<compile_context>
chip_gen: v7x
topology: tpu7x:2x2x1
jax: 0.10.0
libtpu: 0.0.40
codegen_flags: <defaults>
</compile_context>

<pallas_src>
import functools
from collections import namedtuple

import numpy as np
import jax
import jax.numpy as jnp
from jax.experimental import pallas as pl
from jax.experimental.pallas import tpu as pltpu


LayerPlan = namedtuple("LayerPlan", "H W Ho Wo Cin Cout k stride pad relu")


# ----------------------------- weight packing --------------------------------

def _pack_layer(w, b, H, W, stride, pad, relu):
    """Pack Conv2d weights (Cout,Cin,k,k) into a row-Toeplitz matmul operand.

    Activation layout: A[h*N + n, w*Cin + ci] = x[n, ci, h, w].
    M_all[i*W*Cin + w*Cin + ci, wo*Cout + co] = W[co, ci, i, j] with
    j = w - (stride*wo - pad) when 0 <= j < k, else 0.  Column (w) padding is
    therefore handled inside M_all; row (h) padding is handled in-kernel by
    zero-filling out-of-range kernel-row taps.
    """
    w = np.asarray(w, np.float32)   # (Cout, Cin, k, k)
    b = np.asarray(b, np.float32)   # (Cout,)
    Cout, Cin, k, k2 = w.shape
    assert k == k2
    Ho = (H + 2 * pad - k) // stride + 1
    Wo = (W + 2 * pad - k) // stride + 1
    M = np.zeros((k * W * Cin, Wo * Cout), np.float32)
    for i in range(k):
        for wo in range(Wo):
            for j in range(k):
                w_in = stride * wo - pad + j
                if 0 <= w_in < W:
                    r0 = i * W * Cin + w_in * Cin
                    c0 = wo * Cout
                    M[r0:r0 + Cin, c0:c0 + Cout] = w[:, :, i, j].T
    bias_row = np.tile(b, Wo)[None, :]                      # (1, Wo*Cout)
    plan = LayerPlan(H, W, Ho, Wo, Cin, Cout, k, stride, pad, relu)
    return plan, jnp.asarray(M, jnp.bfloat16), jnp.asarray(bias_row, jnp.float32)


def init_encoder(latent_dim, key, H=32, W=32):
    """Mimics nn.Conv2d default init; returns packed params + raw for ref check."""
    cfgs = [
        # (Cin, Cout, k, stride, pad, relu)
        (3, 32, 3, 2, 1, True),
        (32, 64, 3, 2, 1, True),
        (64, 128, 3, 2, 1, True),
        (128, 128, 3, 2, 1, True),
        (128, 128, 3, 2, 1, True),
        (128, 2 * latent_dim, 1, 1, 0, False),
    ]
    plans, mats, biases, raw = [], [], [], []
    h, w = H, W
    for (cin, cout, k, s, p, relu) in cfgs:
        key, kw_, kb_ = jax.random.split(key, 3)
        fan_in = cin * k * k
        scale = 1.0 / np.sqrt(fan_in)
        wgt = jax.random.uniform(kw_, (cout, cin, k, k), jnp.float32, -scale, scale)
        bias = jax.random.uniform(kb_, (cout,), jnp.float32, -scale, scale)
        plan, M, brow = _pack_layer(wgt, bias, h, w, s, p, relu)
        plans.append(plan)
        mats.append(M)
        biases.append(brow)
        raw.append((wgt, bias, s, p))
        h, w = plan.Ho, plan.Wo
    return plans, mats, biases, raw


# ------------------------------ fused kernel ---------------------------------

def _encoder_kernel(plans, batch, x_ref, *refs):
    """Runs all conv layers; activations stay in VMEM.

    refs = [M_1..M_L, bias_1..bias_L, out_ref, gather_scratch, act_1..act_{L-1}]
    """
    n_layers = len(plans)
    mat_refs = refs[0:n_layers]
    bias_refs = refs[n_layers:2 * n_layers]
    out_ref = refs[2 * n_layers]
    g_ref = refs[2 * n_layers + 1]
    act_refs = refs[2 * n_layers + 2:]

    N = batch
    cur = x_ref                                  # bf16, (H*N, W*Cin)
    for li, lp in enumerate(plans):
        WC = lp.W * lp.Cin
        # --- gather kernel-row taps with contiguous static row copies ---
        for i in range(lp.k):
            col0 = i * WC
            for ho in range(lp.Ho):
                h_in = lp.stride * ho - lp.pad + i
                r0 = ho * N
                if 0 <= h_in < lp.H:
                    g_ref[r0:r0 + N, col0:col0 + WC] = cur[h_in * N:(h_in + 1) * N, :]
                else:  # zero-padded image row
                    g_ref[r0:r0 + N, col0:col0 + WC] = jnp.zeros((N, WC), jnp.bfloat16)
        g = g_ref[0:lp.Ho * N, 0:lp.k * WC]                      # bf16
        # --- one MXU matmul per layer, f32 accumulation ---
        acc = jnp.dot(g, mat_refs[li][...], preferred_element_type=jnp.float32)
        acc = acc + bias_refs[li][...]                           # f32 bias
        if lp.relu:
            acc = jnp.maximum(acc, 0.0)
        dst = act_refs[li] if li < n_layers - 1 else out_ref
        dst[...] = acc.astype(dst.dtype)
        cur = dst


def build_forward(plans, batch, latent_dim):
    n_layers = len(plans)
    N = batch
    H0, W0, C0 = plans[0].H, plans[0].W, plans[0].Cin
    out_rows = plans[-1].Ho * N
    out_cols = plans[-1].Wo * plans[-1].Cout

    g_rows = max(lp.Ho * N for lp in plans)
    g_cols = max(lp.k * lp.W * lp.Cin for lp in plans)

    scratch_shapes = [pltpu.VMEM((g_rows, g_cols), jnp.bfloat16)]
    for lp in plans[:-1]:
        scratch_shapes.append(pltpu.VMEM((lp.Ho * N, lp.Wo * lp.Cout), jnp.bfloat16))

    def full_spec(shape):
        return pl.BlockSpec(shape, lambda i: (0, 0))

    kernel = functools.partial(_encoder_kernel, tuple(plans), N)

    @jax.jit
    def fwd(x, mats, biases):
        # NCHW -> A[h*N+n, w*C+c]  (one tiny transpose, done once per forward)
        xr = jnp.transpose(x, (2, 0, 3, 1)).reshape(H0 * N, W0 * C0)
        xr = xr.astype(jnp.bfloat16)
        in_specs = ([full_spec(xr.shape)]
                    + [full_spec(m.shape) for m in mats]
                    + [full_spec(b.shape) for b in biases])
        out = pl.pallas_call(
            kernel,
            out_shape=jax.ShapeDtypeStruct((out_rows, out_cols), jnp.float32),
            grid=(1,),
            in_specs=in_specs,
            out_specs=full_spec((out_rows, out_cols)),
            scratch_shapes=scratch_shapes,
            compiler_params=pltpu.CompilerParams(
                dimension_semantics=("arbitrary",)),
        )(xr, *mats, *biases)
        # out[n, co] = y[n, co, 0, 0] ; torch chunk(2, dim=1)
        mu = out[:, :latent_dim].reshape(N, latent_dim, 1, 1)
        log_sigma = out[:, latent_dim:].reshape(N, latent_dim, 1, 1)
        return mu, log_sigma

    return fwd


# --------------------------- plain-JAX reference -----------------------------

def reference_forward(raw, x):
    """Mirrors the kernel's arithmetic: bf16 weights/activations, f32 math."""
    h = x.astype(jnp.bfloat16).astype(jnp.float32)
    n = len(raw)
    for li, (w, b, s, p) in enumerate(raw):
        wq = w.astype(jnp.bfloat16).astype(jnp.float32)
        h = jax.lax.conv_general_dilated(
            h, wq, window_strides=(s, s), padding=[(p, p), (p, p)],
            dimension_numbers=("NCHW", "OIHW", "NCHW"),
            precision=jax.lax.Precision.HIGHEST)
        h = h + b[None, :, None, None]
        if li < n - 1:
            h = jax.nn.relu(h)
            h = h.astype(jnp.bfloat16).astype(jnp.float32)
    return h[:, :, 0, 0]      # (N, 2*latent_dim)


# ----------------------------------- main -------------------------------------

if __name__ == "__main__":
    latent_dim = 16
    batch = 2
    key = jax.random.PRNGKey(0)
    k_params, k_x = jax.random.split(key)

    plans, mats, biases, raw = init_encoder(latent_dim, k_params, H=32, W=32)
    # Input: NCHW, 32x32 so five stride-2 convs land on 1x1 spatial.
    x = jax.random.normal(k_x, (batch, 3, 32, 32), jnp.float32)

    fwd = build_forward(plans, batch, latent_dim)
    mu, log_sigma = fwd(x, tuple(mats), tuple(biases))
    mu = jax.block_until_ready(mu)
    log_sigma = jax.block_until_ready(log_sigma)

    assert mu.shape == (batch, latent_dim, 1, 1), mu.shape
    assert log_sigma.shape == (batch, latent_dim, 1, 1), log_sigma.shape
    assert bool(jnp.all(jnp.isfinite(mu))) and bool(jnp.all(jnp.isfinite(log_sigma)))

    # Correctness vs. reference that uses the same bf16 rounding points.
    ref = reference_forward(raw, x)                                  # (N, 2L)
    got = jnp.concatenate([mu, log_sigma], axis=1)[:, :, 0, 0]       # (N, 2L)
    err = float(jnp.max(jnp.abs(got - ref)))
    assert err <= 2e-3, f"kernel/reference mismatch: max abs err = {err}"

    print("KERNEL_OK")
</pallas_src>

<mosaic_0001>
module attributes {stable_mosaic.version = 11 : i64} {
  func.func @_encoder_kernel(%arg0: i32, %arg1: memref<64x96xbf16, #tpu.memory_space<vmem>>, %arg2: memref<288x512xbf16, #tpu.memory_space<vmem>>, %arg3: memref<1536x512xbf16, #tpu.memory_space<vmem>>, %arg4: memref<1536x512xbf16, #tpu.memory_space<vmem>>, %arg5: memref<1536x256xbf16, #tpu.memory_space<vmem>>, %arg6: memref<768x128xbf16, #tpu.memory_space<vmem>>, %arg7: memref<128x32xbf16, #tpu.memory_space<vmem>>, %arg8: memref<1x512xf32, #tpu.memory_space<vmem>>, %arg9: memref<1x512xf32, #tpu.memory_space<vmem>>, %arg10: memref<1x512xf32, #tpu.memory_space<vmem>>, %arg11: memref<1x256xf32, #tpu.memory_space<vmem>>, %arg12: memref<1x128xf32, #tpu.memory_space<vmem>>, %arg13: memref<1x32xf32, #tpu.memory_space<vmem>>, %arg14: memref<2x32xf32, #tpu.memory_space<vmem>>, %arg15: memref<32x1536xbf16, #tpu.memory_space<vmem>>, %arg16: memref<32x512xbf16, #tpu.memory_space<vmem>>, %arg17: memref<16x512xbf16, #tpu.memory_space<vmem>>, %arg18: memref<8x512xbf16, #tpu.memory_space<vmem>>, %arg19: memref<4x256xbf16, #tpu.memory_space<vmem>>, %arg20: memref<2x128xbf16, #tpu.memory_space<vmem>>) attributes {dimension_semantics = [#tpu.dimension_semantics<arbitrary>], iteration_bounds = array<i64: 1>, scalar_prefetch = 0 : i64, scratch_operands = 6 : i64, tpu.core_type = #tpu.core_type<tc>, window_params = [{pipeline_mode = #tpu.pipeline_mode<synchronous>, transform_indices = @transform_0, window_bounds = array<i64: 64, 96>}, {pipeline_mode = #tpu.pipeline_mode<synchronous>, transform_indices = @transform_1, window_bounds = array<i64: 288, 512>}, {pipeline_mode = #tpu.pipeline_mode<synchronous>, transform_indices = @transform_2, window_bounds = array<i64: 1536, 512>}, {pipeline_mode = #tpu.pipeline_mode<synchronous>, transform_indices = @transform_3, window_bounds = array<i64: 1536, 512>}, {pipeline_mode = #tpu.pipeline_mode<synchronous>, transform_indices = @transform_4, window_bounds = array<i64: 1536, 256>}, {pipeline_mode = #tpu.pipeline_mode<synchronous>, transform_indices = @transform_5, window_bounds = array<i64: 768, 128>}, {pipeline_mode = #tpu.pipeline_mode<synchronous>, transform_indices = @transform_6, window_bounds = array<i64: 128, 32>}, {pipeline_mode = #tpu.pipeline_mode<synchronous>, transform_indices = @transform_7, window_bounds = array<i64: 1, 512>}, {pipeline_mode = #tpu.pipeline_mode<synchronous>, transform_indices = @transform_8, window_bounds = array<i64: 1, 512>}, {pipeline_mode = #tpu.pipeline_mode<synchronous>, transform_indices = @transform_9, window_bounds = array<i64: 1, 512>}, {pipeline_mode = #tpu.pipeline_mode<synchronous>, transform_indices = @transform_10, window_bounds = array<i64: 1, 256>}, {pipeline_mode = #tpu.pipeline_mode<synchronous>, transform_indices = @transform_11, window_bounds = array<i64: 1, 128>}, {pipeline_mode = #tpu.pipeline_mode<synchronous>, transform_indices = @transform_12, window_bounds = array<i64: 1, 32>}, {pipeline_mode = #tpu.pipeline_mode<synchronous>, transform_indices = @transform_13, window_bounds = array<i64: 2, 32>}]} {
    %cst = arith.constant 0.000000e+00 : bf16
    %0 = vector.broadcast %cst : bf16 to vector<2x96xbf16>
    %c0 = arith.constant 0 : index
    %c0_0 = arith.constant 0 : index
    %1 = vector.load %arg15[%c0, %c0_0] : memref<32x1536xbf16, #tpu.memory_space<vmem>>, vector<2x96xbf16>
    tpu.vector_store %arg15[%c0, %c0_0], %0 {strides = array<i32>} : memref<32x1536xbf16, #tpu.memory_space<vmem>>, vector<2x96xbf16>,
    %c2 = arith.constant 2 : index
    %c0_1 = arith.constant 0 : index
    %2 = vector.load %arg1[%c2, %c0_1] : memref<64x96xbf16, #tpu.memory_space<vmem>>, vector<2x96xbf16>
    %c2_2 = arith.constant 2 : index
    %c0_3 = arith.constant 0 : index
    %3 = vector.load %arg15[%c2_2, %c0_3] : memref<32x1536xbf16, #tpu.memory_space<vmem>>, vector<2x96xbf16>
    tpu.vector_store %arg15[%c2_2, %c0_3], %2 {strides = array<i32>} : memref<32x1536xbf16, #tpu.memory_space<vmem>>, vector<2x96xbf16>,
    %c6 = arith.constant 6 : index
    %c0_4 = arith.constant 0 : index
    %4 = vector.load %arg1[%c6, %c0_4] : memref<64x96xbf16, #tpu.memory_space<vmem>>, vector<2x96xbf16>
    %c4 = arith.constant 4 : index
    %c0_5 = arith.constant 0 : index
    %5 = vector.load %arg15[%c4, %c0_5] : memref<32x1536xbf16, #tpu.memory_space<vmem>>, vector<2x96xbf16>
    tpu.vector_store %arg15[%c4, %c0_5], %4 {strides = array<i32>} : memref<32x1536xbf16, #tpu.memory_space<vmem>>, vector<2x96xbf16>,
    %c10 = arith.constant 10 : index
    %c0_6 = arith.constant 0 : index
    %6 = vector.load %arg1[%c10, %c0_6] : memref<64x96xbf16, #tpu.memory_space<vmem>>, vector<2x96xbf16>
    %c6_7 = arith.constant 6 : index
    %c0_8 = arith.constant 0 : index
    %7 = vector.load %arg15[%c6_7, %c0_8] : memref<32x1536xbf16, #tpu.memory_space<vmem>>, vector<2x96xbf16>
    tpu.vector_store %arg15[%c6_7, %c0_8], %6 {strides = array<i32>} : memref<32x1536xbf16, #tpu.memory_space<vmem>>, vector<2x96xbf16>,
    %c14 = arith.constant 14 : index
    %c0_9 = arith.constant 0 : index
    %8 = vector.load %arg1[%c14, %c0_9] : memref<64x96xbf16, #tpu.memory_space<vmem>>, vector<2x96xbf16>
    %c8 = arith.constant 8 : index
    %c0_10 = arith.constant 0 : index
    %9 = vector.load %arg15[%c8, %c0_10] : memref<32x1536xbf16, #tpu.memory_space<vmem>>, vector<2x96xbf16>
    tpu.vector_store %arg15[%c8, %c0_10], %8 {strides = array<i32>} : memref<32x1536xbf16, #tpu.memory_space<vmem>>, vector<2x96xbf16>,
    %c18 = arith.constant 18 : index
    %c0_11 = arith.constant 0 : index
    %10 = vector.load %arg1[%c18, %c0_11] : memref<64x96xbf16, #tpu.memory_space<vmem>>, vector<2x96xbf16>
    %c10_12 = arith.constant 10 : index
    %c0_13 = arith.constant 0 : index
    %11 = vector.load %arg15[%c10_12, %c0_13] : memref<32x1536xbf16, #tpu.memory_space<vmem>>, vector<2x96xbf16>
    tpu.vector_store %arg15[%c10_12, %c0_13], %10 {strides = array<i32>} : memref<32x1536xbf16, #tpu.memory_space<vmem>>, vector<2x96xbf16>,
    %c22 = arith.constant 22 : index
    %c0_14 = arith.constant 0 : index
    %12 = vector.load %arg1[%c22, %c0_14] : memref<64x96xbf16, #tpu.memory_space<vmem>>, vector<2x96xbf16>
    %c12 = arith.constant 12 : index
    %c0_15 = arith.constant 0 : index
    %13 = vector.load %arg15[%c12, %c0_15] : memref<32x1536xbf16, #tpu.memory_space<vmem>>, vector<2x96xbf16>
    tpu.vector_store %arg15[%c12, %c0_15], %12 {strides = array<i32>} : memref<32x1536xbf16, #tpu.memory_space<vmem>>, vector<2x96xbf16>,
    %c26 = arith.constant 26 : index
    %c0_16 = arith.constant 0 : index
    %14 = vector.load %arg1[%c26, %c0_16] : memref<64x96xbf16, #tpu.memory_space<vmem>>, vector<2x96xbf16>
    %c14_17 = arith.constant 14 : index
    %c0_18 = arith.constant 0 : index
    %15 = vector.load %arg15[%c14_17, %c0_18] : memref<32x1536xbf16, #tpu.memory_space<vmem>>, vector<2x96xbf16>
    tpu.vector_store %arg15[%c14_17, %c0_18], %14 {strides = array<i32>} : memref<32x1536xbf16, #tpu.memory_space<vmem>>, vector<2x96xbf16>,
    %c30 = arith.constant 30 : index
    %c0_19 = arith.constant 0 : index
    %16 = vector.load %arg1[%c30, %c0_19] : memref<64x96xbf16, #tpu.memory_space<vmem>>, vector<2x96xbf16>
    %c16 = arith.constant 16 : index
    %c0_20 = arith.constant 0 : index
    %17 = vector.load %arg15[%c16, %c0_20] : memref<32x1536xbf16, #tpu.memory_space<vmem>>, vector<2x96xbf16>
    tpu.vector_store %arg15[%c16, %c0_20], %16 {strides = array<i32>} : memref<32x1536xbf16, #tpu.memory_space<vmem>>, vector<2x96xbf16>,
    %c34 = arith.constant 34 : index
    %c0_21 = arith.constant 0 : index
    %18 = vector.load %arg1[%c34, %c0_21] : memref<64x96xbf16, #tpu.memory_space<vmem>>, vector<2x96xbf16>
    %c18_22 = arith.constant 18 : index
    %c0_23 = arith.constant 0 : index
    %19 = vector.load %arg15[%c18_22, %c0_23] : memref<32x1536xbf16, #tpu.memory_space<vmem>>, vector<2x96xbf16>
    tpu.vector_store %arg15[%c18_22, %c0_23], %18 {strides = array<i32>} : memref<32x1536xbf16, #tpu.memory_space<vmem>>, vector<2x96xbf16>,
    %c38 = arith.constant 38 : index
    %c0_24 = arith.constant 0 : index
    %20 = vector.load %arg1[%c38, %c0_24] : memref<64x96xbf16, #tpu.memory_space<vmem>>, vector<2x96xbf16>
    %c20 = arith.constant 20 : index
    %c0_25 = arith.constant 0 : index
    %21 = vector.load %arg15[%c20, %c0_25] : memref<32x1536xbf16, #tpu.memory_space<vmem>>, vector<2x96xbf16>
    tpu.vector_store %arg15[%c20, %c0_25], %20 {strides = array<i32>} : memref<32x1536xbf16, #tpu.memory_space<vmem>>, vector<2x96xbf16>,
    %c42 = arith.constant 42 : index
    %c0_26 = arith.constant 0 : index
    %22 = vector.load %arg1[%c42, %c0_26] : memref<64x96xbf16, #tpu.memory_space<vmem>>, vector<2x96xbf16>
    %c22_27 = arith.constant 22 : index
    %c0_28 = arith.constant 0 : index
    %23 = vector.load %arg15[%c22_27, %c0_28] : memref<32x1536xbf16, #tpu.memory_space<vmem>>, vector<2x96xbf16>
    tpu.vector_store %arg15[%c22_27, %c0_28], %22 {strides = array<i32>} : memref<32x1536xbf16, #tpu.memory_space<vmem>>, vector<2x96xbf16>,
    %c46 = arith.constant 46 : index
    %c0_29 = arith.constant 0 : index
    %24 = vector.load %arg1[%c46, %c0_29] : memref<64x96xbf16, #tpu.memory_space<vmem>>, vector<2x96xbf16>
    %c24 = arith.constant 24 : index
    %c0_30 = arith.constant 0 : index
    %25 = vector.load %arg15[%c24, %c0_30] : memref<32x1536xbf16, #tpu.memory_space<vmem>>, vector<2x96xbf16>
    tpu.vector_store %arg15[%c24, %c0_30], %24 {strides = array<i32>} : memref<32x1536xbf16, #tpu.memory_space<vmem>>, vector<2x96xbf16>,
    %c50 = arith.constant 50 : index
    %c0_31 = arith.constant 0 : index
    %26 = vector.load %arg1[%c50, %c0_31] : memref<64x96xbf16, #tpu.memory_space<vmem>>, vector<2x96xbf16>
    %c26_32 = arith.constant 26 : index
    %c0_33 = arith.constant 0 : index
    %27 = vector.load %arg15[%c26_32, %c0_33] : memref<32x1536xbf16, #tpu.memory_space<vmem>>, vector<2x96xbf16>
    tpu.vector_store %arg15[%c26_32, %c0_33], %26 {strides = array<i32>} : memref<32x1536xbf16, #tpu.memory_space<vmem>>, vector<2x96xbf16>,
    %c54 = arith.constant 54 : index
    %c0_34 = arith.constant 0 : index
    %28 = vector.load %arg1[%c54, %c0_34] : memref<64x96xbf16, #tpu.memory_space<vmem>>, vector<2x96xbf16>
    %c28 = arith.constant 28 : index
    %c0_35 = arith.constant 0 : index
    %29 = vector.load %arg15[%c28, %c0_35] : memref<32x1536xbf16, #tpu.memory_space<vmem>>, vector<2x96xbf16>
    tpu.vector_store %arg15[%c28, %c0_35], %28 {strides = array<i32>} : memref<32x1536xbf16, #tpu.memory_space<vmem>>, vector<2x96xbf16>,
    %c58 = arith.constant 58 : index
    %c0_36 = arith.constant 0 : index
    %30 = vector.load %arg1[%c58, %c0_36] : memref<64x96xbf16, #tpu.memory_space<vmem>>, vector<2x96xbf16>
    %c30_37 = arith.constant 30 : index
    %c0_38 = arith.constant 0 : index
    %31 = vector.load %arg15[%c30_37, %c0_38] : memref<32x1536xbf16, #tpu.memory_space<vmem>>, vector<2x96xbf16>
    tpu.vector_store %arg15[%c30_37, %c0_38], %30 {strides = array<i32>} : memref<32x1536xbf16, #tpu.memory_space<vmem>>, vector<2x96xbf16>,
    %c0_39 = arith.constant 0 : index
    %c0_40 = arith.constant 0 : index
    %32 = vector.load %arg1[%c0_39, %c0_40] : memref<64x96xbf16, #tpu.memory_space<vmem>>, vector<2x96xbf16>
    %c0_41 = arith.constant 0 : index
    %c96 = arith.constant 96 : index
    %33 = vector.load %arg15[%c0_41, %c96] : memref<32x1536xbf16, #tpu.memory_space<vmem>>, vector<2x96xbf16>
    tpu.vector_store %arg15[%c0_41, %c96], %32 {strides = array<i32>} : memref<32x1536xbf16, #tpu.memory_space<vmem>>, vector<2x96xbf16>,
    %c4_42 = arith.constant 4 : index
    %c0_43 = arith.constant 0 : index
    %34 = vector.load %arg1[%c4_42, %c0_43] : memref<64x96xbf16, #tpu.memory_space<vmem>>, vector<2x96xbf16>
    %c2_44 = arith.constant 2 : index
    %c96_45 = arith.constant 96 : index
    %35 = vector.load %arg15[%c2_44, %c96_45] : memref<32x1536xbf16, #tpu.memory_space<vmem>>, vector<2x96xbf16>
    tpu.vector_store %arg15[%c2_44, %c96_45], %34 {strides = array<i32>} : memref<32x1536xbf16, #tpu.memory_space<vmem>>, vector<2x96xbf16>,
    %c8_46 = arith.constant 8 : index
    %c0_47 = arith.constant 0 : index
    %36 = vector.load %arg1[%c8_46, %c0_47] : memref<64x96xbf16, #tpu.memory_space<vmem>>, vector<2x96xbf16>
    %c4_48 = arith.constant 4 : index
    %c96_49 = arith.constant 96 : index
    %37 = vector.load %arg15[%c4_48, %c96_49] : memref<32x1536xbf16, #tpu.memory_space<vmem>>, vector<2x96xbf16>
    tpu.vector_store %arg15[%c4_48, %c96_49], %36 {strides = array<i32>} : memref<32x1536xbf16, #tpu.memory_space<vmem>>, vector<2x96xbf16>,
    %c12_50 = arith.constant 12 : index
    %c0_51 = arith.constant 0 : index
    %38 = vector.load %arg1[%c12_50, %c0_51] : memref<64x96xbf16, #tpu.memory_space<vmem>>, vector<2x96xbf16>
    %c6_52 = arith.constant 6 : index
    %c96_53 = arith.constant 96 : index
    %39 = vector.load %arg15[%c6_52, %c96_53] : memref<32x1536xbf16, #tpu.memory_space<vmem>>, vector<2x96xbf16>
    tpu.vector_store %arg15[%c6_52, %c96_53], %38 {strides = array<i32>} : memref<32x1536xbf16, #tpu.memory_space<vmem>>, vector<2x96xbf16>,
    %c16_54 = arith.constant 16 : index
    %c0_55 = arith.constant 0 : index
    %40 = vector.load %arg1[%c16_54, %c0_55] : memref<64x96xbf16, #tpu.memory_space<vmem>>, vector<2x96xbf16>
    %c8_56 = arith.constant 8 : index
    %c96_57 = arith.constant 96 : index
    %41 = vector.load %arg15[%c8_56, %c96_57] : memref<32x1536xbf16, #tpu.memory_space<vmem>>, vector<2x96xbf16>
    tpu.vector_store %arg15[%c8_56, %c96_57], %40 {strides = array<i32>} : memref<32x1536xbf16, #tpu.memory_space<vmem>>, vector<2x96xbf16>,
    %c20_58 = arith.constant 20 : index
    %c0_59 = arith.constant 0 : index
    %42 = vector.load %arg1[%c20_58, %c0_59] : memref<64x96xbf16, #tpu.memory_space<vmem>>, vector<2x96xbf16>
    %c10_60 = arith.constant 10 : index
    %c96_61 = arith.constant 96 : index
    %43 = vector.load %arg15[%c10_60, %c96_61] : memref<32x1536xbf16, #tpu.memory_space<vmem>>, vector<2x96xbf16>
    tpu.vector_store %arg15[%c10_60, %c96_61], %42 {strides = array<i32>} : memref<32x1536xbf16, #tpu.memory_space<vmem>>, vector<2x96xbf16>,
    %c24_62 = arith.constant 24 : index
    %c0_63 = arith.constant 0 : index
    %44 = vector.load %arg1[%c24_62, %c0_63] : memref<64x96xbf16, #tpu.memory_space<vmem>>, vector<2x96xbf16>
    %c12_64 = arith.constant 12 : index
    %c96_65 = arith.constant 96 : index
    %45 = vector.load %arg15[%c12_64, %c96_65] : memref<32x1536xbf16, #tpu.memory_space<vmem>>, vector<2x96xbf16>
    tpu.vector_store %arg15[%c12_64, %c96_65], %44 {strides = array<i32>} : memref<32x1536xbf16, #tpu.memory_space<vmem>>, vector<2x96xbf16>,
    %c28_66 = arith.constant 28 : index
    %c0_67 = arith.constant 0 : index
    %46 = vector.load %arg1[%c28_66, %c0_67] : memref<64x96xbf16, #tpu.memory_space<vmem>>, vector<2x96xbf16>
    %c14_68 = arith.constant 14 : index
    %c96_69 = arith.constant 96 : index
    %47 = vector.load %arg15[%c14_68, %c96_69] : memref<32x1536xbf16, #tpu.memory_space<vmem>>, vector<2x96xbf16>
    tpu.vector_store %arg15[%c14_68, %c96_69], %46 {strides = array<i32>} : memref<32x1536xbf16, #tpu.memory_space<vmem>>, vector<2x96xbf16>,
    %c32 = arith.constant 32 : index
    %c0_70 = arith.constant 0 : index
    %48 = vector.load %arg1[%c32, %c0_70] : memref<64x96xbf16, #tpu.memory_space<vmem>>, vector<2x96xbf16>
    %c16_71 = arith.constant 16 : index
    %c96_72 = arith.constant 96 : index
    %49 = vector.load %arg15[%c16_71, %c96_72] : memref<32x1536xbf16, #tpu.memory_space<vmem>>, vector<2x96xbf16>
    tpu.vector_store %arg15[%c16_71, %c96_72], %48 {strides = array<i32>} : memref<32x1536xbf16, #tpu.memory_space<vmem>>, vector<2x96xbf16>,
    %c36 = arith.constant 36 : index
    %c0_73 = arith.constant 0 : index
    %50 = vector.load %arg1[%c36, %c0_73] : memref<64x96xbf16, #tpu.memory_space<vmem>>, vector<2x96xbf16>
    %c18_74 = arith.constant 18 : index
    %c96_75 = arith.constant 96 : index
    %51 = vector.load %arg15[%c18_74, %c96_75] : memref<32x1536xbf16, #tpu.memory_space<vmem>>, vector<2x96xbf16>
    tpu.vector_store %arg15[%c18_74, %c96_75], %50 {strides = array<i32>} : memref<32x1536xbf16, #tpu.memory_space<vmem>>, vector<2x96xbf16>,
    %c40 = arith.constant 40 : index
    %c0_76 = arith.constant 0 : index
    %52 = vector.load %arg1[%c40, %c0_76] : memref<64x96xbf16, #tpu.memory_space<vmem>>, vector<2x96xbf16>
    %c20_77 = arith.constant 20 : index
    %c96_78 = arith.constant 96 : index
    %53 = vector.load %arg15[%c20_77, %c96_78] : memref<32x1536xbf16, #tpu.memory_space<vmem>>, vector<2x96xbf16>
    tpu.vector_store %arg15[%c20_77, %c96_78], %52 {strides = array<i32>} : memref<32x1536xbf16, #tpu.memory_space<vmem>>, vector<2x96xbf16>,
    %c44 = arith.constant 44 : index
    %c0_79 = arith.constant 0 : index
    %54 = vector.load %arg1[%c44, %c0_79] : memref<64x96xbf16, #tpu.memory_space<vmem>>, vector<2x96xbf16>
    %c22_80 = arith.constant 22 : index
    %c96_81 = arith.constant 96 : index
    %55 = vector.load %arg15[%c22_80, %c96_81] : memref<32x1536xbf16, #tpu.memory_space<vmem>>, vector<2x96xbf16>
    tpu.vector_store %arg15[%c22_80, %c96_81], %54 {strides = array<i32>} : memref<32x1536xbf16, #tpu.memory_space<vmem>>, vector<2x96xbf16>,
    %c48 = arith.constant 48 : index
    %c0_82 = arith.constant 0 : index
    %56 = vector.load %arg1[%c48, %c0_82] : memref<64x96xbf16, #tpu.memory_space<vmem>>, vector<2x96xbf16>
    %c24_83 = arith.constant 24 : index
    %c96_84 = arith.constant 96 : index
    %57 = vector.load %arg15[%c24_83, %c96_84] : memref<32x1536xbf16, #tpu.memory_space<vmem>>, vector<2x96xbf16>
    tpu.vector_store %arg15[%c24_83, %c96_84], %56 {strides = array<i32>} : memref<32x1536xbf16, #tpu.memory_space<vmem>>, vector<2x96xbf16>,
    %c52 = arith.constant 52 : index
    %c0_85 = arith.constant 0 : index
    %58 = vector.load %arg1[%c52, %c0_85] : memref<64x96xbf16, #tpu.memory_space<vmem>>, vector<2x96xbf16>
    %c26_86 = arith.constant 26 : index
    %c96_87 = arith.constant 96 : index
    %59 = vector.load %arg15[%c26_86, %c96_87] : memref<32x1536xbf16, #tpu.memory_space<vmem>>, vector<2x96xbf16>
    tpu.vector_store %arg15[%c26_86, %c96_87], %58 {strides = array<i32>} : memref<32x1536xbf16, #tpu.memory_space<vmem>>, vector<2x96xbf16>,
    %c56 = arith.constant 56 : index
    %c0_88 = arith.constant 0 : index
    %60 = vector.load %arg1[%c56, %c0_88] : memref<64x96xbf16, #tpu.memory_space<vmem>>, vector<2x96xbf16>
    %c28_89 = arith.constant 28 : index
    %c96_90 = arith.constant 96 : index
    %61 = vector.load %arg15[%c28_89, %c96_90] : memref<32x1536xbf16, #tpu.memory_space<vmem>>, vector<2x96xbf16>
    tpu.vector_store %arg15[%c28_89, %c96_90], %60 {strides = array<i32>} : memref<32x1536xbf16, #tpu.memory_space<vmem>>, vector<2x96xbf16>,
    %c60 = arith.constant 60 : index
    %c0_91 = arith.constant 0 : index
    %62 = vector.load %arg1[%c60, %c0_91] : memref<64x96xbf16, #tpu.memory_space<vmem>>, vector<2x96xbf16>
    %c30_92 = arith.constant 30 : index
    %c96_93 = arith.constant 96 : index
    %63 = vector.load %arg15[%c30_92, %c96_93] : memref<32x1536xbf16, #tpu.memory_space<vmem>>, vector<2x96xbf16>
    tpu.vector_store %arg15[%c30_92, %c96_93], %62 {strides = array<i32>} : memref<32x1536xbf16, #tpu.memory_space<vmem>>, vector<2x96xbf16>,
    %c2_94 = arith.constant 2 : index
    %c0_95 = arith.constant 0 : index
    %64 = vector.load %arg1[%c2_94, %c0_95] : memref<64x96xbf16, #tpu.memory_space<vmem>>, vector<2x96xbf16>
    %c0_96 = arith.constant 0 : index
    %c192 = arith.constant 192 : index
    %65 = vector.load %arg15[%c0_96, %c192] : memref<32x1536xbf16, #tpu.memory_space<vmem>>, vector<2x96xbf16>
    tpu.vector_store %arg15[%c0_96, %c192], %64 {strides = array<i32>} : memref<32x1536xbf16, #tpu.memory_space<vmem>>, vector<2x96xbf16>,
    %c6_97 = arith.constant 6 : index
    %c0_98 = arith.constant 0 : index
    %66 = vector.load %arg1[%c6_97, %c0_98] : memref<64x96xbf16, #tpu.memory_space<vmem>>, vector<2x96xbf16>
    %c2_99 = arith.constant 2 : index
    %c192_100 = arith.constant 192 : index
    %67 = vector.load %arg15[%c2_99, %c192_100] : memref<32x1536xbf16, #tpu.memory_space<vmem>>, vector<2x96xbf16>
    tpu.vector_store %arg15[%c2_99, %c192_100], %66 {strides = array<i32>} : memref<32x1536xbf16, #tpu.memory_space<vmem>>, vector<2x96xbf16>,
    %c10_101 = arith.constant 10 : index
    %c0_102 = arith.constant 0 : index
    %68 = vector.load %arg1[%c10_101, %c0_102] : memref<64x96xbf16, #tpu.memory_space<vmem>>, vector<2x96xbf16>
    %c4_103 = arith.constant 4 : index
    %c192_104 = arith.constant 192 : index
    %69 = vector.load %arg15[%c4_103, %c192_104] : memref<32x1536xbf16, #tpu.memory_space<vmem>>, vector<2x96xbf16>
    tpu.vector_store %arg15[%c4_103, %c192_104], %68 {strides = array<i32>} : memref<32x1536xbf16, #tpu.memory_space<vmem>>, vector<2x96xbf16>,
    %c14_105 = arith.constant 14 : index
    %c0_106 = arith.constant 0 : index
    %70 = vector.load %arg1[%c14_105, %c0_106] : memref<64x96xbf16, #tpu.memory_space<vmem>>, vector<2x96xbf16>
    %c6_107 = arith.constant 6 : index
    %c192_108 = arith.constant 192 : index
    %71 = vector.load %arg15[%c6_107, %c192_108] : memref<32x1536xbf16, #tpu.memory_space<vmem>>, vector<2x96xbf16>
    tpu.vector_store %arg15[%c6_107, %c192_108], %70 {strides = array<i32>} : memref<32x1536xbf16, #tpu.memory_space<vmem>>, vector<2x96xbf16>,
    %c18_109 = arith.constant 18 : index
    %c0_110 = arith.constant 0 : index
    %72 = vector.load %arg1[%c18_109, %c0_110] : memref<64x96xbf16, #tpu.memory_space<vmem>>, vector<2x96xbf16>
    %c8_111 = arith.constant 8 : index
    %c192_112 = arith.constant 192 : index
    %73 = vector.load %arg15[%c8_111, %c192_112] : memref<32x1536xbf16, #tpu.memory_space<vmem>>, vector<2x96xbf16>
    tpu.vector_store %arg15[%c8_111, %c192_112], %72 {strides = array<i32>} : memref<32x1536xbf16, #tpu.memory_space<vmem>>, vector<2x96xbf16>,
    %c22_113 = arith.constant 22 : index
    %c0_114 = arith.constant 0 : index
    %74 = vector.load %arg1[%c22_113, %c0_114] : memref<64x96xbf16, #tpu.memory_space<vmem>>, vector<2x96xbf16>
    %c10_115 = arith.constant 10 : index
    %c192_116 = arith.constant 192 : index
    %75 = vector.load %arg15[%c10_115, %c192_116] : memref<32x1536xbf16, #tpu.memory_space<vmem>>, vector<2x96xbf16>
    tpu.vector_store %arg15[%c10_115, %c192_116], %74 {strides = array<i32>} : memref<32x1536xbf16, #tpu.memory_space<vmem>>, vector<2x96xbf16>,
    %c26_117 = arith.constant 26 : index
    %c0_118 = arith.constant 0 : index
    %76 = vector.load %arg1[%c26_117, %c0_118] : memref<64x96xbf16, #tpu.memory_space<vmem>>, vector<2x96xbf16>
    %c12_119 = arith.constant 12 : index
    %c192_120 = arith.constant 192 : index
    %77 = vector.load %arg15[%c12_119, %c192_120] : memref<32x1536xbf16, #tpu.memory_space<vmem>>, vector<2x96xbf16>
    tpu.vector_store %arg15[%c12_119, %c192_120], %76 {strides = array<i32>} : memref<32x1536xbf16, #tpu.memory_space<vmem>>, vector<2x96xbf16>,
    %c30_121 = arith.constant 30 : index
    %c0_122 = arith.constant 0 : index
    %78 = vector.load %arg1[%c30_121, %c0_122] : memref<64x96xbf16, #tpu.memory_space<vmem>>, vector<2x96xbf16>
    %c14_123 = arith.constant 14 : index
    %c192_124 = arith.constant 192 : index
    %79 = vector.load %arg15[%c14_123, %c192_124] : memref<32x1536xbf16, #tpu.memory_space<vmem>>, vector<2x96xbf16>
    tpu.vector_store %arg15[%c14_123, %c192_124], %78 {strides = array<i32>} : memref<32x1536xbf16, #tpu.memory_space<vmem>>, vector<2x96xbf16>,
    %c34_125 = arith.constant 34 : index
    %c0_126 = arith.constant 0 : index
    %80 = vector.load %arg1[%c34_125, %c0_126] : memref<64x96xbf16, #tpu.memory_space<vmem>>, vector<2x96xbf16>
    %c16_127 = arith.constant 16 : index
    %c192_128 = arith.constant 192 : index
    %81 = vector.load %arg15[%c16_127, %c192_128] : memref<32x1536xbf16, #tpu.memory_space<vmem>>, vector<2x96xbf16>
    tpu.vector_store %arg15[%c16_127, %c192_128], %80 {strides = array<i32>} : memref<32x1536xbf16, #tpu.memory_space<vmem>>, vector<2x96xbf16>,
    %c38_129 = arith.constant 38 : index
    %c0_130 = arith.constant 0 : index
    %82 = vector.load %arg1[%c38_129, %c0_130] : memref<64x96xbf16, #tpu.memory_space<vmem>>, vector<2x96xbf16>
    %c18_131 = arith.constant 18 : index
    %c192_132 = arith.constant 192 : index
    %83 = vector.load %arg15[%c18_131, %c192_132] : memref<32x1536xbf16, #tpu.memory_space<vmem>>, vector<2x96xbf16>
    tpu.vector_store %arg15[%c18_131, %c192_132], %82 {strides = array<i32>} : memref<32x1536xbf16, #tpu.memory_space<vmem>>, vector<2x96xbf16>,
    %c42_133 = arith.constant 42 : index
    %c0_134 = arith.constant 0 : index
    %84 = vector.load %arg1[%c42_133, %c0_134] : memref<64x96xbf16, #tpu.memory_space<vmem>>, vector<2x96xbf16>
    %c20_135 = arith.constant 20 : index
    %c192_136 = arith.constant 192 : index
    %85 = vector.load %arg15[%c20_135, %c192_136] : memref<32x1536xbf16, #tpu.memory_space<vmem>>, vector<2x96xbf16>
    tpu.vector_store %arg15[%c20_135, %c192_136], %84 {strides = array<i32>} : memref<32x1536xbf16, #tpu.memory_space<vmem>>, vector<2x96xbf16>,
    %c46_137 = arith.constant 46 : index
    %c0_138 = arith.constant 0 : index
    %86 = vector.load %arg1[%c46_137, %c0_138] : memref<64x96xbf16, #tpu.memory_space<vmem>>, vector<2x96xbf16>
    %c22_139 = arith.constant 22 : index
    %c192_140 = arith.constant 192 : index
    %87 = vector.load %arg15[%c22_139, %c192_140] : memref<32x1536xbf16, #tpu.memory_space<vmem>>, vector<2x96xbf16>
    tpu.vector_store %arg15[%c22_139, %c192_140], %86 {strides = array<i32>} : memref<32x1536xbf16, #tpu.memory_space<vmem>>, vector<2x96xbf16>,
    %c50_141 = arith.constant 50 : index
    %c0_142 = arith.constant 0 : index
    %88 = vector.load %arg1[%c50_141, %c0_142] : memref<64x96xbf16, #tpu.memory_space<vmem>>, vector<2x96xbf16>
    %c24_143 = arith.constant 24 : index
    %c192_144 = arith.constant 192 : index
    %89 = vector.load %arg15[%c24_143, %c192_144] : memref<32x1536xbf16, #tpu.memory_space<vmem>>, vector<2x96xbf16>
    tpu.vector_store %arg15[%c24_143, %c192_144], %88 {strides = array<i32>} : memref<32x1536xbf16, #tpu.memory_space<vmem>>, vector<2x96xbf16>,
    %c54_145 = arith.constant 54 : index
    %c0_146 = arith.constant 0 : index
    %90 = vector.load %arg1[%c54_145, %c0_146] : memref<64x96xbf16, #tpu.memory_space<vmem>>, vector<2x96xbf16>
    %c26_147 = arith.constant 26 : index
    %c192_148 = arith.constant 192 : index
    %91 = vector.load %arg15[%c26_147, %c192_148] : memref<32x1536xbf16, #tpu.memory_space<vmem>>, vector<2x96xbf16>
    tpu.vector_store %arg15[%c26_147, %c192_148], %90 {strides = array<i32>} : memref<32x1536xbf16, #tpu.memory_space<vmem>>, vector<2x96xbf16>,
    %c58_149 = arith.constant 58 : index
    %c0_150 = arith.constant 0 : index
    %92 = vector.load %arg1[%c58_149, %c0_150] : memref<64x96xbf16, #tpu.memory_space<vmem>>, vector<2x96xbf16>
    %c28_151 = arith.constant 28 : index
    %c192_152 = arith.constant 192 : index
    %93 = vector.load %arg15[%c28_151, %c192_152] : memref<32x1536xbf16, #tpu.memory_space<vmem>>, vector<2x96xbf16>
    tpu.vector_store %arg15[%c28_151, %c192_152], %92 {strides = array<i32>} : memref<32x1536xbf16, #tpu.memory_space<vmem>>, vector<2x96xbf16>,
    %c62 = arith.constant 62 : index
    %c0_153 = arith.constant 0 : index
    %94 = vector.load %arg1[%c62, %c0_153] : memref<64x96xbf16, #tpu.memory_space<vmem>>, vector<2x96xbf16>
    %c30_154 = arith.constant 30 : index
    %c192_155 = arith.constant 192 : index
    %95 = vector.load %arg15[%c30_154, %c192_155] : memref<32x1536xbf16, #tpu.memory_space<vmem>>, vector<2x96xbf16>
    tpu.vector_store %arg15[%c30_154, %c192_155], %94 {strides = array<i32>} : memref<32x1536xbf16, #tpu.memory_space<vmem>>, vector<2x96xbf16>,
    %c0_156 = arith.constant 0 : index
    %c0_157 = arith.constant 0 : index
    %96 = vector.load %arg15[%c0_156, %c0_157] : memref<32x1536xbf16, #tpu.memory_space<vmem>>, vector<32x288xbf16>
    %c0_158 = arith.constant 0 : index
    %c0_159 = arith.constant 0 : index
    %97 = vector.load %arg2[%c0_158, %c0_159] : memref<288x512xbf16, #tpu.memory_space<vmem>>, vector<288x512xbf16>
    %cst_160 = arith.constant dense<0.000000e+00> : vector<32x512xf32>
    %98 = tpu.matmul %96, %97, %cst_160 {dimension_numbers = #tpu.dot_dimension_numbers<[1], [0], [0], [1], [0, 0, 1, 1], [], []>} : vector<32x288xbf16>, vector<288x512xbf16>, vector<32x512xf32> -> vector<32x512xf32>
    %c0_161 = arith.constant 0 : index
    %c0_162 = arith.constant 0 : index
    %99 = vector.load %arg8[%c0_161, %c0_162] : memref<1x512xf32, #tpu.memory_space<vmem>>, vector<1x512xf32>
    %100 = vector.broadcast %99 : vector<1x512xf32> to vector<32x512xf32>
    %101 = arith.addf %98, %100 : vector<32x512xf32>
    %cst_163 = arith.constant 0.000000e+00 : f32
    %102 = vector.broadcast %cst_163 : f32 to vector<32x512xf32>
    %103 = arith.maximumf %101, %102 : vector<32x512xf32>
    %104 = arith.truncf %103 : vector<32x512xf32> to vector<32x512xbf16>
    %c0_164 = arith.constant 0 : index
    %c0_165 = arith.constant 0 : index
    %105 = vector.load %arg16[%c0_164, %c0_165] : memref<32x512xbf16, #tpu.memory_space<vmem>>, vector<32x512xbf16>
    tpu.vector_store %arg16[%c0_164, %c0_165], %104 {strides = array<i32>} : memref<32x512xbf16, #tpu.memory_space<vmem>>, vector<32x512xbf16>,
    %cst_166 = arith.constant 0.000000e+00 : bf16
    %106 = vector.broadcast %cst_166 : bf16 to vector<2x512xbf16>
    %c0_167 = arith.constant 0 : index
    %c0_168 = arith.constant 0 : index
    %107 = vector.load %arg15[%c0_167, %c0_168] : memref<32x1536xbf16, #tpu.memory_space<vmem>>, vector<2x512xbf16>
    tpu.vector_store %arg15[%c0_167, %c0_168], %106 {strides = array<i32>} : memref<32x1536xbf16, #tpu.memory_space<vmem>>, vector<2x512xbf16>,
    %c2_169 = arith.constant 2 : index
    %c0_170 = arith.constant 0 : index
    %108 = vector.load %arg16[%c2_169, %c0_170] : memref<32x512xbf16, #tpu.memory_space<vmem>>, vector<2x512xbf16>
    %c2_171 = arith.constant 2 : index
    %c0_172 = arith.constant 0 : index
    %109 = vector.load %arg15[%c2_171, %c0_172] : memref<32x1536xbf16, #tpu.memory_space<vmem>>, vector<2x512xbf16>
    tpu.vector_store %arg15[%c2_171, %c0_172], %108 {strides = array<i32>} : memref<32x1536xbf16, #tpu.memory_space<vmem>>, vector<2x512xbf16>,
    %c6_173 = arith.constant 6 : index
    %c0_174 = arith.constant 0 : index
    %110 = vector.load %arg16[%c6_173, %c0_174] : memref<32x512xbf16, #tpu.memory_space<vmem>>, vector<2x512xbf16>
    %c4_175 = arith.constant 4 : index
    %c0_176 = arith.constant 0 : index
    %111 = vector.load %arg15[%c4_175, %c0_176] : memref<32x1536xbf16, #tpu.memory_space<vmem>>, vector<2x512xbf16>
    tpu.vector_store %arg15[%c4_175, %c0_176], %110 {strides = array<i32>} : memref<32x1536xbf16, #tpu.memory_space<vmem>>, vector<2x512xbf16>,
    %c10_177 = arith.constant 10 : index
    %c0_178 = arith.constant 0 : index
    %112 = vector.load %arg16[%c10_177, %c0_178] : memref<32x512xbf16, #tpu.memory_space<vmem>>, vector<2x512xbf16>
    %c6_179 = arith.constant 6 : index
    %c0_180 = arith.constant 0 : index
    %113 = vector.load %arg15[%c6_179, %c0_180] : memref<32x1536xbf16, #tpu.memory_space<vmem>>, vector<2x512xbf16>
    tpu.vector_store %arg15[%c6_179, %c0_180], %112 {strides = array<i32>} : memref<32x1536xbf16, #tpu.memory_space<vmem>>, vector<2x512xbf16>,
    %c14_181 = arith.constant 14 : index
    %c0_182 = arith.constant 0 : index
    %114 = vector.load %arg16[%c14_181, %c0_182] : memref<32x512xbf16, #tpu.memory_space<vmem>>, vector<2x512xbf16>
    %c8_183 = arith.constant 8 : index
    %c0_184 = arith.constant 0 : index
    %115 = vector.load %arg15[%c8_183, %c0_184] : memref<32x1536xbf16, #tpu.memory_space<vmem>>, vector<2x512xbf16>
    tpu.vector_store %arg15[%c8_183, %c0_184], %114 {strides = array<i32>} : memref<32x1536xbf16, #tpu.memory_space<vmem>>, vector<2x512xbf16>,
    %c18_185 = arith.constant 18 : index
    %c0_186 = arith.constant 0 : index
    %116 = vector.load %arg16[%c18_185, %c0_186] : memref<32x512xbf16, #tpu.memory_space<vmem>>, vector<2x512xbf16>
    %c10_187 = arith.constant 10 : index
    %c0_188 = arith.constant 0 : index
    %117 = vector.load %arg15[%c10_187, %c0_188] : memref<32x1536xbf16, #tpu.memory_space<vmem>>, vector<2x512xbf16>
    tpu.vector_store %arg15[%c10_187, %c0_188], %116 {strides = array<i32>} : memref<32x1536xbf16, #tpu.memory_space<vmem>>, vector<2x512xbf16>,
    %c22_189 = arith.constant 22 : index
    %c0_190 = arith.constant 0 : index
    %118 = vector.load %arg16[%c22_189, %c0_190] : memref<32x512xbf16, #tpu.memory_space<vmem>>, vector<2x512xbf16>
    %c12_191 = arith.constant 12 : index
    %c0_192 = arith.constant 0 : index
    %119 = vector.load %arg15[%c12_191, %c0_192] : memref<32x1536xbf16, #tpu.memory_space<vmem>>, vector<2x512xbf16>
    tpu.vector_store %arg15[%c12_191, %c0_192], %118 {strides = array<i32>} : memref<32x1536xbf16, #tpu.memory_space<vmem>>, vector<2x512xbf16>,
    %c26_193 = arith.constant 26 : index
    %c0_194 = arith.constant 0 : index
    %120 = vector.load %arg16[%c26_193, %c0_194] : memref<32x512xbf16, #tpu.memory_space<vmem>>, vector<2x512xbf16>
    %c14_195 = arith.constant 14 : index
    %c0_196 = arith.constant 0 : index
    %121 = vector.load %arg15[%c14_195, %c0_196] : memref<32x1536xbf16, #tpu.memory_space<vmem>>, vector<2x512xbf16>
    tpu.vector_store %arg15[%c14_195, %c0_196], %120 {strides = array<i32>} : memref<32x1536xbf16, #tpu.memory_space<vmem>>, vector<2x512xbf16>,
    %c0_197 = arith.constant 0 : index
    %c0_198 = arith.constant 0 : index
    %122 = vector.load %arg16[%c0_197, %c0_198] : memref<32x512xbf16, #tpu.memory_space<vmem>>, vector<2x512xbf16>
    %c0_199 = arith.constant 0 : index
    %c512 = arith.constant 512 : index
    %123 = vector.load %arg15[%c0_199, %c512] : memref<32x1536xbf16, #tpu.memory_space<vmem>>, vector<2x512xbf16>
    tpu.vector_store %arg15[%c0_199, %c512], %122 {strides = array<i32>} : memref<32x1536xbf16, #tpu.memory_space<vmem>>, vector<2x512xbf16>,
    %c4_200 = arith.constant 4 : index
    %c0_201 = arith.constant 0 : index
    %124 = vector.load %arg16[%c4_200, %c0_201] : memref<32x512xbf16, #tpu.memory_space<vmem>>, vector<2x512xbf16>
    %c2_202 = arith.constant 2 : index
    %c512_203 = arith.constant 512 : index
    %125 = vector.load %arg15[%c2_202, %c512_203] : memref<32x1536xbf16, #tpu.memory_space<vmem>>, vector<2x512xbf16>
    tpu.vector_store %arg15[%c2_202, %c512_203], %124 {strides = array<i32>} : memref<32x1536xbf16, #tpu.memory_space<vmem>>, vector<2x512xbf16>,
    %c8_204 = arith.constant 8 : index
    %c0_205 = arith.constant 0 : index
    %126 = vector.load %arg16[%c8_204, %c0_205] : memref<32x512xbf16, #tpu.memory_space<vmem>>, vector<2x512xbf16>
    %c4_206 = arith.constant 4 : index
    %c512_207 = arith.constant 512 : index
    %127 = vector.load %arg15[%c4_206, %c512_207] : memref<32x1536xbf16, #tpu.memory_space<vmem>>, vector<2x512xbf16>
    tpu.vector_store %arg15[%c4_206, %c512_207], %126 {strides = array<i32>} : memref<32x1536xbf16, #tpu.memory_space<vmem>>, vector<2x512xbf16>,
    %c12_208 = arith.constant 12 : index
    %c0_209 = arith.constant 0 : index
    %128 = vector.load %arg16[%c12_208, %c0_209] : memref<32x512xbf16, #tpu.memory_space<vmem>>, vector<2x512xbf16>
    %c6_210 = arith.constant 6 : index
    %c512_211 = arith.constant 512 : index
    %129 = vector.load %arg15[%c6_210, %c512_211] : memref<32x1536xbf16, #tpu.memory_space<vmem>>, vector<2x512xbf16>
    tpu.vector_store %arg15[%c6_210, %c512_211], %128 {strides = array<i32>} : memref<32x1536xbf16, #tpu.memory_space<vmem>>, vector<2x512xbf16>,
    %c16_212 = arith.constant 16 : index
    %c0_213 = arith.constant 0 : index
    %130 = vector.load %arg16[%c16_212, %c0_213] : memref<32x512xbf16, #tpu.memory_space<vmem>>, vector<2x512xbf16>
    %c8_214 = arith.constant 8 : index
    %c512_215 = arith.constant 512 : index
    %131 = vector.load %arg15[%c8_214, %c512_215] : memref<32x1536xbf16, #tpu.memory_space<vmem>>, vector<2x512xbf16>
    tpu.vector_store %arg15[%c8_214, %c512_215], %130 {strides = array<i32>} : memref<32x1536xbf16, #tpu.memory_space<vmem>>, vector<2x512xbf16>,
    %c20_216 = arith.constant 20 : index
    %c0_217 = arith.constant 0 : index
    %132 = vector.load %arg16[%c20_216, %c0_217] : memref<32x512xbf16, #tpu.memory_space<vmem>>, vector<2x512xbf16>
    %c10_218 = arith.constant 10 : index
    %c512_219 = arith.constant 512 : index
    %133 = vector.load %arg15[%c10_218, %c512_219] : memref<32x1536xbf16, #tpu.memory_space<vmem>>, vector<2x512xbf16>
    tpu.vector_store %arg15[%c10_218, %c512_219], %132 {strides = array<i32>} : memref<32x1536xbf16, #tpu.memory_space<vmem>>, vector<2x512xbf16>,
    %c24_220 = arith.constant 24 : index
    %c0_221 = arith.constant 0 : index
    %134 = vector.load %arg16[%c24_220, %c0_221] : memref<32x512xbf16, #tpu.memory_space<vmem>>, vector<2x512xbf16>
    %c12_222 = arith.constant 12 : index
    %c512_223 = arith.constant 512 : index
    %135 = vector.load %arg15[%c12_222, %c512_223] : memref<32x1536xbf16, #tpu.memory_space<vmem>>, vector<2x512xbf16>
    tpu.vector_store %arg15[%c12_222, %c512_223], %134 {strides = array<i32>} : memref<32x1536xbf16, #tpu.memory_space<vmem>>, vector<2x512xbf16>,
    %c28_224 = arith.constant 28 : index
    %c0_225 = arith.constant 0 : index
    %136 = vector.load %arg16[%c28_224, %c0_225] : memref<32x512xbf16, #tpu.memory_space<vmem>>, vector<2x512xbf16>
    %c14_226 = arith.constant 14 : index
    %c512_227 = arith.constant 512 : index
    %137 = vector.load %arg15[%c14_226, %c512_227] : memref<32x1536xbf16, #tpu.memory_space<vmem>>, vector<2x512xbf16>
    tpu.vector_store %arg15[%c14_226, %c512_227], %136 {strides = array<i32>} : memref<32x1536xbf16, #tpu.memory_space<vmem>>, vector<2x512xbf16>,
    %c2_228 = arith.constant 2 : index
    %c0_229 = arith.constant 0 : index
    %138 = vector.load %arg16[%c2_228, %c0_229] : memref<32x512xbf16, #tpu.memory_space<vmem>>, vector<2x512xbf16>
    %c0_230 = arith.constant 0 : index
    %c1024 = arith.constant 1024 : index
    %139 = vector.load %arg15[%c0_230, %c1024] : memref<32x1536xbf16, #tpu.memory_space<vmem>>, vector<2x512xbf16>
    tpu.vector_store %arg15[%c0_230, %c1024], %138 {strides = array<i32>} : memref<32x1536xbf16, #tpu.memory_space<vmem>>, vector<2x512xbf16>,
    %c6_231 = arith.constant 6 : index
    %c0_232 = arith.constant 0 : index
    %140 = vector.load %arg16[%c6_231, %c0_232] : memref<32x512xbf16, #tpu.memory_space<vmem>>, vector<2x512xbf16>
    %c2_233 = arith.constant 2 : index
    %c1024_234 = arith.constant 1024 : index
    %141 = vector.load %arg15[%c2_233, %c1024_234] : memref<32x1536xbf16, #tpu.memory_space<vmem>>, vector<2x512xbf16>
    tpu.vector_store %arg15[%c2_233, %c1024_234], %140 {strides = array<i32>} : memref<32x1536xbf16, #tpu.memory_space<vmem>>, vector<2x512xbf16>,
    %c10_235 = arith.constant 10 : index
    %c0_236 = arith.constant 0 : index
    %142 = vector.load %arg16[%c10_235, %c0_236] : memref<32x512xbf16, #tpu.memory_space<vmem>>, vector<2x512xbf16>
    %c4_237 = arith.constant 4 : index
    %c1024_238 = arith.constant 1024 : index
    %143 = vector.load %arg15[%c4_237, %c1024_238] : memref<32x1536xbf16, #tpu.memory_space<vmem>>, vector<2x512xbf16>
    tpu.vector_store %arg15[%c4_237, %c1024_238], %142 {strides = array<i32>} : memref<32x1536xbf16, #tpu.memory_space<vmem>>, vector<2x512xbf16>,
    %c14_239 = arith.constant 14 : index
    %c0_240 = arith.constant 0 : index
    %144 = vector.load %arg16[%c14_239, %c0_240] : memref<32x512xbf16, #tpu.memory_space<vmem>>, vector<2x512xbf16>
    %c6_241 = arith.constant 6 : index
    %c1024_242 = arith.constant 1024 : index
    %145 = vector.load %arg15[%c6_241, %c1024_242] : memref<32x1536xbf16, #tpu.memory_space<vmem>>, vector<2x512xbf16>
    tpu.vector_store %arg15[%c6_241, %c1024_242], %144 {strides = array<i32>} : memref<32x1536xbf16, #tpu.memory_space<vmem>>, vector<2x512xbf16>,
    %c18_243 = arith.constant 18 : index
    %c0_244 = arith.constant 0 : index
    %146 = vector.load %arg16[%c18_243, %c0_244] : memref<32x512xbf16, #tpu.memory_space<vmem>>, vector<2x512xbf16>
    %c8_245 = arith.constant 8 : index
    %c1024_246 = arith.constant 1024 : index
    %147 = vector.load %arg15[%c8_245, %c1024_246] : memref<32x1536xbf16, #tpu.memory_space<vmem>>, vector<2x512xbf16>
    tpu.vector_store %arg15[%c8_245, %c1024_246], %146 {strides = array<i32>} : memref<32x1536xbf16, #tpu.memory_space<vmem>>, vector<2x512xbf16>,
    %c22_247 = arith.constant 22 : index
    %c0_248 = arith.constant 0 : index
    %148 = vector.load %arg16[%c22_247, %c0_248] : memref<32x512xbf16, #tpu.memory_space<vmem>>, vector<2x512xbf16>
    %c10_249 = arith.constant 10 : index
    %c1024_250 = arith.constant 1024 : index
    %149 = vector.load %arg15[%c10_249, %c1024_250] : memref<32x1536xbf16, #tpu.memory_space<vmem>>, vector<2x512xbf16>
    tpu.vector_store %arg15[%c10_249, %c1024_250], %148 {strides = array<i32>} : memref<32x1536xbf16, #tpu.memory_space<vmem>>, vector<2x512xbf16>,
    %c26_251 = arith.constant 26 : index
    %c0_252 = arith.constant 0 : index
    %150 = vector.load %arg16[%c26_251, %c0_252] : memref<32x512xbf16, #tpu.memory_space<vmem>>, vector<2x512xbf16>
    %c12_253 = arith.constant 12 : index
    %c1024_254 = arith.constant 1024 : index
    %151 = vector.load %arg15[%c12_253, %c1024_254] : memref<32x1536xbf16, #tpu.memory_space<vmem>>, vector<2x512xbf16>
    tpu.vector_store %arg15[%c12_253, %c1024_254], %150 {strides = array<i32>} : memref<32x1536xbf16, #tpu.memory_space<vmem>>, vector<2x512xbf16>,
    %c30_255 = arith.constant 30 : index
    %c0_256 = arith.constant 0 : index
    %152 = vector.load %arg16[%c30_255, %c0_256] : memref<32x512xbf16, #tpu.memory_space<vmem>>, vector<2x512xbf16>
    %c14_257 = arith.constant 14 : index
    %c1024_258 = arith.constant 1024 : index
    %153 = vector.load %arg15[%c14_257, %c1024_258] : memref<32x1536xbf16, #tpu.memory_space<vmem>>, vector<2x512xbf16>
    tpu.vector_store %arg15[%c14_257, %c1024_258], %152 {strides = array<i32>} : memref<32x1536xbf16, #tpu.memory_space<vmem>>, vector<2x512xbf16>,
    %c0_259 = arith.constant 0 : index
    %c0_260 = arith.constant 0 : index
    %154 = vector.load %arg15[%c0_259, %c0_260] : memref<32x1536xbf16, #tpu.memory_space<vmem>>, vector<16x1536xbf16>
    %c0_261 = arith.constant 0 : index
    %c0_262 = arith.constant 0 : index
    %155 = vector.load %arg3[%c0_261, %c0_262] : memref<1536x512xbf16, #tpu.memory_space<vmem>>, vector<1536x512xbf16>
    %cst_263 = arith.constant dense<0.000000e+00> : vector<16x512xf32>
    %156 = tpu.matmul %154, %155, %cst_263 {dimension_numbers = #tpu.dot_dimension_numbers<[1], [0], [0], [1], [0, 0, 1, 1], [], []>} : vector<16x1536xbf16>, vector<1536x512xbf16>, vector<16x512xf32> -> vector<16x512xf32>
    %c0_264 = arith.constant 0 : index
    %c0_265 = arith.constant 0 : index
    %157 = vector.load %arg9[%c0_264, %c0_265] : memref<1x512xf32, #tpu.memory_space<vmem>>, vector<1x512xf32>
    %158 = vector.broadcast %157 : vector<1x512xf32> to vector<16x512xf32>
    %159 = arith.addf %156, %158 : vector<16x512xf32>
    %cst_266 = arith.constant 0.000000e+00 : f32
    %160 = vector.broadcast %cst_266 : f32 to vector<16x512xf32>
    %161 = arith.maximumf %159, %160 : vector<16x512xf32>
    %162 = arith.truncf %161 : vector<16x512xf32> to vector<16x512xbf16>
    %c0_267 = arith.constant 0 : index
    %c0_268 = arith.constant 0 : index
    %163 = vector.load %arg17[%c0_267, %c0_268] : memref<16x512xbf16, #tpu.memory_space<vmem>>, vector<16x512xbf16>
    tpu.vector_store %arg17[%c0_267, %c0_268], %162 {strides = array<i32>} : memref<16x512xbf16, #tpu.memory_space<vmem>>, vector<16x512xbf16>,
    %cst_269 = arith.constant 0.000000e+00 : bf16
    %164 = vector.broadcast %cst_269 : bf16 to vector<2x512xbf16>
    %c0_270 = arith.constant 0 : index
    %c0_271 = arith.constant 0 : index
    %165 = vector.load %arg15[%c0_270, %c0_271] : memref<32x1536xbf16, #tpu.memory_space<vmem>>, vector<2x512xbf16>
    tpu.vector_store %arg15[%c0_270, %c0_271], %164 {strides = array<i32>} : memref<32x1536xbf16, #tpu.memory_space<vmem>>, vector<2x512xbf16>,
    %c2_272 = arith.constant 2 : index
    %c0_273 = arith.constant 0 : index
    %166 = vector.load %arg17[%c2_272, %c0_273] : memref<16x512xbf16, #tpu.memory_space<vmem>>, vector<2x512xbf16>
    %c2_274 = arith.constant 2 : index
    %c0_275 = arith.constant 0 : index
    %167 = vector.load %arg15[%c2_274, %c0_275] : memref<32x1536xbf16, #tpu.memory_space<vmem>>, vector<2x512xbf16>
    tpu.vector_store %arg15[%c2_274, %c0_275], %166 {strides = array<i32>} : memref<32x1536xbf16, #tpu.memory_space<vmem>>, vector<2x512xbf16>,
    %c6_276 = arith.constant 6 : index
    %c0_277 = arith.constant 0 : index
    %168 = vector.load %arg17[%c6_276, %c0_277] : memref<16x512xbf16, #tpu.memory_space<vmem>>, vector<2x512xbf16>
    %c4_278 = arith.constant 4 : index
    %c0_279 = arith.constant 0 : index
    %169 = vector.load %arg15[%c4_278, %c0_279] : memref<32x1536xbf16, #tpu.memory_space<vmem>>, vector<2x512xbf16>
    tpu.vector_store %arg15[%c4_278, %c0_279], %168 {strides = array<i32>} : memref<32x1536xbf16, #tpu.memory_space<vmem>>, vector<2x512xbf16>,
    %c10_280 = arith.constant 10 : index
    %c0_281 = arith.constant 0 : index
    %170 = vector.load %arg17[%c10_280, %c0_281] : memref<16x512xbf16, #tpu.memory_space<vmem>>, vector<2x512xbf16>
    %c6_282 = arith.constant 6 : index
    %c0_283 = arith.constant 0 : index
    %171 = vector.load %arg15[%c6_282, %c0_283] : memref<32x1536xbf16, #tpu.memory_space<vmem>>, vector<2x512xbf16>
    tpu.vector_store %arg15[%c6_282, %c0_283], %170 {strides = array<i32>} : memref<32x1536xbf16, #tpu.memory_space<vmem>>, vector<2x512xbf16>,
    %c0_284 = arith.constant 0 : index
    %c0_285 = arith.constant 0 : index
    %172 = vector.load %arg17[%c0_284, %c0_285] : memref<16x512xbf16, #tpu.memory_space<vmem>>, vector<2x512xbf16>
    %c0_286 = arith.constant 0 : index
    %c512_287 = arith.constant 512 : index
    %173 = vector.load %arg15[%c0_286, %c512_287] : memref<32x1536xbf16, #tpu.memory_space<vmem>>, vector<2x512xbf16>
    tpu.vector_store %arg15[%c0_286, %c512_287], %172 {strides = array<i32>} : memref<32x1536xbf16, #tpu.memory_space<vmem>>, vector<2x512xbf16>,
    %c4_288 = arith.constant 4 : index
    %c0_289 = arith.constant 0 : index
    %174 = vector.load %arg17[%c4_288, %c0_289] : memref<16x512xbf16, #tpu.memory_space<vmem>>, vector<2x512xbf16>
    %c2_290 = arith.constant 2 : index
    %c512_291 = arith.constant 512 : index
    %175 = vector.load %arg15[%c2_290, %c512_291] : memref<32x1536xbf16, #tpu.memory_space<vmem>>, vector<2x512xbf16>
    tpu.vector_store %arg15[%c2_290, %c512_291], %174 {strides = array<i32>} : memref<32x1536xbf16, #tpu.memory_space<vmem>>, vector<2x512xbf16>,
    %c8_292 = arith.constant 8 : index
    %c0_293 = arith.constant 0 : index
    %176 = vector.load %arg17[%c8_292, %c0_293] : memref<16x512xbf16, #tpu.memory_space<vmem>>, vector<2x512xbf16>
    %c4_294 = arith.constant 4 : index
    %c512_295 = arith.constant 512 : index
    %177 = vector.load %arg15[%c4_294, %c512_295] : memref<32x1536xbf16, #tpu.memory_space<vmem>>, vector<2x512xbf16>
    tpu.vector_store %arg15[%c4_294, %c512_295], %176 {strides = array<i32>} : memref<32x1536xbf16, #tpu.memory_space<vmem>>, vector<2x512xbf16>,
    %c12_296 = arith.constant 12 : index
    %c0_297 = arith.constant 0 : index
    %178 = vector.load %arg17[%c12_296, %c0_297] : memref<16x512xbf16, #tpu.memory_space<vmem>>, vector<2x512xbf16>
    %c6_298 = arith.constant 6 : index
    %c512_299 = arith.constant 512 : index
    %179 = vector.load %arg15[%c6_298, %c512_299] : memref<32x1536xbf16, #tpu.memory_space<vmem>>, vector<2x512xbf16>
    tpu.vector_store %arg15[%c6_298, %c512_299], %178 {strides = array<i32>} : memref<32x1536xbf16, #tpu.memory_space<vmem>>, vector<2x512xbf16>,
    %c2_300 = arith.constant 2 : index
    %c0_301 = arith.constant 0 : index
    %180 = vector.load %arg17[%c2_300, %c0_301] : memref<16x512xbf16, #tpu.memory_space<vmem>>, vector<2x512xbf16>
    %c0_302 = arith.constant 0 : index
    %c1024_303 = arith.constant 1024 : index
    %181 = vector.load %arg15[%c0_302, %c1024_303] : memref<32x1536xbf16, #tpu.memory_space<vmem>>, vector<2x512xbf16>
    tpu.vector_store %arg15[%c0_302, %c1024_303], %180 {strides = array<i32>} : memref<32x1536xbf16, #tpu.memory_space<vmem>>, vector<2x512xbf16>,
    %c6_304 = arith.constant 6 : index
    %c0_305 = arith.constant 0 : index
    %182 = vector.load %arg17[%c6_304, %c0_305] : memref<16x512xbf16, #tpu.memory_space<vmem>>, vector<2x512xbf16>
    %c2_306 = arith.constant 2 : index
    %c1024_307 = arith.constant 1024 : index
    %183 = vector.load %arg15[%c2_306, %c1024_307] : memref<32x1536xbf16, #tpu.memory_space<vmem>>, vector<2x512xbf16>
    tpu.vector_store %arg15[%c2_306, %c1024_307], %182 {strides = array<i32>} : memref<32x1536xbf16, #tpu.memory_space<vmem>>, vector<2x512xbf16>,
    %c10_308 = arith.constant 10 : index
    %c0_309 = arith.constant 0 : index
    %184 = vector.load %arg17[%c10_308, %c0_309] : memref<16x512xbf16, #tpu.memory_space<vmem>>, vector<2x512xbf16>
    %c4_310 = arith.constant 4 : index
    %c1024_311 = arith.constant 1024 : index
    %185 = vector.load %arg15[%c4_310, %c1024_311] : memref<32x1536xbf16, #tpu.memory_space<vmem>>, vector<2x512xbf16>
    tpu.vector_store %arg15[%c4_310, %c1024_311], %184 {strides = array<i32>} : memref<32x1536xbf16, #tpu.memory_space<vmem>>, vector<2x512xbf16>,
    %c14_312 = arith.constant 14 : index
    %c0_313 = arith.constant 0 : index
    %186 = vector.load %arg17[%c14_312, %c0_313] : memref<16x512xbf16, #tpu.memory_space<vmem>>, vector<2x512xbf16>
    %c6_314 = arith.constant 6 : index
    %c1024_315 = arith.constant 1024 : index
    %187 = vector.load %arg15[%c6_314, %c1024_315] : memref<32x1536xbf16, #tpu.memory_space<vmem>>, vector<2x512xbf16>
    tpu.vector_store %arg15[%c6_314, %c1024_315], %186 {strides = array<i32>} : memref<32x1536xbf16, #tpu.memory_space<vmem>>, vector<2x512xbf16>,
    %c0_316 = arith.constant 0 : index
    %c0_317 = arith.constant 0 : index
    %188 = vector.load %arg15[%c0_316, %c0_317] : memref<32x1536xbf16, #tpu.memory_space<vmem>>, vector<8x1536xbf16>
    %c0_318 = arith.constant 0 : index
    %c0_319 = arith.constant 0 : index
    %189 = vector.load %arg4[%c0_318, %c0_319] : memref<1536x512xbf16, #tpu.memory_space<vmem>>, vector<1536x512xbf16>
    %cst_320 = arith.constant dense<0.000000e+00> : vector<8x512xf32>
    %190 = tpu.matmul %188, %189, %cst_320 {dimension_numbers = #tpu.dot_dimension_numbers<[1], [0], [0], [1], [0, 0, 1, 1], [], []>} : vector<8x1536xbf16>, vector<1536x512xbf16>, vector<8x512xf32> -> vector<8x512xf32>
    %c0_321 = arith.constant 0 : index
    %c0_322 = arith.constant 0 : index
    %191 = vector.load %arg10[%c0_321, %c0_322] : memref<1x512xf32, #tpu.memory_space<vmem>>, vector<1x512xf32>
    %192 = vector.broadcast %191 : vector<1x512xf32> to vector<8x512xf32>
    %193 = arith.addf %190, %192 : vector<8x512xf32>
    %cst_323 = arith.constant 0.000000e+00 : f32
    %194 = vector.broadcast %cst_323 : f32 to vector<8x512xf32>
    %195 = arith.maximumf %193, %194 : vector<8x512xf32>
    %196 = arith.truncf %195 : vector<8x512xf32> to vector<8x512xbf16>
    %c0_324 = arith.constant 0 : index
    %c0_325 = arith.constant 0 : index
    %197 = vector.load %arg18[%c0_324, %c0_325] : memref<8x512xbf16, #tpu.memory_space<vmem>>, vector<8x512xbf16>
    tpu.vector_store %arg18[%c0_324, %c0_325], %196 {strides = array<i32>} : memref<8x512xbf16, #tpu.memory_space<vmem>>, vector<8x512xbf16>,
    %cst_326 = arith.constant 0.000000e+00 : bf16
    %198 = vector.broadcast %cst_326 : bf16 to vector<2x512xbf16>
    %c0_327 = arith.constant 0 : index
    %c0_328 = arith.constant 0 : index
    %199 = vector.load %arg15[%c0_327, %c0_328] : memref<32x1536xbf16, #tpu.memory_space<vmem>>, vector<2x512xbf16>
    tpu.vector_store %arg15[%c0_327, %c0_328], %198 {strides = array<i32>} : memref<32x1536xbf16, #tpu.memory_space<vmem>>, vector<2x512xbf16>,
    %c2_329 = arith.constant 2 : index
    %c0_330 = arith.constant 0 : index
    %200 = vector.load %arg18[%c2_329, %c0_330] : memref<8x512xbf16, #tpu.memory_space<vmem>>, vector<2x512xbf16>
    %c2_331 = arith.constant 2 : index
    %c0_332 = arith.constant 0 : index
    %201 = vector.load %arg15[%c2_331, %c0_332] : memref<32x1536xbf16, #tpu.memory_space<vmem>>, vector<2x512xbf16>
    tpu.vector_store %arg15[%c2_331, %c0_332], %200 {strides = array<i32>} : memref<32x1536xbf16, #tpu.memory_space<vmem>>, vector<2x512xbf16>,
    %c0_333 = arith.constant 0 : index
    %c0_334 = arith.constant 0 : index
    %202 = vector.load %arg18[%c0_333, %c0_334] : memref<8x512xbf16, #tpu.memory_space<vmem>>, vector<2x512xbf16>
    %c0_335 = arith.constant 0 : index
    %c512_336 = arith.constant 512 : index
    %203 = vector.load %arg15[%c0_335, %c512_336] : memref<32x1536xbf16, #tpu.memory_space<vmem>>, vector<2x512xbf16>
    tpu.vector_store %arg15[%c0_335, %c512_336], %202 {strides = array<i32>} : memref<32x1536xbf16, #tpu.memory_space<vmem>>, vector<2x512xbf16>,
    %c4_337 = arith.constant 4 : index
    %c0_338 = arith.constant 0 : index
    %204 = vector.load %arg18[%c4_337, %c0_338] : memref<8x512xbf16, #tpu.memory_space<vmem>>, vector<2x512xbf16>
    %c2_339 = arith.constant 2 : index
    %c512_340 = arith.constant 512 : index
    %205 = vector.load %arg15[%c2_339, %c512_340] : memref<32x1536xbf16, #tpu.memory_space<vmem>>, vector<2x512xbf16>
    tpu.vector_store %arg15[%c2_339, %c512_340], %204 {strides = array<i32>} : memref<32x1536xbf16, #tpu.memory_space<vmem>>, vector<2x512xbf16>,
    %c2_341 = arith.constant 2 : index
    %c0_342 = arith.constant 0 : index
    %206 = vector.load %arg18[%c2_341, %c0_342] : memref<8x512xbf16, #tpu.memory_space<vmem>>, vector<2x512xbf16>
    %c0_343 = arith.constant 0 : index
    %c1024_344 = arith.constant 1024 : index
    %207 = vector.load %arg15[%c0_343, %c1024_344] : memref<32x1536xbf16, #tpu.memory_space<vmem>>, vector<2x512xbf16>
    tpu.vector_store %arg15[%c0_343, %c1024_344], %206 {strides = array<i32>} : memref<32x1536xbf16, #tpu.memory_space<vmem>>, vector<2x512xbf16>,
    %c6_345 = arith.constant 6 : index
    %c0_346 = arith.constant 0 : index
    %208 = vector.load %arg18[%c6_345, %c0_346] : memref<8x512xbf16, #tpu.memory_space<vmem>>, vector<2x512xbf16>
    %c2_347 = arith.constant 2 : index
    %c1024_348 = arith.constant 1024 : index
    %209 = vector.load %arg15[%c2_347, %c1024_348] : memref<32x1536xbf16, #tpu.memory_space<vmem>>, vector<2x512xbf16>
    tpu.vector_store %arg15[%c2_347, %c1024_348], %208 {strides = array<i32>} : memref<32x1536xbf16, #tpu.memory_space<vmem>>, vector<2x512xbf16>,
    %c0_349 = arith.constant 0 : index
    %c0_350 = arith.constant 0 : index
    %210 = vector.load %arg15[%c0_349, %c0_350] : memref<32x1536xbf16, #tpu.memory_space<vmem>>, vector<4x1536xbf16>
    %c0_351 = arith.constant 0 : index
    %c0_352 = arith.constant 0 : index
    %211 = vector.load %arg5[%c0_351, %c0_352] : memref<1536x256xbf16, #tpu.memory_space<vmem>>, vector<1536x256xbf16>
    %cst_353 = arith.constant dense<0.000000e+00> : vector<4x256xf32>
    %212 = tpu.matmul %210, %211, %cst_353 {dimension_numbers = #tpu.dot_dimension_numbers<[1], [0], [0], [1], [0, 0, 1, 1], [], []>} : vector<4x1536xbf16>, vector<1536x256xbf16>, vector<4x256xf32> -> vector<4x256xf32>
    %c0_354 = arith.constant 0 : index
    %c0_355 = arith.constant 0 : index
    %213 = vector.load %arg11[%c0_354, %c0_355] : memref<1x256xf32, #tpu.memory_space<vmem>>, vector<1x256xf32>
    %214 = vector.broadcast %213 : vector<1x256xf32> to vector<4x256xf32>
    %215 = arith.addf %212, %214 : vector<4x256xf32>
    %cst_356 = arith.constant 0.000000e+00 : f32
    %216 = vector.broadcast %cst_356 : f32 to vector<4x256xf32>
    %217 = arith.maximumf %215, %216 : vector<4x256xf32>
    %218 = arith.truncf %217 : vector<4x256xf32> to vector<4x256xbf16>
    %c0_357 = arith.constant 0 : index
    %c0_358 = arith.constant 0 : index
    %219 = vector.load %arg19[%c0_357, %c0_358] : memref<4x256xbf16, #tpu.memory_space<vmem>>, vector<4x256xbf16>
    tpu.vector_store %arg19[%c0_357, %c0_358], %218 {strides = array<i32>} : memref<4x256xbf16, #tpu.memory_space<vmem>>, vector<4x256xbf16>,
    %cst_359 = arith.constant 0.000000e+00 : bf16
    %220 = vector.broadcast %cst_359 : bf16 to vector<2x256xbf16>
    %c0_360 = arith.constant 0 : index
    %c0_361 = arith.constant 0 : index
    %221 = vector.load %arg15[%c0_360, %c0_361] : memref<32x1536xbf16, #tpu.memory_space<vmem>>, vector<2x256xbf16>
    tpu.vector_store %arg15[%c0_360, %c0_361], %220 {strides = array<i32>} : memref<32x1536xbf16, #tpu.memory_space<vmem>>, vector<2x256xbf16>,
    %c0_362 = arith.constant 0 : index
    %c0_363 = arith.constant 0 : index
    %222 = vector.load %arg19[%c0_362, %c0_363] : memref<4x256xbf16, #tpu.memory_space<vmem>>, vector<2x256xbf16>
    %c0_364 = arith.constant 0 : index
    %c256 = arith.constant 256 : index
    %223 = vector.load %arg15[%c0_364, %c256] : memref<32x1536xbf16, #tpu.memory_space<vmem>>, vector<2x256xbf16>
    tpu.vector_store %arg15[%c0_364, %c256], %222 {strides = array<i32>} : memref<32x1536xbf16, #tpu.memory_space<vmem>>, vector<2x256xbf16>,
    %c2_365 = arith.constant 2 : index
    %c0_366 = arith.constant 0 : index
    %224 = vector.load %arg19[%c2_365, %c0_366] : memref<4x256xbf16, #tpu.memory_space<vmem>>, vector<2x256xbf16>
    %c0_367 = arith.constant 0 : index
    %c512_368 = arith.constant 512 : index
    %225 = vector.load %arg15[%c0_367, %c512_368] : memref<32x1536xbf16, #tpu.memory_space<vmem>>, vector<2x256xbf16>
    tpu.vector_store %arg15[%c0_367, %c512_368], %224 {strides = array<i32>} : memref<32x1536xbf16, #tpu.memory_space<vmem>>, vector<2x256xbf16>,
    %c0_369 = arith.constant 0 : index
    %c0_370 = arith.constant 0 : index
    %226 = vector.load %arg15[%c0_369, %c0_370] : memref<32x1536xbf16, #tpu.memory_space<vmem>>, vector<2x768xbf16>
    %c0_371 = arith.constant 0 : index
    %c0_372 = arith.constant 0 : index
    %227 = vector.load %arg6[%c0_371, %c0_372] : memref<768x128xbf16, #tpu.memory_space<vmem>>, vector<768x128xbf16>
    %cst_373 = arith.constant dense<0.000000e+00> : vector<2x128xf32>
    %228 = tpu.matmul %226, %227, %cst_373 {dimension_numbers = #tpu.dot_dimension_numbers<[1], [0], [0], [1], [0, 0, 1, 1], [], []>} : vector<2x768xbf16>, vector<768x128xbf16>, vector<2x128xf32> -> vector<2x128xf32>
    %c0_374 = arith.constant 0 : index
    %c0_375 = arith.constant 0 : index
    %229 = vector.load %arg12[%c0_374, %c0_375] : memref<1x128xf32, #tpu.memory_space<vmem>>, vector<1x128xf32>
    %230 = vector.broadcast %229 : vector<1x128xf32> to vector<2x128xf32>
    %231 = arith.addf %228, %230 : vector<2x128xf32>
    %cst_376 = arith.constant 0.000000e+00 : f32
    %232 = vector.broadcast %cst_376 : f32 to vector<2x128xf32>
    %233 = arith.maximumf %231, %232 : vector<2x128xf32>
    %234 = arith.truncf %233 : vector<2x128xf32> to vector<2x128xbf16>
    %c0_377 = arith.constant 0 : index
    %c0_378 = arith.constant 0 : index
    %235 = vector.load %arg20[%c0_377, %c0_378] : memref<2x128xbf16, #tpu.memory_space<vmem>>, vector<2x128xbf16>
    tpu.vector_store %arg20[%c0_377, %c0_378], %234 {strides = array<i32>} : memref<2x128xbf16, #tpu.memory_space<vmem>>, vector<2x128xbf16>,
    %c0_379 = arith.constant 0 : index
    %c0_380 = arith.constant 0 : index
    %236 = vector.load %arg20[%c0_379, %c0_380] : memref<2x128xbf16, #tpu.memory_space<vmem>>, vector<2x128xbf16>
    %c0_381 = arith.constant 0 : index
    %c0_382 = arith.constant 0 : index
    %237 = vector.load %arg15[%c0_381, %c0_382] : memref<32x1536xbf16, #tpu.memory_space<vmem>>, vector<2x128xbf16>
    tpu.vector_store %arg15[%c0_381, %c0_382], %236 {strides = array<i32>} : memref<32x1536xbf16, #tpu.memory_space<vmem>>, vector<2x128xbf16>,
    %c0_383 = arith.constant 0 : index
    %c0_384 = arith.constant 0 : index
    %238 = vector.load %arg15[%c0_383, %c0_384] : memref<32x1536xbf16, #tpu.memory_space<vmem>>, vector<2x128xbf16>
    %c0_385 = arith.constant 0 : index
    %c0_386 = arith.constant 0 : index
    %239 = vector.load %arg7[%c0_385, %c0_386] : memref<128x32xbf16, #tpu.memory_space<vmem>>, vector<128x32xbf16>
    %cst_387 = arith.constant dense<0.000000e+00> : vector<2x32xf32>
    %240 = tpu.matmul %238, %239, %cst_387 {dimension_numbers = #tpu.dot_dimension_numbers<[1], [0], [0], [1], [0, 0, 1, 1], [], []>} : vector<2x128xbf16>, vector<128x32xbf16>, vector<2x32xf32> -> vector<2x32xf32>
    %c0_388 = arith.constant 0 : index
    %c0_389 = arith.constant 0 : index
    %241 = vector.load %arg13[%c0_388, %c0_389] : memref<1x32xf32, #tpu.memory_space<vmem>>, vector<1x32xf32>
    %242 = vector.broadcast %241 : vector<1x32xf32> to vector<2x32xf32>
    %243 = arith.addf %240, %242 : vector<2x32xf32>
    %c0_390 = arith.constant 0 : index
    %c0_391 = arith.constant 0 : index
    %244 = vector.load %arg14[%c0_390, %c0_391] : memref<2x32xf32, #tpu.memory_space<vmem>>, vector<2x32xf32>
    tpu.vector_store %arg14[%c0_390, %c0_391], %243 {strides = array<i32>} : memref<2x32xf32, #tpu.memory_space<vmem>>, vector<2x32xf32>,
    return
  }
  func.func @transform_0(%arg0: i32) -> (i32, i32) {
    %c0_i32 = arith.constant 0 : i32
    %c0_i32_0 = arith.constant 0 : i32
    %c0_i32_1 = arith.constant 0 : i32
    return %c0_i32, %c0_i32_0 : i32, i32
  }
  func.func @transform_1(%arg0: i32) -> (i32, i32) {
    %c0_i32 = arith.constant 0 : i32
    %c0_i32_0 = arith.constant 0 : i32
    %c0_i32_1 = arith.constant 0 : i32
    return %c0_i32, %c0_i32_0 : i32, i32
  }
  func.func @transform_2(%arg0: i32) -> (i32, i32) {
    %c0_i32 = arith.constant 0 : i32
    %c0_i32_0 = arith.constant 0 : i32
    %c0_i32_1 = arith.constant 0 : i32
    return %c0_i32, %c0_i32_0 : i32, i32
  }
  func.func @transform_3(%arg0: i32) -> (i32, i32) {
    %c0_i32 = arith.constant 0 : i32
    %c0_i32_0 = arith.constant 0 : i32
    %c0_i32_1 = arith.constant 0 : i32
    return %c0_i32, %c0_i32_0 : i32, i32
  }
  func.func @transform_4(%arg0: i32) -> (i32, i32) {
    %c0_i32 = arith.constant 0 : i32
    %c0_i32_0 = arith.constant 0 : i32
    %c0_i32_1 = arith.constant 0 : i32
    return %c0_i32, %c0_i32_0 : i32, i32
  }
  func.func @transform_5(%arg0: i32) -> (i32, i32) {
    %c0_i32 = arith.constant 0 : i32
    %c0_i32_0 = arith.constant 0 : i32
    %c0_i32_1 = arith.constant 0 : i32
    return %c0_i32, %c0_i32_0 : i32, i32
  }
  func.func @transform_6(%arg0: i32) -> (i32, i32) {
    %c0_i32 = arith.constant 0 : i32
    %c0_i32_0 = arith.constant 0 : i32
    %c0_i32_1 = arith.constant 0 : i32
    return %c0_i32, %c0_i32_0 : i32, i32
  }
  func.func @transform_7(%arg0: i32) -> (i32, i32) {
    %c0_i32 = arith.constant 0 : i32
    %c0_i32_0 = arith.constant 0 : i32
    %c0_i32_1 = arith.constant 0 : i32
    return %c0_i32, %c0_i32_0 : i32, i32
  }
  func.func @transform_8(%arg0: i32) -> (i32, i32) {
    %c0_i32 = arith.constant 0 : i32
    %c0_i32_0 = arith.constant 0 : i32
    %c0_i32_1 = arith.constant 0 : i32
    return %c0_i32, %c0_i32_0 : i32, i32
  }
  func.func @transform_9(%arg0: i32) -> (i32, i32) {
    %c0_i32 = arith.constant 0 : i32
    %c0_i32_0 = arith.constant 0 : i32
    %c0_i32_1 = arith.constant 0 : i32
    return %c0_i32, %c0_i32_0 : i32, i32
  }
  func.func @transform_10(%arg0: i32) -> (i32, i32) {
    %c0_i32 = arith.constant 0 : i32
    %c0_i32_0 = arith.constant 0 : i32
    %c0_i32_1 = arith.constant 0 : i32
    return %c0_i32, %c0_i32_0 : i32, i32
  }
  func.func @transform_11(%arg0: i32) -> (i32, i32) {
    %c0_i32 = arith.constant 0 : i32
    %c0_i32_0 = arith.constant 0 : i32
    %c0_i32_1 = arith.constant 0 : i32
    return %c0_i32, %c0_i32_0 : i32, i32
  }
  func.func @transform_12(%arg0: i32) -> (i32, i32) {
    %c0_i32 = arith.constant 0 : i32
    %c0_i32_0 = arith.constant 0 : i32
    %c0_i32_1 = arith.constant 0 : i32
    return %c0_i32, %c0_i32_0 : i32, i32
  }
  func.func @transform_13(%arg0: i32) -> (i32, i32) {
    %c0_i32 = arith.constant 0 : i32
    %c0_i32_0 = arith.constant 0 : i32
    %c0_i32_1 = arith.constant 0 : i32
    return %c0_i32, %c0_i32_0 : i32, i32
  }
}

</mosaic_0001>

<llo_original>
// kernel: fwd.1
$region0: #{fwd.1}
  #allocation0 [shape = 'u32[]', space=smem, size = 0x4, offset = 0x4, fixed_abs, tag = 'smem constant byte address 0x4 - core index']
  #allocation1 [shape = 'u32[144,128]{1,0:T(1,128)}', space=vmem, size = 0x12000, scoped, tag = 'internal scratch']
  #allocation2 [shape = 'bf16[32,1536]{1,0:T(16,128)(2,1)}', space=vmem, size = 0x18000, scoped, tag = 'scratch operand']
  #allocation3 [shape = 'bf16[32,512]{1,0:T(16,128)(2,1)}', space=vmem, size = 0x8000, scoped, tag = 'scratch operand']
  #allocation4 [shape = 'bf16[16,512]{1,0:T(16,128)(2,1)}', space=vmem, size = 0x4000, scoped, tag = 'scratch operand']
  #allocation5 [shape = 'bf16[8,512]{1,0:T(8,128)(2,1)}', space=vmem, size = 0x2000, scoped, tag = 'scratch operand']
  #allocation6 [shape = 'bf16[4,256]{1,0:T(4,128)(2,1)}', space=vmem, size = 0x800, scoped, tag = 'scratch operand']
  #allocation7 [shape = 'bf16[2,128]{1,0:T(2,128)(2,1)}', space=vmem, size = 0x200, scoped, tag = 'scratch operand']
  %s0 = inlined_call_operand.vmem [shape: bf16[64,96], index: 0, kind: input, shape index: {}]
  %s1 = inlined_call_operand.hbm [shape: bf16[288,512], index: 1, kind: input, shape index: {}]
  %s2 = inlined_call_operand.hbm [shape: bf16[1536,512], index: 2, kind: input, shape index: {}]
  %s3 = inlined_call_operand.hbm [shape: bf16[1536,512], index: 3, kind: input, shape index: {}]
  %s4 = inlined_call_operand.vmem [shape: bf16[1536,256], index: 4, kind: input, shape index: {}]
  %s5 = inlined_call_operand.hbm [shape: bf16[768,128], index: 5, kind: input, shape index: {}]
  %s6 = inlined_call_operand.vmem [shape: bf16[128,32], index: 6, kind: input, shape index: {}]
  %s7 = inlined_call_operand.hbm [shape: f32[1,512], index: 7, kind: input, shape index: {}]
  %s8 = inlined_call_operand.hbm [shape: f32[1,512], index: 8, kind: input, shape index: {}]
  %s9 = inlined_call_operand.hbm [shape: f32[1,512], index: 9, kind: input, shape index: {}]
  %s10 = inlined_call_operand.hbm [shape: f32[1,256], index: 10, kind: input, shape index: {}]
  %s11 = inlined_call_operand.hbm [shape: f32[1,128], index: 11, kind: input, shape index: {}]
  %s12 = inlined_call_operand.hbm [shape: f32[1,32], index: 12, kind: input, shape index: {}]
  %s13 = inlined_call_operand.vmem [shape: f32[2,32], index: 13, kind: output, shape index: {}]
  %s14 = sld [smem:[#allocation0]]
  $region102: #{fwd.1} parent=0
    _
  %s16 = ssub.s32 1, %s14
  %s17 = scalar_select 0, %s16, %s14
  $region1: #{fwd.1} parent=0
    #allocation8 [shape = 'u8[294912]{0}', space=vmem, size = 0x48000, scoped, tag = 'input window, operand 1, single buffered']
    #allocation9 [shape = 's32[1]{0}', space=sflag, size = 0x4, scoped, tag = 'scoped memory for fwd.1']
    #allocation10 [shape = 'u8[1572864]{0}', space=vmem, size = 0x180000, scoped, tag = 'input window, operand 2, single buffered']
    #allocation11 [shape = 's32[1]{0}', space=sflag, size = 0x4, scoped, tag = 'scoped memory for fwd.1']
    #allocation12 [shape = 'u8[1572864]{0}', space=vmem, size = 0x180000, scoped, tag = 'input window, operand 3, single buffered']
    #allocation13 [shape = 'u8[196608]{0}', space=vmem, size = 0x30000, scoped, tag = 'input window, operand 5, single buffered']
    #allocation14 [shape = 's32[1]{0}', space=sflag, size = 0x4, scoped, tag = 'scoped memory for fwd.1']
    #allocation15 [shape = 'u8[2048]{0}', space=vmem, size = 0x800, scoped, tag = 'input window, operand 7, single buffered']
    #allocation16 [shape = 'u8[2048]{0}', space=vmem, size = 0x800, scoped, tag = 'input window, operand 8, single buffered']
    #allocation17 [shape = 's32[1]{0}', space=sflag, size = 0x4, scoped, tag = 'scoped memory for fwd.1']
    #allocation18 [shape = 'u8[2048]{0}', space=vmem, size = 0x800, scoped, tag = 'input window, operand 9, single buffered']
    #allocation19 [shape = 'u8[1024]{0}', space=vmem, size = 0x400, scoped, tag = 'input window, operand 10, single buffered']
    #allocation20 [shape = 's32[1]{0}', space=sflag, size = 0x4, scoped, tag = 'scoped memory for fwd.1']
    #allocation21 [shape = 'u8[512]{0}', space=vmem, size = 0x400, scoped, tag = 'input window, operand 11, single buffered']
    #allocation22 [shape = 'u8[512]{0}', space=vmem, size = 0x400, scoped, tag = 'input window, operand 12, single buffered']
    #allocation23 [shape = 's32[1]{0}', space=sflag, size = 0x4, scoped, tag = 'scoped memory for fwd.1']
    %18 = vsyncpa [#allocation9], 0
    %19 = vsyncpa [#allocation11], 0
    %20 = vsyncpa [#allocation14], 0
    %21 = vsyncpa [#allocation17], 0
    %22 = vsyncpa [#allocation20], 0
    %23 = vsyncpa [#allocation23], 0
    // Predicated region
    $region2: #{fwd.1} parent=1 // pred_check
      _
    $region3: #{fwd.1} parent=1 // pred_check_branch
      %25 = sbr.rel (0) target = $region5
    $region4: #{fwd.1} parent=1 // pred_region
      _
    $region5: #{fwd.1} parent=1 // pred_fallthru
      _
    // Predicated region
    $region6: #{fwd.1} parent=1 // pred_check
      _
    $region7: #{fwd.1} parent=1 // pred_check_branch
      %27 = sbr.rel (0) target = $region9
    $region8: #{fwd.1} parent=1 // pred_region
      %s29 = ssub.s32 9216, 9216
      %30 = vsyncadd [#allocation9], %s29
      %s31 = sshll.u32 [#allocation8], 4
      %s32 = int_to_ptr.vmem [resolvable:$true] %s31
      %37 = dma.hbm_to_vmem [thread:$0]  %s1, 9216, %s32, [#allocation9], 256, 256, 16
    $region9: #{fwd.1} parent=1 // pred_fallthru
      _
    // Predicated region
    $region10: #{fwd.1} parent=1 // pred_check
      _
    $region11: #{fwd.1} parent=1 // pred_check_branch
      %39 = sbr.rel (0) target = $region13
    $region12: #{fwd.1} parent=1 // pred_region
      %s41 = ssub.s32 49152, 49152
      %42 = vsyncadd [#allocation11], %s41
      %s43 = sshll.u32 [#allocation10], 4
      %s44 = int_to_ptr.vmem [resolvable:$true] %s43
      %49 = dma.hbm_to_vmem [thread:$0]  %s2, 49152, %s44, [#allocation11], 256, 256, 16
    $region13: #{fwd.1} parent=1 // pred_fallthru
      _
    // Predicated region
    $region14: #{fwd.1} parent=1 // pred_check
      _
    $region15: #{fwd.1} parent=1 // pred_check_branch
      %51 = sbr.rel (0) target = $region17
    $region16: #{fwd.1} parent=1 // pred_region
      %s53 = ssub.s32 49152, 49152
      %54 = vsyncadd [#allocation11], %s53
      %s55 = sshll.u32 [#allocation12], 4
      %s56 = int_to_ptr.vmem [resolvable:$true] %s55
      %61 = dma.hbm_to_vmem [thread:$0]  %s3, 49152, %s56, [#allocation11], 256, 256, 16
    $region17: #{fwd.1} parent=1 // pred_fallthru
      _
    // Predicated region
    $region18: #{fwd.1} parent=1 // pred_check
      _
    $region19: #{fwd.1} parent=1 // pred_check_branch
      %63 = sbr.rel (0) target = $region21
    $region20: #{fwd.1} parent=1 // pred_region
      _
    $region21: #{fwd.1} parent=1 // pred_fallthru
      _
    // Predicated region
    $region22: #{fwd.1} parent=1 // pred_check
      _
    $region23: #{fwd.1} parent=1 // pred_check_branch
      %65 = sbr.rel (0) target = $region25
    $region24: #{fwd.1} parent=1 // pred_region
      %s67 = ssub.s32 6144, 6144
      %68 = vsyncadd [#allocation14], %s67
      %s69 = sshll.u32 [#allocation13], 4
      %s70 = int_to_ptr.vmem [resolvable:$true] %s69
      %75 = dma.hbm_to_vmem [thread:$0]  %s5, 6144, %s70, [#allocation14], 64, 64, 4
    $region25: #{fwd.1} parent=1 // pred_fallthru
      _
    // Predicated region
    $region26: #{fwd.1} parent=1 // pred_check
      _
    $region27: #{fwd.1} parent=1 // pred_check_branch
      %77 = sbr.rel (0) target = $region29
    $region28: #{fwd.1} parent=1 // pred_region
      _
    $region29: #{fwd.1} parent=1 // pred_fallthru
      _
    // Predicated region
    $region30: #{fwd.1} parent=1 // pred_check
      _
    $region31: #{fwd.1} parent=1 // pred_check_branch
      %79 = sbr.rel (0) target = $region33
    $region32: #{fwd.1} parent=1 // pred_region
      %s81 = ssub.s32 64, 64
      %82 = vsyncadd [#allocation14], %s81
      %s84 = sshll.u32 [#allocation15], 4
      %s85 = int_to_ptr.vmem [resolvable:$true] %s84
      %87 = dma.hbm_to_vmem [thread:$0]  %s7, 64, %s85, [#allocation14]
    $region33: #{fwd.1} parent=1 // pred_fallthru
      _
    // Predicated region
    $region34: #{fwd.1} parent=1 // pred_check
      _
    $region35: #{fwd.1} parent=1 // pred_check_branch
      %89 = sbr.rel (0) target = $region37
    $region36: #{fwd.1} parent=1 // pred_region
      %s91 = ssub.s32 64, 64
      %92 = vsyncadd [#allocation17], %s91
      %s94 = sshll.u32 [#allocation16], 4
      %s95 = int_to_ptr.vmem [resolvable:$true] %s94
      %97 = dma.hbm_to_vmem [thread:$0]  %s8, 64, %s95, [#allocation17]
    $region37: #{fwd.1} parent=1 // pred_fallthru
      _
    // Predicated region
    $region38: #{fwd.1} parent=1 // pred_check
      _
    $region39: #{fwd.1} parent=1 // pred_check_branch
      %99 = sbr.rel (0) target = $region41
    $region40: #{fwd.1} parent=1 // pred_region
      %s101 = ssub.s32 64, 64
      %102 = vsyncadd [#allocation17], %s101
      %s104 = sshll.u32 [#allocation18], 4
      %s105 = int_to_ptr.vmem [resolvable:$true] %s104
      %107 = dma.hbm_to_vmem [thread:$0]  %s9, 64, %s105, [#allocation17]
    $region41: #{fwd.1} parent=1 // pred_fallthru
      _
    // Predicated region
    $region42: #{fwd.1} parent=1 // pred_check
      _
    $region43: #{fwd.1} parent=1 // pred_check_branch
      %109 = sbr.rel (0) target = $region45
    $region44: #{fwd.1} parent=1 // pred_region
      %s111 = ssub.s32 32, 32
      %112 = vsyncadd [#allocation20], %s111
      %s114 = sshll.u32 [#allocation19], 4
      %s115 = int_to_ptr.vmem [resolvable:$true] %s114
      %117 = dma.hbm_to_vmem [thread:$0]  %s10, 32, %s115, [#allocation20]
    $region45: #{fwd.1} parent=1 // pred_fallthru
      _
    // Predicated region
    $region46: #{fwd.1} parent=1 // pred_check
      _
    $region47: #{fwd.1} parent=1 // pred_check_branch
      %119 = sbr.rel (0) target = $region49
    $region48: #{fwd.1} parent=1 // pred_region
      %s121 = ssub.s32 16, 16
      %122 = vsyncadd [#allocation20], %s121
      %s124 = sshll.u32 [#allocation21], 4
      %s125 = int_to_ptr.vmem [resolvable:$true] %s124
      %127 = dma.hbm_to_vmem [thread:$0]  %s11, 16, %s125, [#allocation20]
    $region49: #{fwd.1} parent=1 // pred_fallthru
      _
    // Predicated region
    $region50: #{fwd.1} parent=1 // pred_check
      _
    $region51: #{fwd.1} parent=1 // pred_check_branch
      %129 = sbr.rel (0) target = $region53
    $region52: #{fwd.1} parent=1 // pred_region
      %s131 = ssub.s32 16, 16
      %132 = vsyncadd [#allocation23], %s131
      %s134 = sshll.u32 [#allocation22], 4
      %s135 = int_to_ptr.vmem [resolvable:$true] %s134
      %137 = dma.hbm_to_vmem [thread:$0]  %s12, 16, %s135, [#allocation23]
    $region53: #{fwd.1} parent=1 // pred_fallthru
      _
    // Predicated region
    $region54: #{fwd.1} parent=1 // pred_check
      _
    $region55: #{fwd.1} parent=1 // pred_check_branch
      %139 = sbr.rel (0) target = $region57
    $region56: #{fwd.1} parent=1 // pred_region
      %140 = dma.done [#allocation9], 9216
    $region57: #{fwd.1} parent=1 // pred_fallthru
      _
    // Predicated region
    $region58: #{fwd.1} parent=1 // pred_check
      _
    $region59: #{fwd.1} parent=1 // pred_check_branch
      %142 = sbr.rel (0) target = $region61
    $region60: #{fwd.1} parent=1 // pred_region
      %143 = dma.done [#allocation11], 49152
    $region61: #{fwd.1} parent=1 // pred_fallthru
      _
    // Predicated region
    $region62: #{fwd.1} parent=1 // pred_check
      _
    $region63: #{fwd.1} parent=1 // pred_check_branch
      %145 = sbr.rel (0) target = $region65
    $region64: #{fwd.1} parent=1 // pred_region
      %146 = dma.done [#allocation11], 49152
    $region65: #{fwd.1} parent=1 // pred_fallthru
      _
    // Predicated region
    $region66: #{fwd.1} parent=1 // pred_check
      _
    $region67: #{fwd.1} parent=1 // pred_check_branch
      %148 = sbr.rel (0) target = $region69
    $region68: #{fwd.1} parent=1 // pred_region
      %149 = dma.done [#allocation14], 6144
    $region69: #{fwd.1} parent=1 // pred_fallthru
      _
    // Predicated region
    $region70: #{fwd.1} parent=1 // pred_check
      _
    $region71: #{fwd.1} parent=1 // pred_check_branch
      %151 = sbr.rel (0) target = $region73
    $region72: #{fwd.1} parent=1 // pred_region
      %152 = dma.done [#allocation14], 64
    $region73: #{fwd.1} parent=1 // pred_fallthru
      _
    // Predicated region
    $region74: #{fwd.1} parent=1 // pred_check
      _
    $region75: #{fwd.1} parent=1 // pred_check_branch
      %154 = sbr.rel (0) target = $region77
    $region76: #{fwd.1} parent=1 // pred_region
      %155 = dma.done [#allocation17], 64
    $region77: #{fwd.1} parent=1 // pred_fallthru
      _
    // Predicated region
    $region78: #{fwd.1} parent=1 // pred_check
      _
    $region79: #{fwd.1} parent=1 // pred_check_branch
      %157 = sbr.rel (0) target = $region81
    $region80: #{fwd.1} parent=1 // pred_region
      %158 = dma.done [#allocation17], 64
    $region81: #{fwd.1} parent=1 // pred_fallthru
      _
    // Predicated region
    $region82: #{fwd.1} parent=1 // pred_check
      _
    $region83: #{fwd.1} parent=1 // pred_check_branch
      %160 = sbr.rel (0) target = $region85
    $region84: #{fwd.1} parent=1 // pred_region
      %161 = dma.done [#allocation20], 32
    $region85: #{fwd.1} parent=1 // pred_fallthru
      _
    // Predicated region
    $region86: #{fwd.1} parent=1 // pred_check
      _
    $region87: #{fwd.1} parent=1 // pred_check_branch
      %163 = sbr.rel (0) target = $region89
    $region88: #{fwd.1} parent=1 // pred_region
      %164 = dma.done [#allocation20], 16
    $region89: #{fwd.1} parent=1 // pred_fallthru
      _
    // Predicated region
    $region90: #{fwd.1} parent=1 // pred_check
      _
    $region91: #{fwd.1} parent=1 // pred_check_branch
      %166 = sbr.rel (0) target = $region93
    $region92: #{fwd.1} parent=1 // pred_region
      %167 = dma.done [#allocation23], 16
    $region93: #{fwd.1} parent=1 // pred_fallthru
      _
    %vm169 = vcmask 778240
    %170 = vst.msk [vmem:[#allocation2] sm:$0x1] %vm169, 0
    %v171 = vld [vmem:[%s0] sm:$0x2]
    %vm172 = vcmask 779265
    %173 = vst.msk [vmem:[#allocation2] sm:$0x2] %vm172, %v171
    %v174 = vld [vmem:[%s0] sm:$0x8]
    %v176 = vunpack.c.l.b16 %v174
    %v177 = vpack.c.b16 %v176, %v176
    %v178 = vrot.slane %v177, 1
    %vm180 = vcmask 780290
    %181 = vst.msk [vmem:[#allocation2] sm:$0x4] %vm180, %v178
    %v182 = vld [vmem:[%s0 + $0x4] sm:$0x2]
    %v184 = vunpack.c.l.b16 %v182
    %v185 = vpack.c.b16 %v184, %v184
    %v186 = vrot.slane %v185, 6
    %vm188 = vcmask 781315
    %189 = vst.msk [vmem:[#allocation2] sm:$0x8] %vm188, %v186
    %v190 = vld [vmem:[%s0 + $0x4] sm:$0x8]
    %v192 = vunpack.c.l.b16 %v190
    %v193 = vpack.c.b16 %v192, %v192
    %v194 = vrot.slane %v193, 7
    %vm196 = vcmask 782340
    %197 = vst.msk [vmem:[#allocation2] sm:$0x10] %vm196, %v194
    %v198 = vld [vmem:[%s0 + $0x8] sm:$0x2]
    %v200 = vunpack.c.l.b16 %v198
    %v201 = vpack.c.b16 %v200, %v200
    %vm203 = vcmask 783365
    %204 = vst.msk [vmem:[#allocation2] sm:$0x20] %vm203, %v201
    %v205 = vld [vmem:[%s0 + $0x8] sm:$0x8]
    %v207 = vunpack.c.l.b16 %v205
    %v208 = vpack.c.b16 %v207, %v207
    %v209 = vrot.slane %v208, 5
    %vm211 = vcmask 784390
    %212 = vst.msk [vmem:[#allocation2] sm:$0x40] %vm211, %v209
    %v213 = vld [vmem:[%s0 + $0xc] sm:$0x2]
    %v215 = vunpack.c.l.b16 %v213
    %v216 = vpack.c.b16 %v215, %v215
    %v217 = vrot.slane %v216, 2
    %vm219 = vcmask 785415
    %220 = vst.msk [vmem:[#allocation2] sm:$0x80] %vm219, %v217
    %v221 = vld [vmem:[%s0 + $0xc] sm:$0x8]
    %v223 = vunpack.c.l.b16 %v221
    %v224 = vpack.c.b16 %v223, %v223
    %v225 = vrot.slane %v224, 3
    %227 = vst.msk [vmem:[#allocation2 + $0x60] sm:$0x1] %vm169, %v225
    %v228 = vld [vmem:[%s0 + $0x10] sm:$0x2]
    %229 = vst.msk [vmem:[#allocation2 + $0x60] sm:$0x2] %vm172, %v228
    %v230 = vld [vmem:[%s0 + $0x10] sm:$0x8]
    %v232 = vunpack.c.l.b16 %v230
    %v233 = vpack.c.b16 %v232, %v232
    %v234 = vrot.slane %v233, 1
    %236 = vst.msk [vmem:[#allocation2 + $0x60] sm:$0x4] %vm180, %v234
    %v237 = vld [vmem:[%s0 + $0x14] sm:$0x2]
    %v239 = vunpack.c.l.b16 %v237
    %v240 = vpack.c.b16 %v239, %v239
    %v241 = vrot.slane %v240, 6
    %243 = vst.msk [vmem:[#allocation2 + $0x60] sm:$0x8] %vm188, %v241
    %v244 = vld [vmem:[%s0 + $0x14] sm:$0x8]
    %v246 = vunpack.c.l.b16 %v244
    %v247 = vpack.c.b16 %v246, %v246
    %v248 = vrot.slane %v247, 7
    %250 = vst.msk [vmem:[#allocation2 + $0x60] sm:$0x10] %vm196, %v248
    %v251 = vld [vmem:[%s0 + $0x18] sm:$0x2]
    %v253 = vunpack.c.l.b16 %v251
    %v254 = vpack.c.b16 %v253, %v253
    %256 = vst.msk [vmem:[#allocation2 + $0x60] sm:$0x20] %vm203, %v254
    %v257 = vld [vmem:[%s0 + $0x18] sm:$0x8]
    %v259 = vunpack.c.l.b16 %v257
    %v260 = vpack.c.b16 %v259, %v259
    %v261 = vrot.slane %v260, 5
    %263 = vst.msk [vmem:[#allocation2 + $0x60] sm:$0x40] %vm211, %v261
    %v264 = vld [vmem:[%s0 + $0x1c] sm:$0x2]
    %v266 = vunpack.c.l.b16 %v264
    %v267 = vpack.c.b16 %v266, %v266
    %v268 = vrot.slane %v267, 2
    %270 = vst.msk [vmem:[#allocation2 + $0x60] sm:$0x80] %vm219, %v268
    %v271 = vld [vmem:[%s0] sm:$0x1]
    %v273 = vunpack.c.l.b16 %v271
    %v274 = vpack.c.b16 %v273, %v273
    %275 = vrot.lane.b32.xlu0 %v274, 96
    %v276 = vpop.permute.xlu0 %275
    %vm278 = vcmask 1041152
    %279 = vst.msk [vmem:[#allocation2] sm:$0x1] %vm278, %v276
    %vm280 = vcmask 516096
    %281 = vst.msk [vmem:[#allocation2 + $0x8] sm:$0x1] %vm280, %v276
    %v282 = vld [vmem:[%s0] sm:$0x4]
    %v284 = vunpack.c.l.b16 %v282
    %v285 = vpack.c.b16 %v284, %v284
    %v286 = vrot.slane %v285, 1
    %287 = vrot.lane.b32.xlu0 %v286, 96
    %v288 = vpop.permute.xlu0 %287
    %vm290 = vcmask 1042177
    %291 = vst.msk [vmem:[#allocation2] sm:$0x2] %vm290, %v288
    %vm292 = vcmask 517121
    %293 = vst.msk [vmem:[#allocation2 + $0x8] sm:$0x2] %vm292, %v288
    %v294 = vld [vmem:[%s0 + $0x4] sm:$0x1]
    %v296 = vunpack.c.l.b16 %v294
    %v297 = vpack.c.b16 %v296, %v296
    %v298 = vrot.slane %v297, 6
    %299 = vrot.lane.b32.xlu0 %v298, 96
    %v300 = vpop.permute.xlu0 %299
    %vm302 = vcmask 1043202
    %303 = vst.msk [vmem:[#allocation2] sm:$0x4] %vm302, %v300
    %vm304 = vcmask 518146
    %305 = vst.msk [vmem:[#allocation2 + $0x8] sm:$0x4] %vm304, %v300
    %v306 = vld [vmem:[%s0 + $0x4] sm:$0x4]
    %v308 = vunpack.c.l.b16 %v306
    %v309 = vpack.c.b16 %v308, %v308
    %v310 = vrot.slane %v309, 7
    %311 = vrot.lane.b32.xlu0 %v310, 96
    %v312 = vpop.permute.xlu0 %311
    %vm314 = vcmask 1044227
    %315 = vst.msk [vmem:[#allocation2] sm:$0x8] %vm314, %v312
    %vm316 = vcmask 519171
    %317 = vst.msk [vmem:[#allocation2 + $0x8] sm:$0x8] %vm316, %v312
    %v318 = vld [vmem:[%s0 + $0x8] sm:$0x1]
    %v320 = vunpack.c.l.b16 %v318
    %v321 = vpack.c.b16 %v320, %v320
    %322 = vrot.lane.b32.xlu0 %v321, 96
    %v323 = vpop.permute.xlu0 %322
    %vm325 = vcmask 1045252
    %326 = vst.msk [vmem:[#allocation2] sm:$0x10] %vm325, %v323
    %vm327 = vcmask 520196
    %328 = vst.msk [vmem:[#allocation2 + $0x8] sm:$0x10] %vm327, %v323
    %v329 = vld [vmem:[%s0 + $0x8] sm:$0x4]
    %v331 = vunpack.c.l.b16 %v329
    %v332 = vpack.c.b16 %v331, %v331
    %v333 = vrot.slane %v332, 5
    %334 = vrot.lane.b32.xlu0 %v333, 96
    %v335 = vpop.permute.xlu0 %334
    %vm337 = vcmask 1046277
    %338 = vst.msk [vmem:[#allocation2] sm:$0x20] %vm337, %v335
    %vm339 = vcmask 521221
    %340 = vst.msk [vmem:[#allocation2 + $0x8] sm:$0x20] %vm339, %v335
    %v341 = vld [vmem:[%s0 + $0xc] sm:$0x1]
    %v343 = vunpack.c.l.b16 %v341
    %v344 = vpack.c.b16 %v343, %v343
    %v345 = vrot.slane %v344, 2
    %346 = vrot.lane.b32.xlu0 %v345, 96
    %v347 = vpop.permute.xlu0 %346
    %vm349 = vcmask 1047302
    %350 = vst.msk [vmem:[#allocation2] sm:$0x40] %vm349, %v347
    %vm351 = vcmask 522246
    %352 = vst.msk [vmem:[#allocation2 + $0x8] sm:$0x40] %vm351, %v347
    %v353 = vld [vmem:[%s0 + $0xc] sm:$0x4]
    %v355 = vunpack.c.l.b16 %v353
    %v356 = vpack.c.b16 %v355, %v355
    %v357 = vrot.slane %v356, 3
    %358 = vrot.lane.b32.xlu0 %v357, 96
    %v359 = vpop.permute.xlu0 %358
    %vm361 = vcmask 1048327
    %362 = vst.msk [vmem:[#allocation2] sm:$0x80] %vm361, %v359
    %vm363 = vcmask 523271
    %364 = vst.msk [vmem:[#allocation2 + $0x8] sm:$0x80] %vm363, %v359
    %v365 = vld [vmem:[%s0 + $0x10] sm:$0x1]
    %v367 = vunpack.c.l.b16 %v365
    %v368 = vpack.c.b16 %v367, %v367
    %369 = vrot.lane.b32.xlu0 %v368, 96
    %v370 = vpop.permute.xlu0 %369
    %372 = vst.msk [vmem:[#allocation2 + $0x60] sm:$0x1] %vm278, %v370
    %373 = vst.msk [vmem:[#allocation2 + $0x68] sm:$0x1] %vm280, %v370
    %v374 = vld [vmem:[%s0 + $0x10] sm:$0x4]
    %v376 = vunpack.c.l.b16 %v374
    %v377 = vpack.c.b16 %v376, %v376
    %v378 = vrot.slane %v377, 1
    %379 = vrot.lane.b32.xlu0 %v378, 96
    %v380 = vpop.permute.xlu0 %379
    %382 = vst.msk [vmem:[#allocation2 + $0x60] sm:$0x2] %vm290, %v380
    %383 = vst.msk [vmem:[#allocation2 + $0x68] sm:$0x2] %vm292, %v380
    %v384 = vld [vmem:[%s0 + $0x14] sm:$0x1]
    %v386 = vunpack.c.l.b16 %v384
    %v387 = vpack.c.b16 %v386, %v386
    %v388 = vrot.slane %v387, 6
    %389 = vrot.lane.b32.xlu0 %v388, 96
    %v390 = vpop.permute.xlu0 %389
    %392 = vst.msk [vmem:[#allocation2 + $0x60] sm:$0x4] %vm302, %v390
    %393 = vst.msk [vmem:[#allocation2 + $0x68] sm:$0x4] %vm304, %v390
    %v394 = vld [vmem:[%s0 + $0x14] sm:$0x4]
    %v396 = vunpack.c.l.b16 %v394
    %v397 = vpack.c.b16 %v396, %v396
    %v398 = vrot.slane %v397, 7
    %399 = vrot.lane.b32.xlu0 %v398, 96
    %v400 = vpop.permute.xlu0 %399
    %402 = vst.msk [vmem:[#allocation2 + $0x60] sm:$0x8] %vm314, %v400
    %403 = vst.msk [vmem:[#allocation2 + $0x68] sm:$0x8] %vm316, %v400
    %v404 = vld [vmem:[%s0 + $0x18] sm:$0x1]
    %v406 = vunpack.c.l.b16 %v404
    %v407 = vpack.c.b16 %v406, %v406
    %408 = vrot.lane.b32.xlu0 %v407, 96
    %v409 = vpop.permute.xlu0 %408
    %411 = vst.msk [vmem:[#allocation2 + $0x60] sm:$0x10] %vm325, %v409
    %412 = vst.msk [vmem:[#allocation2 + $0x68] sm:$0x10] %vm327, %v409
    %v413 = vld [vmem:[%s0 + $0x18] sm:$0x4]
    %v415 = vunpack.c.l.b16 %v413
    %v416 = vpack.c.b16 %v415, %v415
    %v417 = vrot.slane %v416, 5
    %418 = vrot.lane.b32.xlu0 %v417, 96
    %v419 = vpop.permute.xlu0 %418
    %421 = vst.msk [vmem:[#allocation2 + $0x60] sm:$0x20] %vm337, %v419
    %422 = vst.msk [vmem:[#allocation2 + $0x68] sm:$0x20] %vm339, %v419
    %v423 = vld [vmem:[%s0 + $0x1c] sm:$0x1]
    %v425 = vunpack.c.l.b16 %v423
    %v426 = vpack.c.b16 %v425, %v425
    %v427 = vrot.slane %v426, 2
    %428 = vrot.lane.b32.xlu0 %v427, 96
    %v429 = vpop.permute.xlu0 %428
    %431 = vst.msk [vmem:[#allocation2 + $0x60] sm:$0x40] %vm349, %v429
    %432 = vst.msk [vmem:[#allocation2 + $0x68] sm:$0x40] %vm351, %v429
    %v433 = vld [vmem:[%s0 + $0x1c] sm:$0x4]
    %v435 = vunpack.c.l.b16 %v433
    %v436 = vpack.c.b16 %v435, %v435
    %v437 = vrot.slane %v436, 3
    %438 = vrot.lane.b32.xlu0 %v437, 96
    %v439 = vpop.permute.xlu0 %438
    %441 = vst.msk [vmem:[#allocation2 + $0x60] sm:$0x80] %vm361, %v439
    %442 = vst.msk [vmem:[#allocation2 + $0x68] sm:$0x80] %vm363, %v439
    %v443 = vld [vmem:[%s0] sm:$0x2]
    %v445 = vunpack.c.l.b16 %v443
    %v446 = vpack.c.b16 %v445, %v445
    %v447 = vrot.slane %v446, 1
    %448 = vrot.lane.b32.xlu0 %v447, 64
    %v449 = vpop.permute.xlu0 %448
    %vm451 = vcmask 1040896
    %452 = vst.msk [vmem:[#allocation2 + $0x8] sm:$0x1] %vm451, %v449
    %vm453 = vcmask 253952
    %454 = vst.msk [vmem:[#allocation2 + $0x10] sm:$0x1] %vm453, %v449
    %v455 = vld [vmem:[%s0] sm:$0x8]
    %v457 = vunpack.c.l.b16 %v455
    %v458 = vpack.c.b16 %v457, %v457
    %v459 = vrot.slane %v458, 2
    %460 = vrot.lane.b32.xlu0 %v459, 64
    %v461 = vpop.permute.xlu0 %460
    %vm463 = vcmask 1041921
    %464 = vst.msk [vmem:[#allocation2 + $0x8] sm:$0x2] %vm463, %v461
    %vm465 = vcmask 254977
    %466 = vst.msk [vmem:[#allocation2 + $0x10] sm:$0x2] %vm465, %v461
    %v467 = vld [vmem:[%s0 + $0x4] sm:$0x2]
    %v469 = vunpack.c.l.b16 %v467
    %v470 = vpack.c.b16 %v469, %v469
    %v471 = vrot.slane %v470, 7
    %472 = vrot.lane.b32.xlu0 %v471, 64
    %v473 = vpop.permute.xlu0 %472
    %vm475 = vcmask 1042946
    %476 = vst.msk [vmem:[#allocation2 + $0x8] sm:$0x4] %vm475, %v473
    %vm477 = vcmask 256002
    %478 = vst.msk [vmem:[#allocation2 + $0x10] sm:$0x4] %vm477, %v473
    %v479 = vld [vmem:[%s0 + $0x4] sm:$0x8]
    %v481 = vunpack.c.l.b16 %v479
    %v482 = vpack.c.b16 %v481, %v481
    %483 = vrot.lane.b32.xlu0 %v482, 64
    %v484 = vpop.permute.xlu0 %483
    %vm486 = vcmask 1043971
    %487 = vst.msk [vmem:[#allocation2 + $0x8] sm:$0x8] %vm486, %v484
    %vm488 = vcmask 257027
    %489 = vst.msk [vmem:[#allocation2 + $0x10] sm:$0x8] %vm488, %v484
    %v490 = vld [vmem:[%s0 + $0x8] sm:$0x2]
    %v492 = vunpack.c.l.b16 %v490
    %v493 = vpack.c.b16 %v492, %v492
    %v494 = vrot.slane %v493, 5
    %495 = vrot.lane.b32.xlu0 %v494, 64
    %v496 = vpop.permute.xlu0 %495
    %vm498 = vcmask 1044996
    %499 = vst.msk [vmem:[#allocation2 + $0x8] sm:$0x10] %vm498, %v496
    %vm500 = vcmask 258052
    %501 = vst.msk [vmem:[#allocation2 + $0x10] sm:$0x10] %vm500, %v496
    %v502 = vld [vmem:[%s0 + $0x8] sm:$0x8]
    %v504 = vunpack.c.l.b16 %v502
    %v505 = vpack.c.b16 %v504, %v504
    %v506 = vrot.slane %v505, 6
    %507 = vrot.lane.b32.xlu0 %v506, 64
    %v508 = vpop.permute.xlu0 %507
    %vm510 = vcmask 1046021
    %511 = vst.msk [vmem:[#allocation2 + $0x8] sm:$0x20] %vm510, %v508
    %vm512 = vcmask 259077
    %513 = vst.msk [vmem:[#allocation2 + $0x10] sm:$0x20] %vm512, %v508
    %v514 = vld [vmem:[%s0 + $0xc] sm:$0x2]
    %v516 = vunpack.c.l.b16 %v514
    %v517 = vpack.c.b16 %v516, %v516
    %v518 = vrot.slane %v517, 3
    %519 = vrot.lane.b32.xlu0 %v518, 64
    %v520 = vpop.permute.xlu0 %519
    %vm522 = vcmask 1047046
    %523 = vst.msk [vmem:[#allocation2 + $0x8] sm:$0x40] %vm522, %v520
    %vm524 = vcmask 260102
    %525 = vst.msk [vmem:[#allocation2 + $0x10] sm:$0x40] %vm524, %v520
    %v526 = vld [vmem:[%s0 + $0xc] sm:$0x8]
    %v528 = vunpack.c.l.b16 %v526
    %v529 = vpack.c.b16 %v528, %v528
    %530 = vrot.lane.b32.xlu0 %v529, 64
    %v531 = vpop.permute.xlu0 %530
    %vm533 = vcmask 1048071
    %534 = vst.msk [vmem:[#allocation2 + $0x8] sm:$0x80] %vm533, %v531
    %vm535 = vcmask 261127
    %536 = vst.msk [vmem:[#allocation2 + $0x10] sm:$0x80] %vm535, %v531
    %v537 = vld [vmem:[%s0 + $0x10] sm:$0x2]
    %v539 = vunpack.c.l.b16 %v537
    %v540 = vpack.c.b16 %v539, %v539
    %v541 = vrot.slane %v540, 1
    %542 = vrot.lane.b32.xlu0 %v541, 64
    %v543 = vpop.permute.xlu0 %542
    %545 = vst.msk [vmem:[#allocation2 + $0x68] sm:$0x1] %vm451, %v543
    %546 = vst.msk [vmem:[#allocation2 + $0x70] sm:$0x1] %vm453, %v543
    %v547 = vld [vmem:[%s0 + $0x10] sm:$0x8]
    %v549 = vunpack.c.l.b16 %v547
    %v550 = vpack.c.b16 %v549, %v549
    %v551 = vrot.slane %v550, 2
    %552 = vrot.lane.b32.xlu0 %v551, 64
    %v553 = vpop.permute.xlu0 %552
    %555 = vst.msk [vmem:[#allocation2 + $0x68] sm:$0x2] %vm463, %v553
    %556 = vst.msk [vmem:[#allocation2 + $0x70] sm:$0x2] %vm465, %v553
    %v557 = vld [vmem:[%s0 + $0x14] sm:$0x2]
    %v559 = vunpack.c.l.b16 %v557
    %v560 = vpack.c.b16 %v559, %v559
    %v561 = vrot.slane %v560, 7
    %562 = vrot.lane.b32.xlu0 %v561, 64
    %v563 = vpop.permute.xlu0 %562
    %565 = vst.msk [vmem:[#allocation2 + $0x68] sm:$0x4] %vm475, %v563
    %566 = vst.msk [vmem:[#allocation2 + $0x70] sm:$0x4] %vm477, %v563
    %v567 = vld [vmem:[%s0 + $0x14] sm:$0x8]
    %v569 = vunpack.c.l.b16 %v567
    %v570 = vpack.c.b16 %v569, %v569
    %571 = vrot.lane.b32.xlu0 %v570, 64
    %v572 = vpop.permute.xlu0 %571
    %574 = vst.msk [vmem:[#allocation2 + $0x68] sm:$0x8] %vm486, %v572
    %575 = vst.msk [vmem:[#allocation2 + $0x70] sm:$0x8] %vm488, %v572
    %v576 = vld [vmem:[%s0 + $0x18] sm:$0x2]
    %v578 = vunpack.c.l.b16 %v576
    %v579 = vpack.c.b16 %v578, %v578
    %v580 = vrot.slane %v579, 5
    %581 = vrot.lane.b32.xlu0 %v580, 64
    %v582 = vpop.permute.xlu0 %581
    %584 = vst.msk [vmem:[#allocation2 + $0x68] sm:$0x10] %vm498, %v582
    %585 = vst.msk [vmem:[#allocation2 + $0x70] sm:$0x10] %vm500, %v582
    %v586 = vld [vmem:[%s0 + $0x18] sm:$0x8]
    %v588 = vunpack.c.l.b16 %v586
    %v589 = vpack.c.b16 %v588, %v588
    %v590 = vrot.slane %v589, 6
    %591 = vrot.lane.b32.xlu0 %v590, 64
    %v592 = vpop.permute.xlu0 %591
    %594 = vst.msk [vmem:[#allocation2 + $0x68] sm:$0x20] %vm510, %v592
    %595 = vst.msk [vmem:[#allocation2 + $0x70] sm:$0x20] %vm512, %v592
    %v596 = vld [vmem:[%s0 + $0x1c] sm:$0x2]
    %v598 = vunpack.c.l.b16 %v596
    %v599 = vpack.c.b16 %v598, %v598
    %v600 = vrot.slane %v599, 3
    %601 = vrot.lane.b32.xlu0 %v600, 64
    %v602 = vpop.permute.xlu0 %601
    %604 = vst.msk [vmem:[#allocation2 + $0x68] sm:$0x40] %vm522, %v602
    %605 = vst.msk [vmem:[#allocation2 + $0x70] sm:$0x40] %vm524, %v602
    %v606 = vld [vmem:[%s0 + $0x1c] sm:$0x8]
    %v608 = vunpack.c.l.b16 %v606
    %v609 = vpack.c.b16 %v608, %v608
    %610 = vrot.lane.b32.xlu0 %v609, 64
    %v611 = vpop.permute.xlu0 %610
    %613 = vst.msk [vmem:[#allocation2 + $0x68] sm:$0x80] %vm533, %v611
    %614 = vst.msk [vmem:[#allocation2 + $0x70] sm:$0x80] %vm535, %v611
    %v615 = vld [vmem:[#allocation2] sm:$0xff]
    %v616 = vld [vmem:[#allocation2 + $0x8] sm:$0xff]
    %v617 = vld [vmem:[#allocation2 + $0x10] sm:$0xff]
    %v618 = vld [vmem:[#allocation2 + $0x60] sm:$0xff]
    %v619 = vld [vmem:[#allocation2 + $0x68] sm:$0xff]
    %v620 = vld [vmem:[#allocation2 + $0x70] sm:$0xff]
    %v621 = vld [vmem:[#allocation8] sm:$0xff]
    %v622 = vld [vmem:[#allocation8 + $0x8] sm:$0xff]
    %v623 = vld [vmem:[#allocation8 + $0x10] sm:$0xff]
    %v624 = vld [vmem:[#allocation8 + $0x18] sm:$0xff]
    %v625 = vld [vmem:[#allocation8 + $0x20] sm:$0xff]
    %v626 = vld [vmem:[#allocation8 + $0x28] sm:$0xff]
    %v627 = vld [vmem:[#allocation8 + $0x30] sm:$0xff]
    %v628 = vld [vmem:[#allocation8 + $0x38] sm:$0xff]
    %v629 = vld [vmem:[#allocation8 + $0x40] sm:$0xff]
    %v630 = vld [vmem:[#allocation8 + $0x48] sm:$0xff]
    %v631 = vld [vmem:[#allocation8 + $0x50] sm:$0xff]
    %v632 = vld [vmem:[#allocation8 + $0x58] sm:$0xff]
    %v633 = vld [vmem:[#allocation8 + $0x60] sm:$0xff]
    %v634 = vld [vmem:[#allocation8 + $0x68] sm:$0xff]
    %v635 = vld [vmem:[#allocation8 + $0x70] sm:$0xff]
    %v636 = vld [vmem:[#allocation8 + $0x78] sm:$0xff]
    %v637 = vld [vmem:[#allocation8 + $0x80] sm:$0xff]
    %v638 = vld [vmem:[#allocation8 + $0x88] sm:$0xff]
    %v639 = vld [vmem:[#allocation8 + $0x90] sm:$0xff]
    %v640 = vld [vmem:[#allocation8 + $0x98] sm:$0xff]
    %v641 = vld [vmem:[#allocation8 + $0xa0] sm:$0xff]
    %v642 = vld [vmem:[#allocation8 + $0xa8] sm:$0xff]
    %v643 = vld [vmem:[#allocation8 + $0xb0] sm:$0xff]
    %v644 = vld [vmem:[#allocation8 + $0xb8] sm:$0xff]
    %v645 = vld [vmem:[#allocation8 + $0xc0] sm:$0xff]
    %v646 = vld [vmem:[#allocation8 + $0xc8] sm:$0xff]
    %v647 = vld [vmem:[#allocation8 + $0xd0] sm:$0xff]
    %v648 = vld [vmem:[#allocation8 + $0xd8] sm:$0xff]
    %v649 = vld [vmem:[#allocation8 + $0xe0] sm:$0xff]
    %v650 = vld [vmem:[#allocation8 + $0xe8] sm:$0xff]
    %v651 = vld [vmem:[#allocation8 + $0xf0] sm:$0xff]
    %v652 = vld [vmem:[#allocation8 + $0xf8] sm:$0xff]
    %v653 = vld [vmem:[#allocation8 + $0x100] sm:$0xff]
    %v654 = vld [vmem:[#allocation8 + $0x108] sm:$0xff]
    %v655 = vld [vmem:[#allocation8 + $0x110] sm:$0xff]
    %v656 = vld [vmem:[#allocation8 + $0x118] sm:$0xff]
    %v657 = vld [vmem:[#allocation8 + $0x120] sm:$0xff]
    %v658 = vld [vmem:[#allocation8 + $0x128] sm:$0xff]
    %v659 = vld [vmem:[#allocation8 + $0x130] sm:$0xff]
    %v660 = vld [vmem:[#allocation8 + $0x138] sm:$0xff]
    %v661 = vld [vmem:[#allocation8 + $0x140] sm:$0xff]
    %v662 = vld [vmem:[#allocation8 + $0x148] sm:$0xff]
    %v663 = vld [vmem:[#allocation8 + $0x150] sm:$0xff]
    %v664 = vld [vmem:[#allocation8 + $0x158] sm:$0xff]
    %v665 = vld [vmem:[#allocation8 + $0x160] sm:$0xff]
    %v666 = vld [vmem:[#allocation8 + $0x168] sm:$0xff]
    %v667 = vld [vmem:[#allocation8 + $0x170] sm:$0xff]
    %v668 = vld [vmem:[#allocation8 + $0x178] sm:$0xff]
    %v669 = vld [vmem:[#allocation8 + $0x180] sm:$0xff]
    %v670 = vld [vmem:[#allocation8 + $0x188] sm:$0xff]
    %v671 = vld [vmem:[#allocation8 + $0x190] sm:$0xff]
    %v672 = vld [vmem:[#allocation8 + $0x198] sm:$0xff]
    %v673 = vld [vmem:[#allocation8 + $0x1a0] sm:$0xff]
    %v674 = vld [vmem:[#allocation8 + $0x1a8] sm:$0xff]
    %v675 = vld [vmem:[#allocation8 + $0x1b0] sm:$0xff]
    %v676 = vld [vmem:[#allocation8 + $0x1b8] sm:$0xff]
    %v677 = vld [vmem:[#allocation8 + $0x1c0] sm:$0xff]
    %v678 = vld [vmem:[#allocation8 + $0x1c8] sm:$0xff]
    %v679 = vld [vmem:[#allocation8 + $0x1d0] sm:$0xff]
    %v680 = vld [vmem:[#allocation8 + $0x1d8] sm:$0xff]
    %v681 = vld [vmem:[#allocation8 + $0x1e0] sm:$0xff]
    %v682 = vld [vmem:[#allocation8 + $0x1e8] sm:$0xff]
    %v683 = vld [vmem:[#allocation8 + $0x1f0] sm:$0xff]
    %v684 = vld [vmem:[#allocation8 + $0x1f8] sm:$0xff]
    %v685 = vld [vmem:[#allocation8 + $0x200] sm:$0xff]
    %v686 = vld [vmem:[#allocation8 + $0x208] sm:$0xff]
    %v687 = vld [vmem:[#allocation8 + $0x210] sm:$0xff]
    %v688 = vld [vmem:[#allocation8 + $0x218] sm:$0xff]
    %v689 = vld [vmem:[#allocation8 + $0x220] sm:$0xff]
    %v690 = vld [vmem:[#allocation8 + $0x228] sm:$0xff]
    %v691 = vld [vmem:[#allocation8 + $0x230] sm:$0xff]
    %v692 = vld [vmem:[#allocation8 + $0x238] sm:$0xff]
    %v693 = vld [vmem:[#allocation15] sm:$0xf]
    %v695 = vlaneseq
    %v696 = vshrl.u32 %v695, 7
    %v697 = vsub.s32 0, %v696
    %v698 = vrot.slane %v693, %v697
    %v699 = vlaneseq
    %v700 = vshrl.u32 %v699, 7
    %v701 = vsub.s32 1, %v700
    %v702 = vrot.slane %v693, %v701
    %v703 = vlaneseq
    %v704 = vshrl.u32 %v703, 7
    %v705 = vsub.s32 2, %v704
    %v706 = vrot.slane %v693, %v705
    %v707 = vlaneseq
    %v708 = vshrl.u32 %v707, 7
    %v709 = vsub.s32 3, %v708
    %v710 = vrot.slane %v693, %v709
    %v787 = vunpack.c.l.b16 %v621
    %v788 = vunpack.c.h.b16 %v621
    %v789 = vunpack.c.l.b16 %v622
    %v790 = vunpack.c.h.b16 %v622
    %v791 = vunpack.c.l.b16 %v623
    %v792 = vunpack.c.h.b16 %v623
    %v793 = vunpack.c.l.b16 %v624
    %v794 = vunpack.c.h.b16 %v624
    %v795 = vunpack.c.l.b16 %v625
    %v796 = vunpack.c.h.b16 %v625
    %v797 = vunpack.c.l.b16 %v626
    %v798 = vunpack.c.h.b16 %v626
    %v799 = vunpack.c.l.b16 %v627
    %v800 = vunpack.c.h.b16 %v627
    %v801 = vunpack.c.l.b16 %v628
    %v802 = vunpack.c.h.b16 %v628
    %v803 = vunpack.c.l.b16 %v629
    %v804 = vunpack.c.h.b16 %v629
    %v805 = vunpack.c.l.b16 %v630
    %v806 = vunpack.c.h.b16 %v630
    %v807 = vunpack.c.l.b16 %v631
    %v808 = vunpack.c.h.b16 %v631
    %v809 = vunpack.c.l.b16 %v632
    %v810 = vunpack.c.h.b16 %v632
    %v811 = vunpack.c.l.b16 %v633
    %v812 = vunpack.c.h.b16 %v633
    %v813 = vunpack.c.l.b16 %v634
    %v814 = vunpack.c.h.b16 %v634
    %v815 = vunpack.c.l.b16 %v635
    %v816 = vunpack.c.h.b16 %v635
    %v817 = vunpack.c.l.b16 %v636
    %v818 = vunpack.c.h.b16 %v636
    %v819 = vunpack.c.l.b16 %v637
    %v820 = vunpack.c.h.b16 %v637
    %v821 = vunpack.c.l.b16 %v638
    %v822 = vunpack.c.h.b16 %v638
    %v823 = vunpack.c.l.b16 %v639
    %v824 = vunpack.c.h.b16 %v639
    %v825 = vunpack.c.l.b16 %v640
    %v826 = vunpack.c.h.b16 %v640
    %v827 = vunpack.c.l.b16 %v641
    %v828 = vunpack.c.h.b16 %v641
    %v829 = vunpack.c.l.b16 %v642
    %v830 = vunpack.c.h.b16 %v642
    %v831 = vunpack.c.l.b16 %v643
    %v832 = vunpack.c.h.b16 %v643
    %v833 = vunpack.c.l.b16 %v644
    %v834 = vunpack.c.h.b16 %v644
    %v835 = vunpack.c.l.b16 %v645
    %v836 = vunpack.c.h.b16 %v645
    %v837 = vunpack.c.l.b16 %v646
    %v838 = vunpack.c.h.b16 %v646
    %v839 = vunpack.c.l.b16 %v647
    %v840 = vunpack.c.h.b16 %v647
    %v841 = vunpack.c.l.b16 %v648
    %v842 = vunpack.c.h.b16 %v648
    %v843 = vunpack.c.l.b16 %v649
    %v844 = vunpack.c.h.b16 %v649
    %v845 = vunpack.c.l.b16 %v650
    %v846 = vunpack.c.h.b16 %v650
    %v847 = vunpack.c.l.b16 %v651
    %v848 = vunpack.c.h.b16 %v651
    %v849 = vunpack.c.l.b16 %v652
    %v850 = vunpack.c.h.b16 %v652
    %v851 = vunpack.c.l.b16 %v653
    %v852 = vunpack.c.h.b16 %v653
    %v853 = vunpack.c.l.b16 %v654
    %v854 = vunpack.c.h.b16 %v654
    %v855 = vunpack.c.l.b16 %v655
    %v856 = vunpack.c.h.b16 %v655
    %v857 = vunpack.c.l.b16 %v656
    %v858 = vunpack.c.h.b16 %v656
    %v859 = vunpack.c.l.b16 %v657
    %v860 = vunpack.c.h.b16 %v657
    %v861 = vunpack.c.l.b16 %v658
    %v862 = vunpack.c.h.b16 %v658
    %v863 = vunpack.c.l.b16 %v659
    %v864 = vunpack.c.h.b16 %v659
    %v865 = vunpack.c.l.b16 %v660
    %v866 = vunpack.c.h.b16 %v660
    %v867 = vunpack.c.l.b16 %v661
    %v868 = vunpack.c.h.b16 %v661
    %v869 = vunpack.c.l.b16 %v662
    %v870 = vunpack.c.h.b16 %v662
    %v871 = vunpack.c.l.b16 %v663
    %v872 = vunpack.c.h.b16 %v663
    %v873 = vunpack.c.l.b16 %v664
    %v874 = vunpack.c.h.b16 %v664
    %v875 = vunpack.c.l.b16 %v665
    %v876 = vunpack.c.h.b16 %v665
    %v877 = vunpack.c.l.b16 %v666
    %v878 = vunpack.c.h.b16 %v666
    %v879 = vunpack.c.l.b16 %v667
    %v880 = vunpack.c.h.b16 %v667
    %v881 = vunpack.c.l.b16 %v668
    %v882 = vunpack.c.h.b16 %v668
    %v883 = vunpack.c.l.b16 %v669
    %v884 = vunpack.c.h.b16 %v669
    %v885 = vunpack.c.l.b16 %v670
    %v886 = vunpack.c.h.b16 %v670
    %v887 = vunpack.c.l.b16 %v671
    %v888 = vunpack.c.h.b16 %v671
    %v889 = vunpack.c.l.b16 %v672
    %v890 = vunpack.c.h.b16 %v672
    %v891 = vunpack.c.l.b16 %v673
    %v892 = vunpack.c.h.b16 %v673
    %v893 = vunpack.c.l.b16 %v674
    %v894 = vunpack.c.h.b16 %v674
    %v895 = vunpack.c.l.b16 %v675
    %v896 = vunpack.c.h.b16 %v675
    %v897 = vunpack.c.l.b16 %v676
    %v898 = vunpack.c.h.b16 %v676
    %v899 = vunpack.c.l.b16 %v677
    %v900 = vunpack.c.h.b16 %v677
    %v901 = vunpack.c.l.b16 %v678
    %v902 = vunpack.c.h.b16 %v678
    %v903 = vunpack.c.l.b16 %v679
    %v904 = vunpack.c.h.b16 %v679
    %v905 = vunpack.c.l.b16 %v680
    %v906 = vunpack.c.h.b16 %v680
    %v907 = vunpack.c.l.b16 %v681
    %v908 = vunpack.c.h.b16 %v681
    %v909 = vunpack.c.l.b16 %v682
    %v910 = vunpack.c.h.b16 %v682
    %v911 = vunpack.c.l.b16 %v683
    %v912 = vunpack.c.h.b16 %v683
    %v913 = vunpack.c.l.b16 %v684
    %v914 = vunpack.c.h.b16 %v684
    %v915 = vunpack.c.l.b16 %v685
    %v916 = vunpack.c.h.b16 %v685
    %v917 = vunpack.c.l.b16 %v686
    %v918 = vunpack.c.h.b16 %v686
    %v919 = vunpack.c.l.b16 %v687
    %v920 = vunpack.c.h.b16 %v687
    %v921 = vunpack.c.l.b16 %v688
    %v922 = vunpack.c.h.b16 %v688
    %v923 = vunpack.c.l.b16 %v689
    %v924 = vunpack.c.h.b16 %v689
    %v925 = vunpack.c.l.b16 %v690
    %v926 = vunpack.c.h.b16 %v690
    %v927 = vunpack.c.l.b16 %v691
    %v928 = vunpack.c.h.b16 %v691
    %v929 = vunpack.c.l.b16 %v692
    %v930 = vunpack.c.h.b16 %v692
    %v931 = vpack.c.b16 %v791, %v787
    %v932 = vpack.c.b16 %v792, %v788
    %v933 = vpack.c.b16 %v793, %v789
    %v934 = vpack.c.b16 %v794, %v790
    %v935 = vpack.c.b16 %v799, %v795
    %v936 = vpack.c.b16 %v800, %v796
    %v937 = vpack.c.b16 %v801, %v797
    %v938 = vpack.c.b16 %v802, %v798
    %v939 = vpack.c.b16 %v807, %v803
    %v940 = vpack.c.b16 %v808, %v804
    %v941 = vpack.c.b16 %v809, %v805
    %v942 = vpack.c.b16 %v810, %v806
    %v943 = vpack.c.b16 %v815, %v811
    %v944 = vpack.c.b16 %v816, %v812
    %v945 = vpack.c.b16 %v817, %v813
    %v946 = vpack.c.b16 %v818, %v814
    %v947 = vpack.c.b16 %v823, %v819
    %v948 = vpack.c.b16 %v824, %v820
    %v949 = vpack.c.b16 %v825, %v821
    %v950 = vpack.c.b16 %v826, %v822
    %v951 = vpack.c.b16 %v831, %v827
    %v952 = vpack.c.b16 %v832, %v828
    %v953 = vpack.c.b16 %v833, %v829
    %v954 = vpack.c.b16 %v834, %v830
    %v955 = vpack.c.b16 %v839, %v835
    %v956 = vpack.c.b16 %v840, %v836
    %v957 = vpack.c.b16 %v841, %v837
    %v958 = vpack.c.b16 %v842, %v838
    %v959 = vpack.c.b16 %v847, %v843
    %v960 = vpack.c.b16 %v848, %v844
    %v961 = vpack.c.b16 %v849, %v845
    %v962 = vpack.c.b16 %v850, %v846
    %v963 = vpack.c.b16 %v855, %v851
    %v964 = vpack.c.b16 %v856, %v852
    %v965 = vpack.c.b16 %v857, %v853
    %v966 = vpack.c.b16 %v858, %v854
    %v967 = vpack.c.b16 %v863, %v859
    %v968 = vpack.c.b16 %v864, %v860
    %v969 = vpack.c.b16 %v865, %v861
    %v970 = vpack.c.b16 %v866, %v862
    %v971 = vpack.c.b16 %v871, %v867
    %v972 = vpack.c.b16 %v872, %v868
    %v973 = vpack.c.b16 %v873, %v869
    %v974 = vpack.c.b16 %v874, %v870
    %v975 = vpack.c.b16 %v879, %v875
    %v976 = vpack.c.b16 %v880, %v876
    %v977 = vpack.c.b16 %v881, %v877
    %v978 = vpack.c.b16 %v882, %v878
    %v979 = vpack.c.b16 %v887, %v883
    %v980 = vpack.c.b16 %v888, %v884
    %v981 = vpack.c.b16 %v889, %v885
    %v982 = vpack.c.b16 %v890, %v886
    %v983 = vpack.c.b16 %v895, %v891
    %v984 = vpack.c.b16 %v896, %v892
    %v985 = vpack.c.b16 %v897, %v893
    %v986 = vpack.c.b16 %v898, %v894
    %v987 = vpack.c.b16 %v903, %v899
    %v988 = vpack.c.b16 %v904, %v900
    %v989 = vpack.c.b16 %v905, %v901
    %v990 = vpack.c.b16 %v906, %v902
    %v991 = vpack.c.b16 %v911, %v907
    %v992 = vpack.c.b16 %v912, %v908
    %v993 = vpack.c.b16 %v913, %v909
    %v994 = vpack.c.b16 %v914, %v910
    %v995 = vpack.c.b16 %v919, %v915
    %v996 = vpack.c.b16 %v920, %v916
    %v997 = vpack.c.b16 %v921, %v917
    %v998 = vpack.c.b16 %v922, %v918
    %v999 = vpack.c.b16 %v927, %v923
    %v1000 = vpack.c.b16 %v928, %v924
    %v1001 = vpack.c.b16 %v929, %v925
    %v1002 = vpack.c.b16 %v930, %v926
    %vm1075 = vcmask 261120
    %v1077 = vsel %vm1075, %v617, 0
    %v1080 = vsel %vm1075, %v620, 0
    %1082 = vmatprep.subr.bf16.mxu0 %v932
    %1083 = vmatpush1.bf16.msra.mxu0 %v931
    %1084 = vmatprep.subr.bf16.mxu0 %v936
    %1085 = vmatpush1.bf16.msra.mxu0 %v935
    %1086 = vmatprep.subr.bf16.mxu0 %v940
    %1087 = vmatpush1.bf16.msra.mxu0 %v939
    %1088 = vmatprep.subr.bf16.mxu0 %v944
    %1089 = vmatpush1.bf16.msra.mxu0 %v943
    %1090 = vmatprep.subr.bf16.mxu0 %v948
    %1091 = vmatpush1.bf16.msra.mxu0 %v947
    %1092 = vmatprep.subr.bf16.mxu0 %v952
    %1093 = vmatpush1.bf16.msra.mxu0 %v951
    %1094 = vmatprep.subr.bf16.mxu0 %v956
    %1095 = vmatpush1.bf16.msra.mxu0 %v955
    %1096 = vmatprep.subr.bf16.mxu0 %v960
    %1097 = vmatpush1.bf16.msra.mxu0 %v959
    %1098 = vmatprep.subr.bf16.mxu0 %v964
    %1099 = vmatpush1.bf16.msra.mxu0 %v963
    %1100 = vmatprep.subr.bf16.mxu0 %v968
    %1101 = vmatpush1.bf16.msra.mxu0 %v967
    %1102 = vmatprep.subr.bf16.mxu0 %v972
    %1103 = vmatpush1.bf16.msra.mxu0 %v971
    %1104 = vmatprep.subr.bf16.mxu0 %v976
    %1105 = vmatpush1.bf16.msra.mxu0 %v975
    %1106 = vmatprep.subr.bf16.mxu0 %v980
    %1107 = vmatpush1.bf16.msra.mxu0 %v979
    %1108 = vmatprep.subr.bf16.mxu0 %v984
    %1109 = vmatpush1.bf16.msra.mxu0 %v983
    %1110 = vmatprep.subr.bf16.mxu0 %v988
    %1111 = vmatpush1.bf16.msra.mxu0 %v987
    %1112 = vmatprep.subr.bf16.mxu0 %v992
    %1113 = vmatpush1.bf16.msra.mxu0 %v991
    %1114 = vmatprep.mubr.bf16.mxu0 %v616
    %1115 = vmatmul.mubr.bf16.gmra.mrb[0].mxu0 %v615
    %v1116 = vpop.f32.mrb[0].mxu0
    %v1117 = vadd.f32 %v698, %v1116
    %v1118 = vpop.f32.mrb[0].mxu0
    %v1119 = vadd.f32 %v702, %v1118
    %v1120 = vpop.f32.mrb[0].mxu0
    %v1121 = vadd.f32 %v698, %v1120
    %v1122 = vpop.f32.mrb[0].mxu0
    %v1123 = vadd.f32 %v702, %v1122
    %1124 = vmatprep.mubr.bf16.mxu0 %v619
    %1125 = vmatmul.mubr.bf16.gmra.mrb[0].mxu0 %v618
    %v1126 = vpop.f32.mrb[0].mxu0
    %v1127 = vadd.f32 %v698, %v1126
    %v1128 = vpop.f32.mrb[0].mxu0
    %v1129 = vadd.f32 %v702, %v1128
    %v1130 = vpop.f32.mrb[0].mxu0
    %v1131 = vadd.f32 %v698, %v1130
    %v1132 = vpop.f32.mrb[0].mxu0
    %v1133 = vadd.f32 %v702, %v1132
    %1134 = vdwg.mxu0
    %1135 = vmatprep.subr.bf16.mxu0 %v996
    %1136 = vmatpush1.bf16.msra.mxu0 %v995
    %1137 = vmatprep.subr.bf16.mxu0 %v1000
    %1138 = vmatpush1.bf16.msra.mxu0 %v999
    %1139 = vmatprep.subr.bf16.mxu0 0
    %1140 = vmatpush1.bf16.msra.mxu0 0
    %1141 = vmatprep.subr.bf16.mxu0 0
    %1142 = vmatpush1.bf16.msra.mxu0 0
    %1143 = vmatprep.subr.bf16.mxu0 0
    %1144 = vmatpush1.bf16.msra.mxu0 0
    %1145 = vmatprep.subr.bf16.mxu0 0
    %1146 = vmatpush1.bf16.msra.mxu0 0
    %1147 = vmatprep.subr.bf16.mxu0 0
    %1148 = vmatpush1.bf16.msra.mxu0 0
    %1149 = vmatprep.subr.bf16.mxu0 0
    %1150 = vmatpush1.bf16.msra.mxu0 0
    %1151 = vmatprep.subr.bf16.mxu0 0
    %1152 = vmatpush1.bf16.msra.mxu0 0
    %1153 = vmatprep.subr.bf16.mxu0 0
    %1154 = vmatpush1.bf16.msra.mxu0 0
    %1155 = vmatprep.subr.bf16.mxu0 0
    %1156 = vmatpush1.bf16.msra.mxu0 0
    %1157 = vmatprep.subr.bf16.mxu0 0
    %1158 = vmatpush1.bf16.msra.mxu0 0
    %1159 = vmatprep.subr.bf16.mxu0 0
    %1160 = vmatpush1.bf16.msra.mxu0 0
    %1161 = vmatprep.subr.bf16.mxu0 0
    %1162 = vmatpush1.bf16.msra.mxu0 0
    %1163 = vmatprep.subr.bf16.mxu0 0
    %1164 = vmatpush1.bf16.msra.mxu0 0
    %1165 = vmatprep.subr.bf16.mxu0 0
    %1166 = vmatpush1.bf16.msra.mxu0 0
    %1167 = vmatprep.mubr.bf16.mxu0 0
    %1168 = vmatmul.mubr.bf16.gmra.mrb[0].mxu0 %v1077
    %v1169 = vpop.f32.mrb[0].mxu0
    %v1170 = vadd.f32 %v1117, %v1169
    %v1171 = vpop.f32.mrb[0].mxu0
    %v1172 = vadd.f32 %v1119, %v1171
    %v1173 = vpop.f32.mrb[0].mxu0
    %v1174 = vadd.f32 %v1121, %v1173
    %v1175 = vpop.f32.mrb[0].mxu0
    %v1176 = vadd.f32 %v1123, %v1175
    %1177 = vmatprep.mubr.bf16.mxu0 0
    %1178 = vmatmul.mubr.bf16.gmra.mrb[0].mxu0 %v1080
    %v1179 = vpop.f32.mrb[0].mxu0
    %v1180 = vadd.f32 %v1127, %v1179
    %v1181 = vpop.f32.mrb[0].mxu0
    %v1182 = vadd.f32 %v1129, %v1181
    %v1183 = vpop.f32.mrb[0].mxu0
    %v1184 = vadd.f32 %v1131, %v1183
    %v1185 = vpop.f32.mrb[0].mxu0
    %v1186 = vadd.f32 %v1133, %v1185
    %1187 = vdwg.mxu0
    %1188 = vmatprep.subr.bf16.mxu0 %v934
    %1189 = vmatpush1.bf16.msra.mxu0 %v933
    %1190 = vmatprep.subr.bf16.mxu0 %v938
    %1191 = vmatpush1.bf16.msra.mxu0 %v937
    %1192 = vmatprep.subr.bf16.mxu0 %v942
    %1193 = vmatpush1.bf16.msra.mxu0 %v941
    %1194 = vmatprep.subr.bf16.mxu0 %v946
    %1195 = vmatpush1.bf16.msra.mxu0 %v945
    %1196 = vmatprep.subr.bf16.mxu0 %v950
    %1197 = vmatpush1.bf16.msra.mxu0 %v949
    %1198 = vmatprep.subr.bf16.mxu0 %v954
    %1199 = vmatpush1.bf16.msra.mxu0 %v953
    %1200 = vmatprep.subr.bf16.mxu0 %v958
    %1201 = vmatpush1.bf16.msra.mxu0 %v957
    %1202 = vmatprep.subr.bf16.mxu0 %v962
    %1203 = vmatpush1.bf16.msra.mxu0 %v961
    %1204 = vmatprep.subr.bf16.mxu0 %v966
    %1205 = vmatpush1.bf16.msra.mxu0 %v965
    %1206 = vmatprep.subr.bf16.mxu0 %v970
    %1207 = vmatpush1.bf16.msra.mxu0 %v969
    %1208 = vmatprep.subr.bf16.mxu0 %v974
    %1209 = vmatpush1.bf16.msra.mxu0 %v973
    %1210 = vmatprep.subr.bf16.mxu0 %v978
    %1211 = vmatpush1.bf16.msra.mxu0 %v977
    %1212 = vmatprep.subr.bf16.mxu0 %v982
    %1213 = vmatpush1.bf16.msra.mxu0 %v981
    %1214 = vmatprep.subr.bf16.mxu0 %v986
    %1215 = vmatpush1.bf16.msra.mxu0 %v985
    %1216 = vmatprep.subr.bf16.mxu0 %v990
    %1217 = vmatpush1.bf16.msra.mxu0 %v989
    %1218 = vmatprep.subr.bf16.mxu0 %v994
    %1219 = vmatpush1.bf16.msra.mxu0 %v993
    %1220 = vmatprep.mubr.bf16.mxu0 %v616
    %1221 = vmatmul.mubr.bf16.gmra.mrb[0].mxu0 %v615
    %v1222 = vpop.f32.mrb[0].mxu0
    %v1223 = vadd.f32 %v706, %v1222
    %v1224 = vpop.f32.mrb[0].mxu0
    %v1225 = vadd.f32 %v710, %v1224
    %v1226 = vpop.f32.mrb[0].mxu0
    %v1227 = vadd.f32 %v706, %v1226
    %v1228 = vpop.f32.mrb[0].mxu0
    %v1229 = vadd.f32 %v710, %v1228
    %1230 = vmatprep.mubr.bf16.mxu0 %v619
    %1231 = vmatmul.mubr.bf16.gmra.mrb[0].mxu0 %v618
    %v1232 = vpop.f32.mrb[0].mxu0
    %v1233 = vadd.f32 %v706, %v1232
    %v1234 = vpop.f32.mrb[0].mxu0
    %v1235 = vadd.f32 %v710, %v1234
    %v1236 = vpop.f32.mrb[0].mxu0
    %v1237 = vadd.f32 %v706, %v1236
    %v1238 = vpop.f32.mrb[0].mxu0
    %v1239 = vadd.f32 %v710, %v1238
    %1240 = vdwg.mxu0
    %1241 = vmatprep.subr.bf16.mxu0 %v998
    %1242 = vmatpush1.bf16.msra.mxu0 %v997
    %1243 = vmatprep.subr.bf16.mxu0 %v1002
    %1244 = vmatpush1.bf16.msra.mxu0 %v1001
    %1245 = vmatprep.subr.bf16.mxu0 0
    %1246 = vmatpush1.bf16.msra.mxu0 0
    %1247 = vmatprep.subr.bf16.mxu0 0
    %1248 = vmatpush1.bf16.msra.mxu0 0
    %1249 = vmatprep.subr.bf16.mxu0 0
    %1250 = vmatpush1.bf16.msra.mxu0 0
    %1251 = vmatprep.subr.bf16.mxu0 0
    %1252 = vmatpush1.bf16.msra.mxu0 0
    %1253 = vmatprep.subr.bf16.mxu0 0
    %1254 = vmatpush1.bf16.msra.mxu0 0
    %1255 = vmatprep.subr.bf16.mxu0 0
    %1256 = vmatpush1.bf16.msra.mxu0 0
    %1257 = vmatprep.subr.bf16.mxu0 0
    %1258 = vmatpush1.bf16.msra.mxu0 0
    %1259 = vmatprep.subr.bf16.mxu0 0
    %1260 = vmatpush1.bf16.msra.mxu0 0
    %1261 = vmatprep.subr.bf16.mxu0 0
    %1262 = vmatpush1.bf16.msra.mxu0 0
    %1263 = vmatprep.subr.bf16.mxu0 0
    %1264 = vmatpush1.bf16.msra.mxu0 0
    %1265 = vmatprep.subr.bf16.mxu0 0
    %1266 = vmatpush1.bf16.msra.mxu0 0
    %1267 = vmatprep.subr.bf16.mxu0 0
    %1268 = vmatpush1.bf16.msra.mxu0 0
    %1269 = vmatprep.subr.bf16.mxu0 0
    %1270 = vmatpush1.bf16.msra.mxu0 0
    %1271 = vmatprep.subr.bf16.mxu0 0
    %1272 = vmatpush1.bf16.msra.mxu0 0
    %1273 = vmatprep.mubr.bf16.mxu0 0
    %1274 = vmatmul.mubr.bf16.gmra.mrb[0].mxu0 %v1077
    %v1275 = vpop.f32.mrb[0].mxu0
    %v1276 = vadd.f32 %v1223, %v1275
    %v1277 = vpop.f32.mrb[0].mxu0
    %v1278 = vadd.f32 %v1225, %v1277
    %v1279 = vpop.f32.mrb[0].mxu0
    %v1280 = vadd.f32 %v1227, %v1279
    %v1281 = vpop.f32.mrb[0].mxu0
    %v1282 = vadd.f32 %v1229, %v1281
    %1283 = vmatprep.mubr.bf16.mxu0 0
    %1284 = vmatmul.mubr.bf16.gmra.mrb[0].mxu0 %v1080
    %v1285 = vpop.f32.mrb[0].mxu0
    %v1286 = vadd.f32 %v1233, %v1285
    %v1287 = vpop.f32.mrb[0].mxu0
    %v1288 = vadd.f32 %v1235, %v1287
    %v1289 = vpop.f32.mrb[0].mxu0
    %v1290 = vadd.f32 %v1237, %v1289
    %v1291 = vpop.f32.mrb[0].mxu0
    %v1292 = vadd.f32 %v1239, %v1291
    %1293 = vdwg.mxu0
    %v1294 = vmax.f32 %v1170, 0.0
    %v1295 = vmax.f32 %v1172, 0.0
    %v1296 = vmax.f32 %v1276, 0.0
    %v1297 = vmax.f32 %v1278, 0.0
    %v1298 = vmax.f32 %v1174, 0.0
    %v1299 = vmax.f32 %v1176, 0.0
    %v1300 = vmax.f32 %v1280, 0.0
    %v1301 = vmax.f32 %v1282, 0.0
    %v1302 = vmax.f32 %v1180, 0.0
    %v1303 = vmax.f32 %v1182, 0.0
    %v1304 = vmax.f32 %v1286, 0.0
    %v1305 = vmax.f32 %v1288, 0.0
    %v1306 = vmax.f32 %v1184, 0.0
    %v1307 = vmax.f32 %v1186, 0.0
    %v1308 = vmax.f32 %v1290, 0.0
    %v1309 = vmax.f32 %v1292, 0.0
    %v1310 = vpack.c.bf16 %v1298, %v1294
    %v1311 = vpack.c.bf16 %v1299, %v1295
    %v1312 = vpack.c.bf16 %v1300, %v1296
    %v1313 = vpack.c.bf16 %v1301, %v1297
    %v1314 = vpack.c.bf16 %v1306, %v1302
    %v1315 = vpack.c.bf16 %v1307, %v1303
    %v1316 = vpack.c.bf16 %v1308, %v1304
    %v1317 = vpack.c.bf16 %v1309, %v1305
    %1318 = vst [vmem:[#allocation3] sm:$0xff] %v1310
    %1319 = vst [vmem:[#allocation3 + $0x8] sm:$0xff] %v1311
    %1320 = vst [vmem:[#allocation3 + $0x10] sm:$0xff] %v1312
    %1321 = vst [vmem:[#allocation3 + $0x18] sm:$0xff] %v1313
    %1322 = vst [vmem:[#allocation3 + $0x20] sm:$0xff] %v1314
    %1323 = vst [vmem:[#allocation3 + $0x28] sm:$0xff] %v1315
    %1324 = vst [vmem:[#allocation3 + $0x30] sm:$0xff] %v1316
    %1325 = vst [vmem:[#allocation3 + $0x38] sm:$0xff] %v1317
    %1326 = vst [vmem:[#allocation2] sm:$0x1] 0
    %1327 = vst [vmem:[#allocation2 + $0x8] sm:$0x1] 0
    %1328 = vst [vmem:[#allocation2 + $0x10] sm:$0x1] 0
    %1329 = vst [vmem:[#allocation2 + $0x18] sm:$0x1] 0
    %v1330 = vld [vmem:[#allocation3] sm:$0x2]
    %v1331 = vld [vmem:[#allocation3 + $0x8] sm:$0x2]
    %v1332 = vld [vmem:[#allocation3 + $0x10] sm:$0x2]
    %v1333 = vld [vmem:[#allocation3 + $0x18] sm:$0x2]
    %1334 = vst [vmem:[#allocation2] sm:$0x2] %v1330
    %1335 = vst [vmem:[#allocation2 + $0x8] sm:$0x2] %v1331
    %1336 = vst [vmem:[#allocation2 + $0x10] sm:$0x2] %v1332
    %1337 = vst [vmem:[#allocation2 + $0x18] sm:$0x2] %v1333
    %v1338 = vld [vmem:[#allocation3] sm:$0x8]
    %v1339 = vld [vmem:[#allocation3 + $0x8] sm:$0x8]
    %v1340 = vld [vmem:[#allocation3 + $0x10] sm:$0x8]
    %v1341 = vld [vmem:[#allocation3 + $0x18] sm:$0x8]
    %v1346 = vrot.slane %v1338, 1
    %v1347 = vrot.slane %v1339, 1
    %v1348 = vrot.slane %v1340, 1
    %v1349 = vrot.slane %v1341, 1
    %1354 = vst [vmem:[#allocation2] sm:$0x4] %v1346
    %1355 = vst [vmem:[#allocation2 + $0x8] sm:$0x4] %v1347
    %1356 = vst [vmem:[#allocation2 + $0x10] sm:$0x4] %v1348
    %1357 = vst [vmem:[#allocation2 + $0x18] sm:$0x4] %v1349
    %v1358 = vld [vmem:[#allocation3] sm:$0x20]
    %v1359 = vld [vmem:[#allocation3 + $0x8] sm:$0x20]
    %v1360 = vld [vmem:[#allocation3 + $0x10] sm:$0x20]
    %v1361 = vld [vmem:[#allocation3 + $0x18] sm:$0x20]
    %v1366 = vrot.slane %v1358, 2
    %v1367 = vrot.slane %v1359, 2
    %v1368 = vrot.slane %v1360, 2
    %v1369 = vrot.slane %v1361, 2
    %1374 = vst [vmem:[#allocation2] sm:$0x8] %v1366
    %1375 = vst [vmem:[#allocation2 + $0x8] sm:$0x8] %v1367
    %1376 = vst [vmem:[#allocation2 + $0x10] sm:$0x8] %v1368
    %1377 = vst [vmem:[#allocation2 + $0x18] sm:$0x8] %v1369
    %v1378 = vld [vmem:[#allocation3] sm:$0x80]
    %v1379 = vld [vmem:[#allocation3 + $0x8] sm:$0x80]
    %v1380 = vld [vmem:[#allocation3 + $0x10] sm:$0x80]
    %v1381 = vld [vmem:[#allocation3 + $0x18] sm:$0x80]
    %v1386 = vrot.slane %v1378, 3
    %v1387 = vrot.slane %v1379, 3
    %v1388 = vrot.slane %v1380, 3
    %v1389 = vrot.slane %v1381, 3
    %1394 = vst [vmem:[#allocation2] sm:$0x10] %v1386
    %1395 = vst [vmem:[#allocation2 + $0x8] sm:$0x10] %v1387
    %1396 = vst [vmem:[#allocation2 + $0x10] sm:$0x10] %v1388
    %1397 = vst [vmem:[#allocation2 + $0x18] sm:$0x10] %v1389
    %v1398 = vld [vmem:[#allocation3 + $0x20] sm:$0x2]
    %v1399 = vld [vmem:[#allocation3 + $0x28] sm:$0x2]
    %v1400 = vld [vmem:[#allocation3 + $0x30] sm:$0x2]
    %v1401 = vld [vmem:[#allocation3 + $0x38] sm:$0x2]
    %v1406 = vrot.slane %v1398, 4
    %v1407 = vrot.slane %v1399, 4
    %v1408 = vrot.slane %v1400, 4
    %v1409 = vrot.slane %v1401, 4
    %1414 = vst [vmem:[#allocation2] sm:$0x20] %v1406
    %1415 = vst [vmem:[#allocation2 + $0x8] sm:$0x20] %v1407
    %1416 = vst [vmem:[#allocation2 + $0x10] sm:$0x20] %v1408
    %1417 = vst [vmem:[#allocation2 + $0x18] sm:$0x20] %v1409
    %v1418 = vld [vmem:[#allocation3 + $0x20] sm:$0x8]
    %v1419 = vld [vmem:[#allocation3 + $0x28] sm:$0x8]
    %v1420 = vld [vmem:[#allocation3 + $0x30] sm:$0x8]
    %v1421 = vld [vmem:[#allocation3 + $0x38] sm:$0x8]
    %v1426 = vrot.slane %v1418, 5
    %v1427 = vrot.slane %v1419, 5
    %v1428 = vrot.slane %v1420, 5
    %v1429 = vrot.slane %v1421, 5
    %1434 = vst [vmem:[#allocation2] sm:$0x40] %v1426
    %1435 = vst [vmem:[#allocation2 + $0x8] sm:$0x40] %v1427
    %1436 = vst [vmem:[#allocation2 + $0x10] sm:$0x40] %v1428
    %1437 = vst [vmem:[#allocation2 + $0x18] sm:$0x40] %v1429
    %v1438 = vld [vmem:[#allocation3 + $0x20] sm:$0x20]
    %v1439 = vld [vmem:[#allocation3 + $0x28] sm:$0x20]
    %v1440 = vld [vmem:[#allocation3 + $0x30] sm:$0x20]
    %v1441 = vld [vmem:[#allocation3 + $0x38] sm:$0x20]
    %v1446 = vrot.slane %v1438, 6
    %v1447 = vrot.slane %v1439, 6
    %v1448 = vrot.slane %v1440, 6
    %v1449 = vrot.slane %v1441, 6
    %1454 = vst [vmem:[#allocation2] sm:$0x80] %v1446
    %1455 = vst [vmem:[#allocation2 + $0x8] sm:$0x80] %v1447
    %1456 = vst [vmem:[#allocation2 + $0x10] sm:$0x80] %v1448
    %1457 = vst [vmem:[#allocation2 + $0x18] sm:$0x80] %v1449
    %v1458 = vld [vmem:[#allocation3] sm:$0x1]
    %v1459 = vld [vmem:[#allocation3 + $0x8] sm:$0x1]
    %v1460 = vld [vmem:[#allocation3 + $0x10] sm:$0x1]
    %v1461 = vld [vmem:[#allocation3 + $0x18] sm:$0x1]
    %1462 = vst [vmem:[#allocation2 + $0x20] sm:$0x1] %v1458
    %1463 = vst [vmem:[#allocation2 + $0x28] sm:$0x1] %v1459
    %1464 = vst [vmem:[#allocation2 + $0x30] sm:$0x1] %v1460
    %1465 = vst [vmem:[#allocation2 + $0x38] sm:$0x1] %v1461
    %v1466 = vld [vmem:[#allocation3] sm:$0x4]
    %v1467 = vld [vmem:[#allocation3 + $0x8] sm:$0x4]
    %v1468 = vld [vmem:[#allocation3 + $0x10] sm:$0x4]
    %v1469 = vld [vmem:[#allocation3 + $0x18] sm:$0x4]
    %v1474 = vrot.slane %v1466, 1
    %v1475 = vrot.slane %v1467, 1
    %v1476 = vrot.slane %v1468, 1
    %v1477 = vrot.slane %v1469, 1
    %1482 = vst [vmem:[#allocation2 + $0x20] sm:$0x2] %v1474
    %1483 = vst [vmem:[#allocation2 + $0x28] sm:$0x2] %v1475
    %1484 = vst [vmem:[#allocation2 + $0x30] sm:$0x2] %v1476
    %1485 = vst [vmem:[#allocation2 + $0x38] sm:$0x2] %v1477
    %v1486 = vld [vmem:[#allocation3] sm:$0x10]
    %v1487 = vld [vmem:[#allocation3 + $0x8] sm:$0x10]
    %v1488 = vld [vmem:[#allocation3 + $0x10] sm:$0x10]
    %v1489 = vld [vmem:[#allocation3 + $0x18] sm:$0x10]
    %v1494 = vrot.slane %v1486, 2
    %v1495 = vrot.slane %v1487, 2
    %v1496 = vrot.slane %v1488, 2
    %v1497 = vrot.slane %v1489, 2
    %1502 = vst [vmem:[#allocation2 + $0x20] sm:$0x4] %v1494
    %1503 = vst [vmem:[#allocation2 + $0x28] sm:$0x4] %v1495
    %1504 = vst [vmem:[#allocation2 + $0x30] sm:$0x4] %v1496
    %1505 = vst [vmem:[#allocation2 + $0x38] sm:$0x4] %v1497
    %v1506 = vld [vmem:[#allocation3] sm:$0x40]
    %v1507 = vld [vmem:[#allocation3 + $0x8] sm:$0x40]
    %v1508 = vld [vmem:[#allocation3 + $0x10] sm:$0x40]
    %v1509 = vld [vmem:[#allocation3 + $0x18] sm:$0x40]
    %v1514 = vrot.slane %v1506, 3
    %v1515 = vrot.slane %v1507, 3
    %v1516 = vrot.slane %v1508, 3
    %v1517 = vrot.slane %v1509, 3
    %1522 = vst [vmem:[#allocation2 + $0x20] sm:$0x8] %v1514
    %1523 = vst [vmem:[#allocation2 + $0x28] sm:$0x8] %v1515
    %1524 = vst [vmem:[#allocation2 + $0x30] sm:$0x8] %v1516
    %1525 = vst [vmem:[#allocation2 + $0x38] sm:$0x8] %v1517
    %v1526 = vld [vmem:[#allocation3 + $0x20] sm:$0x1]
    %v1527 = vld [vmem:[#allocation3 + $0x28] sm:$0x1]
    %v1528 = vld [vmem:[#allocation3 + $0x30] sm:$0x1]
    %v1529 = vld [vmem:[#allocation3 + $0x38] sm:$0x1]
    %v1534 = vrot.slane %v1526, 4
    %v1535 = vrot.slane %v1527, 4
    %v1536 = vrot.slane %v1528, 4
    %v1537 = vrot.slane %v1529, 4
    %1542 = vst [vmem:[#allocation2 + $0x20] sm:$0x10] %v1534
    %1543 = vst [vmem:[#allocation2 + $0x28] sm:$0x10] %v1535
    %1544 = vst [vmem:[#allocation2 + $0x30] sm:$0x10] %v1536
    %1545 = vst [vmem:[#allocation2 + $0x38] sm:$0x10] %v1537
    %v1546 = vld [vmem:[#allocation3 + $0x20] sm:$0x4]
    %v1547 = vld [vmem:[#allocation3 + $0x28] sm:$0x4]
    %v1548 = vld [vmem:[#allocation3 + $0x30] sm:$0x4]
    %v1549 = vld [vmem:[#allocation3 + $0x38] sm:$0x4]
    %v1554 = vrot.slane %v1546, 5
    %v1555 = vrot.slane %v1547, 5
    %v1556 = vrot.slane %v1548, 5
    %v1557 = vrot.slane %v1549, 5
    %1562 = vst [vmem:[#allocation2 + $0x20] sm:$0x20] %v1554
    %1563 = vst [vmem:[#allocation2 + $0x28] sm:$0x20] %v1555
    %1564 = vst [vmem:[#allocation2 + $0x30] sm:$0x20] %v1556
    %1565 = vst [vmem:[#allocation2 + $0x38] sm:$0x20] %v1557
    %v1566 = vld [vmem:[#allocation3 + $0x20] sm:$0x10]
    %v1567 = vld [vmem:[#allocation3 + $0x28] sm:$0x10]
    %v1568 = vld [vmem:[#allocation3 + $0x30] sm:$0x10]
    %v1569 = vld [vmem:[#allocation3 + $0x38] sm:$0x10]
    %v1574 = vrot.slane %v1566, 6
    %v1575 = vrot.slane %v1567, 6
    %v1576 = vrot.slane %v1568, 6
    %v1577 = vrot.slane %v1569, 6
    %1582 = vst [vmem:[#allocation2 + $0x20] sm:$0x40] %v1574
    %1583 = vst [vmem:[#allocation2 + $0x28] sm:$0x40] %v1575
    %1584 = vst [vmem:[#allocation2 + $0x30] sm:$0x40] %v1576
    %1585 = vst [vmem:[#allocation2 + $0x38] sm:$0x40] %v1577
    %v1586 = vld [vmem:[#allocation3 + $0x20] sm:$0x40]
    %v1587 = vld [vmem:[#allocation3 + $0x28] sm:$0x40]
    %v1588 = vld [vmem:[#allocation3 + $0x30] sm:$0x40]
    %v1589 = vld [vmem:[#allocation3 + $0x38] sm:$0x40]
    %v1594 = vrot.slane %v1586, 7
    %v1595 = vrot.slane %v1587, 7
    %v1596 = vrot.slane %v1588, 7
    %v1597 = vrot.slane %v1589, 7
    %1602 = vst [vmem:[#allocation2 + $0x20] sm:$0x80] %v1594
    %1603 = vst [vmem:[#allocation2 + $0x28] sm:$0x80] %v1595
    %1604 = vst [vmem:[#allocation2 + $0x30] sm:$0x80] %v1596
    %1605 = vst [vmem:[#allocation2 + $0x38] sm:$0x80] %v1597
    %v1606 = vld [vmem:[#allocation3] sm:$0x2]
    %v1607 = vld [vmem:[#allocation3 + $0x8] sm:$0x2]
    %v1608 = vld [vmem:[#allocation3 + $0x10] sm:$0x2]
    %v1609 = vld [vmem:[#allocation3 + $0x18] sm:$0x2]
    %v1614 = vrot.slane %v1606, 1
    %v1615 = vrot.slane %v1607, 1
    %v1616 = vrot.slane %v1608, 1
    %v1617 = vrot.slane %v1609, 1
    %1622 = vst [vmem:[#allocation2 + $0x40] sm:$0x1] %v1614
    %1623 = vst [vmem:[#allocation2 + $0x48] sm:$0x1] %v1615
    %1624 = vst [vmem:[#allocation2 + $0x50] sm:$0x1] %v1616
    %1625 = vst [vmem:[#allocation2 + $0x58] sm:$0x1] %v1617
    %v1626 = vld [vmem:[#allocation3] sm:$0x8]
    %v1627 = vld [vmem:[#allocation3 + $0x8] sm:$0x8]
    %v1628 = vld [vmem:[#allocation3 + $0x10] sm:$0x8]
    %v1629 = vld [vmem:[#allocation3 + $0x18] sm:$0x8]
    %v1634 = vrot.slane %v1626, 2
    %v1635 = vrot.slane %v1627, 2
    %v1636 = vrot.slane %v1628, 2
    %v1637 = vrot.slane %v1629, 2
    %1642 = vst [vmem:[#allocation2 + $0x40] sm:$0x2] %v1634
    %1643 = vst [vmem:[#allocation2 + $0x48] sm:$0x2] %v1635
    %1644 = vst [vmem:[#allocation2 + $0x50] sm:$0x2] %v1636
    %1645 = vst [vmem:[#allocation2 + $0x58] sm:$0x2] %v1637
    %v1646 = vld [vmem:[#allocation3] sm:$0x20]
    %v1647 = vld [vmem:[#allocation3 + $0x8] sm:$0x20]
    %v1648 = vld [vmem:[#allocation3 + $0x10] sm:$0x20]
    %v1649 = vld [vmem:[#allocation3 + $0x18] sm:$0x20]
    %v1654 = vrot.slane %v1646, 3
    %v1655 = vrot.slane %v1647, 3
    %v1656 = vrot.slane %v1648, 3
    %v1657 = vrot.slane %v1649, 3
    %1662 = vst [vmem:[#allocation2 + $0x40] sm:$0x4] %v1654
    %1663 = vst [vmem:[#allocation2 + $0x48] sm:$0x4] %v1655
    %1664 = vst [vmem:[#allocation2 + $0x50] sm:$0x4] %v1656
    %1665 = vst [vmem:[#allocation2 + $0x58] sm:$0x4] %v1657
    %v1666 = vld [vmem:[#allocation3] sm:$0x80]
    %v1667 = vld [vmem:[#allocation3 + $0x8] sm:$0x80]
    %v1668 = vld [vmem:[#allocation3 + $0x10] sm:$0x80]
    %v1669 = vld [vmem:[#allocation3 + $0x18] sm:$0x80]
    %v1674 = vrot.slane %v1666, 4
    %v1675 = vrot.slane %v1667, 4
    %v1676 = vrot.slane %v1668, 4
    %v1677 = vrot.slane %v1669, 4
    %1682 = vst [vmem:[#allocation2 + $0x40] sm:$0x8] %v1674
    %1683 = vst [vmem:[#allocation2 + $0x48] sm:$0x8] %v1675
    %1684 = vst [vmem:[#allocation2 + $0x50] sm:$0x8] %v1676
    %1685 = vst [vmem:[#allocation2 + $0x58] sm:$0x8] %v1677
    %v1686 = vld [vmem:[#allocation3 + $0x20] sm:$0x2]
    %v1687 = vld [vmem:[#allocation3 + $0x28] sm:$0x2]
    %v1688 = vld [vmem:[#allocation3 + $0x30] sm:$0x2]
    %v1689 = vld [vmem:[#allocation3 + $0x38] sm:$0x2]
    %v1694 = vrot.slane %v1686, 5
    %v1695 = vrot.slane %v1687, 5
    %v1696 = vrot.slane %v1688, 5
    %v1697 = vrot.slane %v1689, 5
    %1702 = vst [vmem:[#allocation2 + $0x40] sm:$0x10] %v1694
    %1703 = vst [vmem:[#allocation2 + $0x48] sm:$0x10] %v1695
    %1704 = vst [vmem:[#allocation2 + $0x50] sm:$0x10] %v1696
    %1705 = vst [vmem:[#allocation2 + $0x58] sm:$0x10] %v1697
    %v1706 = vld [vmem:[#allocation3 + $0x20] sm:$0x8]
    %v1707 = vld [vmem:[#allocation3 + $0x28] sm:$0x8]
    %v1708 = vld [vmem:[#allocation3 + $0x30] sm:$0x8]
    %v1709 = vld [vmem:[#allocation3 + $0x38] sm:$0x8]
    %v1714 = vrot.slane %v1706, 6
    %v1715 = vrot.slane %v1707, 6
    %v1716 = vrot.slane %v1708, 6
    %v1717 = vrot.slane %v1709, 6
    %1722 = vst [vmem:[#allocation2 + $0x40] sm:$0x20] %v1714
    %1723 = vst [vmem:[#allocation2 + $0x48] sm:$0x20] %v1715
    %1724 = vst [vmem:[#allocation2 + $0x50] sm:$0x20] %v1716
    %1725 = vst [vmem:[#allocation2 + $0x58] sm:$0x20] %v1717
    %v1726 = vld [vmem:[#allocation3 + $0x20] sm:$0x20]
    %v1727 = vld [vmem:[#allocation3 + $0x28] sm:$0x20]
    %v1728 = vld [vmem:[#allocation3 + $0x30] sm:$0x20]
    %v1729 = vld [vmem:[#allocation3 + $0x38] sm:$0x20]
    %v1734 = vrot.slane %v1726, 7
    %v1735 = vrot.slane %v1727, 7
    %v1736 = vrot.slane %v1728, 7
    %v1737 = vrot.slane %v1729, 7
    %1742 = vst [vmem:[#allocation2 + $0x40] sm:$0x40] %v1734
    %1743 = vst [vmem:[#allocation2 + $0x48] sm:$0x40] %v1735
    %1744 = vst [vmem:[#allocation2 + $0x50] sm:$0x40] %v1736
    %1745 = vst [vmem:[#allocation2 + $0x58] sm:$0x40] %v1737
    %v1746 = vld [vmem:[#allocation3 + $0x20] sm:$0x80]
    %v1747 = vld [vmem:[#allocation3 + $0x28] sm:$0x80]
    %v1748 = vld [vmem:[#allocation3 + $0x30] sm:$0x80]
    %v1749 = vld [vmem:[#allocation3 + $0x38] sm:$0x80]
    %1750 = vst [vmem:[#allocation2 + $0x40] sm:$0x80] %v1746
    %1751 = vst [vmem:[#allocation2 + $0x48] sm:$0x80] %v1747
    %1752 = vst [vmem:[#allocation2 + $0x50] sm:$0x80] %v1748
    %1753 = vst [vmem:[#allocation2 + $0x58] sm:$0x80] %v1749
    %v1754 = vld [vmem:[#allocation2] sm:$0xff]
    %v1755 = vld [vmem:[#allocation2 + $0x8] sm:$0xff]
    %v1756 = vld [vmem:[#allocation2 + $0x10] sm:$0xff]
    %v1757 = vld [vmem:[#allocation2 + $0x18] sm:$0xff]
    %v1758 = vld [vmem:[#allocation2 + $0x20] sm:$0xff]
    %v1759 = vld [vmem:[#allocation2 + $0x28] sm:$0xff]
    %v1760 = vld [vmem:[#allocation2 + $0x30] sm:$0xff]
    %v1761 = vld [vmem:[#allocation2 + $0x38] sm:$0xff]
    %v1762 = vld [vmem:[#allocation2 + $0x40] sm:$0xff]
    %v1763 = vld [vmem:[#allocation2 + $0x48] sm:$0xff]
    %v1764 = vld [vmem:[#allocation2 + $0x50] sm:$0xff]
    %v1765 = vld [vmem:[#allocation2 + $0x58] sm:$0xff]
    %v1766 = vld [vmem:[#allocation10] sm:$0xff]
    %v1767 = vld [vmem:[#allocation10 + $0x8] sm:$0xff]
    %v1768 = vld [vmem:[#allocation10 + $0x10] sm:$0xff]
    %v1769 = vld [vmem:[#allocation10 + $0x18] sm:$0xff]
    %v1770 = vld [vmem:[#allocation10 + $0x20] sm:$0xff]
    %v1771 = vld [vmem:[#allocation10 + $0x28] sm:$0xff]
    %v1772 = vld [vmem:[#allocation10 + $0x30] sm:$0xff]
    %v1773 = vld [vmem:[#allocation10 + $0x38] sm:$0xff]
    %v1774 = vld [vmem:[#allocation10 + $0x40] sm:$0xff]
    %v1775 = vld [vmem:[#allocation10 + $0x48] sm:$0xff]
    %v1776 = vld [vmem:[#allocation10 + $0x50] sm:$0xff]
    %v1777 = vld [vmem:[#allocation10 + $0x58] sm:$0xff]
    %v1778 = vld [vmem:[#allocation10 + $0x60] sm:$0xff]
    %v1779 = vld [vmem:[#allocation10 + $0x68] sm:$0xff]
    %v1780 = vld [vmem:[#allocation10 + $0x70] sm:$0xff]
    %v1781 = vld [vmem:[#allocation10 + $0x78] sm:$0xff]
    %v1782 = vld [vmem:[#allocation10 + $0x80] sm:$0xff]
    %v1783 = vld [vmem:[#allocation10 + $0x88] sm:$0xff]
    %v1784 = vld [vmem:[#allocation10 + $0x90] sm:$0xff]
    %v1785 = vld [vmem:[#allocation10 + $0x98] sm:$0xff]
    %v1786 = vld [vmem:[#allocation10 + $0xa0] sm:$0xff]
    %v1787 = vld [vmem:[#allocation10 + $0xa8] sm:$0xff]
    %v1788 = vld [vmem:[#allocation10 + $0xb0] sm:$0xff]
    %v1789 = vld [vmem:[#allocation10 + $0xb8] sm:$0xff]
    %v1790 = vld [vmem:[#allocation10 + $0xc0] sm:$0xff]
    %v1791 = vld [vmem:[#allocation10 + $0xc8] sm:$0xff]
    %v1792 = vld [vmem:[#allocation10 + $0xd0] sm:$0xff]
    %v1793 = vld [vmem:[#allocation10 + $0xd8] sm:$0xff]
    %v1794 = vld [vmem:[#allocation10 + $0xe0] sm:$0xff]
    %v1795 = vld [vmem:[#allocation10 + $0xe8] sm:$0xff]
    %v1796 = vld [vmem:[#allocation10 + $0xf0] sm:$0xff]
    %v1797 = vld [vmem:[#allocation10 + $0xf8] sm:$0xff]
    %v1798 = vld [vmem:[#allocation10 + $0x100] sm:$0xff]
    %v1799 = vld [vmem:[#allocation10 + $0x108] sm:$0xff]
    %v1800 = vld [vmem:[#allocation10 + $0x110] sm:$0xff]
    %v1801 = vld [vmem:[#allocation10 + $0x118] sm:$0xff]
    %v1802 = vld [vmem:[#allocation10 + $0x120] sm:$0xff]
    %v1803 = vld [vmem:[#allocation10 + $0x128] sm:$0xff]
    %v1804 = vld [vmem:[#allocation10 + $0x130] sm:$0xff]
    %v1805 = vld [vmem:[#allocation10 + $0x138] sm:$0xff]
    %v1806 = vld [vmem:[#allocation10 + $0x140] sm:$0xff]
    %v1807 = vld [vmem:[#allocation10 + $0x148] sm:$0xff]
    %v1808 = vld [vmem:[#allocation10 + $0x150] sm:$0xff]
    %v1809 = vld [vmem:[#allocation10 + $0x158] sm:$0xff]
    %v1810 = vld [vmem:[#allocation10 + $0x160] sm:$0xff]
    %v1811 = vld [vmem:[#allocation10 + $0x168] sm:$0xff]
    %v1812 = vld [vmem:[#allocation10 + $0x170] sm:$0xff]
    %v1813 = vld [vmem:[#allocation10 + $0x178] sm:$0xff]
    %v1814 = vld [vmem:[#allocation10 + $0x180] sm:$0xff]
    %v1815 = vld [vmem:[#allocation10 + $0x188] sm:$0xff]
    %v1816 = vld [vmem:[#allocation10 + $0x190] sm:$0xff]
    %v1817 = vld [vmem:[#allocation10 + $0x198] sm:$0xff]
    %v1818 = vld [vmem:[#allocation10 + $0x1a0] sm:$0xff]
    %v1819 = vld [vmem:[#allocation10 + $0x1a8] sm:$0xff]
    %v1820 = vld [vmem:[#allocation10 + $0x1b0] sm:$0xff]
    %v1821 = vld [vmem:[#allocation10 + $0x1b8] sm:$0xff]
    %v1822 = vld [vmem:[#allocation10 + $0x1c0] sm:$0xff]
    %v1823 = vld [vmem:[#allocation10 + $0x1c8] sm:$0xff]
    %v1824 = vld [vmem:[#allocation10 + $0x1d0] sm:$0xff]
    %v1825 = vld [vmem:[#allocation10 + $0x1d8] sm:$0xff]
    %v1826 = vld [vmem:[#allocation10 + $0x1e0] sm:$0xff]
    %v1827 = vld [vmem:[#allocation10 + $0x1e8] sm:$0xff]
    %v1828 = vld [vmem:[#allocation10 + $0x1f0] sm:$0xff]
    %v1829 = vld [vmem:[#allocation10 + $0x1f8] sm:$0xff]
    %v1830 = vld [vmem:[#allocation10 + $0x200] sm:$0xff]
    %v1831 = vld [vmem:[#allocation10 + $0x208] sm:$0xff]
    %v1832 = vld [vmem:[#allocation10 + $0x210] sm:$0xff]
    %v1833 = vld [vmem:[#allocation10 + $0x218] sm:$0xff]
    %v1834 = vld [vmem:[#allocation10 + $0x220] sm:$0xff]
    %v1835 = vld [vmem:[#allocation10 + $0x228] sm:$0xff]
    %v1836 = vld [vmem:[#allocation10 + $0x230] sm:$0xff]
    %v1837 = vld [vmem:[#allocation10 + $0x238] sm:$0xff]
    %v1838 = vld [vmem:[#allocation10 + $0x240] sm:$0xff]
    %v1839 = vld [vmem:[#allocation10 + $0x248] sm:$0xff]
    %v1840 = vld [vmem:[#allocation10 + $0x250] sm:$0xff]
    %v1841 = vld [vmem:[#allocation10 + $0x258] sm:$0xff]
    %v1842 = vld [vmem:[#allocation10 + $0x260] sm:$0xff]
    %v1843 = vld [vmem:[#allocation10 + $0x268] sm:$0xff]
    %v1844 = vld [vmem:[#allocation10 + $0x270] sm:$0xff]
    %v1845 = vld [vmem:[#allocation10 + $0x278] sm:$0xff]
    %v1846 = vld [vmem:[#allocation10 + $0x280] sm:$0xff]
    %v1847 = vld [vmem:[#allocation10 + $0x288] sm:$0xff]
    %v1848 = vld [vmem:[#allocation10 + $0x290] sm:$0xff]
    %v1849 = vld [vmem:[#allocation10 + $0x298] sm:$0xff]
    %v1850 = vld [vmem:[#allocation10 + $0x2a0] sm:$0xff]
    %v1851 = vld [vmem:[#allocation10 + $0x2a8] sm:$0xff]
    %v1852 = vld [vmem:[#allocation10 + $0x2b0] sm:$0xff]
    %v1853 = vld [vmem:[#allocation10 + $0x2b8] sm:$0xff]
    %v1854 = vld [vmem:[#allocation10 + $0x2c0] sm:$0xff]
    %v1855 = vld [vmem:[#allocation10 + $0x2c8] sm:$0xff]
    %v1856 = vld [vmem:[#allocation10 + $0x2d0] sm:$0xff]
    %v1857 = vld [vmem:[#allocation10 + $0x2d8] sm:$0xff]
    %v1858 = vld [vmem:[#allocation10 + $0x2e0] sm:$0xff]
    %v1859 = vld [vmem:[#allocation10 + $0x2e8] sm:$0xff]
    %v1860 = vld [vmem:[#allocation10 + $0x2f0] sm:$0xff]
    %v1861 = vld [vmem:[#allocation10 + $0x2f8] sm:$0xff]
    %v1862 = vld [vmem:[#allocation10 + $0x300] sm:$0xff]
    %v1863 = vld [vmem:[#allocation10 + $0x308] sm:$0xff]
    %v1864 = vld [vmem:[#allocation10 + $0x310] sm:$0xff]
    %v1865 = vld [vmem:[#allocation10 + $0x318] sm:$0xff]
    %v1866 = vld [vmem:[#allocation10 + $0x320] sm:$0xff]
    %v1867 = vld [vmem:[#allocation10 + $0x328] sm:$0xff]
    %v1868 = vld [vmem:[#allocation10 + $0x330] sm:$0xff]
    %v1869 = vld [vmem:[#allocation10 + $0x338] sm:$0xff]
    %v1870 = vld [vmem:[#allocation10 + $0x340] sm:$0xff]
    %v1871 = vld [vmem:[#allocation10 + $0x348] sm:$0xff]
    %v1872 = vld [vmem:[#allocation10 + $0x350] sm:$0xff]
    %v1873 = vld [vmem:[#allocation10 + $0x358] sm:$0xff]
    %v1874 = vld [vmem:[#allocation10 + $0x360] sm:$0xff]
    %v1875 = vld [vmem:[#allocation10 + $0x368] sm:$0xff]
    %v1876 = vld [vmem:[#allocation10 + $0x370] sm:$0xff]
    %v1877 = vld [vmem:[#allocation10 + $0x378] sm:$0xff]
    %v1878 = vld [vmem:[#allocation10 + $0x380] sm:$0xff]
    %v1879 = vld [vmem:[#allocation10 + $0x388] sm:$0xff]
    %v1880 = vld [vmem:[#allocation10 + $0x390] sm:$0xff]
    %v1881 = vld [vmem:[#allocation10 + $0x398] sm:$0xff]
    %v1882 = vld [vmem:[#allocation10 + $0x3a0] sm:$0xff]
    %v1883 = vld [vmem:[#allocation10 + $0x3a8] sm:$0xff]
    %v1884 = vld [vmem:[#allocation10 + $0x3b0] sm:$0xff]
    %v1885 = vld [vmem:[#allocation10 + $0x3b8] sm:$0xff]
    %v1886 = vld [vmem:[#allocation10 + $0x3c0] sm:$0xff]
    %v1887 = vld [vmem:[#allocation10 + $0x3c8] sm:$0xff]
    %v1888 = vld [vmem:[#allocation10 + $0x3d0] sm:$0xff]
    %v1889 = vld [vmem:[#allocation10 + $0x3d8] sm:$0xff]
    %v1890 = vld [vmem:[#allocation10 + $0x3e0] sm:$0xff]
    %v1891 = vld [vmem:[#allocation10 + $0x3e8] sm:$0xff]
    %v1892 = vld [vmem:[#allocation10 + $0x3f0] sm:$0xff]
    %v1893 = vld [vmem:[#allocation10 + $0x3f8] sm:$0xff]
    %v1894 = vld [vmem:[#allocation10 + $0x400] sm:$0xff]
    %v1895 = vld [vmem:[#allocation10 + $0x408] sm:$0xff]
    %v1896 = vld [vmem:[#allocation10 + $0x410] sm:$0xff]
    %v1897 = vld [vmem:[#allocation10 + $0x418] sm:$0xff]
    %v1898 = vld [vmem:[#allocation10 + $0x420] sm:$0xff]
    %v1899 = vld [vmem:[#allocation10 + $0x428] sm:$0xff]
    %v1900 = vld [vmem:[#allocation10 + $0x430] sm:$0xff]
    %v1901 = vld [vmem:[#allocation10 + $0x438] sm:$0xff]
    %v1902 = vld [vmem:[#allocation10 + $0x440] sm:$0xff]
    %v1903 = vld [vmem:[#allocation10 + $0x448] sm:$0xff]
    %v1904 = vld [vmem:[#allocation10 + $0x450] sm:$0xff]
    %v1905 = vld [vmem:[#allocation10 + $0x458] sm:$0xff]
    %v1906 = vld [vmem:[#allocation10 + $0x460] sm:$0xff]
    %v1907 = vld [vmem:[#allocation10 + $0x468] sm:$0xff]
    %v1908 = vld [vmem:[#allocation10 + $0x470] sm:$0xff]
    %v1909 = vld [vmem:[#allocation10 + $0x478] sm:$0xff]
    %v1910 = vld [vmem:[#allocation10 + $0x480] sm:$0xff]
    %v1911 = vld [vmem:[#allocation10 + $0x488] sm:$0xff]
    %v1912 = vld [vmem:[#allocation10 + $0x490] sm:$0xff]
    %v1913 = vld [vmem:[#allocation10 + $0x498] sm:$0xff]
    %v1914 = vld [vmem:[#allocation10 + $0x4a0] sm:$0xff]
    %v1915 = vld [vmem:[#allocation10 + $0x4a8] sm:$0xff]
    %v1916 = vld [vmem:[#allocation10 + $0x4b0] sm:$0xff]
    %v1917 = vld [vmem:[#allocation10 + $0x4b8] sm:$0xff]
    %v1918 = vld [vmem:[#allocation10 + $0x4c0] sm:$0xff]
    %v1919 = vld [vmem:[#allocation10 + $0x4c8] sm:$0xff]
    %v1920 = vld [vmem:[#allocation10 + $0x4d0] sm:$0xff]
    %v1921 = vld [vmem:[#allocation10 + $0x4d8] sm:$0xff]
    %v1922 = vld [vmem:[#allocation10 + $0x4e0] sm:$0xff]
    %v1923 = vld [vmem:[#allocation10 + $0x4e8] sm:$0xff]
    %v1924 = vld [vmem:[#allocation10 + $0x4f0] sm:$0xff]
    %v1925 = vld [vmem:[#allocation10 + $0x4f8] sm:$0xff]
    %v1926 = vld [vmem:[#allocation10 + $0x500] sm:$0xff]
    %v1927 = vld [vmem:[#allocation10 + $0x508] sm:$0xff]
    %v1928 = vld [vmem:[#allocation10 + $0x510] sm:$0xff]
    %v1929 = vld [vmem:[#allocation10 + $0x518] sm:$0xff]
    %v1930 = vld [vmem:[#allocation10 + $0x520] sm:$0xff]
    %v1931 = vld [vmem:[#allocation10 + $0x528] sm:$0xff]
    %v1932 = vld [vmem:[#allocation10 + $0x530] sm:$0xff]
    %v1933 = vld [vmem:[#allocation10 + $0x538] sm:$0xff]
    %v1934 = vld [vmem:[#allocation10 + $0x540] sm:$0xff]
    %v1935 = vld [vmem:[#allocation10 + $0x548] sm:$0xff]
    %v1936 = vld [vmem:[#allocation10 + $0x550] sm:$0xff]
    %v1937 = vld [vmem:[#allocation10 + $0x558] sm:$0xff]
    %v1938 = vld [vmem:[#allocation10 + $0x560] sm:$0xff]
    %v1939 = vld [vmem:[#allocation10 + $0x568] sm:$0xff]
    %v1940 = vld [vmem:[#allocation10 + $0x570] sm:$0xff]
    %v1941 = vld [vmem:[#allocation10 + $0x578] sm:$0xff]
    %v1942 = vld [vmem:[#allocation10 + $0x580] sm:$0xff]
    %v1943 = vld [vmem:[#allocation10 + $0x588] sm:$0xff]
    %v1944 = vld [vmem:[#allocation10 + $0x590] sm:$0xff]
    %v1945 = vld [vmem:[#allocation10 + $0x598] sm:$0xff]
    %v1946 = vld [vmem:[#allocation10 + $0x5a0] sm:$0xff]
    %v1947 = vld [vmem:[#allocation10 + $0x5a8] sm:$0xff]
    %v1948 = vld [vmem:[#allocation10 + $0x5b0] sm:$0xff]
    %v1949 = vld [vmem:[#allocation10 + $0x5b8] sm:$0xff]
    %v1950 = vld [vmem:[#allocation10 + $0x5c0] sm:$0xff]
    %v1951 = vld [vmem:[#allocation10 + $0x5c8] sm:$0xff]
    %v1952 = vld [vmem:[#allocation10 + $0x5d0] sm:$0xff]
    %v1953 = vld [vmem:[#allocation10 + $0x5d8] sm:$0xff]
    %v1954 = vld [vmem:[#allocation10 + $0x5e0] sm:$0xff]
    %v1955 = vld [vmem:[#allocation10 + $0x5e8] sm:$0xff]
    %v1956 = vld [vmem:[#allocation10 + $0x5f0] sm:$0xff]
    %v1957 = vld [vmem:[#allocation10 + $0x5f8] sm:$0xff]
    %v1958 = vld [vmem:[#allocation10 + $0x600] sm:$0xff]
    %v1959 = vld [vmem:[#allocation10 + $0x608] sm:$0xff]
    %v1960 = vld [vmem:[#allocation10 + $0x610] sm:$0xff]
    %v1961 = vld [vmem:[#allocation10 + $0x618] sm:$0xff]
    %v1962 = vld [vmem:[#allocation10 + $0x620] sm:$0xff]
    %v1963 = vld [vmem:[#allocation10 + $0x628] sm:$0xff]
    %v1964 = vld [vmem:[#allocation10 + $0x630] sm:$0xff]
    %v1965 = vld [vmem:[#allocation10 + $0x638] sm:$0xff]
    %v1966 = vld [vmem:[#allocation10 + $0x640] sm:$0xff]
    %v1967 = vld [vmem:[#allocation10 + $0x648] sm:$0xff]
    %v1968 = vld [vmem:[#allocation10 + $0x650] sm:$0xff]
    %v1969 = vld [vmem:[#allocation10 + $0x658] sm:$0xff]
    %v1970 = vld [vmem:[#allocation10 + $0x660] sm:$0xff]
    %v1971 = vld [vmem:[#allocation10 + $0x668] sm:$0xff]
    %v1972 = vld [vmem:[#allocation10 + $0x670] sm:$0xff]
    %v1973 = vld [vmem:[#allocation10 + $0x678] sm:$0xff]
    %v1974 = vld [vmem:[#allocation10 + $0x680] sm:$0xff]
    %v1975 = vld [vmem:[#allocation10 + $0x688] sm:$0xff]
    %v1976 = vld [vmem:[#allocation10 + $0x690] sm:$0xff]
    %v1977 = vld [vmem:[#allocation10 + $0x698] sm:$0xff]
    %v1978 = vld [vmem:[#allocation10 + $0x6a0] sm:$0xff]
    %v1979 = vld [vmem:[#allocation10 + $0x6a8] sm:$0xff]
    %v1980 = vld [vmem:[#allocation10 + $0x6b0] sm:$0xff]
    %v1981 = vld [vmem:[#allocation10 + $0x6b8] sm:$0xff]
    %v1982 = vld [vmem:[#allocation10 + $0x6c0] sm:$0xff]
    %v1983 = vld [vmem:[#allocation10 + $0x6c8] sm:$0xff]
    %v1984 = vld [vmem:[#allocation10 + $0x6d0] sm:$0xff]
    %v1985 = vld [vmem:[#allocation10 + $0x6d8] sm:$0xff]
    %v1986 = vld [vmem:[#allocation10 + $0x6e0] sm:$0xff]
    %v1987 = vld [vmem:[#allocation10 + $0x6e8] sm:$0xff]
    %v1988 = vld [vmem:[#allocation10 + $0x6f0] sm:$0xff]
    %v1989 = vld [vmem:[#allocation10 + $0x6f8] sm:$0xff]
    %v1990 = vld [vmem:[#allocation10 + $0x700] sm:$0xff]
    %v1991 = vld [vmem:[#allocation10 + $0x708] sm:$0xff]
    %v1992 = vld [vmem:[#allocation10 + $0x710] sm:$0xff]
    %v1993 = vld [vmem:[#allocation10 + $0x718] sm:$0xff]
    %v1994 = vld [vmem:[#allocation10 + $0x720] sm:$0xff]
    %v1995 = vld [vmem:[#allocation10 + $0x728] sm:$0xff]
    %v1996 = vld [vmem:[#allocation10 + $0x730] sm:$0xff]
    %v1997 = vld [vmem:[#allocation10 + $0x738] sm:$0xff]
    %v1998 = vld [vmem:[#allocation10 + $0x740] sm:$0xff]
    %v1999 = vld [vmem:[#allocation10 + $0x748] sm:$0xff]
    %v2000 = vld [vmem:[#allocation10 + $0x750] sm:$0xff]
    %v2001 = vld [vmem:[#allocation10 + $0x758] sm:$0xff]
    %v2002 = vld [vmem:[#allocation10 + $0x760] sm:$0xff]
    %v2003 = vld [vmem:[#allocation10 + $0x768] sm:$0xff]
    %v2004 = vld [vmem:[#allocation10 + $0x770] sm:$0xff]
    %v2005 = vld [vmem:[#allocation10 + $0x778] sm:$0xff]
    %v2006 = vld [vmem:[#allocation10 + $0x780] sm:$0xff]
    %v2007 = vld [vmem:[#allocation10 + $0x788] sm:$0xff]
    %v2008 = vld [vmem:[#allocation10 + $0x790] sm:$0xff]
    %v2009 = vld [vmem:[#allocation10 + $0x798] sm:$0xff]
    %v2010 = vld [vmem:[#allocation10 + $0x7a0] sm:$0xff]
    %v2011 = vld [vmem:[#allocation10 + $0x7a8] sm:$0xff]
    %v2012 = vld [vmem:[#allocation10 + $0x7b0] sm:$0xff]
    %v2013 = vld [vmem:[#allocation10 + $0x7b8] sm:$0xff]
    %v2014 = vld [vmem:[#allocation10 + $0x7c0] sm:$0xff]
    %v2015 = vld [vmem:[#allocation10 + $0x7c8] sm:$0xff]
    %v2016 = vld [vmem:[#allocation10 + $0x7d0] sm:$0xff]
    %v2017 = vld [vmem:[#allocation10 + $0x7d8] sm:$0xff]
    %v2018 = vld [vmem:[#allocation10 + $0x7e0] sm:$0xff]
    %v2019 = vld [vmem:[#allocation10 + $0x7e8] sm:$0xff]
    %v2020 = vld [vmem:[#allocation10 + $0x7f0] sm:$0xff]
    %v2021 = vld [vmem:[#allocation10 + $0x7f8] sm:$0xff]
    %v2022 = vld [vmem:[#allocation10 + $0x800] sm:$0xff]
    %v2023 = vld [vmem:[#allocation10 + $0x808] sm:$0xff]
    %v2024 = vld [vmem:[#allocation10 + $0x810] sm:$0xff]
    %v2025 = vld [vmem:[#allocation10 + $0x818] sm:$0xff]
    %v2026 = vld [vmem:[#allocation10 + $0x820] sm:$0xff]
    %v2027 = vld [vmem:[#allocation10 + $0x828] sm:$0xff]
    %v2028 = vld [vmem:[#allocation10 + $0x830] sm:$0xff]
    %v2029 = vld [vmem:[#allocation10 + $0x838] sm:$0xff]
    %v2030 = vld [vmem:[#allocation10 + $0x840] sm:$0xff]
    %v2031 = vld [vmem:[#allocation10 + $0x848] sm:$0xff]
    %v2032 = vld [vmem:[#allocation10 + $0x850] sm:$0xff]
    %v2033 = vld [vmem:[#allocation10 + $0x858] sm:$0xff]
    %v2034 = vld [vmem:[#allocation10 + $0x860] sm:$0xff]
    %v2035 = vld [vmem:[#allocation10 + $0x868] sm:$0xff]
    %v2036 = vld [vmem:[#allocation10 + $0x870] sm:$0xff]
    %v2037 = vld [vmem:[#allocation10 + $0x878] sm:$0xff]
    %v2038 = vld [vmem:[#allocation10 + $0x880] sm:$0xff]
    %v2039 = vld [vmem:[#allocation10 + $0x888] sm:$0xff]
    %v2040 = vld [vmem:[#allocation10 + $0x890] sm:$0xff]
    %v2041 = vld [vmem:[#allocation10 + $0x898] sm:$0xff]
    %v2042 = vld [vmem:[#allocation10 + $0x8a0] sm:$0xff]
    %v2043 = vld [vmem:[#allocation10 + $0x8a8] sm:$0xff]
    %v2044 = vld [vmem:[#allocation10 + $0x8b0] sm:$0xff]
    %v2045 = vld [vmem:[#allocation10 + $0x8b8] sm:$0xff]
    %v2046 = vld [vmem:[#allocation10 + $0x8c0] sm:$0xff]
    %v2047 = vld [vmem:[#allocation10 + $0x8c8] sm:$0xff]
    %v2048 = vld [vmem:[#allocation10 + $0x8d0] sm:$0xff]
    %v2049 = vld [vmem:[#allocation10 + $0x8d8] sm:$0xff]
    %v2050 = vld [vmem:[#allocation10 + $0x8e0] sm:$0xff]
    %v2051 = vld [vmem:[#allocation10 + $0x8e8] sm:$0xff]
    %v2052 = vld [vmem:[#allocation10 + $0x8f0] sm:$0xff]
    %v2053 = vld [vmem:[#allocation10 + $0x8f8] sm:$0xff]
    %v2054 = vld [vmem:[#allocation10 + $0x900] sm:$0xff]
    %v2055 = vld [vmem:[#allocation10 + $0x908] sm:$0xff]
    %v2056 = vld [vmem:[#allocation10 + $0x910] sm:$0xff]
    %v2057 = vld [vmem:[#allocation10 + $0x918] sm:$0xff]
    %v2058 = vld [vmem:[#allocation10 + $0x920] sm:$0xff]
    %v2059 = vld [vmem:[#allocation10 + $0x928] sm:$0xff]
    %v2060 = vld [vmem:[#allocation10 + $0x930] sm:$0xff]
    %v2061 = vld [vmem:[#allocation10 + $0x938] sm:$0xff]
    %v2062 = vld [vmem:[#allocation10 + $0x940] sm:$0xff]
    %v2063 = vld [vmem:[#allocation10 + $0x948] sm:$0xff]
    %v2064 = vld [vmem:[#allocation10 + $0x950] sm:$0xff]
    %v2065 = vld [vmem:[#allocation10 + $0x958] sm:$0xff]
    %v2066 = vld [vmem:[#allocation10 + $0x960] sm:$0xff]
    %v2067 = vld [vmem:[#allocation10 + $0x968] sm:$0xff]
    %v2068 = vld [vmem:[#allocation10 + $0x970] sm:$0xff]
    %v2069 = vld [vmem:[#allocation10 + $0x978] sm:$0xff]
    %v2070 = vld [vmem:[#allocation10 + $0x980] sm:$0xff]
    %v2071 = vld [vmem:[#allocation10 + $0x988] sm:$0xff]
    %v2072 = vld [vmem:[#allocation10 + $0x990] sm:$0xff]
    %v2073 = vld [vmem:[#allocation10 + $0x998] sm:$0xff]
    %v2074 = vld [vmem:[#allocation10 + $0x9a0] sm:$0xff]
    %v2075 = vld [vmem:[#allocation10 + $0x9a8] sm:$0xff]
    %v2076 = vld [vmem:[#allocation10 + $0x9b0] sm:$0xff]
    %v2077 = vld [vmem:[#allocation10 + $0x9b8] sm:$0xff]
    %v2078 = vld [vmem:[#allocation10 + $0x9c0] sm:$0xff]
    %v2079 = vld [vmem:[#allocation10 + $0x9c8] sm:$0xff]
    %v2080 = vld [vmem:[#allocation10 + $0x9d0] sm:$0xff]
    %v2081 = vld [vmem:[#allocation10 + $0x9d8] sm:$0xff]
    %v2082 = vld [vmem:[#allocation10 + $0x9e0] sm:$0xff]
    %v2083 = vld [vmem:[#allocation10 + $0x9e8] sm:$0xff]
    %v2084 = vld [vmem:[#allocation10 + $0x9f0] sm:$0xff]
    %v2085 = vld [vmem:[#allocation10 + $0x9f8] sm:$0xff]
    %v2086 = vld [vmem:[#allocation10 + $0xa00] sm:$0xff]
    %v2087 = vld [vmem:[#allocation10 + $0xa08] sm:$0xff]
    %v2088 = vld [vmem:[#allocation10 + $0xa10] sm:$0xff]
    %v2089 = vld [vmem:[#allocation10 + $0xa18] sm:$0xff]
    %v2090 = vld [vmem:[#allocation10 + $0xa20] sm:$0xff]
    %v2091 = vld [vmem:[#allocation10 + $0xa28] sm:$0xff]
    %v2092 = vld [vmem:[#allocation10 + $0xa30] sm:$0xff]
    %v2093 = vld [vmem:[#allocation10 + $0xa38] sm:$0xff]
    %v2094 = vld [vmem:[#allocation10 + $0xa40] sm:$0xff]
    %v2095 = vld [vmem:[#allocation10 + $0xa48] sm:$0xff]
    %v2096 = vld [vmem:[#allocation10 + $0xa50] sm:$0xff]
    %v2097 = vld [vmem:[#allocation10 + $0xa58] sm:$0xff]
    %v2098 = vld [vmem:[#allocation10 + $0xa60] sm:$0xff]
    %v2099 = vld [vmem:[#allocation10 + $0xa68] sm:$0xff]
    %v2100 = vld [vmem:[#allocation10 + $0xa70] sm:$0xff]
    %v2101 = vld [vmem:[#allocation10 + $0xa78] sm:$0xff]
    %v2102 = vld [vmem:[#allocation10 + $0xa80] sm:$0xff]
    %v2103 = vld [vmem:[#allocation10 + $0xa88] sm:$0xff]
    %v2104 = vld [vmem:[#allocation10 + $0xa90] sm:$0xff]
    %v2105 = vld [vmem:[#allocation10 + $0xa98] sm:$0xff]
    %v2106 = vld [vmem:[#allocation10 + $0xaa0] sm:$0xff]
    %v2107 = vld [vmem:[#allocation10 + $0xaa8] sm:$0xff]
    %v2108 = vld [vmem:[#allocation10 + $0xab0] sm:$0xff]
    %v2109 = vld [vmem:[#allocation10 + $0xab8] sm:$0xff]
    %v2110 = vld [vmem:[#allocation10 + $0xac0] sm:$0xff]
    %v2111 = vld [vmem:[#allocation10 + $0xac8] sm:$0xff]
    %v2112 = vld [vmem:[#allocation10 + $0xad0] sm:$0xff]
    %v2113 = vld [vmem:[#allocation10 + $0xad8] sm:$0xff]
    %v2114 = vld [vmem:[#allocation10 + $0xae0] sm:$0xff]
    %v2115 = vld [vmem:[#allocation10 + $0xae8] sm:$0xff]
    %v2116 = vld [vmem:[#allocation10 + $0xaf0] sm:$0xff]
    %v2117 = vld [vmem:[#allocation10 + $0xaf8] sm:$0xff]
    %v2118 = vld [vmem:[#allocation10 + $0xb00] sm:$0xff]
    %v2119 = vld [vmem:[#allocation10 + $0xb08] sm:$0xff]
    %v2120 = vld [vmem:[#allocation10 + $0xb10] sm:$0xff]
    %v2121 = vld [vmem:[#allocation10 + $0xb18] sm:$0xff]
    %v2122 = vld [vmem:[#allocation10 + $0xb20] sm:$0xff]
    %v2123 = vld [vmem:[#allocation10 + $0xb28] sm:$0xff]
    %v2124 = vld [vmem:[#allocation10 + $0xb30] sm:$0xff]
    %v2125 = vld [vmem:[#allocation10 + $0xb38] sm:$0xff]
    %v2126 = vld [vmem:[#allocation10 + $0xb40] sm:$0xff]
    %v2127 = vld [vmem:[#allocation10 + $0xb48] sm:$0xff]
    %v2128 = vld [vmem:[#allocation10 + $0xb50] sm:$0xff]
    %v2129 = vld [vmem:[#allocation10 + $0xb58] sm:$0xff]
    %v2130 = vld [vmem:[#allocation10 + $0xb60] sm:$0xff]
    %v2131 = vld [vmem:[#allocation10 + $0xb68] sm:$0xff]
    %v2132 = vld [vmem:[#allocation10 + $0xb70] sm:$0xff]
    %v2133 = vld [vmem:[#allocation10 + $0xb78] sm:$0xff]
    %v2134 = vld [vmem:[#allocation10 + $0xb80] sm:$0xff]
    %v2135 = vld [vmem:[#allocation10 + $0xb88] sm:$0xff]
    %v2136 = vld [vmem:[#allocation10 + $0xb90] sm:$0xff]
    %v2137 = vld [vmem:[#allocation10 + $0xb98] sm:$0xff]
    %v2138 = vld [vmem:[#allocation10 + $0xba0] sm:$0xff]
    %v2139 = vld [vmem:[#allocation10 + $0xba8] sm:$0xff]
    %v2140 = vld [vmem:[#allocation10 + $0xbb0] sm:$0xff]
    %v2141 = vld [vmem:[#allocation10 + $0xbb8] sm:$0xff]
    %v2142 = vld [vmem:[#allocation10 + $0xbc0] sm:$0xff]
    %v2143 = vld [vmem:[#allocation10 + $0xbc8] sm:$0xff]
    %v2144 = vld [vmem:[#allocation10 + $0xbd0] sm:$0xff]
    %v2145 = vld [vmem:[#allocation10 + $0xbd8] sm:$0xff]
    %v2146 = vld [vmem:[#allocation10 + $0xbe0] sm:$0xff]
    %v2147 = vld [vmem:[#allocation10 + $0xbe8] sm:$0xff]
    %v2148 = vld [vmem:[#allocation10 + $0xbf0] sm:$0xff]
    %v2149 = vld [vmem:[#allocation10 + $0xbf8] sm:$0xff]
    %v2150 = vld [vmem:[#allocation16] sm:$0xf]
    %v2152 = vlaneseq
    %v2153 = vshrl.u32 %v2152, 7
    %v2154 = vsub.s32 0, %v2153
    %v2155 = vrot.slane %v2150, %v2154
    %v2156 = vlaneseq
    %v2157 = vshrl.u32 %v2156, 7
    %v2158 = vsub.s32 1, %v2157
    %v2159 = vrot.slane %v2150, %v2158
    %v2160 = vlaneseq
    %v2161 = vshrl.u32 %v2160, 7
    %v2162 = vsub.s32 2, %v2161
    %v2163 = vrot.slane %v2150, %v2162
    %v2164 = vlaneseq
    %v2165 = vshrl.u32 %v2164, 7
    %v2166 = vsub.s32 3, %v2165
    %v2167 = vrot.slane %v2150, %v2166
    %v2556 = vunpack.c.l.b16 %v1766
    %v2557 = vunpack.c.h.b16 %v1766
    %v2558 = vunpack.c.l.b16 %v1767
    %v2559 = vunpack.c.h.b16 %v1767
    %v2560 = vunpack.c.l.b16 %v1768
    %v2561 = vunpack.c.h.b16 %v1768
    %v2562 = vunpack.c.l.b16 %v1769
    %v2563 = vunpack.c.h.b16 %v1769
    %v2564 = vunpack.c.l.b16 %v1770
    %v2565 = vunpack.c.h.b16 %v1770
    %v2566 = vunpack.c.l.b16 %v1771
    %v2567 = vunpack.c.h.b16 %v1771
    %v2568 = vunpack.c.l.b16 %v1772
    %v2569 = vunpack.c.h.b16 %v1772
    %v2570 = vunpack.c.l.b16 %v1773
    %v2571 = vunpack.c.h.b16 %v1773
    %v2572 = vunpack.c.l.b16 %v1774
    %v2573 = vunpack.c.h.b16 %v1774
    %v2574 = vunpack.c.l.b16 %v1775
    %v2575 = vunpack.c.h.b16 %v1775
    %v2576 = vunpack.c.l.b16 %v1776
    %v2577 = vunpack.c.h.b16 %v1776
    %v2578 = vunpack.c.l.b16 %v1777
    %v2579 = vunpack.c.h.b16 %v1777
    %v2580 = vunpack.c.l.b16 %v1778
    %v2581 = vunpack.c.h.b16 %v1778
    %v2582 = vunpack.c.l.b16 %v1779
    %v2583 = vunpack.c.h.b16 %v1779
    %v2584 = vunpack.c.l.b16 %v1780
    %v2585 = vunpack.c.h.b16 %v1780
    %v2586 = vunpack.c.l.b16 %v1781
    %v2587 = vunpack.c.h.b16 %v1781
    %v2588 = vunpack.c.l.b16 %v1782
    %v2589 = vunpack.c.h.b16 %v1782
    %v2590 = vunpack.c.l.b16 %v1783
    %v2591 = vunpack.c.h.b16 %v1783
    %v2592 = vunpack.c.l.b16 %v1784
    %v2593 = vunpack.c.h.b16 %v1784
    %v2594 = vunpack.c.l.b16 %v1785
    %v2595 = vunpack.c.h.b16 %v1785
    %v2596 = vunpack.c.l.b16 %v1786
    %v2597 = vunpack.c.h.b16 %v1786
    %v2598 = vunpack.c.l.b16 %v1787
    %v2599 = vunpack.c.h.b16 %v1787
    %v2600 = vunpack.c.l.b16 %v1788
    %v2601 = vunpack.c.h.b16 %v1788
    %v2602 = vunpack.c.l.b16 %v1789
    %v2603 = vunpack.c.h.b16 %v1789
    %v2604 = vunpack.c.l.b16 %v1790
    %v2605 = vunpack.c.h.b16 %v1790
    %v2606 = vunpack.c.l.b16 %v1791
    %v2607 = vunpack.c.h.b16 %v1791
    %v2608 = vunpack.c.l.b16 %v1792
    %v2609 = vunpack.c.h.b16 %v1792
    %v2610 = vunpack.c.l.b16 %v1793
    %v2611 = vunpack.c.h.b16 %v1793
    %v2612 = vunpack.c.l.b16 %v1794
    %v2613 = vunpack.c.h.b16 %v1794
    %v2614 = vunpack.c.l.b16 %v1795
    %v2615 = vunpack.c.h.b16 %v1795
    %v2616 = vunpack.c.l.b16 %v1796
    %v2617 = vunpack.c.h.b16 %v1796
    %v2618 = vunpack.c.l.b16 %v1797
    %v2619 = vunpack.c.h.b16 %v1797
    %v2620 = vunpack.c.l.b16 %v1798
    %v2621 = vunpack.c.h.b16 %v1798
    %v2622 = vunpack.c.l.b16 %v1799
    %v2623 = vunpack.c.h.b16 %v1799
    %v2624 = vunpack.c.l.b16 %v1800
    %v2625 = vunpack.c.h.b16 %v1800
    %v2626 = vunpack.c.l.b16 %v1801
    %v2627 = vunpack.c.h.b16 %v1801
    %v2628 = vunpack.c.l.b16 %v1802
    %v2629 = vunpack.c.h.b16 %v1802
    %v2630 = vunpack.c.l.b16 %v1803
    %v2631 = vunpack.c.h.b16 %v1803
    %v2632 = vunpack.c.l.b16 %v1804
    %v2633 = vunpack.c.h.b16 %v1804
    %v2634 = vunpack.c.l.b16 %v1805
    %v2635 = vunpack.c.h.b16 %v1805
    %v2636 = vunpack.c.l.b16 %v1806
    %v2637 = vunpack.c.h.b16 %v1806
    %v2638 = vunpack.c.l.b16 %v1807
    %v2639 = vunpack.c.h.b16 %v1807
    %v2640 = vunpack.c.l.b16 %v1808
    %v2641 = vunpack.c.h.b16 %v1808
    %v2642 = vunpack.c.l.b16 %v1809
    %v2643 = vunpack.c.h.b16 %v1809
    %v2644 = vunpack.c.l.b16 %v1810
    %v2645 = vunpack.c.h.b16 %v1810
    %v2646 = vunpack.c.l.b16 %v1811
    %v2647 = vunpack.c.h.b16 %v1811
    %v2648 = vunpack.c.l.b16 %v1812
    %v2649 = vunpack.c.h.b16 %v1812
    %v2650 = vunpack.c.l.b16 %v1813
    %v2651 = vunpack.c.h.b16 %v1813
    %v2652 = vunpack.c.l.b16 %v1814
    %v2653 = vunpack.c.h.b16 %v1814
    %v2654 = vunpack.c.l.b16 %v1815
    %v2655 = vunpack.c.h.b16 %v1815
    %v2656 = vunpack.c.l.b16 %v1816
    %v2657 = vunpack.c.h.b16 %v1816
    %v2658 = vunpack.c.l.b16 %v1817
    %v2659 = vunpack.c.h.b16 %v1817
    %v2660 = vunpack.c.l.b16 %v1818
    %v2661 = vunpack.c.h.b16 %v1818
    %v2662 = vunpack.c.l.b16 %v1819
    %v2663 = vunpack.c.h.b16 %v1819
    %v2664 = vunpack.c.l.b16 %v1820
    %v2665 = vunpack.c.h.b16 %v1820
    %v2666 = vunpack.c.l.b16 %v1821
    %v2667 = vunpack.c.h.b16 %v1821
    %v2668 = vunpack.c.l.b16 %v1822
    %v2669 = vunpack.c.h.b16 %v1822
    %v2670 = vunpack.c.l.b16 %v1823
    %v2671 = vunpack.c.h.b16 %v1823
    %v2672 = vunpack.c.l.b16 %v1824
    %v2673 = vunpack.c.h.b16 %v1824
    %v2674 = vunpack.c.l.b16 %v1825
    %v2675 = vunpack.c.h.b16 %v1825
    %v2676 = vunpack.c.l.b16 %v1826
    %v2677 = vunpack.c.h.b16 %v1826
    %v2678 = vunpack.c.l.b16 %v1827
    %v2679 = vunpack.c.h.b16 %v1827
    %v2680 = vunpack.c.l.b16 %v1828
    %v2681 = vunpack.c.h.b16 %v1828
    %v2682 = vunpack.c.l.b16 %v1829
    %v2683 = vunpack.c.h.b16 %v1829
    %v2684 = vunpack.c.l.b16 %v1830
    %v2685 = vunpack.c.h.b16 %v1830
    %v2686 = vunpack.c.l.b16 %v1831
    %v2687 = vunpack.c.h.b16 %v1831
    %v2688 = vunpack.c.l.b16 %v1832
    %v2689 = vunpack.c.h.b16 %v1832
    %v2690 = vunpack.c.l.b16 %v1833
    %v2691 = vunpack.c.h.b16 %v1833
    %v2692 = vunpack.c.l.b16 %v1834
    %v2693 = vunpack.c.h.b16 %v1834
    %v2694 = vunpack.c.l.b16 %v1835
    %v2695 = vunpack.c.h.b16 %v1835
    %v2696 = vunpack.c.l.b16 %v1836
    %v2697 = vunpack.c.h.b16 %v1836
    %v2698 = vunpack.c.l.b16 %v1837
    %v2699 = vunpack.c.h.b16 %v1837
    %v2700 = vunpack.c.l.b16 %v1838
    %v2701 = vunpack.c.h.b16 %v1838
    %v2702 = vunpack.c.l.b16 %v1839
    %v2703 = vunpack.c.h.b16 %v1839
    %v2704 = vunpack.c.l.b16 %v1840
    %v2705 = vunpack.c.h.b16 %v1840
    %v2706 = vunpack.c.l.b16 %v1841
    %v2707 = vunpack.c.h.b16 %v1841
    %v2708 = vunpack.c.l.b16 %v1842
    %v2709 = vunpack.c.h.b16 %v1842
    %v2710 = vunpack.c.l.b16 %v1843
    %v2711 = vunpack.c.h.b16 %v1843
    %v2712 = vunpack.c.l.b16 %v1844
    %v2713 = vunpack.c.h.b16 %v1844
    %v2714 = vunpack.c.l.b16 %v1845
    %v2715 = vunpack.c.h.b16 %v1845
    %v2716 = vunpack.c.l.b16 %v1846
    %v2717 = vunpack.c.h.b16 %v1846
    %v2718 = vunpack.c.l.b16 %v1847
    %v2719 = vunpack.c.h.b16 %v1847
    %v2720 = vunpack.c.l.b16 %v1848
    %v2721 = vunpack.c.h.b16 %v1848
    %v2722 = vunpack.c.l.b16 %v1849
    %v2723 = vunpack.c.h.b16 %v1849
    %v2724 = vunpack.c.l.b16 %v1850
    %v2725 = vunpack.c.h.b16 %v1850
    %v2726 = vunpack.c.l.b16 %v1851
    %v2727 = vunpack.c.h.b16 %v1851
    %v2728 = vunpack.c.l.b16 %v1852
    %v2729 = vunpack.c.h.b16 %v1852
    %v2730 = vunpack.c.l.b16 %v1853
    %v2731 = vunpack.c.h.b16 %v1853
    %v2732 = vunpack.c.l.b16 %v1854
    %v2733 = vunpack.c.h.b16 %v1854
    %v2734 = vunpack.c.l.b16 %v1855
    %v2735 = vunpack.c.h.b16 %v1855
    %v2736 = vunpack.c.l.b16 %v1856
    %v2737 = vunpack.c.h.b16 %v1856
    %v2738 = vunpack.c.l.b16 %v1857
    %v2739 = vunpack.c.h.b16 %v1857
    %v2740 = vunpack.c.l.b16 %v1858
    %v2741 = vunpack.c.h.b16 %v1858
    %v2742 = vunpack.c.l.b16 %v1859
    %v2743 = vunpack.c.h.b16 %v1859
    %v2744 = vunpack.c.l.b16 %v1860
    %v2745 = vunpack.c.h.b16 %v1860
    %v2746 = vunpack.c.l.b16 %v1861
    %v2747 = vunpack.c.h.b16 %v1861
    %v2748 = vunpack.c.l.b16 %v1862
    %v2749 = vunpack.c.h.b16 %v1862
    %v2750 = vunpack.c.l.b16 %v1863
    %v2751 = vunpack.c.h.b16 %v1863
    %v2752 = vunpack.c.l.b16 %v1864
    %v2753 = vunpack.c.h.b16 %v1864
    %v2754 = vunpack.c.l.b16 %v1865
    %v2755 = vunpack.c.h.b16 %v1865
    %v2756 = vunpack.c.l.b16 %v1866
    %v2757 = vunpack.c.h.b16 %v1866
    %v2758 = vunpack.c.l.b16 %v1867
    %v2759 = vunpack.c.h.b16 %v1867
    %v2760 = vunpack.c.l.b16 %v1868
    %v2761 = vunpack.c.h.b16 %v1868
    %v2762 = vunpack.c.l.b16 %v1869
    %v2763 = vunpack.c.h.b16 %v1869
    %v2764 = vunpack.c.l.b16 %v1870
    %v2765 = vunpack.c.h.b16 %v1870
    %v2766 = vunpack.c.l.b16 %v1871
    %v2767 = vunpack.c.h.b16 %v1871
    %v2768 = vunpack.c.l.b16 %v1872
    %v2769 = vunpack.c.h.b16 %v1872
    %v2770 = vunpack.c.l.b16 %v1873
    %v2771 = vunpack.c.h.b16 %v1873
    %v2772 = vunpack.c.l.b16 %v1874
    %v2773 = vunpack.c.h.b16 %v1874
    %v2774 = vunpack.c.l.b16 %v1875
    %v2775 = vunpack.c.h.b16 %v1875
    %v2776 = vunpack.c.l.b16 %v1876
    %v2777 = vunpack.c.h.b16 %v1876
    %v2778 = vunpack.c.l.b16 %v1877
    %v2779 = vunpack.c.h.b16 %v1877
    %v2780 = vunpack.c.l.b16 %v1878
    %v2781 = vunpack.c.h.b16 %v1878
    %v2782 = vunpack.c.l.b16 %v1879
    %v2783 = vunpack.c.h.b16 %v1879
    %v2784 = vunpack.c.l.b16 %v1880
    %v2785 = vunpack.c.h.b16 %v1880
    %v2786 = vunpack.c.l.b16 %v1881
    %v2787 = vunpack.c.h.b16 %v1881
    %v2788 = vunpack.c.l.b16 %v1882
    %v2789 = vunpack.c.h.b16 %v1882
    %v2790 = vunpack.c.l.b16 %v1883
    %v2791 = vunpack.c.h.b16 %v1883
    %v2792 = vunpack.c.l.b16 %v1884
    %v2793 = vunpack.c.h.b16 %v1884
    %v2794 = vunpack.c.l.b16 %v1885
    %v2795 = vunpack.c.h.b16 %v1885
    %v2796 = vunpack.c.l.b16 %v1886
    %v2797 = vunpack.c.h.b16 %v1886
    %v2798 = vunpack.c.l.b16 %v1887
    %v2799 = vunpack.c.h.b16 %v1887
    %v2800 = vunpack.c.l.b16 %v1888
    %v2801 = vunpack.c.h.b16 %v1888
    %v2802 = vunpack.c.l.b16 %v1889
    %v2803 = vunpack.c.h.b16 %v1889
    %v2804 = vunpack.c.l.b16 %v1890
    %v2805 = vunpack.c.h.b16 %v1890
    %v2806 = vunpack.c.l.b16 %v1891
    %v2807 = vunpack.c.h.b16 %v1891
    %v2808 = vunpack.c.l.b16 %v1892
    %v2809 = vunpack.c.h.b16 %v1892
    %v2810 = vunpack.c.l.b16 %v1893
    %v2811 = vunpack.c.h.b16 %v1893
    %v2812 = vunpack.c.l.b16 %v1894
    %v2813 = vunpack.c.h.b16 %v1894
    %v2814 = vunpack.c.l.b16 %v1895
    %v2815 = vunpack.c.h.b16 %v1895
    %v2816 = vunpack.c.l.b16 %v1896
    %v2817 = vunpack.c.h.b16 %v1896
    %v2818 = vunpack.c.l.b16 %v1897
    %v2819 = vunpack.c.h.b16 %v1897
    %v2820 = vunpack.c.l.b16 %v1898
    %v2821 = vunpack.c.h.b16 %v1898
    %v2822 = vunpack.c.l.b16 %v1899
    %v2823 = vunpack.c.h.b16 %v1899
    %v2824 = vunpack.c.l.b16 %v1900
    %v2825 = vunpack.c.h.b16 %v1900
    %v2826 = vunpack.c.l.b16 %v1901
    %v2827 = vunpack.c.h.b16 %v1901
    %v2828 = vunpack.c.l.b16 %v1902
    %v2829 = vunpack.c.h.b16 %v1902
    %v2830 = vunpack.c.l.b16 %v1903
    %v2831 = vunpack.c.h.b16 %v1903
    %v2832 = vunpack.c.l.b16 %v1904
    %v2833 = vunpack.c.h.b16 %v1904
    %v2834 = vunpack.c.l.b16 %v1905
    %v2835 = vunpack.c.h.b16 %v1905
    %v2836 = vunpack.c.l.b16 %v1906
    %v2837 = vunpack.c.h.b16 %v1906
    %v2838 = vunpack.c.l.b16 %v1907
    %v2839 = vunpack.c.h.b16 %v1907
    %v2840 = vunpack.c.l.b16 %v1908
    %v2841 = vunpack.c.h.b16 %v1908
    %v2842 = vunpack.c.l.b16 %v1909
    %v2843 = vunpack.c.h.b16 %v1909
    %v2844 = vunpack.c.l.b16 %v1910
    %v2845 = vunpack.c.h.b16 %v1910
    %v2846 = vunpack.c.l.b16 %v1911
    %v2847 = vunpack.c.h.b16 %v1911
    %v2848 = vunpack.c.l.b16 %v1912
    %v2849 = vunpack.c.h.b16 %v1912
    %v2850 = vunpack.c.l.b16 %v1913
    %v2851 = vunpack.c.h.b16 %v1913
    %v2852 = vunpack.c.l.b16 %v1914
    %v2853 = vunpack.c.h.b16 %v1914
    %v2854 = vunpack.c.l.b16 %v1915
    %v2855 = vunpack.c.h.b16 %v1915
    %v2856 = vunpack.c.l.b16 %v1916
    %v2857 = vunpack.c.h.b16 %v1916
    %v2858 = vunpack.c.l.b16 %v1917
    %v2859 = vunpack.c.h.b16 %v1917
    %v2860 = vunpack.c.l.b16 %v1918
    %v2861 = vunpack.c.h.b16 %v1918
    %v2862 = vunpack.c.l.b16 %v1919
    %v2863 = vunpack.c.h.b16 %v1919
    %v2864 = vunpack.c.l.b16 %v1920
    %v2865 = vunpack.c.h.b16 %v1920
    %v2866 = vunpack.c.l.b16 %v1921
    %v2867 = vunpack.c.h.b16 %v1921
    %v2868 = vunpack.c.l.b16 %v1922
    %v2869 = vunpack.c.h.b16 %v1922
    %v2870 = vunpack.c.l.b16 %v1923
    %v2871 = vunpack.c.h.b16 %v1923
    %v2872 = vunpack.c.l.b16 %v1924
    %v2873 = vunpack.c.h.b16 %v1924
    %v2874 = vunpack.c.l.b16 %v1925
    %v2875 = vunpack.c.h.b16 %v1925
    %v2876 = vunpack.c.l.b16 %v1926
    %v2877 = vunpack.c.h.b16 %v1926
    %v2878 = vunpack.c.l.b16 %v1927
    %v2879 = vunpack.c.h.b16 %v1927
    %v2880 = vunpack.c.l.b16 %v1928
    %v2881 = vunpack.c.h.b16 %v1928
    %v2882 = vunpack.c.l.b16 %v1929
    %v2883 = vunpack.c.h.b16 %v1929
    %v2884 = vunpack.c.l.b16 %v1930
    %v2885 = vunpack.c.h.b16 %v1930
    %v2886 = vunpack.c.l.b16 %v1931
    %v2887 = vunpack.c.h.b16 %v1931
    %v2888 = vunpack.c.l.b16 %v1932
    %v2889 = vunpack.c.h.b16 %v1932
    %v2890 = vunpack.c.l.b16 %v1933
    %v2891 = vunpack.c.h.b16 %v1933
    %v2892 = vunpack.c.l.b16 %v1934
    %v2893 = vunpack.c.h.b16 %v1934
    %v2894 = vunpack.c.l.b16 %v1935
    %v2895 = vunpack.c.h.b16 %v1935
    %v2896 = vunpack.c.l.b16 %v1936
    %v2897 = vunpack.c.h.b16 %v1936
    %v2898 = vunpack.c.l.b16 %v1937
    %v2899 = vunpack.c.h.b16 %v1937
    %v2900 = vunpack.c.l.b16 %v1938
    %v2901 = vunpack.c.h.b16 %v1938
    %v2902 = vunpack.c.l.b16 %v1939
    %v2903 = vunpack.c.h.b16 %v1939
    %v2904 = vunpack.c.l.b16 %v1940
    %v2905 = vunpack.c.h.b16 %v1940
    %v2906 = vunpack.c.l.b16 %v1941
    %v2907 = vunpack.c.h.b16 %v1941
    %v2908 = vunpack.c.l.b16 %v1942
    %v2909 = vunpack.c.h.b16 %v1942
    %v2910 = vunpack.c.l.b16 %v1943
    %v2911 = vunpack.c.h.b16 %v1943
    %v2912 = vunpack.c.l.b16 %v1944
    %v2913 = vunpack.c.h.b16 %v1944
    %v2914 = vunpack.c.l.b16 %v1945
    %v2915 = vunpack.c.h.b16 %v1945
    %v2916 = vunpack.c.l.b16 %v1946
    %v2917 = vunpack.c.h.b16 %v1946
    %v2918 = vunpack.c.l.b16 %v1947
    %v2919 = vunpack.c.h.b16 %v1947
    %v2920 = vunpack.c.l.b16 %v1948
    %v2921 = vunpack.c.h.b16 %v1948
    %v2922 = vunpack.c.l.b16 %v1949
    %v2923 = vunpack.c.h.b16 %v1949
    %v2924 = vunpack.c.l.b16 %v1950
    %v2925 = vunpack.c.h.b16 %v1950
    %v2926 = vunpack.c.l.b16 %v1951
    %v2927 = vunpack.c.h.b16 %v1951
    %v2928 = vunpack.c.l.b16 %v1952
    %v2929 = vunpack.c.h.b16 %v1952
    %v2930 = vunpack.c.l.b16 %v1953
    %v2931 = vunpack.c.h.b16 %v1953
    %v2932 = vunpack.c.l.b16 %v1954
    %v2933 = vunpack.c.h.b16 %v1954
    %v2934 = vunpack.c.l.b16 %v1955
    %v2935 = vunpack.c.h.b16 %v1955
    %v2936 = vunpack.c.l.b16 %v1956
    %v2937 = vunpack.c.h.b16 %v1956
    %v2938 = vunpack.c.l.b16 %v1957
    %v2939 = vunpack.c.h.b16 %v1957
    %v2940 = vunpack.c.l.b16 %v1958
    %v2941 = vunpack.c.h.b16 %v1958
    %v2942 = vunpack.c.l.b16 %v1959
    %v2943 = vunpack.c.h.b16 %v1959
    %v2944 = vunpack.c.l.b16 %v1960
    %v2945 = vunpack.c.h.b16 %v1960
    %v2946 = vunpack.c.l.b16 %v1961
    %v2947 = vunpack.c.h.b16 %v1961
    %v2948 = vunpack.c.l.b16 %v1962
    %v2949 = vunpack.c.h.b16 %v1962
    %v2950 = vunpack.c.l.b16 %v1963
    %v2951 = vunpack.c.h.b16 %v1963
    %v2952 = vunpack.c.l.b16 %v1964
    %v2953 = vunpack.c.h.b16 %v1964
    %v2954 = vunpack.c.l.b16 %v1965
    %v2955 = vunpack.c.h.b16 %v1965
    %v2956 = vunpack.c.l.b16 %v1966
    %v2957 = vunpack.c.h.b16 %v1966
    %v2958 = vunpack.c.l.b16 %v1967
    %v2959 = vunpack.c.h.b16 %v1967
    %v2960 = vunpack.c.l.b16 %v1968
    %v2961 = vunpack.c.h.b16 %v1968
    %v2962 = vunpack.c.l.b16 %v1969
    %v2963 = vunpack.c.h.b16 %v1969
    %v2964 = vunpack.c.l.b16 %v1970
    %v2965 = vunpack.c.h.b16 %v1970
    %v2966 = vunpack.c.l.b16 %v1971
    %v2967 = vunpack.c.h.b16 %v1971
    %v2968 = vunpack.c.l.b16 %v1972
    %v2969 = vunpack.c.h.b16 %v1972
    %v2970 = vunpack.c.l.b16 %v1973
    %v2971 = vunpack.c.h.b16 %v1973
    %v2972 = vunpack.c.l.b16 %v1974
    %v2973 = vunpack.c.h.b16 %v1974
    %v2974 = vunpack.c.l.b16 %v1975
    %v2975 = vunpack.c.h.b16 %v1975
    %v2976 = vunpack.c.l.b16 %v1976
    %v2977 = vunpack.c.h.b16 %v1976
    %v2978 = vunpack.c.l.b16 %v1977
    %v2979 = vunpack.c.h.b16 %v1977
    %v2980 = vunpack.c.l.b16 %v1978
    %v2981 = vunpack.c.h.b16 %v1978
    %v2982 = vunpack.c.l.b16 %v1979
    %v2983 = vunpack.c.h.b16 %v1979
    %v2984 = vunpack.c.l.b16 %v1980
    %v2985 = vunpack.c.h.b16 %v1980
    %v2986 = vunpack.c.l.b16 %v1981
    %v2987 = vunpack.c.h.b16 %v1981
    %v2988 = vunpack.c.l.b16 %v1982
    %v2989 = vunpack.c.h.b16 %v1982
    %v2990 = vunpack.c.l.b16 %v1983
    %v2991 = vunpack.c.h.b16 %v1983
    %v2992 = vunpack.c.l.b16 %v1984
    %v2993 = vunpack.c.h.b16 %v1984
    %v2994 = vunpack.c.l.b16 %v1985
    %v2995 = vunpack.c.h.b16 %v1985
    %v2996 = vunpack.c.l.b16 %v1986
    %v2997 = vunpack.c.h.b16 %v1986
    %v2998 = vunpack.c.l.b16 %v1987
    %v2999 = vunpack.c.h.b16 %v1987
    %v3000 = vunpack.c.l.b16 %v1988
    %v3001 = vunpack.c.h.b16 %v1988
    %v3002 = vunpack.c.l.b16 %v1989
    %v3003 = vunpack.c.h.b16 %v1989
    %v3004 = vunpack.c.l.b16 %v1990
    %v3005 = vunpack.c.h.b16 %v1990
    %v3006 = vunpack.c.l.b16 %v1991
    %v3007 = vunpack.c.h.b16 %v1991
    %v3008 = vunpack.c.l.b16 %v1992
    %v3009 = vunpack.c.h.b16 %v1992
    %v3010 = vunpack.c.l.b16 %v1993
    %v3011 = vunpack.c.h.b16 %v1993
    %v3012 = vunpack.c.l.b16 %v1994
    %v3013 = vunpack.c.h.b16 %v1994
    %v3014 = vunpack.c.l.b16 %v1995
    %v3015 = vunpack.c.h.b16 %v1995
    %v3016 = vunpack.c.l.b16 %v1996
    %v3017 = vunpack.c.h.b16 %v1996
    %v3018 = vunpack.c.l.b16 %v1997
    %v3019 = vunpack.c.h.b16 %v1997
    %v3020 = vunpack.c.l.b16 %v1998
    %v3021 = vunpack.c.h.b16 %v1998
    %v3022 = vunpack.c.l.b16 %v1999
    %v3023 = vunpack.c.h.b16 %v1999
    %v3024 = vunpack.c.l.b16 %v2000
    %v3025 = vunpack.c.h.b16 %v2000
    %v3026 = vunpack.c.l.b16 %v2001
    %v3027 = vunpack.c.h.b16 %v2001
    %v3028 = vunpack.c.l.b16 %v2002
    %v3029 = vunpack.c.h.b16 %v2002
    %v3030 = vunpack.c.l.b16 %v2003
    %v3031 = vunpack.c.h.b16 %v2003
    %v3032 = vunpack.c.l.b16 %v2004
    %v3033 = vunpack.c.h.b16 %v2004
    %v3034 = vunpack.c.l.b16 %v2005
    %v3035 = vunpack.c.h.b16 %v2005
    %v3036 = vunpack.c.l.b16 %v2006
    %v3037 = vunpack.c.h.b16 %v2006
    %v3038 = vunpack.c.l.b16 %v2007
    %v3039 = vunpack.c.h.b16 %v2007
    %v3040 = vunpack.c.l.b16 %v2008
    %v3041 = vunpack.c.h.b16 %v2008
    %v3042 = vunpack.c.l.b16 %v2009
    %v3043 = vunpack.c.h.b16 %v2009
    %v3044 = vunpack.c.l.b16 %v2010
    %v3045 = vunpack.c.h.b16 %v2010
    %v3046 = vunpack.c.l.b16 %v2011
    %v3047 = vunpack.c.h.b16 %v2011
    %v3048 = vunpack.c.l.b16 %v2012
    %v3049 = vunpack.c.h.b16 %v2012
    %v3050 = vunpack.c.l.b16 %v2013
    %v3051 = vunpack.c.h.b16 %v2013
    %v3052 = vunpack.c.l.b16 %v2014
    %v3053 = vunpack.c.h.b16 %v2014
    %v3054 = vunpack.c.l.b16 %v2015
    %v3055 = vunpack.c.h.b16 %v2015
    %v3056 = vunpack.c.l.b16 %v2016
    %v3057 = vunpack.c.h.b16 %v2016
    %v3058 = vunpack.c.l.b16 %v2017
    %v3059 = vunpack.c.h.b16 %v2017
    %v3060 = vunpack.c.l.b16 %v2018
    %v3061 = vunpack.c.h.b16 %v2018
    %v3062 = vunpack.c.l.b16 %v2019
    %v3063 = vunpack.c.h.b16 %v2019
    %v3064 = vunpack.c.l.b16 %v2020
    %v3065 = vunpack.c.h.b16 %v2020
    %v3066 = vunpack.c.l.b16 %v2021
    %v3067 = vunpack.c.h.b16 %v2021
    %v3068 = vunpack.c.l.b16 %v2022
    %v3069 = vunpack.c.h.b16 %v2022
    %v3070 = vunpack.c.l.b16 %v2023
    %v3071 = vunpack.c.h.b16 %v2023
    %v3072 = vunpack.c.l.b16 %v2024
    %v3073 = vunpack.c.h.b16 %v2024
    %v3074 = vunpack.c.l.b16 %v2025
    %v3075 = vunpack.c.h.b16 %v2025
    %v3076 = vunpack.c.l.b16 %v2026
    %v3077 = vunpack.c.h.b16 %v2026
    %v3078 = vunpack.c.l.b16 %v2027
    %v3079 = vunpack.c.h.b16 %v2027
    %v3080 = vunpack.c.l.b16 %v2028
    %v3081 = vunpack.c.h.b16 %v2028
    %v3082 = vunpack.c.l.b16 %v2029
    %v3083 = vunpack.c.h.b16 %v2029
    %v3084 = vunpack.c.l.b16 %v2030
    %v3085 = vunpack.c.h.b16 %v2030
    %v3086 = vunpack.c.l.b16 %v2031
    %v3087 = vunpack.c.h.b16 %v2031
    %v3088 = vunpack.c.l.b16 %v2032
    %v3089 = vunpack.c.h.b16 %v2032
    %v3090 = vunpack.c.l.b16 %v2033
    %v3091 = vunpack.c.h.b16 %v2033
    %v3092 = vunpack.c.l.b16 %v2034
    %v3093 = vunpack.c.h.b16 %v2034
    %v3094 = vunpack.c.l.b16 %v2035
    %v3095 = vunpack.c.h.b16 %v2035
    %v3096 = vunpack.c.l.b16 %v2036
    %v3097 = vunpack.c.h.b16 %v2036
    %v3098 = vunpack.c.l.b16 %v2037
    %v3099 = vunpack.c.h.b16 %v2037
    %v3100 = vunpack.c.l.b16 %v2038
    %v3101 = vunpack.c.h.b16 %v2038
    %v3102 = vunpack.c.l.b16 %v2039
    %v3103 = vunpack.c.h.b16 %v2039
    %v3104 = vunpack.c.l.b16 %v2040
    %v3105 = vunpack.c.h.b16 %v2040
    %v3106 = vunpack.c.l.b16 %v2041
    %v3107 = vunpack.c.h.b16 %v2041
    %v3108 = vunpack.c.l.b16 %v2042
    %v3109 = vunpack.c.h.b16 %v2042
    %v3110 = vunpack.c.l.b16 %v2043
    %v3111 = vunpack.c.h.b16 %v2043
    %v3112 = vunpack.c.l.b16 %v2044
    %v3113 = vunpack.c.h.b16 %v2044
    %v3114 = vunpack.c.l.b16 %v2045
    %v3115 = vunpack.c.h.b16 %v2045
    %v3116 = vunpack.c.l.b16 %v2046
    %v3117 = vunpack.c.h.b16 %v2046
    %v3118 = vunpack.c.l.b16 %v2047
    %v3119 = vunpack.c.h.b16 %v2047
    %v3120 = vunpack.c.l.b16 %v2048
    %v3121 = vunpack.c.h.b16 %v2048
    %v3122 = vunpack.c.l.b16 %v2049
    %v3123 = vunpack.c.h.b16 %v2049
    %v3124 = vunpack.c.l.b16 %v2050
    %v3125 = vunpack.c.h.b16 %v2050
    %v3126 = vunpack.c.l.b16 %v2051
    %v3127 = vunpack.c.h.b16 %v2051
    %v3128 = vunpack.c.l.b16 %v2052
    %v3129 = vunpack.c.h.b16 %v2052
    %v3130 = vunpack.c.l.b16 %v2053
    %v3131 = vunpack.c.h.b16 %v2053
    %v3132 = vunpack.c.l.b16 %v2054
    %v3133 = vunpack.c.h.b16 %v2054
    %v3134 = vunpack.c.l.b16 %v2055
    %v3135 = vunpack.c.h.b16 %v2055
    %v3136 = vunpack.c.l.b16 %v2056
    %v3137 = vunpack.c.h.b16 %v2056
    %v3138 = vunpack.c.l.b16 %v2057
    %v3139 = vunpack.c.h.b16 %v2057
    %v3140 = vunpack.c.l.b16 %v2058
    %v3141 = vunpack.c.h.b16 %v2058
    %v3142 = vunpack.c.l.b16 %v2059
    %v3143 = vunpack.c.h.b16 %v2059
    %v3144 = vunpack.c.l.b16 %v2060
    %v3145 = vunpack.c.h.b16 %v2060
    %v3146 = vunpack.c.l.b16 %v2061
    %v3147 = vunpack.c.h.b16 %v2061
    %v3148 = vunpack.c.l.b16 %v2062
    %v3149 = vunpack.c.h.b16 %v2062
    %v3150 = vunpack.c.l.b16 %v2063
    %v3151 = vunpack.c.h.b16 %v2063
    %v3152 = vunpack.c.l.b16 %v2064
    %v3153 = vunpack.c.h.b16 %v2064
    %v3154 = vunpack.c.l.b16 %v2065
    %v3155 = vunpack.c.h.b16 %v2065
    %v3156 = vunpack.c.l.b16 %v2066
    %v3157 = vunpack.c.h.b16 %v2066
    %v3158 = vunpack.c.l.b16 %v2067
    %v3159 = vunpack.c.h.b16 %v2067
    %v3160 = vunpack.c.l.b16 %v2068
    %v3161 = vunpack.c.h.b16 %v2068
    %v3162 = vunpack.c.l.b16 %v2069
    %v3163 = vunpack.c.h.b16 %v2069
    %v3164 = vunpack.c.l.b16 %v2070
    %v3165 = vunpack.c.h.b16 %v2070
    %v3166 = vunpack.c.l.b16 %v2071
    %v3167 = vunpack.c.h.b16 %v2071
    %v3168 = vunpack.c.l.b16 %v2072
    %v3169 = vunpack.c.h.b16 %v2072
    %v3170 = vunpack.c.l.b16 %v2073
    %v3171 = vunpack.c.h.b16 %v2073
    %v3172 = vunpack.c.l.b16 %v2074
    %v3173 = vunpack.c.h.b16 %v2074
    %v3174 = vunpack.c.l.b16 %v2075
    %v3175 = vunpack.c.h.b16 %v2075
    %v3176 = vunpack.c.l.b16 %v2076
    %v3177 = vunpack.c.h.b16 %v2076
    %v3178 = vunpack.c.l.b16 %v2077
    %v3179 = vunpack.c.h.b16 %v2077
    %v3180 = vunpack.c.l.b16 %v2078
    %v3181 = vunpack.c.h.b16 %v2078
    %v3182 = vunpack.c.l.b16 %v2079
    %v3183 = vunpack.c.h.b16 %v2079
    %v3184 = vunpack.c.l.b16 %v2080
    %v3185 = vunpack.c.h.b16 %v2080
    %v3186 = vunpack.c.l.b16 %v2081
    %v3187 = vunpack.c.h.b16 %v2081
    %v3188 = vunpack.c.l.b16 %v2082
    %v3189 = vunpack.c.h.b16 %v2082
    %v3190 = vunpack.c.l.b16 %v2083
    %v3191 = vunpack.c.h.b16 %v2083
    %v3192 = vunpack.c.l.b16 %v2084
    %v3193 = vunpack.c.h.b16 %v2084
    %v3194 = vunpack.c.l.b16 %v2085
    %v3195 = vunpack.c.h.b16 %v2085
    %v3196 = vunpack.c.l.b16 %v2086
    %v3197 = vunpack.c.h.b16 %v2086
    %v3198 = vunpack.c.l.b16 %v2087
    %v3199 = vunpack.c.h.b16 %v2087
    %v3200 = vunpack.c.l.b16 %v2088
    %v3201 = vunpack.c.h.b16 %v2088
    %v3202 = vunpack.c.l.b16 %v2089
    %v3203 = vunpack.c.h.b16 %v2089
    %v3204 = vunpack.c.l.b16 %v2090
    %v3205 = vunpack.c.h.b16 %v2090
    %v3206 = vunpack.c.l.b16 %v2091
    %v3207 = vunpack.c.h.b16 %v2091
    %v3208 = vunpack.c.l.b16 %v2092
    %v3209 = vunpack.c.h.b16 %v2092
    %v3210 = vunpack.c.l.b16 %v2093
    %v3211 = vunpack.c.h.b16 %v2093
    %v3212 = vunpack.c.l.b16 %v2094
    %v3213 = vunpack.c.h.b16 %v2094
    %v3214 = vunpack.c.l.b16 %v2095
    %v3215 = vunpack.c.h.b16 %v2095
    %v3216 = vunpack.c.l.b16 %v2096
    %v3217 = vunpack.c.h.b16 %v2096
    %v3218 = vunpack.c.l.b16 %v2097
    %v3219 = vunpack.c.h.b16 %v2097
    %v3220 = vunpack.c.l.b16 %v2098
    %v3221 = vunpack.c.h.b16 %v2098
    %v3222 = vunpack.c.l.b16 %v2099
    %v3223 = vunpack.c.h.b16 %v2099
    %v3224 = vunpack.c.l.b16 %v2100
    %v3225 = vunpack.c.h.b16 %v2100
    %v3226 = vunpack.c.l.b16 %v2101
    %v3227 = vunpack.c.h.b16 %v2101
    %v3228 = vunpack.c.l.b16 %v2102
    %v3229 = vunpack.c.h.b16 %v2102
    %v3230 = vunpack.c.l.b16 %v2103
    %v3231 = vunpack.c.h.b16 %v2103
    %v3232 = vunpack.c.l.b16 %v2104
    %v3233 = vunpack.c.h.b16 %v2104
    %v3234 = vunpack.c.l.b16 %v2105
    %v3235 = vunpack.c.h.b16 %v2105
    %v3236 = vunpack.c.l.b16 %v2106
    %v3237 = vunpack.c.h.b16 %v2106
    %v3238 = vunpack.c.l.b16 %v2107
    %v3239 = vunpack.c.h.b16 %v2107
    %v3240 = vunpack.c.l.b16 %v2108
    %v3241 = vunpack.c.h.b16 %v2108
    %v3242 = vunpack.c.l.b16 %v2109
    %v3243 = vunpack.c.h.b16 %v2109
    %v3244 = vunpack.c.l.b16 %v2110
    %v3245 = vunpack.c.h.b16 %v2110
    %v3246 = vunpack.c.l.b16 %v2111
    %v3247 = vunpack.c.h.b16 %v2111
    %v3248 = vunpack.c.l.b16 %v2112
    %v3249 = vunpack.c.h.b16 %v2112
    %v3250 = vunpack.c.l.b16 %v2113
    %v3251 = vunpack.c.h.b16 %v2113
    %v3252 = vunpack.c.l.b16 %v2114
    %v3253 = vunpack.c.h.b16 %v2114
    %v3254 = vunpack.c.l.b16 %v2115
    %v3255 = vunpack.c.h.b16 %v2115
    %v3256 = vunpack.c.l.b16 %v2116
    %v3257 = vunpack.c.h.b16 %v2116
    %v3258 = vunpack.c.l.b16 %v2117
    %v3259 = vunpack.c.h.b16 %v2117
    %v3260 = vunpack.c.l.b16 %v2118
    %v3261 = vunpack.c.h.b16 %v2118
    %v3262 = vunpack.c.l.b16 %v2119
    %v3263 = vunpack.c.h.b16 %v2119
    %v3264 = vunpack.c.l.b16 %v2120
    %v3265 = vunpack.c.h.b16 %v2120
    %v3266 = vunpack.c.l.b16 %v2121
    %v3267 = vunpack.c.h.b16 %v2121
    %v3268 = vunpack.c.l.b16 %v2122
    %v3269 = vunpack.c.h.b16 %v2122
    %v3270 = vunpack.c.l.b16 %v2123
    %v3271 = vunpack.c.h.b16 %v2123
    %v3272 = vunpack.c.l.b16 %v2124
    %v3273 = vunpack.c.h.b16 %v2124
    %v3274 = vunpack.c.l.b16 %v2125
    %v3275 = vunpack.c.h.b16 %v2125
    %v3276 = vunpack.c.l.b16 %v2126
    %v3277 = vunpack.c.h.b16 %v2126
    %v3278 = vunpack.c.l.b16 %v2127
    %v3279 = vunpack.c.h.b16 %v2127
    %v3280 = vunpack.c.l.b16 %v2128
    %v3281 = vunpack.c.h.b16 %v2128
    %v3282 = vunpack.c.l.b16 %v2129
    %v3283 = vunpack.c.h.b16 %v2129
    %v3284 = vunpack.c.l.b16 %v2130
    %v3285 = vunpack.c.h.b16 %v2130
    %v3286 = vunpack.c.l.b16 %v2131
    %v3287 = vunpack.c.h.b16 %v2131
    %v3288 = vunpack.c.l.b16 %v2132
    %v3289 = vunpack.c.h.b16 %v2132
    %v3290 = vunpack.c.l.b16 %v2133
    %v3291 = vunpack.c.h.b16 %v2133
    %v3292 = vunpack.c.l.b16 %v2134
    %v3293 = vunpack.c.h.b16 %v2134
    %v3294 = vunpack.c.l.b16 %v2135
    %v3295 = vunpack.c.h.b16 %v2135
    %v3296 = vunpack.c.l.b16 %v2136
    %v3297 = vunpack.c.h.b16 %v2136
    %v3298 = vunpack.c.l.b16 %v2137
    %v3299 = vunpack.c.h.b16 %v2137
    %v3300 = vunpack.c.l.b16 %v2138
    %v3301 = vunpack.c.h.b16 %v2138
    %v3302 = vunpack.c.l.b16 %v2139
    %v3303 = vunpack.c.h.b16 %v2139
    %v3304 = vunpack.c.l.b16 %v2140
    %v3305 = vunpack.c.h.b16 %v2140
    %v3306 = vunpack.c.l.b16 %v2141
    %v3307 = vunpack.c.h.b16 %v2141
    %v3308 = vunpack.c.l.b16 %v2142
    %v3309 = vunpack.c.h.b16 %v2142
    %v3310 = vunpack.c.l.b16 %v2143
    %v3311 = vunpack.c.h.b16 %v2143
    %v3312 = vunpack.c.l.b16 %v2144
    %v3313 = vunpack.c.h.b16 %v2144
    %v3314 = vunpack.c.l.b16 %v2145
    %v3315 = vunpack.c.h.b16 %v2145
    %v3316 = vunpack.c.l.b16 %v2146
    %v3317 = vunpack.c.h.b16 %v2146
    %v3318 = vunpack.c.l.b16 %v2147
    %v3319 = vunpack.c.h.b16 %v2147
    %v3320 = vunpack.c.l.b16 %v2148
    %v3321 = vunpack.c.h.b16 %v2148
    %v3322 = vunpack.c.l.b16 %v2149
    %v3323 = vunpack.c.h.b16 %v2149
    %v3324 = vpack.c.b16 %v2560, %v2556
    %v3325 = vpack.c.b16 %v2561, %v2557
    %v3326 = vpack.c.b16 %v2562, %v2558
    %v3327 = vpack.c.b16 %v2563, %v2559
    %v3328 = vpack.c.b16 %v2568, %v2564
    %v3329 = vpack.c.b16 %v2569, %v2565
    %v3330 = vpack.c.b16 %v2570, %v2566
    %v3331 = vpack.c.b16 %v2571, %v2567
    %v3332 = vpack.c.b16 %v2576, %v2572
    %v3333 = vpack.c.b16 %v2577, %v2573
    %v3334 = vpack.c.b16 %v2578, %v2574
    %v3335 = vpack.c.b16 %v2579, %v2575
    %v3336 = vpack.c.b16 %v2584, %v2580
    %v3337 = vpack.c.b16 %v2585, %v2581
    %v3338 = vpack.c.b16 %v2586, %v2582
    %v3339 = vpack.c.b16 %v2587, %v2583
    %v3340 = vpack.c.b16 %v2592, %v2588
    %v3341 = vpack.c.b16 %v2593, %v2589
    %v3342 = vpack.c.b16 %v2594, %v2590
    %v3343 = vpack.c.b16 %v2595, %v2591
    %v3344 = vpack.c.b16 %v2600, %v2596
    %v3345 = vpack.c.b16 %v2601, %v2597
    %v3346 = vpack.c.b16 %v2602, %v2598
    %v3347 = vpack.c.b16 %v2603, %v2599
    %v3348 = vpack.c.b16 %v2608, %v2604
    %v3349 = vpack.c.b16 %v2609, %v2605
    %v3350 = vpack.c.b16 %v2610, %v2606
    %v3351 = vpack.c.b16 %v2611, %v2607
    %v3352 = vpack.c.b16 %v2616, %v2612
    %v3353 = vpack.c.b16 %v2617, %v2613
    %v3354 = vpack.c.b16 %v2618, %v2614
    %v3355 = vpack.c.b16 %v2619, %v2615
    %v3356 = vpack.c.b16 %v2624, %v2620
    %v3357 = vpack.c.b16 %v2625, %v2621
    %v3358 = vpack.c.b16 %v2626, %v2622
    %v3359 = vpack.c.b16 %v2627, %v2623
    %v3360 = vpack.c.b16 %v2632, %v2628
    %v3361 = vpack.c.b16 %v2633, %v2629
    %v3362 = vpack.c.b16 %v2634, %v2630
    %v3363 = vpack.c.b16 %v2635, %v2631
    %v3364 = vpack.c.b16 %v2640, %v2636
    %v3365 = vpack.c.b16 %v2641, %v2637
    %v3366 = vpack.c.b16 %v2642, %v2638
    %v3367 = vpack.c.b16 %v2643, %v2639
    %v3368 = vpack.c.b16 %v2648, %v2644
    %v3369 = vpack.c.b16 %v2649, %v2645
    %v3370 = vpack.c.b16 %v2650, %v2646
    %v3371 = vpack.c.b16 %v2651, %v2647
    %v3372 = vpack.c.b16 %v2656, %v2652
    %v3373 = vpack.c.b16 %v2657, %v2653
    %v3374 = vpack.c.b16 %v2658, %v2654
    %v3375 = vpack.c.b16 %v2659, %v2655
    %v3376 = vpack.c.b16 %v2664, %v2660
    %v3377 = vpack.c.b16 %v2665, %v2661
    %v3378 = vpack.c.b16 %v2666, %v2662
    %v3379 = vpack.c.b16 %v2667, %v2663
    %v3380 = vpack.c.b16 %v2672, %v2668
    %v3381 = vpack.c.b16 %v2673, %v2669
    %v3382 = vpack.c.b16 %v2674, %v2670
    %v3383 = vpack.c.b16 %v2675, %v2671
    %v3384 = vpack.c.b16 %v2680, %v2676
    %v3385 = vpack.c.b16 %v2681, %v2677
    %v3386 = vpack.c.b16 %v2682, %v2678
    %v3387 = vpack.c.b16 %v2683, %v2679
    %v3388 = vpack.c.b16 %v2688, %v2684
    %v3389 = vpack.c.b16 %v2689, %v2685
    %v3390 = vpack.c.b16 %v2690, %v2686
    %v3391 = vpack.c.b16 %v2691, %v2687
    %v3392 = vpack.c.b16 %v2696, %v2692
    %v3393 = vpack.c.b16 %v2697, %v2693
    %v3394 = vpack.c.b16 %v2698, %v2694
    %v3395 = vpack.c.b16 %v2699, %v2695
    %v3396 = vpack.c.b16 %v2704, %v2700
    %v3397 = vpack.c.b16 %v2705, %v2701
    %v3398 = vpack.c.b16 %v2706, %v2702
    %v3399 = vpack.c.b16 %v2707, %v2703
    %v3400 = vpack.c.b16 %v2712, %v2708
    %v3401 = vpack.c.b16 %v2713, %v2709
    %v3402 = vpack.c.b16 %v2714, %v2710
    %v3403 = vpack.c.b16 %v2715, %v2711
    %v3404 = vpack.c.b16 %v2720, %v2716
    %v3405 = vpack.c.b16 %v2721, %v2717
    %v3406 = vpack.c.b16 %v2722, %v2718
    %v3407 = vpack.c.b16 %v2723, %v2719
    %v3408 = vpack.c.b16 %v2728, %v2724
    %v3409 = vpack.c.b16 %v2729, %v2725
    %v3410 = vpack.c.b16 %v2730, %v2726
    %v3411 = vpack.c.b16 %v2731, %v2727
    %v3412 = vpack.c.b16 %v2736, %v2732
    %v3413 = vpack.c.b16 %v2737, %v2733
    %v3414 = vpack.c.b16 %v2738, %v2734
    %v3415 = vpack.c.b16 %v2739, %v2735
    %v3416 = vpack.c.b16 %v2744, %v2740
    %v3417 = vpack.c.b16 %v2745, %v2741
    %v3418 = vpack.c.b16 %v2746, %v2742
    %v3419 = vpack.c.b16 %v2747, %v2743
    %v3420 = vpack.c.b16 %v2752, %v2748
    %v3421 = vpack.c.b16 %v2753, %v2749
    %v3422 = vpack.c.b16 %v2754, %v2750
    %v3423 = vpack.c.b16 %v2755, %v2751
    %v3424 = vpack.c.b16 %v2760, %v2756
    %v3425 = vpack.c.b16 %v2761, %v2757
    %v3426 = vpack.c.b16 %v2762, %v2758
    %v3427 = vpack.c.b16 %v2763, %v2759
    %v3428 = vpack.c.b16 %v2768, %v2764
    %v3429 = vpack.c.b16 %v2769, %v2765
    %v3430 = vpack.c.b16 %v2770, %v2766
    %v3431 = vpack.c.b16 %v2771, %v2767
    %v3432 = vpack.c.b16 %v2776, %v2772
    %v3433 = vpack.c.b16 %v2777, %v2773
    %v3434 = vpack.c.b16 %v2778, %v2774
    %v3435 = vpack.c.b16 %v2779, %v2775
    %v3436 = vpack.c.b16 %v2784, %v2780
    %v3437 = vpack.c.b16 %v2785, %v2781
    %v3438 = vpack.c.b16 %v2786, %v2782
    %v3439 = vpack.c.b16 %v2787, %v2783
    %v3440 = vpack.c.b16 %v2792, %v2788
    %v3441 = vpack.c.b16 %v2793, %v2789
    %v3442 = vpack.c.b16 %v2794, %v2790
    %v3443 = vpack.c.b16 %v2795, %v2791
    %v3444 = vpack.c.b16 %v2800, %v2796
    %v3445 = vpack.c.b16 %v2801, %v2797
    %v3446 = vpack.c.b16 %v2802, %v2798
    %v3447 = vpack.c.b16 %v2803, %v2799
    %v3448 = vpack.c.b16 %v2808, %v2804
    %v3449 = vpack.c.b16 %v2809, %v2805
    %v3450 = vpack.c.b16 %v2810, %v2806
    %v3451 = vpack.c.b16 %v2811, %v2807
    %v3452 = vpack.c.b16 %v2816, %v2812
    %v3453 = vpack.c.b16 %v2817, %v2813
    %v3454 = vpack.c.b16 %v2818, %v2814
    %v3455 = vpack.c.b16 %v2819, %v2815
    %v3456 = vpack.c.b16 %v2824, %v2820
    %v3457 = vpack.c.b16 %v2825, %v2821
    %v3458 = vpack.c.b16 %v2826, %v2822
    %v3459 = vpack.c.b16 %v2827, %v2823
    %v3460 = vpack.c.b16 %v2832, %v2828
    %v3461 = vpack.c.b16 %v2833, %v2829
    %v3462 = vpack.c.b16 %v2834, %v2830
    %v3463 = vpack.c.b16 %v2835, %v2831
    %v3464 = vpack.c.b16 %v2840, %v2836
    %v3465 = vpack.c.b16 %v2841, %v2837
    %v3466 = vpack.c.b16 %v2842, %v2838
    %v3467 = vpack.c.b16 %v2843, %v2839
    %v3468 = vpack.c.b16 %v2848, %v2844
    %v3469 = vpack.c.b16 %v2849, %v2845
    %v3470 = vpack.c.b16 %v2850, %v2846
    %v3471 = vpack.c.b16 %v2851, %v2847
    %v3472 = vpack.c.b16 %v2856, %v2852
    %v3473 = vpack.c.b16 %v2857, %v2853
    %v3474 = vpack.c.b16 %v2858, %v2854
    %v3475 = vpack.c.b16 %v2859, %v2855
    %v3476 = vpack.c.b16 %v2864, %v2860
    %v3477 = vpack.c.b16 %v2865, %v2861
    %v3478 = vpack.c.b16 %v2866, %v2862
    %v3479 = vpack.c.b16 %v2867, %v2863
    %v3480 = vpack.c.b16 %v2872, %v2868
    %v3481 = vpack.c.b16 %v2873, %v2869
    %v3482 = vpack.c.b16 %v2874, %v2870
    %v3483 = vpack.c.b16 %v2875, %v2871
    %v3484 = vpack.c.b16 %v2880, %v2876
    %v3485 = vpack.c.b16 %v2881, %v2877
    %v3486 = vpack.c.b16 %v2882, %v2878
    %v3487 = vpack.c.b16 %v2883, %v2879
    %v3488 = vpack.c.b16 %v2888, %v2884
    %v3489 = vpack.c.b16 %v2889, %v2885
    %v3490 = vpack.c.b16 %v2890, %v2886
    %v3491 = vpack.c.b16 %v2891, %v2887
    %v3492 = vpack.c.b16 %v2896, %v2892
    %v3493 = vpack.c.b16 %v2897, %v2893
    %v3494 = vpack.c.b16 %v2898, %v2894
    %v3495 = vpack.c.b16 %v2899, %v2895
    %v3496 = vpack.c.b16 %v2904, %v2900
    %v3497 = vpack.c.b16 %v2905, %v2901
    %v3498 = vpack.c.b16 %v2906, %v2902
    %v3499 = vpack.c.b16 %v2907, %v2903
    %v3500 = vpack.c.b16 %v2912, %v2908
    %v3501 = vpack.c.b16 %v2913, %v2909
    %v3502 = vpack.c.b16 %v2914, %v2910
    %v3503 = vpack.c.b16 %v2915, %v2911
    %v3504 = vpack.c.b16 %v2920, %v2916
    %v3505 = vpack.c.b16 %v2921, %v2917
    %v3506 = vpack.c.b16 %v2922, %v2918
    %v3507 = vpack.c.b16 %v2923, %v2919
    %v3508 = vpack.c.b16 %v2928, %v2924
    %v3509 = vpack.c.b16 %v2929, %v2925
    %v3510 = vpack.c.b16 %v2930, %v2926
    %v3511 = vpack.c.b16 %v2931, %v2927
    %v3512 = vpack.c.b16 %v2936, %v2932
    %v3513 = vpack.c.b16 %v2937, %v2933
    %v3514 = vpack.c.b16 %v2938, %v2934
    %v3515 = vpack.c.b16 %v2939, %v2935
    %v3516 = vpack.c.b16 %v2944, %v2940
    %v3517 = vpack.c.b16 %v2945, %v2941
    %v3518 = vpack.c.b16 %v2946, %v2942
    %v3519 = vpack.c.b16 %v2947, %v2943
    %v3520 = vpack.c.b16 %v2952, %v2948
    %v3521 = vpack.c.b16 %v2953, %v2949
    %v3522 = vpack.c.b16 %v2954, %v2950
    %v3523 = vpack.c.b16 %v2955, %v2951
    %v3524 = vpack.c.b16 %v2960, %v2956
    %v3525 = vpack.c.b16 %v2961, %v2957
    %v3526 = vpack.c.b16 %v2962, %v2958
    %v3527 = vpack.c.b16 %v2963, %v2959
    %v3528 = vpack.c.b16 %v2968, %v2964
    %v3529 = vpack.c.b16 %v2969, %v2965
    %v3530 = vpack.c.b16 %v2970, %v2966
    %v3531 = vpack.c.b16 %v2971, %v2967
    %v3532 = vpack.c.b16 %v2976, %v2972
    %v3533 = vpack.c.b16 %v2977, %v2973
    %v3534 = vpack.c.b16 %v2978, %v2974
    %v3535 = vpack.c.b16 %v2979, %v2975
    %v3536 = vpack.c.b16 %v2984, %v2980
    %v3537 = vpack.c.b16 %v2985, %v2981
    %v3538 = vpack.c.b16 %v2986, %v2982
    %v3539 = vpack.c.b16 %v2987, %v2983
    %v3540 = vpack.c.b16 %v2992, %v2988
    %v3541 = vpack.c.b16 %v2993, %v2989
    %v3542 = vpack.c.b16 %v2994, %v2990
    %v3543 = vpack.c.b16 %v2995, %v2991
    %v3544 = vpack.c.b16 %v3000, %v2996
    %v3545 = vpack.c.b16 %v3001, %v2997
    %v3546 = vpack.c.b16 %v3002, %v2998
    %v3547 = vpack.c.b16 %v3003, %v2999
    %v3548 = vpack.c.b16 %v3008, %v3004
    %v3549 = vpack.c.b16 %v3009, %v3005
    %v3550 = vpack.c.b16 %v3010, %v3006
    %v3551 = vpack.c.b16 %v3011, %v3007
    %v3552 = vpack.c.b16 %v3016, %v3012
    %v3553 = vpack.c.b16 %v3017, %v3013
    %v3554 = vpack.c.b16 %v3018, %v3014
    %v3555 = vpack.c.b16 %v3019, %v3015
    %v3556 = vpack.c.b16 %v3024, %v3020
    %v3557 = vpack.c.b16 %v3025, %v3021
    %v3558 = vpack.c.b16 %v3026, %v3022
    %v3559 = vpack.c.b16 %v3027, %v3023
    %v3560 = vpack.c.b16 %v3032, %v3028
    %v3561 = vpack.c.b16 %v3033, %v3029
    %v3562 = vpack.c.b16 %v3034, %v3030
    %v3563 = vpack.c.b16 %v3035, %v3031
    %v3564 = vpack.c.b16 %v3040, %v3036
    %v3565 = vpack.c.b16 %v3041, %v3037
    %v3566 = vpack.c.b16 %v3042, %v3038
    %v3567 = vpack.c.b16 %v3043, %v3039
    %v3568 = vpack.c.b16 %v3048, %v3044
    %v3569 = vpack.c.b16 %v3049, %v3045
    %v3570 = vpack.c.b16 %v3050, %v3046
    %v3571 = vpack.c.b16 %v3051, %v3047
    %v3572 = vpack.c.b16 %v3056, %v3052
    %v3573 = vpack.c.b16 %v3057, %v3053
    %v3574 = vpack.c.b16 %v3058, %v3054
    %v3575 = vpack.c.b16 %v3059, %v3055
    %v3576 = vpack.c.b16 %v3064, %v3060
    %v3577 = vpack.c.b16 %v3065, %v3061
    %v3578 = vpack.c.b16 %v3066, %v3062
    %v3579 = vpack.c.b16 %v3067, %v3063
    %v3580 = vpack.c.b16 %v3072, %v3068
    %v3581 = vpack.c.b16 %v3073, %v3069
    %v3582 = vpack.c.b16 %v3074, %v3070
    %v3583 = vpack.c.b16 %v3075, %v3071
    %v3584 = vpack.c.b16 %v3080, %v3076
    %v3585 = vpack.c.b16 %v3081, %v3077
    %v3586 = vpack.c.b16 %v3082, %v3078
    %v3587 = vpack.c.b16 %v3083, %v3079
    %v3588 = vpack.c.b16 %v3088, %v3084
    %v3589 = vpack.c.b16 %v3089, %v3085
    %v3590 = vpack.c.b16 %v3090, %v3086
    %v3591 = vpack.c.b16 %v3091, %v3087
    %v3592 = vpack.c.b16 %v3096, %v3092
    %v3593 = vpack.c.b16 %v3097, %v3093
    %v3594 = vpack.c.b16 %v3098, %v3094
    %v3595 = vpack.c.b16 %v3099, %v3095
    %v3596 = vpack.c.b16 %v3104, %v3100
    %v3597 = vpack.c.b16 %v3105, %v3101
    %v3598 = vpack.c.b16 %v3106, %v3102
    %v3599 = vpack.c.b16 %v3107, %v3103
    %v3600 = vpack.c.b16 %v3112, %v3108
    %v3601 = vpack.c.b16 %v3113, %v3109
    %v3602 = vpack.c.b16 %v3114, %v3110
    %v3603 = vpack.c.b16 %v3115, %v3111
    %v3604 = vpack.c.b16 %v3120, %v3116
    %v3605 = vpack.c.b16 %v3121, %v3117
    %v3606 = vpack.c.b16 %v3122, %v3118
    %v3607 = vpack.c.b16 %v3123, %v3119
    %v3608 = vpack.c.b16 %v3128, %v3124
    %v3609 = vpack.c.b16 %v3129, %v3125
    %v3610 = vpack.c.b16 %v3130, %v3126
    %v3611 = vpack.c.b16 %v3131, %v3127
    %v3612 = vpack.c.b16 %v3136, %v3132
    %v3613 = vpack.c.b16 %v3137, %v3133
    %v3614 = vpack.c.b16 %v3138, %v3134
    %v3615 = vpack.c.b16 %v3139, %v3135
    %v3616 = vpack.c.b16 %v3144, %v3140
    %v3617 = vpack.c.b16 %v3145, %v3141
    %v3618 = vpack.c.b16 %v3146, %v3142
    %v3619 = vpack.c.b16 %v3147, %v3143
    %v3620 = vpack.c.b16 %v3152, %v3148
    %v3621 = vpack.c.b16 %v3153, %v3149
    %v3622 = vpack.c.b16 %v3154, %v3150
    %v3623 = vpack.c.b16 %v3155, %v3151
    %v3624 = vpack.c.b16 %v3160, %v3156
    %v3625 = vpack.c.b16 %v3161, %v3157
    %v3626 = vpack.c.b16 %v3162, %v3158
    %v3627 = vpack.c.b16 %v3163, %v3159
    %v3628 = vpack.c.b16 %v3168, %v3164
    %v3629 = vpack.c.b16 %v3169, %v3165
    %v3630 = vpack.c.b16 %v3170, %v3166
    %v3631 = vpack.c.b16 %v3171, %v3167
    %v3632 = vpack.c.b16 %v3176, %v3172
    %v3633 = vpack.c.b16 %v3177, %v3173
    %v3634 = vpack.c.b16 %v3178, %v3174
    %v3635 = vpack.c.b16 %v3179, %v3175
    %v3636 = vpack.c.b16 %v3184, %v3180
    %v3637 = vpack.c.b16 %v3185, %v3181
    %v3638 = vpack.c.b16 %v3186, %v3182
    %v3639 = vpack.c.b16 %v3187, %v3183
    %v3640 = vpack.c.b16 %v3192, %v3188
    %v3641 = vpack.c.b16 %v3193, %v3189
    %v3642 = vpack.c.b16 %v3194, %v3190
    %v3643 = vpack.c.b16 %v3195, %v3191
    %v3644 = vpack.c.b16 %v3200, %v3196
    %v3645 = vpack.c.b16 %v3201, %v3197
    %v3646 = vpack.c.b16 %v3202, %v3198
    %v3647 = vpack.c.b16 %v3203, %v3199
    %v3648 = vpack.c.b16 %v3208, %v3204
    %v3649 = vpack.c.b16 %v3209, %v3205
    %v3650 = vpack.c.b16 %v3210, %v3206
    %v3651 = vpack.c.b16 %v3211, %v3207
    %v3652 = vpack.c.b16 %v3216, %v3212
    %v3653 = vpack.c.b16 %v3217, %v3213
    %v3654 = vpack.c.b16 %v3218, %v3214
    %v3655 = vpack.c.b16 %v3219, %v3215
    %v3656 = vpack.c.b16 %v3224, %v3220
    %v3657 = vpack.c.b16 %v3225, %v3221
    %v3658 = vpack.c.b16 %v3226, %v3222
    %v3659 = vpack.c.b16 %v3227, %v3223
    %v3660 = vpack.c.b16 %v3232, %v3228
    %v3661 = vpack.c.b16 %v3233, %v3229
    %v3662 = vpack.c.b16 %v3234, %v3230
    %v3663 = vpack.c.b16 %v3235, %v3231
    %v3664 = vpack.c.b16 %v3240, %v3236
    %v3665 = vpack.c.b16 %v3241, %v3237
    %v3666 = vpack.c.b16 %v3242, %v3238
    %v3667 = vpack.c.b16 %v3243, %v3239
    %v3668 = vpack.c.b16 %v3248, %v3244
    %v3669 = vpack.c.b16 %v3249, %v3245
    %v3670 = vpack.c.b16 %v3250, %v3246
    %v3671 = vpack.c.b16 %v3251, %v3247
    %v3672 = vpack.c.b16 %v3256, %v3252
    %v3673 = vpack.c.b16 %v3257, %v3253
    %v3674 = vpack.c.b16 %v3258, %v3254
    %v3675 = vpack.c.b16 %v3259, %v3255
    %v3676 = vpack.c.b16 %v3264, %v3260
    %v3677 = vpack.c.b16 %v3265, %v3261
    %v3678 = vpack.c.b16 %v3266, %v3262
    %v3679 = vpack.c.b16 %v3267, %v3263
    %v3680 = vpack.c.b16 %v3272, %v3268
    %v3681 = vpack.c.b16 %v3273, %v3269
    %v3682 = vpack.c.b16 %v3274, %v3270
    %v3683 = vpack.c.b16 %v3275, %v3271
    %v3684 = vpack.c.b16 %v3280, %v3276
    %v3685 = vpack.c.b16 %v3281, %v3277
    %v3686 = vpack.c.b16 %v3282, %v3278
    %v3687 = vpack.c.b16 %v3283, %v3279
    %v3688 = vpack.c.b16 %v3288, %v3284
    %v3689 = vpack.c.b16 %v3289, %v3285
    %v3690 = vpack.c.b16 %v3290, %v3286
    %v3691 = vpack.c.b16 %v3291, %v3287
    %v3692 = vpack.c.b16 %v3296, %v3292
    %v3693 = vpack.c.b16 %v3297, %v3293
    %v3694 = vpack.c.b16 %v3298, %v3294
    %v3695 = vpack.c.b16 %v3299, %v3295
    %v3696 = vpack.c.b16 %v3304, %v3300
    %v3697 = vpack.c.b16 %v3305, %v3301
    %v3698 = vpack.c.b16 %v3306, %v3302
    %v3699 = vpack.c.b16 %v3307, %v3303
    %v3700 = vpack.c.b16 %v3312, %v3308
    %v3701 = vpack.c.b16 %v3313, %v3309
    %v3702 = vpack.c.b16 %v3314, %v3310
    %v3703 = vpack.c.b16 %v3315, %v3311
    %v3704 = vpack.c.b16 %v3320, %v3316
    %v3705 = vpack.c.b16 %v3321, %v3317
    %v3706 = vpack.c.b16 %v3322, %v3318
    %v3707 = vpack.c.b16 %v3323, %v3319
    %4092 = vmatprep.subr.bf16.mxu0 %v3325
    %4093 = vmatpush1.bf16.msra.mxu0 %v3324
    %4094 = vmatprep.subr.bf16.mxu0 %v3329
    %4095 = vmatpush1.bf16.msra.mxu0 %v3328
    %4096 = vmatprep.subr.bf16.mxu0 %v3333
    %4097 = vmatpush1.bf16.msra.mxu0 %v3332
    %4098 = vmatprep.subr.bf16.mxu0 %v3337
    %4099 = vmatpush1.bf16.msra.mxu0 %v3336
    %4100 = vmatprep.subr.bf16.mxu0 %v3341
    %4101 = vmatpush1.bf16.msra.mxu0 %v3340
    %4102 = vmatprep.subr.bf16.mxu0 %v3345
    %4103 = vmatpush1.bf16.msra.mxu0 %v3344
    %4104 = vmatprep.subr.bf16.mxu0 %v3349
    %4105 = vmatpush1.bf16.msra.mxu0 %v3348
    %4106 = vmatprep.subr.bf16.mxu0 %v3353
    %4107 = vmatpush1.bf16.msra.mxu0 %v3352
    %4108 = vmatprep.subr.bf16.mxu0 %v3357
    %4109 = vmatpush1.bf16.msra.mxu0 %v3356
    %4110 = vmatprep.subr.bf16.mxu0 %v3361
    %4111 = vmatpush1.bf16.msra.mxu0 %v3360
    %4112 = vmatprep.subr.bf16.mxu0 %v3365
    %4113 = vmatpush1.bf16.msra.mxu0 %v3364
    %4114 = vmatprep.subr.bf16.mxu0 %v3369
    %4115 = vmatpush1.bf16.msra.mxu0 %v3368
    %4116 = vmatprep.subr.bf16.mxu0 %v3373
    %4117 = vmatpush1.bf16.msra.mxu0 %v3372
    %4118 = vmatprep.subr.bf16.mxu0 %v3377
    %4119 = vmatpush1.bf16.msra.mxu0 %v3376
    %4120 = vmatprep.subr.bf16.mxu0 %v3381
    %4121 = vmatpush1.bf16.msra.mxu0 %v3380
    %4122 = vmatprep.subr.bf16.mxu0 %v3385
    %4123 = vmatpush1.bf16.msra.mxu0 %v3384
    %4124 = vmatprep.mubr.bf16.mxu0 %v1755
    %4125 = vmatmul.mubr.bf16.gmra.mrb[0].mxu0 %v1754
    %v4126 = vpop.f32.mrb[0].mxu0
    %v4127 = vadd.f32 %v2155, %v4126
    %v4128 = vpop.f32.mrb[0].mxu0
    %v4129 = vadd.f32 %v2159, %v4128
    %v4130 = vpop.f32.mrb[0].mxu0
    %v4131 = vadd.f32 %v2155, %v4130
    %v4132 = vpop.f32.mrb[0].mxu0
    %v4133 = vadd.f32 %v2159, %v4132
    %4134 = vdwg.mxu0
    %4135 = vmatprep.subr.bf16.mxu0 %v3389
    %4136 = vmatpush1.bf16.msra.mxu0 %v3388
    %4137 = vmatprep.subr.bf16.mxu0 %v3393
    %4138 = vmatpush1.bf16.msra.mxu0 %v3392
    %4139 = vmatprep.subr.bf16.mxu0 %v3397
    %4140 = vmatpush1.bf16.msra.mxu0 %v3396
    %4141 = vmatprep.subr.bf16.mxu0 %v3401
    %4142 = vmatpush1.bf16.msra.mxu0 %v3400
    %4143 = vmatprep.subr.bf16.mxu0 %v3405
    %4144 = vmatpush1.bf16.msra.mxu0 %v3404
    %4145 = vmatprep.subr.bf16.mxu0 %v3409
    %4146 = vmatpush1.bf16.msra.mxu0 %v3408
    %4147 = vmatprep.subr.bf16.mxu0 %v3413
    %4148 = vmatpush1.bf16.msra.mxu0 %v3412
    %4149 = vmatprep.subr.bf16.mxu0 %v3417
    %4150 = vmatpush1.bf16.msra.mxu0 %v3416
    %4151 = vmatprep.subr.bf16.mxu0 %v3421
    %4152 = vmatpush1.bf16.msra.mxu0 %v3420
    %4153 = vmatprep.subr.bf16.mxu0 %v3425
    %4154 = vmatpush1.bf16.msra.mxu0 %v3424
    %4155 = vmatprep.subr.bf16.mxu0 %v3429
    %4156 = vmatpush1.bf16.msra.mxu0 %v3428
    %4157 = vmatprep.subr.bf16.mxu0 %v3433
    %4158 = vmatpush1.bf16.msra.mxu0 %v3432
    %4159 = vmatprep.subr.bf16.mxu0 %v3437
    %4160 = vmatpush1.bf16.msra.mxu0 %v3436
    %4161 = vmatprep.subr.bf16.mxu0 %v3441
    %4162 = vmatpush1.bf16.msra.mxu0 %v3440
    %4163 = vmatprep.subr.bf16.mxu0 %v3445
    %4164 = vmatpush1.bf16.msra.mxu0 %v3444
    %4165 = vmatprep.subr.bf16.mxu0 %v3449
    %4166 = vmatpush1.bf16.msra.mxu0 %v3448
    %4167 = vmatprep.mubr.bf16.mxu0 %v1757
    %4168 = vmatmul.mubr.bf16.gmra.mrb[0].mxu0 %v1756
    %v4169 = vpop.f32.mrb[0].mxu0
    %v4170 = vadd.f32 %v4127, %v4169
    %v4171 = vpop.f32.mrb[0].mxu0
    %v4172 = vadd.f32 %v4129, %v4171
    %v4173 = vpop.f32.mrb[0].mxu0
    %v4174 = vadd.f32 %v4131, %v4173
    %v4175 = vpop.f32.mrb[0].mxu0
    %v4176 = vadd.f32 %v4133, %v4175
    %4177 = vdwg.mxu0
    %4178 = vmatprep.subr.bf16.mxu0 %v3453
    %4179 = vmatpush1.bf16.msra.mxu0 %v3452
    %4180 = vmatprep.subr.bf16.mxu0 %v3457
    %4181 = vmatpush1.bf16.msra.mxu0 %v3456
    %4182 = vmatprep.subr.bf16.mxu0 %v3461
    %4183 = vmatpush1.bf16.msra.mxu0 %v3460
    %4184 = vmatprep.subr.bf16.mxu0 %v3465
    %4185 = vmatpush1.bf16.msra.mxu0 %v3464
    %4186 = vmatprep.subr.bf16.mxu0 %v3469
    %4187 = vmatpush1.bf16.msra.mxu0 %v3468
    %4188 = vmatprep.subr.bf16.mxu0 %v3473
    %4189 = vmatpush1.bf16.msra.mxu0 %v3472
    %4190 = vmatprep.subr.bf16.mxu0 %v3477
    %4191 = vmatpush1.bf16.msra.mxu0 %v3476
    %4192 = vmatprep.subr.bf16.mxu0 %v3481
    %4193 = vmatpush1.bf16.msra.mxu0 %v3480
    %4194 = vmatprep.subr.bf16.mxu0 %v3485
    %4195 = vmatpush1.bf16.msra.mxu0 %v3484
    %4196 = vmatprep.subr.bf16.mxu0 %v3489
    %4197 = vmatpush1.bf16.msra.mxu0 %v3488
    %4198 = vmatprep.subr.bf16.mxu0 %v3493
    %4199 = vmatpush1.bf16.msra.mxu0 %v3492
    %4200 = vmatprep.subr.bf16.mxu0 %v3497
    %4201 = vmatpush1.bf16.msra.mxu0 %v3496
    %4202 = vmatprep.subr.bf16.mxu0 %v3501
    %4203 = vmatpush1.bf16.msra.mxu0 %v3500
    %4204 = vmatprep.subr.bf16.mxu0 %v3505
    %4205 = vmatpush1.bf16.msra.mxu0 %v3504
    %4206 = vmatprep.subr.bf16.mxu0 %v3509
    %4207 = vmatpush1.bf16.msra.mxu0 %v3508
    %4208 = vmatprep.subr.bf16.mxu0 %v3513
    %4209 = vmatpush1.bf16.msra.mxu0 %v3512
    %4210 = vmatprep.mubr.bf16.mxu0 %v1759
    %4211 = vmatmul.mubr.bf16.gmra.mrb[0].mxu0 %v1758
    %v4212 = vpop.f32.mrb[0].mxu0
    %v4213 = vadd.f32 %v4170, %v4212
    %v4214 = vpop.f32.mrb[0].mxu0
    %v4215 = vadd.f32 %v4172, %v4214
    %v4216 = vpop.f32.mrb[0].mxu0
    %v4217 = vadd.f32 %v4174, %v4216
    %v4218 = vpop.f32.mrb[0].mxu0
    %v4219 = vadd.f32 %v4176, %v4218
    %4220 = vdwg.mxu0
    %4221 = vmatprep.subr.bf16.mxu0 %v3517
    %4222 = vmatpush1.bf16.msra.mxu0 %v3516
    %4223 = vmatprep.subr.bf16.mxu0 %v3521
    %4224 = vmatpush1.bf16.msra.mxu0 %v3520
    %4225 = vmatprep.subr.bf16.mxu0 %v3525
    %4226 = vmatpush1.bf16.msra.mxu0 %v3524
    %4227 = vmatprep.subr.bf16.mxu0 %v3529
    %4228 = vmatpush1.bf16.msra.mxu0 %v3528
    %4229 = vmatprep.subr.bf16.mxu0 %v3533
    %4230 = vmatpush1.bf16.msra.mxu0 %v3532
    %4231 = vmatprep.subr.bf16.mxu0 %v3537
    %4232 = vmatpush1.bf16.msra.mxu0 %v3536
    %4233 = vmatprep.subr.bf16.mxu0 %v3541
    %4234 = vmatpush1.bf16.msra.mxu0 %v3540
    %4235 = vmatprep.subr.bf16.mxu0 %v3545
    %4236 = vmatpush1.bf16.msra.mxu0 %v3544
    %4237 = vmatprep.subr.bf16.mxu0 %v3549
    %4238 = vmatpush1.bf16.msra.mxu0 %v3548
    %4239 = vmatprep.subr.bf16.mxu0 %v3553
    %4240 = vmatpush1.bf16.msra.mxu0 %v3552
    %4241 = vmatprep.subr.bf16.mxu0 %v3557
    %4242 = vmatpush1.bf16.msra.mxu0 %v3556
    %4243 = vmatprep.subr.bf16.mxu0 %v3561
    %4244 = vmatpush1.bf16.msra.mxu0 %v3560
    %4245 = vmatprep.subr.bf16.mxu0 %v3565
    %4246 = vmatpush1.bf16.msra.mxu0 %v3564
    %4247 = vmatprep.subr.bf16.mxu0 %v3569
    %4248 = vmatpush1.bf16.msra.mxu0 %v3568
    %4249 = vmatprep.subr.bf16.mxu0 %v3573
    %4250 = vmatpush1.bf16.msra.mxu0 %v3572
    %4251 = vmatprep.subr.bf16.mxu0 %v3577
    %4252 = vmatpush1.bf16.msra.mxu0 %v3576
    %4253 = vmatprep.mubr.bf16.mxu0 %v1761
    %4254 = vmatmul.mubr.bf16.gmra.mrb[0].mxu0 %v1760
    %v4255 = vpop.f32.mrb[0].mxu0
    %v4256 = vadd.f32 %v4213, %v4255
    %v4257 = vpop.f32.mrb[0].mxu0
    %v4258 = vadd.f32 %v4215, %v4257
    %v4259 = vpop.f32.mrb[0].mxu0
    %v4260 = vadd.f32 %v4217, %v4259
    %v4261 = vpop.f32.mrb[0].mxu0
    %v4262 = vadd.f32 %v4219, %v4261
    %4263 = vdwg.mxu0
    %4264 = vmatprep.subr.bf16.mxu0 %v3581
    %4265 = vmatpush1.bf16.msra.mxu0 %v3580
    %4266 = vmatprep.subr.bf16.mxu0 %v3585
    %4267 = vmatpush1.bf16.msra.mxu0 %v3584
    %4268 = vmatprep.subr.bf16.mxu0 %v3589
    %4269 = vmatpush1.bf16.msra.mxu0 %v3588
    %4270 = vmatprep.subr.bf16.mxu0 %v3593
    %4271 = vmatpush1.bf16.msra.mxu0 %v3592
    %4272 = vmatprep.subr.bf16.mxu0 %v3597
    %4273 = vmatpush1.bf16.msra.mxu0 %v3596
    %4274 = vmatprep.subr.bf16.mxu0 %v3601
    %4275 = vmatpush1.bf16.msra.mxu0 %v3600
    %4276 = vmatprep.subr.bf16.mxu0 %v3605
    %4277 = vmatpush1.bf16.msra.mxu0 %v3604
    %4278 = vmatprep.subr.bf16.mxu0 %v3609
    %4279 = vmatpush1.bf16.msra.mxu0 %v3608
    %4280 = vmatprep.subr.bf16.mxu0 %v3613
    %4281 = vmatpush1.bf16.msra.mxu0 %v3612
    %4282 = vmatprep.subr.bf16.mxu0 %v3617
    %4283 = vmatpush1.bf16.msra.mxu0 %v3616
    %4284 = vmatprep.subr.bf16.mxu0 %v3621
    %4285 = vmatpush1.bf16.msra.mxu0 %v3620
    %4286 = vmatprep.subr.bf16.mxu0 %v3625
    %4287 = vmatpush1.bf16.msra.mxu0 %v3624
    %4288 = vmatprep.subr.bf16.mxu0 %v3629
    %4289 = vmatpush1.bf16.msra.mxu0 %v3628
    %4290 = vmatprep.subr.bf16.mxu0 %v3633
    %4291 = vmatpush1.bf16.msra.mxu0 %v3632
    %4292 = vmatprep.subr.bf16.mxu0 %v3637
    %4293 = vmatpush1.bf16.msra.mxu0 %v3636
    %4294 = vmatprep.subr.bf16.mxu0 %v3641
    %4295 = vmatpush1.bf16.msra.mxu0 %v3640
    %4296 = vmatprep.mubr.bf16.mxu0 %v1763
    %4297 = vmatmul.mubr.bf16.gmra.mrb[0].mxu0 %v1762
    %v4298 = vpop.f32.mrb[0].mxu0
    %v4299 = vadd.f32 %v4256, %v4298
    %v4300 = vpop.f32.mrb[0].mxu0
    %v4301 = vadd.f32 %v4258, %v4300
    %v4302 = vpop.f32.mrb[0].mxu0
    %v4303 = vadd.f32 %v4260, %v4302
    %v4304 = vpop.f32.mrb[0].mxu0
    %v4305 = vadd.f32 %v4262, %v4304
    %4306 = vdwg.mxu0
    %4307 = vmatprep.subr.bf16.mxu0 %v3645
    %4308 = vmatpush1.bf16.msra.mxu0 %v3644
    %4309 = vmatprep.subr.bf16.mxu0 %v3649
    %4310 = vmatpush1.bf16.msra.mxu0 %v3648
    %4311 = vmatprep.subr.bf16.mxu0 %v3653
    %4312 = vmatpush1.bf16.msra.mxu0 %v3652
    %4313 = vmatprep.subr.bf16.mxu0 %v3657
    %4314 = vmatpush1.bf16.msra.mxu0 %v3656
    %4315 = vmatprep.subr.bf16.mxu0 %v3661
    %4316 = vmatpush1.bf16.msra.mxu0 %v3660
    %4317 = vmatprep.subr.bf16.mxu0 %v3665
    %4318 = vmatpush1.bf16.msra.mxu0 %v3664
    %4319 = vmatprep.subr.bf16.mxu0 %v3669
    %4320 = vmatpush1.bf16.msra.mxu0 %v3668
    %4321 = vmatprep.subr.bf16.mxu0 %v3673
    %4322 = vmatpush1.bf16.msra.mxu0 %v3672
    %4323 = vmatprep.subr.bf16.mxu0 %v3677
    %4324 = vmatpush1.bf16.msra.mxu0 %v3676
    %4325 = vmatprep.subr.bf16.mxu0 %v3681
    %4326 = vmatpush1.bf16.msra.mxu0 %v3680
    %4327 = vmatprep.subr.bf16.mxu0 %v3685
    %4328 = vmatpush1.bf16.msra.mxu0 %v3684
    %4329 = vmatprep.subr.bf16.mxu0 %v3689
    %4330 = vmatpush1.bf16.msra.mxu0 %v3688
    %4331 = vmatprep.subr.bf16.mxu0 %v3693
    %4332 = vmatpush1.bf16.msra.mxu0 %v3692
    %4333 = vmatprep.subr.bf16.mxu0 %v3697
    %4334 = vmatpush1.bf16.msra.mxu0 %v3696
    %4335 = vmatprep.subr.bf16.mxu0 %v3701
    %4336 = vmatpush1.bf16.msra.mxu0 %v3700
    %4337 = vmatprep.subr.bf16.mxu0 %v3705
    %4338 = vmatpush1.bf16.msra.mxu0 %v3704
    %4339 = vmatprep.mubr.bf16.mxu0 %v1765
    %4340 = vmatmul.mubr.bf16.gmra.mrb[0].mxu0 %v1764
    %v4341 = vpop.f32.mrb[0].mxu0
    %v4342 = vadd.f32 %v4299, %v4341
    %v4343 = vpop.f32.mrb[0].mxu0
    %v4344 = vadd.f32 %v4301, %v4343
    %v4345 = vpop.f32.mrb[0].mxu0
    %v4346 = vadd.f32 %v4303, %v4345
    %v4347 = vpop.f32.mrb[0].mxu0
    %v4348 = vadd.f32 %v4305, %v4347
    %4349 = vdwg.mxu0
    %4350 = vmatprep.subr.bf16.mxu0 %v3327
    %4351 = vmatpush1.bf16.msra.mxu0 %v3326
    %4352 = vmatprep.subr.bf16.mxu0 %v3331
    %4353 = vmatpush1.bf16.msra.mxu0 %v3330
    %4354 = vmatprep.subr.bf16.mxu0 %v3335
    %4355 = vmatpush1.bf16.msra.mxu0 %v3334
    %4356 = vmatprep.subr.bf16.mxu0 %v3339
    %4357 = vmatpush1.bf16.msra.mxu0 %v3338
    %4358 = vmatprep.subr.bf16.mxu0 %v3343
    %4359 = vmatpush1.bf16.msra.mxu0 %v3342
    %4360 = vmatprep.subr.bf16.mxu0 %v3347
    %4361 = vmatpush1.bf16.msra.mxu0 %v3346
    %4362 = vmatprep.subr.bf16.mxu0 %v3351
    %4363 = vmatpush1.bf16.msra.mxu0 %v3350
    %4364 = vmatprep.subr.bf16.mxu0 %v3355
    %4365 = vmatpush1.bf16.msra.mxu0 %v3354
    %4366 = vmatprep.subr.bf16.mxu0 %v3359
    %4367 = vmatpush1.bf16.msra.mxu0 %v3358
    %4368 = vmatprep.subr.bf16.mxu0 %v3363
    %4369 = vmatpush1.bf16.msra.mxu0 %v3362
    %4370 = vmatprep.subr.bf16.mxu0 %v3367
    %4371 = vmatpush1.bf16.msra.mxu0 %v3366
    %4372 = vmatprep.subr.bf16.mxu0 %v3371
    %4373 = vmatpush1.bf16.msra.mxu0 %v3370
    %4374 = vmatprep.subr.bf16.mxu0 %v3375
    %4375 = vmatpush1.bf16.msra.mxu0 %v3374
    %4376 = vmatprep.subr.bf16.mxu0 %v3379
    %4377 = vmatpush1.bf16.msra.mxu0 %v3378
    %4378 = vmatprep.subr.bf16.mxu0 %v3383
    %4379 = vmatpush1.bf16.msra.mxu0 %v3382
    %4380 = vmatprep.subr.bf16.mxu0 %v3387
    %4381 = vmatpush1.bf16.msra.mxu0 %v3386
    %4382 = vmatprep.mubr.bf16.mxu0 %v1755
    %4383 = vmatmul.mubr.bf16.gmra.mrb[0].mxu0 %v1754
    %v4384 = vpop.f32.mrb[0].mxu0
    %v4385 = vadd.f32 %v2163, %v4384
    %v4386 = vpop.f32.mrb[0].mxu0
    %v4387 = vadd.f32 %v2167, %v4386
    %v4388 = vpop.f32.mrb[0].mxu0
    %v4389 = vadd.f32 %v2163, %v4388
    %v4390 = vpop.f32.mrb[0].mxu0
    %v4391 = vadd.f32 %v2167, %v4390
    %4392 = vdwg.mxu0
    %4393 = vmatprep.subr.bf16.mxu0 %v3391
    %4394 = vmatpush1.bf16.msra.mxu0 %v3390
    %4395 = vmatprep.subr.bf16.mxu0 %v3395
    %4396 = vmatpush1.bf16.msra.mxu0 %v3394
    %4397 = vmatprep.subr.bf16.mxu0 %v3399
    %4398 = vmatpush1.bf16.msra.mxu0 %v3398
    %4399 = vmatprep.subr.bf16.mxu0 %v3403
    %4400 = vmatpush1.bf16.msra.mxu0 %v3402
    %4401 = vmatprep.subr.bf16.mxu0 %v3407
    %4402 = vmatpush1.bf16.msra.mxu0 %v3406
    %4403 = vmatprep.subr.bf16.mxu0 %v3411
    %4404 = vmatpush1.bf16.msra.mxu0 %v3410
    %4405 = vmatprep.subr.bf16.mxu0 %v3415
    %4406 = vmatpush1.bf16.msra.mxu0 %v3414
    %4407 = vmatprep.subr.bf16.mxu0 %v3419
    %4408 = vmatpush1.bf16.msra.mxu0 %v3418
    %4409 = vmatprep.subr.bf16.mxu0 %v3423
    %4410 = vmatpush1.bf16.msra.mxu0 %v3422
    %4411 = vmatprep.subr.bf16.mxu0 %v3427
    %4412 = vmatpush1.bf16.msra.mxu0 %v3426
    %4413 = vmatprep.subr.bf16.mxu0 %v3431
    %4414 = vmatpush1.bf16.msra.mxu0 %v3430
    %4415 = vmatprep.subr.bf16.mxu0 %v3435
    %4416 = vmatpush1.bf16.msra.mxu0 %v3434
    %4417 = vmatprep.subr.bf16.mxu0 %v3439
    %4418 = vmatpush1.bf16.msra.mxu0 %v3438
    %4419 = vmatprep.subr.bf16.mxu0 %v3443
    %4420 = vmatpush1.bf16.msra.mxu0 %v3442
    %4421 = vmatprep.subr.bf16.mxu0 %v3447
    %4422 = vmatpush1.bf16.msra.mxu0 %v3446
    %4423 = vmatprep.subr.bf16.mxu0 %v3451
    %4424 = vmatpush1.bf16.msra.mxu0 %v3450
    %4425 = vmatprep.mubr.bf16.mxu0 %v1757
    %4426 = vmatmul.mubr.bf16.gmra.mrb[0].mxu0 %v1756
    %v4427 = vpop.f32.mrb[0].mxu0
    %v4428 = vadd.f32 %v4385, %v4427
    %v4429 = vpop.f32.mrb[0].mxu0
    %v4430 = vadd.f32 %v4387, %v4429
    %v4431 = vpop.f32.mrb[0].mxu0
    %v4432 = vadd.f32 %v4389, %v4431
    %v4433 = vpop.f32.mrb[0].mxu0
    %v4434 = vadd.f32 %v4391, %v4433
    %4435 = vdwg.mxu0
    %4436 = vmatprep.subr.bf16.mxu0 %v3455
    %4437 = vmatpush1.bf16.msra.mxu0 %v3454
    %4438 = vmatprep.subr.bf16.mxu0 %v3459
    %4439 = vmatpush1.bf16.msra.mxu0 %v3458
    %4440 = vmatprep.subr.bf16.mxu0 %v3463
    %4441 = vmatpush1.bf16.msra.mxu0 %v3462
    %4442 = vmatprep.subr.bf16.mxu0 %v3467
    %4443 = vmatpush1.bf16.msra.mxu0 %v3466
    %4444 = vmatprep.subr.bf16.mxu0 %v3471
    %4445 = vmatpush1.bf16.msra.mxu0 %v3470
    %4446 = vmatprep.subr.bf16.mxu0 %v3475
    %4447 = vmatpush1.bf16.msra.mxu0 %v3474
    %4448 = vmatprep.subr.bf16.mxu0 %v3479
    %4449 = vmatpush1.bf16.msra.mxu0 %v3478
    %4450 = vmatprep.subr.bf16.mxu0 %v3483
    %4451 = vmatpush1.bf16.msra.mxu0 %v3482
    %4452 = vmatprep.subr.bf16.mxu0 %v3487
    %4453 = vmatpush1.bf16.msra.mxu0 %v3486
    %4454 = vmatprep.subr.bf16.mxu0 %v3491
    %4455 = vmatpush1.bf16.msra.mxu0 %v3490
    %4456 = vmatprep.subr.bf16.mxu0 %v3495
    %4457 = vmatpush1.bf16.msra.mxu0 %v3494
    %4458 = vmatprep.subr.bf16.mxu0 %v3499
    %4459 = vmatpush1.bf16.msra.mxu0 %v3498
    %4460 = vmatprep.subr.bf16.mxu0 %v3503
    %4461 = vmatpush1.bf16.msra.mxu0 %v3502
    %4462 = vmatprep.subr.bf16.mxu0 %v3507
    %4463 = vmatpush1.bf16.msra.mxu0 %v3506
    %4464 = vmatprep.subr.bf16.mxu0 %v3511
    %4465 = vmatpush1.bf16.msra.mxu0 %v3510
    %4466 = vmatprep.subr.bf16.mxu0 %v3515
    %4467 = vmatpush1.bf16.msra.mxu0 %v3514
    %4468 = vmatprep.mubr.bf16.mxu0 %v1759
    %4469 = vmatmul.mubr.bf16.gmra.mrb[0].mxu0 %v1758
    %v4470 = vpop.f32.mrb[0].mxu0
    %v4471 = vadd.f32 %v4428, %v4470
    %v4472 = vpop.f32.mrb[0].mxu0
    %v4473 = vadd.f32 %v4430, %v4472
    %v4474 = vpop.f32.mrb[0].mxu0
    %v4475 = vadd.f32 %v4432, %v4474
    %v4476 = vpop.f32.mrb[0].mxu0
    %v4477 = vadd.f32 %v4434, %v4476
    %4478 = vdwg.mxu0
    %4479 = vmatprep.subr.bf16.mxu0 %v3519
    %4480 = vmatpush1.bf16.msra.mxu0 %v3518
    %4481 = vmatprep.subr.bf16.mxu0 %v3523
    %4482 = vmatpush1.bf16.msra.mxu0 %v3522
    %4483 = vmatprep.subr.bf16.mxu0 %v3527
    %4484 = vmatpush1.bf16.msra.mxu0 %v3526
    %4485 = vmatprep.subr.bf16.mxu0 %v3531
    %4486 = vmatpush1.bf16.msra.mxu0 %v3530
    %4487 = vmatprep.subr.bf16.mxu0 %v3535
    %4488 = vmatpush1.bf16.msra.mxu0 %v3534
    %4489 = vmatprep.subr.bf16.mxu0 %v3539
    %4490 = vmatpush1.bf16.msra.mxu0 %v3538
    %4491 = vmatprep.subr.bf16.mxu0 %v3543
    %4492 = vmatpush1.bf16.msra.mxu0 %v3542
    %4493 = vmatprep.subr.bf16.mxu0 %v3547
    %4494 = vmatpush1.bf16.msra.mxu0 %v3546
    %4495 = vmatprep.subr.bf16.mxu0 %v3551
    %4496 = vmatpush1.bf16.msra.mxu0 %v3550
    %4497 = vmatprep.subr.bf16.mxu0 %v3555
    %4498 = vmatpush1.bf16.msra.mxu0 %v3554
    %4499 = vmatprep.subr.bf16.mxu0 %v3559
    %4500 = vmatpush1.bf16.msra.mxu0 %v3558
    %4501 = vmatprep.subr.bf16.mxu0 %v3563
    %4502 = vmatpush1.bf16.msra.mxu0 %v3562
    %4503 = vmatprep.subr.bf16.mxu0 %v3567
    %4504 = vmatpush1.bf16.msra.mxu0 %v3566
    %4505 = vmatprep.subr.bf16.mxu0 %v3571
    %4506 = vmatpush1.bf16.msra.mxu0 %v3570
    %4507 = vmatprep.subr.bf16.mxu0 %v3575
    %4508 = vmatpush1.bf16.msra.mxu0 %v3574
    %4509 = vmatprep.subr.bf16.mxu0 %v3579
    %4510 = vmatpush1.bf16.msra.mxu0 %v3578
    %4511 = vmatprep.mubr.bf16.mxu0 %v1761
    %4512 = vmatmul.mubr.bf16.gmra.mrb[0].mxu0 %v1760
    %v4513 = vpop.f32.mrb[0].mxu0
    %v4514 = vadd.f32 %v4471, %v4513
    %v4515 = vpop.f32.mrb[0].mxu0
    %v4516 = vadd.f32 %v4473, %v4515
    %v4517 = vpop.f32.mrb[0].mxu0
    %v4518 = vadd.f32 %v4475, %v4517
    %v4519 = vpop.f32.mrb[0].mxu0
    %v4520 = vadd.f32 %v4477, %v4519
    %4521 = vdwg.mxu0
    %4522 = vmatprep.subr.bf16.mxu0 %v3583
    %4523 = vmatpush1.bf16.msra.mxu0 %v3582
    %4524 = vmatprep.subr.bf16.mxu0 %v3587
    %4525 = vmatpush1.bf16.msra.mxu0 %v3586
    %4526 = vmatprep.subr.bf16.mxu0 %v3591
    %4527 = vmatpush1.bf16.msra.mxu0 %v3590
    %4528 = vmatprep.subr.bf16.mxu0 %v3595
    %4529 = vmatpush1.bf16.msra.mxu0 %v3594
    %4530 = vmatprep.subr.bf16.mxu0 %v3599
    %4531 = vmatpush1.bf16.msra.mxu0 %v3598
    %4532 = vmatprep.subr.bf16.mxu0 %v3603
    %4533 = vmatpush1.bf16.msra.mxu0 %v3602
    %4534 = vmatprep.subr.bf16.mxu0 %v3607
    %4535 = vmatpush1.bf16.msra.mxu0 %v3606
    %4536 = vmatprep.subr.bf16.mxu0 %v3611
    %4537 = vmatpush1.bf16.msra.mxu0 %v3610
    %4538 = vmatprep.subr.bf16.mxu0 %v3615
    %4539 = vmatpush1.bf16.msra.mxu0 %v3614
    %4540 = vmatprep.subr.bf16.mxu0 %v3619
    %4541 = vmatpush1.bf16.msra.mxu0 %v3618
    %4542 = vmatprep.subr.bf16.mxu0 %v3623
    %4543 = vmatpush1.bf16.msra.mxu0 %v3622
    %4544 = vmatprep.subr.bf16.mxu0 %v3627
    %4545 = vmatpush1.bf16.msra.mxu0 %v3626
    %4546 = vmatprep.subr.bf16.mxu0 %v3631
    %4547 = vmatpush1.bf16.msra.mxu0 %v3630
    %4548 = vmatprep.subr.bf16.mxu0 %v3635
    %4549 = vmatpush1.bf16.msra.mxu0 %v3634
    %4550 = vmatprep.subr.bf16.mxu0 %v3639
    %4551 = vmatpush1.bf16.msra.mxu0 %v3638
    %4552 = vmatprep.subr.bf16.mxu0 %v3643
    %4553 = vmatpush1.bf16.msra.mxu0 %v3642
    %4554 = vmatprep.mubr.bf16.mxu0 %v1763
    %4555 = vmatmul.mubr.bf16.gmra.mrb[0].mxu0 %v1762
    %v4556 = vpop.f32.mrb[0].mxu0
    %v4557 = vadd.f32 %v4514, %v4556
    %v4558 = vpop.f32.mrb[0].mxu0
    %v4559 = vadd.f32 %v4516, %v4558
    %v4560 = vpop.f32.mrb[0].mxu0
    %v4561 = vadd.f32 %v4518, %v4560
    %v4562 = vpop.f32.mrb[0].mxu0
    %v4563 = vadd.f32 %v4520, %v4562
    %4564 = vdwg.mxu0
    %4565 = vmatprep.subr.bf16.mxu0 %v3647
    %4566 = vmatpush1.bf16.msra.mxu0 %v3646
    %4567 = vmatprep.subr.bf16.mxu0 %v3651
    %4568 = vmatpush1.bf16.msra.mxu0 %v3650
    %4569 = vmatprep.subr.bf16.mxu0 %v3655
    %4570 = vmatpush1.bf16.msra.mxu0 %v3654
    %4571 = vmatprep.subr.bf16.mxu0 %v3659
    %4572 = vmatpush1.bf16.msra.mxu0 %v3658
    %4573 = vmatprep.subr.bf16.mxu0 %v3663
    %4574 = vmatpush1.bf16.msra.mxu0 %v3662
    %4575 = vmatprep.subr.bf16.mxu0 %v3667
    %4576 = vmatpush1.bf16.msra.mxu0 %v3666
    %4577 = vmatprep.subr.bf16.mxu0 %v3671
    %4578 = vmatpush1.bf16.msra.mxu0 %v3670
    %4579 = vmatprep.subr.bf16.mxu0 %v3675
    %4580 = vmatpush1.bf16.msra.mxu0 %v3674
    %4581 = vmatprep.subr.bf16.mxu0 %v3679
    %4582 = vmatpush1.bf16.msra.mxu0 %v3678
    %4583 = vmatprep.subr.bf16.mxu0 %v3683
    %4584 = vmatpush1.bf16.msra.mxu0 %v3682
    %4585 = vmatprep.subr.bf16.mxu0 %v3687
    %4586 = vmatpush1.bf16.msra.mxu0 %v3686
    %4587 = vmatprep.subr.bf16.mxu0 %v3691
    %4588 = vmatpush1.bf16.msra.mxu0 %v3690
    %4589 = vmatprep.subr.bf16.mxu0 %v3695
    %4590 = vmatpush1.bf16.msra.mxu0 %v3694
    %4591 = vmatprep.subr.bf16.mxu0 %v3699
    %4592 = vmatpush1.bf16.msra.mxu0 %v3698
    %4593 = vmatprep.subr.bf16.mxu0 %v3703
    %4594 = vmatpush1.bf16.msra.mxu0 %v3702
    %4595 = vmatprep.subr.bf16.mxu0 %v3707
    %4596 = vmatpush1.bf16.msra.mxu0 %v3706
    %4597 = vmatprep.mubr.bf16.mxu0 %v1765
    %4598 = vmatmul.mubr.bf16.gmra.mrb[0].mxu0 %v1764
    %v4599 = vpop.f32.mrb[0].mxu0
    %v4600 = vadd.f32 %v4557, %v4599
    %v4601 = vpop.f32.mrb[0].mxu0
    %v4602 = vadd.f32 %v4559, %v4601
    %v4603 = vpop.f32.mrb[0].mxu0
    %v4604 = vadd.f32 %v4561, %v4603
    %v4605 = vpop.f32.mrb[0].mxu0
    %v4606 = vadd.f32 %v4563, %v4605
    %4607 = vdwg.mxu0
    %v4608 = vmax.f32 %v4342, 0.0
    %v4609 = vmax.f32 %v4344, 0.0
    %v4610 = vmax.f32 %v4600, 0.0
    %v4611 = vmax.f32 %v4602, 0.0
    %v4612 = vmax.f32 %v4346, 0.0
    %v4613 = vmax.f32 %v4348, 0.0
    %v4614 = vmax.f32 %v4604, 0.0
    %v4615 = vmax.f32 %v4606, 0.0
    %v4616 = vpack.c.bf16 %v4612, %v4608
    %v4617 = vpack.c.bf16 %v4613, %v4609
    %v4618 = vpack.c.bf16 %v4614, %v4610
    %v4619 = vpack.c.bf16 %v4615, %v4611
    %4620 = vst [vmem:[#allocation4] sm:$0xff] %v4616
    %4621 = vst [vmem:[#allocation4 + $0x8] sm:$0xff] %v4617
    %4622 = vst [vmem:[#allocation4 + $0x10] sm:$0xff] %v4618
    %4623 = vst [vmem:[#allocation4 + $0x18] sm:$0xff] %v4619
    %4624 = vst [vmem:[#allocation2] sm:$0x1] 0
    %4625 = vst [vmem:[#allocation2 + $0x8] sm:$0x1] 0
    %4626 = vst [vmem:[#allocation2 + $0x10] sm:$0x1] 0
    %4627 = vst [vmem:[#allocation2 + $0x18] sm:$0x1] 0
    %v4628 = vld [vmem:[#allocation4] sm:$0x2]
    %v4629 = vld [vmem:[#allocation4 + $0x8] sm:$0x2]
    %v4630 = vld [vmem:[#allocation4 + $0x10] sm:$0x2]
    %v4631 = vld [vmem:[#allocation4 + $0x18] sm:$0x2]
    %4632 = vst [vmem:[#allocation2] sm:$0x2] %v4628
    %4633 = vst [vmem:[#allocation2 + $0x8] sm:$0x2] %v4629
    %4634 = vst [vmem:[#allocation2 + $0x10] sm:$0x2] %v4630
    %4635 = vst [vmem:[#allocation2 + $0x18] sm:$0x2] %v4631
    %v4636 = vld [vmem:[#allocation4] sm:$0x8]
    %v4637 = vld [vmem:[#allocation4 + $0x8] sm:$0x8]
    %v4638 = vld [vmem:[#allocation4 + $0x10] sm:$0x8]
    %v4639 = vld [vmem:[#allocation4 + $0x18] sm:$0x8]
    %v4644 = vrot.slane %v4636, 1
    %v4645 = vrot.slane %v4637, 1
    %v4646 = vrot.slane %v4638, 1
    %v4647 = vrot.slane %v4639, 1
    %4652 = vst [vmem:[#allocation2] sm:$0x4] %v4644
    %4653 = vst [vmem:[#allocation2 + $0x8] sm:$0x4] %v4645
    %4654 = vst [vmem:[#allocation2 + $0x10] sm:$0x4] %v4646
    %4655 = vst [vmem:[#allocation2 + $0x18] sm:$0x4] %v4647
    %v4656 = vld [vmem:[#allocation4] sm:$0x20]
    %v4657 = vld [vmem:[#allocation4 + $0x8] sm:$0x20]
    %v4658 = vld [vmem:[#allocation4 + $0x10] sm:$0x20]
    %v4659 = vld [vmem:[#allocation4 + $0x18] sm:$0x20]
    %v4664 = vrot.slane %v4656, 2
    %v4665 = vrot.slane %v4657, 2
    %v4666 = vrot.slane %v4658, 2
    %v4667 = vrot.slane %v4659, 2
    %4672 = vst [vmem:[#allocation2] sm:$0x8] %v4664
    %4673 = vst [vmem:[#allocation2 + $0x8] sm:$0x8] %v4665
    %4674 = vst [vmem:[#allocation2 + $0x10] sm:$0x8] %v4666
    %4675 = vst [vmem:[#allocation2 + $0x18] sm:$0x8] %v4667
    %v4676 = vld [vmem:[#allocation4] sm:$0x1]
    %v4677 = vld [vmem:[#allocation4 + $0x8] sm:$0x1]
    %v4678 = vld [vmem:[#allocation4 + $0x10] sm:$0x1]
    %v4679 = vld [vmem:[#allocation4 + $0x18] sm:$0x1]
    %4680 = vst [vmem:[#allocation2 + $0x20] sm:$0x1] %v4676
    %4681 = vst [vmem:[#allocation2 + $0x28] sm:$0x1] %v4677
    %4682 = vst [vmem:[#allocation2 + $0x30] sm:$0x1] %v4678
    %4683 = vst [vmem:[#allocation2 + $0x38] sm:$0x1] %v4679
    %v4684 = vld [vmem:[#allocation4] sm:$0x4]
    %v4685 = vld [vmem:[#allocation4 + $0x8] sm:$0x4]
    %v4686 = vld [vmem:[#allocation4 + $0x10] sm:$0x4]
    %v4687 = vld [vmem:[#allocation4 + $0x18] sm:$0x4]
    %v4692 = vrot.slane %v4684, 1
    %v4693 = vrot.slane %v4685, 1
    %v4694 = vrot.slane %v4686, 1
    %v4695 = vrot.slane %v4687, 1
    %4700 = vst [vmem:[#allocation2 + $0x20] sm:$0x2] %v4692
    %4701 = vst [vmem:[#allocation2 + $0x28] sm:$0x2] %v4693
    %4702 = vst [vmem:[#allocation2 + $0x30] sm:$0x2] %v4694
    %4703 = vst [vmem:[#allocation2 + $0x38] sm:$0x2] %v4695
    %v4704 = vld [vmem:[#allocation4] sm:$0x10]
    %v4705 = vld [vmem:[#allocation4 + $0x8] sm:$0x10]
    %v4706 = vld [vmem:[#allocation4 + $0x10] sm:$0x10]
    %v4707 = vld [vmem:[#allocation4 + $0x18] sm:$0x10]
    %v4712 = vrot.slane %v4704, 2
    %v4713 = vrot.slane %v4705, 2
    %v4714 = vrot.slane %v4706, 2
    %v4715 = vrot.slane %v4707, 2
    %4720 = vst [vmem:[#allocation2 + $0x20] sm:$0x4] %v4712
    %4721 = vst [vmem:[#allocation2 + $0x28] sm:$0x4] %v4713
    %4722 = vst [vmem:[#allocation2 + $0x30] sm:$0x4] %v4714
    %4723 = vst [vmem:[#allocation2 + $0x38] sm:$0x4] %v4715
    %v4724 = vld [vmem:[#allocation4] sm:$0x40]
    %v4725 = vld [vmem:[#allocation4 + $0x8] sm:$0x40]
    %v4726 = vld [vmem:[#allocation4 + $0x10] sm:$0x40]
    %v4727 = vld [vmem:[#allocation4 + $0x18] sm:$0x40]
    %v4732 = vrot.slane %v4724, 3
    %v4733 = vrot.slane %v4725, 3
    %v4734 = vrot.slane %v4726, 3
    %v4735 = vrot.slane %v4727, 3
    %4740 = vst [vmem:[#allocation2 + $0x20] sm:$0x8] %v4732
    %4741 = vst [vmem:[#allocation2 + $0x28] sm:$0x8] %v4733
    %4742 = vst [vmem:[#allocation2 + $0x30] sm:$0x8] %v4734
    %4743 = vst [vmem:[#allocation2 + $0x38] sm:$0x8] %v4735
    %v4744 = vld [vmem:[#allocation4] sm:$0x2]
    %v4745 = vld [vmem:[#allocation4 + $0x8] sm:$0x2]
    %v4746 = vld [vmem:[#allocation4 + $0x10] sm:$0x2]
    %v4747 = vld [vmem:[#allocation4 + $0x18] sm:$0x2]
    %v4752 = vrot.slane %v4744, 1
    %v4753 = vrot.slane %v4745, 1
    %v4754 = vrot.slane %v4746, 1
    %v4755 = vrot.slane %v4747, 1
    %4760 = vst [vmem:[#allocation2 + $0x40] sm:$0x1] %v4752
    %4761 = vst [vmem:[#allocation2 + $0x48] sm:$0x1] %v4753
    %4762 = vst [vmem:[#allocation2 + $0x50] sm:$0x1] %v4754
    %4763 = vst [vmem:[#allocation2 + $0x58] sm:$0x1] %v4755
    %v4764 = vld [vmem:[#allocation4] sm:$0x8]
    %v4765 = vld [vmem:[#allocation4 + $0x8] sm:$0x8]
    %v4766 = vld [vmem:[#allocation4 + $0x10] sm:$0x8]
    %v4767 = vld [vmem:[#allocation4 + $0x18] sm:$0x8]
    %v4772 = vrot.slane %v4764, 2
    %v4773 = vrot.slane %v4765, 2
    %v4774 = vrot.slane %v4766, 2
    %v4775 = vrot.slane %v4767, 2
    %4780 = vst [vmem:[#allocation2 + $0x40] sm:$0x2] %v4772
    %4781 = vst [vmem:[#allocation2 + $0x48] sm:$0x2] %v4773
    %4782 = vst [vmem:[#allocation2 + $0x50] sm:$0x2] %v4774
    %4783 = vst [vmem:[#allocation2 + $0x58] sm:$0x2] %v4775
    %v4784 = vld [vmem:[#allocation4] sm:$0x20]
    %v4785 = vld [vmem:[#allocation4 + $0x8] sm:$0x20]
    %v4786 = vld [vmem:[#allocation4 + $0x10] sm:$0x20]
    %v4787 = vld [vmem:[#allocation4 + $0x18] sm:$0x20]
    %v4792 = vrot.slane %v4784, 3
    %v4793 = vrot.slane %v4785, 3
    %v4794 = vrot.slane %v4786, 3
    %v4795 = vrot.slane %v4787, 3
    %4800 = vst [vmem:[#allocation2 + $0x40] sm:$0x4] %v4792
    %4801 = vst [vmem:[#allocation2 + $0x48] sm:$0x4] %v4793
    %4802 = vst [vmem:[#allocation2 + $0x50] sm:$0x4] %v4794
    %4803 = vst [vmem:[#allocation2 + $0x58] sm:$0x4] %v4795
    %v4804 = vld [vmem:[#allocation4] sm:$0x80]
    %v4805 = vld [vmem:[#allocation4 + $0x8] sm:$0x80]
    %v4806 = vld [vmem:[#allocation4 + $0x10] sm:$0x80]
    %v4807 = vld [vmem:[#allocation4 + $0x18] sm:$0x80]
    %v4812 = vrot.slane %v4804, 4
    %v4813 = vrot.slane %v4805, 4
    %v4814 = vrot.slane %v4806, 4
    %v4815 = vrot.slane %v4807, 4
    %4820 = vst [vmem:[#allocation2 + $0x40] sm:$0x8] %v4812
    %4821 = vst [vmem:[#allocation2 + $0x48] sm:$0x8] %v4813
    %4822 = vst [vmem:[#allocation2 + $0x50] sm:$0x8] %v4814
    %4823 = vst [vmem:[#allocation2 + $0x58] sm:$0x8] %v4815
    %v4824 = vld [vmem:[#allocation2] sm:$0xf]
    %v4825 = vld [vmem:[#allocation2 + $0x8] sm:$0xf]
    %v4826 = vld [vmem:[#allocation2 + $0x10] sm:$0xf]
    %v4827 = vld [vmem:[#allocation2 + $0x18] sm:$0xf]
    %v4828 = vld [vmem:[#allocation2 + $0x20] sm:$0xf]
    %v4829 = vld [vmem:[#allocation2 + $0x28] sm:$0xf]
    %v4830 = vld [vmem:[#allocation2 + $0x30] sm:$0xf]
    %v4831 = vld [vmem:[#allocation2 + $0x38] sm:$0xf]
    %v4832 = vld [vmem:[#allocation2 + $0x40] sm:$0xf]
    %v4833 = vld [vmem:[#allocation2 + $0x48] sm:$0xf]
    %v4834 = vld [vmem:[#allocation2 + $0x50] sm:$0xf]
    %v4835 = vld [vmem:[#allocation2 + $0x58] sm:$0xf]
    %v4836 = vld [vmem:[#allocation12] sm:$0xff]
    %v4837 = vld [vmem:[#allocation12 + $0x8] sm:$0xff]
    %v4838 = vld [vmem:[#allocation12 + $0x10] sm:$0xff]
    %v4839 = vld [vmem:[#allocation12 + $0x18] sm:$0xff]
    %v4840 = vld [vmem:[#allocation12 + $0x20] sm:$0xff]
    %v4841 = vld [vmem:[#allocation12 + $0x28] sm:$0xff]
    %v4842 = vld [vmem:[#allocation12 + $0x30] sm:$0xff]
    %v4843 = vld [vmem:[#allocation12 + $0x38] sm:$0xff]
    %v4844 = vld [vmem:[#allocation12 + $0x40] sm:$0xff]
    %v4845 = vld [vmem:[#allocation12 + $0x48] sm:$0xff]
    %v4846 = vld [vmem:[#allocation12 + $0x50] sm:$0xff]
    %v4847 = vld [vmem:[#allocation12 + $0x58] sm:$0xff]
    %v4848 = vld [vmem:[#allocation12 + $0x60] sm:$0xff]
    %v4849 = vld [vmem:[#allocation12 + $0x68] sm:$0xff]
    %v4850 = vld [vmem:[#allocation12 + $0x70] sm:$0xff]
    %v4851 = vld [vmem:[#allocation12 + $0x78] sm:$0xff]
    %v4852 = vld [vmem:[#allocation12 + $0x80] sm:$0xff]
    %v4853 = vld [vmem:[#allocation12 + $0x88] sm:$0xff]
    %v4854 = vld [vmem:[#allocation12 + $0x90] sm:$0xff]
    %v4855 = vld [vmem:[#allocation12 + $0x98] sm:$0xff]
    %v4856 = vld [vmem:[#allocation12 + $0xa0] sm:$0xff]
    %v4857 = vld [vmem:[#allocation12 + $0xa8] sm:$0xff]
    %v4858 = vld [vmem:[#allocation12 + $0xb0] sm:$0xff]
    %v4859 = vld [vmem:[#allocation12 + $0xb8] sm:$0xff]
    %v4860 = vld [vmem:[#allocation12 + $0xc0] sm:$0xff]
    %v4861 = vld [vmem:[#allocation12 + $0xc8] sm:$0xff]
    %v4862 = vld [vmem:[#allocation12 + $0xd0] sm:$0xff]
    %v4863 = vld [vmem:[#allocation12 + $0xd8] sm:$0xff]
    %v4864 = vld [vmem:[#allocation12 + $0xe0] sm:$0xff]
    %v4865 = vld [vmem:[#allocation12 + $0xe8] sm:$0xff]
    %v4866 = vld [vmem:[#allocation12 + $0xf0] sm:$0xff]
    %v4867 = vld [vmem:[#allocation12 + $0xf8] sm:$0xff]
    %v4868 = vld [vmem:[#allocation12 + $0x100] sm:$0xff]
    %v4869 = vld [vmem:[#allocation12 + $0x108] sm:$0xff]
    %v4870 = vld [vmem:[#allocation12 + $0x110] sm:$0xff]
    %v4871 = vld [vmem:[#allocation12 + $0x118] sm:$0xff]
    %v4872 = vld [vmem:[#allocation12 + $0x120] sm:$0xff]
    %v4873 = vld [vmem:[#allocation12 + $0x128] sm:$0xff]
    %v4874 = vld [vmem:[#allocation12 + $0x130] sm:$0xff]
    %v4875 = vld [vmem:[#allocation12 + $0x138] sm:$0xff]
    %v4876 = vld [vmem:[#allocation12 + $0x140] sm:$0xff]
    %v4877 = vld [vmem:[#allocation12 + $0x148] sm:$0xff]
    %v4878 = vld [vmem:[#allocation12 + $0x150] sm:$0xff]
    %v4879 = vld [vmem:[#allocation12 + $0x158] sm:$0xff]
    %v4880 = vld [vmem:[#allocation12 + $0x160] sm:$0xff]
    %v4881 = vld [vmem:[#allocation12 + $0x168] sm:$0xff]
    %v4882 = vld [vmem:[#allocation12 + $0x170] sm:$0xff]
    %v4883 = vld [vmem:[#allocation12 + $0x178] sm:$0xff]
    %v4884 = vld [vmem:[#allocation12 + $0x180] sm:$0xff]
    %v4885 = vld [vmem:[#allocation12 + $0x188] sm:$0xff]
    %v4886 = vld [vmem:[#allocation12 + $0x190] sm:$0xff]
    %v4887 = vld [vmem:[#allocation12 + $0x198] sm:$0xff]
    %v4888 = vld [vmem:[#allocation12 + $0x1a0] sm:$0xff]
    %v4889 = vld [vmem:[#allocation12 + $0x1a8] sm:$0xff]
    %v4890 = vld [vmem:[#allocation12 + $0x1b0] sm:$0xff]
    %v4891 = vld [vmem:[#allocation12 + $0x1b8] sm:$0xff]
    %v4892 = vld [vmem:[#allocation12 + $0x1c0] sm:$0xff]
    %v4893 = vld [vmem:[#allocation12 + $0x1c8] sm:$0xff]
    %v4894 = vld [vmem:[#allocation12 + $0x1d0] sm:$0xff]
    %v4895 = vld [vmem:[#allocation12 + $0x1d8] sm:$0xff]
    %v4896 = vld [vmem:[#allocation12 + $0x1e0] sm:$0xff]
    %v4897 = vld [vmem:[#allocation12 + $0x1e8] sm:$0xff]
    %v4898 = vld [vmem:[#allocation12 + $0x1f0] sm:$0xff]
    %v4899 = vld [vmem:[#allocation12 + $0x1f8] sm:$0xff]
    %v4900 = vld [vmem:[#allocation12 + $0x200] sm:$0xff]
    %v4901 = vld [vmem:[#allocation12 + $0x208] sm:$0xff]
    %v4902 = vld [vmem:[#allocation12 + $0x210] sm:$0xff]
    %v4903 = vld [vmem:[#allocation12 + $0x218] sm:$0xff]
    %v4904 = vld [vmem:[#allocation12 + $0x220] sm:$0xff]
    %v4905 = vld [vmem:[#allocation12 + $0x228] sm:$0xff]
    %v4906 = vld [vmem:[#allocation12 + $0x230] sm:$0xff]
    %v4907 = vld [vmem:[#allocation12 + $0x238] sm:$0xff]
    %v4908 = vld [vmem:[#allocation12 + $0x240] sm:$0xff]
    %v4909 = vld [vmem:[#allocation12 + $0x248] sm:$0xff]
    %v4910 = vld [vmem:[#allocation12 + $0x250] sm:$0xff]
    %v4911 = vld [vmem:[#allocation12 + $0x258] sm:$0xff]
    %v4912 = vld [vmem:[#allocation12 + $0x260] sm:$0xff]
    %v4913 = vld [vmem:[#allocation12 + $0x268] sm:$0xff]
    %v4914 = vld [vmem:[#allocation12 + $0x270] sm:$0xff]
    %v4915 = vld [vmem:[#allocation12 + $0x278] sm:$0xff]
    %v4916 = vld [vmem:[#allocation12 + $0x280] sm:$0xff]
    %v4917 = vld [vmem:[#allocation12 + $0x288] sm:$0xff]
    %v4918 = vld [vmem:[#allocation12 + $0x290] sm:$0xff]
    %v4919 = vld [vmem:[#allocation12 + $0x298] sm:$0xff]
    %v4920 = vld [vmem:[#allocation12 + $0x2a0] sm:$0xff]
    %v4921 = vld [vmem:[#allocation12 + $0x2a8] sm:$0xff]
    %v4922 = vld [vmem:[#allocation12 + $0x2b0] sm:$0xff]
    %v4923 = vld [vmem:[#allocation12 + $0x2b8] sm:$0xff]
    %v4924 = vld [vmem:[#allocation12 + $0x2c0] sm:$0xff]
    %v4925 = vld [vmem:[#allocation12 + $0x2c8] sm:$0xff]
    %v4926 = vld [vmem:[#allocation12 + $0x2d0] sm:$0xff]
    %v4927 = vld [vmem:[#allocation12 + $0x2d8] sm:$0xff]
    %v4928 = vld [vmem:[#allocation12 + $0x2e0] sm:$0xff]
    %v4929 = vld [vmem:[#allocation12 + $0x2e8] sm:$0xff]
    %v4930 = vld [vmem:[#allocation12 + $0x2f0] sm:$0xff]
    %v4931 = vld [vmem:[#allocation12 + $0x2f8] sm:$0xff]
    %v4932 = vld [vmem:[#allocation12 + $0x300] sm:$0xff]
    %v4933 = vld [vmem:[#allocation12 + $0x308] sm:$0xff]
    %v4934 = vld [vmem:[#allocation12 + $0x310] sm:$0xff]
    %v4935 = vld [vmem:[#allocation12 + $0x318] sm:$0xff]
    %v4936 = vld [vmem:[#allocation12 + $0x320] sm:$0xff]
    %v4937 = vld [vmem:[#allocation12 + $0x328] sm:$0xff]
    %v4938 = vld [vmem:[#allocation12 + $0x330] sm:$0xff]
    %v4939 = vld [vmem:[#allocation12 + $0x338] sm:$0xff]
    %v4940 = vld [vmem:[#allocation12 + $0x340] sm:$0xff]
    %v4941 = vld [vmem:[#allocation12 + $0x348] sm:$0xff]
    %v4942 = vld [vmem:[#allocation12 + $0x350] sm:$0xff]
    %v4943 = vld [vmem:[#allocation12 + $0x358] sm:$0xff]
    %v4944 = vld [vmem:[#allocation12 + $0x360] sm:$0xff]
    %v4945 = vld [vmem:[#allocation12 + $0x368] sm:$0xff]
    %v4946 = vld [vmem:[#allocation12 + $0x370] sm:$0xff]
    %v4947 = vld [vmem:[#allocation12 + $0x378] sm:$0xff]
    %v4948 = vld [vmem:[#allocation12 + $0x380] sm:$0xff]
    %v4949 = vld [vmem:[#allocation12 + $0x388] sm:$0xff]
    %v4950 = vld [vmem:[#allocation12 + $0x390] sm:$0xff]
    %v4951 = vld [vmem:[#allocation12 + $0x398] sm:$0xff]
    %v4952 = vld [vmem:[#allocation12 + $0x3a0] sm:$0xff]
    %v4953 = vld [vmem:[#allocation12 + $0x3a8] sm:$0xff]
    %v4954 = vld [vmem:[#allocation12 + $0x3b0] sm:$0xff]
    %v4955 = vld [vmem:[#allocation12 + $0x3b8] sm:$0xff]
    %v4956 = vld [vmem:[#allocation12 + $0x3c0] sm:$0xff]
    %v4957 = vld [vmem:[#allocation12 + $0x3c8] sm:$0xff]
    %v4958 = vld [vmem:[#allocation12 + $0x3d0] sm:$0xff]
    %v4959 = vld [vmem:[#allocation12 + $0x3d8] sm:$0xff]
    %v4960 = vld [vmem:[#allocation12 + $0x3e0] sm:$0xff]
    %v4961 = vld [vmem:[#allocation12 + $0x3e8] sm:$0xff]
    %v4962 = vld [vmem:[#allocation12 + $0x3f0] sm:$0xff]
    %v4963 = vld [vmem:[#allocation12 + $0x3f8] sm:$0xff]
    %v4964 = vld [vmem:[#allocation12 + $0x400] sm:$0xff]
    %v4965 = vld [vmem:[#allocation12 + $0x408] sm:$0xff]
    %v4966 = vld [vmem:[#allocation12 + $0x410] sm:$0xff]
    %v4967 = vld [vmem:[#allocation12 + $0x418] sm:$0xff]
    %v4968 = vld [vmem:[#allocation12 + $0x420] sm:$0xff]
    %v4969 = vld [vmem:[#allocation12 + $0x428] sm:$0xff]
    %v4970 = vld [vmem:[#allocation12 + $0x430] sm:$0xff]
    %v4971 = vld [vmem:[#allocation12 + $0x438] sm:$0xff]
    %v4972 = vld [vmem:[#allocation12 + $0x440] sm:$0xff]
    %v4973 = vld [vmem:[#allocation12 + $0x448] sm:$0xff]
    %v4974 = vld [vmem:[#allocation12 + $0x450] sm:$0xff]
    %v4975 = vld [vmem:[#allocation12 + $0x458] sm:$0xff]
    %v4976 = vld [vmem:[#allocation12 + $0x460] sm:$0xff]
    %v4977 = vld [vmem:[#allocation12 + $0x468] sm:$0xff]
    %v4978 = vld [vmem:[#allocation12 + $0x470] sm:$0xff]
    %v4979 = vld [vmem:[#allocation12 + $0x478] sm:$0xff]
    %v4980 = vld [vmem:[#allocation12 + $0x480] sm:$0xff]
    %v4981 = vld [vmem:[#allocation12 + $0x488] sm:$0xff]
    %v4982 = vld [vmem:[#allocation12 + $0x490] sm:$0xff]
    %v4983 = vld [vmem:[#allocation12 + $0x498] sm:$0xff]
    %v4984 = vld [vmem:[#allocation12 + $0x4a0] sm:$0xff]
    %v4985 = vld [vmem:[#allocation12 + $0x4a8] sm:$0xff]
    %v4986 = vld [vmem:[#allocation12 + $0x4b0] sm:$0xff]
    %v4987 = vld [vmem:[#allocation12 + $0x4b8] sm:$0xff]
    %v4988 = vld [vmem:[#allocation12 + $0x4c0] sm:$0xff]
    %v4989 = vld [vmem:[#allocation12 + $0x4c8] sm:$0xff]
    %v4990 = vld [vmem:[#allocation12 + $0x4d0] sm:$0xff]
    %v4991 = vld [vmem:[#allocation12 + $0x4d8] sm:$0xff]
    %v4992 = vld [vmem:[#allocation12 + $0x4e0] sm:$0xff]
    %v4993 = vld [vmem:[#allocation12 + $0x4e8] sm:$0xff]
    %v4994 = vld [vmem:[#allocation12 + $0x4f0] sm:$0xff]
    %v4995 = vld [vmem:[#allocation12 + $0x4f8] sm:$0xff]
    %v4996 = vld [vmem:[#allocation12 + $0x500] sm:$0xff]
    %v4997 = vld [vmem:[#allocation12 + $0x508] sm:$0xff]
    %v4998 = vld [vmem:[#allocation12 + $0x510] sm:$0xff]
    %v4999 = vld [vmem:[#allocation12 + $0x518] sm:$0xff]
    %v5000 = vld [vmem:[#allocation12 + $0x520] sm:$0xff]
    %v5001 = vld [vmem:[#allocation12 + $0x528] sm:$0xff]
    %v5002 = vld [vmem:[#allocation12 + $0x530] sm:$0xff]
    %v5003 = vld [vmem:[#allocation12 + $0x538] sm:$0xff]
    %v5004 = vld [vmem:[#allocation12 + $0x540] sm:$0xff]
    %v5005 = vld [vmem:[#allocation12 + $0x548] sm:$0xff]
    %v5006 = vld [vmem:[#allocation12 + $0x550] sm:$0xff]
    %v5007 = vld [vmem:[#allocation12 + $0x558] sm:$0xff]
    %v5008 = vld [vmem:[#allocation12 + $0x560] sm:$0xff]
    %v5009 = vld [vmem:[#allocation12 + $0x568] sm:$0xff]
    %v5010 = vld [vmem:[#allocation12 + $0x570] sm:$0xff]
    %v5011 = vld [vmem:[#allocation12 + $0x578] sm:$0xff]
    %v5012 = vld [vmem:[#allocation12 + $0x580] sm:$0xff]
    %v5013 = vld [vmem:[#allocation12 + $0x588] sm:$0xff]
    %v5014 = vld [vmem:[#allocation12 + $0x590] sm:$0xff]
    %v5015 = vld [vmem:[#allocation12 + $0x598] sm:$0xff]
    %v5016 = vld [vmem:[#allocation12 + $0x5a0] sm:$0xff]
    %v5017 = vld [vmem:[#allocation12 + $0x5a8] sm:$0xff]
    %v5018 = vld [vmem:[#allocation12 + $0x5b0] sm:$0xff]
    %v5019 = vld [vmem:[#allocation12 + $0x5b8] sm:$0xff]
    %v5020 = vld [vmem:[#allocation12 + $0x5c0] sm:$0xff]
    %v5021 = vld [vmem:[#allocation12 + $0x5c8] sm:$0xff]
    %v5022 = vld [vmem:[#allocation12 + $0x5d0] sm:$0xff]
    %v5023 = vld [vmem:[#allocation12 + $0x5d8] sm:$0xff]
    %v5024 = vld [vmem:[#allocation12 + $0x5e0] sm:$0xff]
    %v5025 = vld [vmem:[#allocation12 + $0x5e8] sm:$0xff]
    %v5026 = vld [vmem:[#allocation12 + $0x5f0] sm:$0xff]
    %v5027 = vld [vmem:[#allocation12 + $0x5f8] sm:$0xff]
    %v5028 = vld [vmem:[#allocation12 + $0x600] sm:$0xff]
    %v5029 = vld [vmem:[#allocation12 + $0x608] sm:$0xff]
    %v5030 = vld [vmem:[#allocation12 + $0x610] sm:$0xff]
    %v5031 = vld [vmem:[#allocation12 + $0x618] sm:$0xff]
    %v5032 = vld [vmem:[#allocation12 + $0x620] sm:$0xff]
    %v5033 = vld [vmem:[#allocation12 + $0x628] sm:$0xff]
    %v5034 = vld [vmem:[#allocation12 + $0x630] sm:$0xff]
    %v5035 = vld [vmem:[#allocation12 + $0x638] sm:$0xff]
    %v5036 = vld [vmem:[#allocation12 + $0x640] sm:$0xff]
    %v5037 = vld [vmem:[#allocation12 + $0x648] sm:$0xff]
    %v5038 = vld [vmem:[#allocation12 + $0x650] sm:$0xff]
    %v5039 = vld [vmem:[#allocation12 + $0x658] sm:$0xff]
    %v5040 = vld [vmem:[#allocation12 + $0x660] sm:$0xff]
    %v5041 = vld [vmem:[#allocation12 + $0x668] sm:$0xff]
    %v5042 = vld [vmem:[#allocation12 + $0x670] sm:$0xff]
    %v5043 = vld [vmem:[#allocation12 + $0x678] sm:$0xff]
    %v5044 = vld [vmem:[#allocation12 + $0x680] sm:$0xff]
    %v5045 = vld [vmem:[#allocation12 + $0x688] sm:$0xff]
    %v5046 = vld [vmem:[#allocation12 + $0x690] sm:$0xff]
    %v5047 = vld [vmem:[#allocation12 + $0x698] sm:$0xff]
    %v5048 = vld [vmem:[#allocation12 + $0x6a0] sm:$0xff]
    %v5049 = vld [vmem:[#allocation12 + $0x6a8] sm:$0xff]
    %v5050 = vld [vmem:[#allocation12 + $0x6b0] sm:$0xff]
    %v5051 = vld [vmem:[#allocation12 + $0x6b8] sm:$0xff]
    %v5052 = vld [vmem:[#allocation12 + $0x6c0] sm:$0xff]
    %v5053 = vld [vmem:[#allocation12 + $0x6c8] sm:$0xff]
    %v5054 = vld [vmem:[#allocation12 + $0x6d0] sm:$0xff]
    %v5055 = vld [vmem:[#allocation12 + $0x6d8] sm:$0xff]
    %v5056 = vld [vmem:[#allocation12 + $0x6e0] sm:$0xff]
    %v5057 = vld [vmem:[#allocation12 + $0x6e8] sm:$0xff]
    %v5058 = vld [vmem:[#allocation12 + $0x6f0] sm:$0xff]
    %v5059 = vld [vmem:[#allocation12 + $0x6f8] sm:$0xff]
    %v5060 = vld [vmem:[#allocation12 + $0x700] sm:$0xff]
    %v5061 = vld [vmem:[#allocation12 + $0x708] sm:$0xff]
    %v5062 = vld [vmem:[#allocation12 + $0x710] sm:$0xff]
    %v5063 = vld [vmem:[#allocation12 + $0x718] sm:$0xff]
    %v5064 = vld [vmem:[#allocation12 + $0x720] sm:$0xff]
    %v5065 = vld [vmem:[#allocation12 + $0x728] sm:$0xff]
    %v5066 = vld [vmem:[#allocation12 + $0x730] sm:$0xff]
    %v5067 = vld [vmem:[#allocation12 + $0x738] sm:$0xff]
    %v5068 = vld [vmem:[#allocation12 + $0x740] sm:$0xff]
    %v5069 = vld [vmem:[#allocation12 + $0x748] sm:$0xff]
    %v5070 = vld [vmem:[#allocation12 + $0x750] sm:$0xff]
    %v5071 = vld [vmem:[#allocation12 + $0x758] sm:$0xff]
    %v5072 = vld [vmem:[#allocation12 + $0x760] sm:$0xff]
    %v5073 = vld [vmem:[#allocation12 + $0x768] sm:$0xff]
    %v5074 = vld [vmem:[#allocation12 + $0x770] sm:$0xff]
    %v5075 = vld [vmem:[#allocation12 + $0x778] sm:$0xff]
    %v5076 = vld [vmem:[#allocation12 + $0x780] sm:$0xff]
    %v5077 = vld [vmem:[#allocation12 + $0x788] sm:$0xff]
    %v5078 = vld [vmem:[#allocation12 + $0x790] sm:$0xff]
    %v5079 = vld [vmem:[#allocation12 + $0x798] sm:$0xff]
    %v5080 = vld [vmem:[#allocation12 + $0x7a0] sm:$0xff]
    %v5081 = vld [vmem:[#allocation12 + $0x7a8] sm:$0xff]
    %v5082 = vld [vmem:[#allocation12 + $0x7b0] sm:$0xff]
    %v5083 = vld [vmem:[#allocation12 + $0x7b8] sm:$0xff]
    %v5084 = vld [vmem:[#allocation12 + $0x7c0] sm:$0xff]
    %v5085 = vld [vmem:[#allocation12 + $0x7c8] sm:$0xff]
    %v5086 = vld [vmem:[#allocation12 + $0x7d0] sm:$0xff]
    %v5087 = vld [vmem:[#allocation12 + $0x7d8] sm:$0xff]
    %v5088 = vld [vmem:[#allocation12 + $0x7e0] sm:$0xff]
    %v5089 = vld [vmem:[#allocation12 + $0x7e8] sm:$0xff]
    %v5090 = vld [vmem:[#allocation12 + $0x7f0] sm:$0xff]
    %v5091 = vld [vmem:[#allocation12 + $0x7f8] sm:$0xff]
    %v5092 = vld [vmem:[#allocation12 + $0x800] sm:$0xff]
    %v5093 = vld [vmem:[#allocation12 + $0x808] sm:$0xff]
    %v5094 = vld [vmem:[#allocation12 + $0x810] sm:$0xff]
    %v5095 = vld [vmem:[#allocation12 + $0x818] sm:$0xff]
    %v5096 = vld [vmem:[#allocation12 + $0x820] sm:$0xff]
    %v5097 = vld [vmem:[#allocation12 + $0x828] sm:$0xff]
    %v5098 = vld [vmem:[#allocation12 + $0x830] sm:$0xff]
    %v5099 = vld [vmem:[#allocation12 + $0x838] sm:$0xff]
    %v5100 = vld [vmem:[#allocation12 + $0x840] sm:$0xff]
    %v5101 = vld [vmem:[#allocation12 + $0x848] sm:$0xff]
    %v5102 = vld [vmem:[#allocation12 + $0x850] sm:$0xff]
    %v5103 = vld [vmem:[#allocation12 + $0x858] sm:$0xff]
    %v5104 = vld [vmem:[#allocation12 + $0x860] sm:$0xff]
    %v5105 = vld [vmem:[#allocation12 + $0x868] sm:$0xff]
    %v5106 = vld [vmem:[#allocation12 + $0x870] sm:$0xff]
    %v5107 = vld [vmem:[#allocation12 + $0x878] sm:$0xff]
    %v5108 = vld [vmem:[#allocation12 + $0x880] sm:$0xff]
    %v5109 = vld [vmem:[#allocation12 + $0x888] sm:$0xff]
    %v5110 = vld [vmem:[#allocation12 + $0x890] sm:$0xff]
    %v5111 = vld [vmem:[#allocation12 + $0x898] sm:$0xff]
    %v5112 = vld [vmem:[#allocation12 + $0x8a0] sm:$0xff]
    %v5113 = vld [vmem:[#allocation12 + $0x8a8] sm:$0xff]
    %v5114 = vld [vmem:[#allocation12 + $0x8b0] sm:$0xff]
    %v5115 = vld [vmem:[#allocation12 + $0x8b8] sm:$0xff]
    %v5116 = vld [vmem:[#allocation12 + $0x8c0] sm:$0xff]
    %v5117 = vld [vmem:[#allocation12 + $0x8c8] sm:$0xff]
    %v5118 = vld [vmem:[#allocation12 + $0x8d0] sm:$0xff]
    %v5119 = vld [vmem:[#allocation12 + $0x8d8] sm:$0xff]
    %v5120 = vld [vmem:[#allocation12 + $0x8e0] sm:$0xff]
    %v5121 = vld [vmem:[#allocation12 + $0x8e8] sm:$0xff]
    %v5122 = vld [vmem:[#allocation12 + $0x8f0] sm:$0xff]
    %v5123 = vld [vmem:[#allocation12 + $0x8f8] sm:$0xff]
    %v5124 = vld [vmem:[#allocation12 + $0x900] sm:$0xff]
    %v5125 = vld [vmem:[#allocation12 + $0x908] sm:$0xff]
    %v5126 = vld [vmem:[#allocation12 + $0x910] sm:$0xff]
    %v5127 = vld [vmem:[#allocation12 + $0x918] sm:$0xff]
    %v5128 = vld [vmem:[#allocation12 + $0x920] sm:$0xff]
    %v5129 = vld [vmem:[#allocation12 + $0x928] sm:$0xff]
    %v5130 = vld [vmem:[#allocation12 + $0x930] sm:$0xff]
    %v5131 = vld [vmem:[#allocation12 + $0x938] sm:$0xff]
    %v5132 = vld [vmem:[#allocation12 + $0x940] sm:$0xff]
    %v5133 = vld [vmem:[#allocation12 + $0x948] sm:$0xff]
    %v5134 = vld [vmem:[#allocation12 + $0x950] sm:$0xff]
    %v5135 = vld [vmem:[#allocation12 + $0x958] sm:$0xff]
    %v5136 = vld [vmem:[#allocation12 + $0x960] sm:$0xff]
    %v5137 = vld [vmem:[#allocation12 + $0x968] sm:$0xff]
    %v5138 = vld [vmem:[#allocation12 + $0x970] sm:$0xff]
    %v5139 = vld [vmem:[#allocation12 + $0x978] sm:$0xff]
    %v5140 = vld [vmem:[#allocation12 + $0x980] sm:$0xff]
    %v5141 = vld [vmem:[#allocation12 + $0x988] sm:$0xff]
    %v5142 = vld [vmem:[#allocation12 + $0x990] sm:$0xff]
    %v5143 = vld [vmem:[#allocation12 + $0x998] sm:$0xff]
    %v5144 = vld [vmem:[#allocation12 + $0x9a0] sm:$0xff]
    %v5145 = vld [vmem:[#allocation12 + $0x9a8] sm:$0xff]
    %v5146 = vld [vmem:[#allocation12 + $0x9b0] sm:$0xff]
    %v5147 = vld [vmem:[#allocation12 + $0x9b8] sm:$0xff]
    %v5148 = vld [vmem:[#allocation12 + $0x9c0] sm:$0xff]
    %v5149 = vld [vmem:[#allocation12 + $0x9c8] sm:$0xff]
    %v5150 = vld [vmem:[#allocation12 + $0x9d0] sm:$0xff]
    %v5151 = vld [vmem:[#allocation12 + $0x9d8] sm:$0xff]
    %v5152 = vld [vmem:[#allocation12 + $0x9e0] sm:$0xff]
    %v5153 = vld [vmem:[#allocation12 + $0x9e8] sm:$0xff]
    %v5154 = vld [vmem:[#allocation12 + $0x9f0] sm:$0xff]
    %v5155 = vld [vmem:[#allocation12 + $0x9f8] sm:$0xff]
    %v5156 = vld [vmem:[#allocation12 + $0xa00] sm:$0xff]
    %v5157 = vld [vmem:[#allocation12 + $0xa08] sm:$0xff]
    %v5158 = vld [vmem:[#allocation12 + $0xa10] sm:$0xff]
    %v5159 = vld [vmem:[#allocation12 + $0xa18] sm:$0xff]
    %v5160 = vld [vmem:[#allocation12 + $0xa20] sm:$0xff]
    %v5161 = vld [vmem:[#allocation12 + $0xa28] sm:$0xff]
    %v5162 = vld [vmem:[#allocation12 + $0xa30] sm:$0xff]
    %v5163 = vld [vmem:[#allocation12 + $0xa38] sm:$0xff]
    %v5164 = vld [vmem:[#allocation12 + $0xa40] sm:$0xff]
    %v5165 = vld [vmem:[#allocation12 + $0xa48] sm:$0xff]
    %v5166 = vld [vmem:[#allocation12 + $0xa50] sm:$0xff]
    %v5167 = vld [vmem:[#allocation12 + $0xa58] sm:$0xff]
    %v5168 = vld [vmem:[#allocation12 + $0xa60] sm:$0xff]
    %v5169 = vld [vmem:[#allocation12 + $0xa68] sm:$0xff]
    %v5170 = vld [vmem:[#allocation12 + $0xa70] sm:$0xff]
    %v5171 = vld [vmem:[#allocation12 + $0xa78] sm:$0xff]
    %v5172 = vld [vmem:[#allocation12 + $0xa80] sm:$0xff]
    %v5173 = vld [vmem:[#allocation12 + $0xa88] sm:$0xff]
    %v5174 = vld [vmem:[#allocation12 + $0xa90] sm:$0xff]
    %v5175 = vld [vmem:[#allocation12 + $0xa98] sm:$0xff]
    %v5176 = vld [vmem:[#allocation12 + $0xaa0] sm:$0xff]
    %v5177 = vld [vmem:[#allocation12 + $0xaa8] sm:$0xff]
    %v5178 = vld [vmem:[#allocation12 + $0xab0] sm:$0xff]
    %v5179 = vld [vmem:[#allocation12 + $0xab8] sm:$0xff]
    %v5180 = vld [vmem:[#allocation12 + $0xac0] sm:$0xff]
    %v5181 = vld [vmem:[#allocation12 + $0xac8] sm:$0xff]
    %v5182 = vld [vmem:[#allocation12 + $0xad0] sm:$0xff]
    %v5183 = vld [vmem:[#allocation12 + $0xad8] sm:$0xff]
    %v5184 = vld [vmem:[#allocation12 + $0xae0] sm:$0xff]
    %v5185 = vld [vmem:[#allocation12 + $0xae8] sm:$0xff]
    %v5186 = vld [vmem:[#allocation12 + $0xaf0] sm:$0xff]
    %v5187 = vld [vmem:[#allocation12 + $0xaf8] sm:$0xff]
    %v5188 = vld [vmem:[#allocation12 + $0xb00] sm:$0xff]
    %v5189 = vld [vmem:[#allocation12 + $0xb08] sm:$0xff]
    %v5190 = vld [vmem:[#allocation12 + $0xb10] sm:$0xff]
    %v5191 = vld [vmem:[#allocation12 + $0xb18] sm:$0xff]
    %v5192 = vld [vmem:[#allocation12 + $0xb20] sm:$0xff]
    %v5193 = vld [vmem:[#allocation12 + $0xb28] sm:$0xff]
    %v5194 = vld [vmem:[#allocation12 + $0xb30] sm:$0xff]
    %v5195 = vld [vmem:[#allocation12 + $0xb38] sm:$0xff]
    %v5196 = vld [vmem:[#allocation12 + $0xb40] sm:$0xff]
    %v5197 = vld [vmem:[#allocation12 + $0xb48] sm:$0xff]
    %v5198 = vld [vmem:[#allocation12 + $0xb50] sm:$0xff]
    %v5199 = vld [vmem:[#allocation12 + $0xb58] sm:$0xff]
    %v5200 = vld [vmem:[#allocation12 + $0xb60] sm:$0xff]
    %v5201 = vld [vmem:[#allocation12 + $0xb68] sm:$0xff]
    %v5202 = vld [vmem:[#allocation12 + $0xb70] sm:$0xff]
    %v5203 = vld [vmem:[#allocation12 + $0xb78] sm:$0xff]
    %v5204 = vld [vmem:[#allocation12 + $0xb80] sm:$0xff]
    %v5205 = vld [vmem:[#allocation12 + $0xb88] sm:$0xff]
    %v5206 = vld [vmem:[#allocation12 + $0xb90] sm:$0xff]
    %v5207 = vld [vmem:[#allocation12 + $0xb98] sm:$0xff]
    %v5208 = vld [vmem:[#allocation12 + $0xba0] sm:$0xff]
    %v5209 = vld [vmem:[#allocation12 + $0xba8] sm:$0xff]
    %v5210 = vld [vmem:[#allocation12 + $0xbb0] sm:$0xff]
    %v5211 = vld [vmem:[#allocation12 + $0xbb8] sm:$0xff]
    %v5212 = vld [vmem:[#allocation12 + $0xbc0] sm:$0xff]
    %v5213 = vld [vmem:[#allocation12 + $0xbc8] sm:$0xff]
    %v5214 = vld [vmem:[#allocation12 + $0xbd0] sm:$0xff]
    %v5215 = vld [vmem:[#allocation12 + $0xbd8] sm:$0xff]
    %v5216 = vld [vmem:[#allocation12 + $0xbe0] sm:$0xff]
    %v5217 = vld [vmem:[#allocation12 + $0xbe8] sm:$0xff]
    %v5218 = vld [vmem:[#allocation12 + $0xbf0] sm:$0xff]
    %v5219 = vld [vmem:[#allocation12 + $0xbf8] sm:$0xff]
    %v5220 = vld [vmem:[#allocation18] sm:$0xf]
    %v5222 = vlaneseq
    %v5223 = vshrl.u32 %v5222, 7
    %v5224 = vsub.s32 0, %v5223
    %v5225 = vrot.slane %v5220, %v5224
    %v5226 = vlaneseq
    %v5227 = vshrl.u32 %v5226, 7
    %v5228 = vsub.s32 1, %v5227
    %v5229 = vrot.slane %v5220, %v5228
    %v5230 = vlaneseq
    %v5231 = vshrl.u32 %v5230, 7
    %v5232 = vsub.s32 2, %v5231
    %v5233 = vrot.slane %v5220, %v5232
    %v5234 = vlaneseq
    %v5235 = vshrl.u32 %v5234, 7
    %v5236 = vsub.s32 3, %v5235
    %v5237 = vrot.slane %v5220, %v5236
    %v5626 = vunpack.c.l.b16 %v4836
    %v5627 = vunpack.c.h.b16 %v4836
    %v5628 = vunpack.c.l.b16 %v4837
    %v5629 = vunpack.c.h.b16 %v4837
    %v5630 = vunpack.c.l.b16 %v4838
    %v5631 = vunpack.c.h.b16 %v4838
    %v5632 = vunpack.c.l.b16 %v4839
    %v5633 = vunpack.c.h.b16 %v4839
    %v5634 = vunpack.c.l.b16 %v4840
    %v5635 = vunpack.c.h.b16 %v4840
    %v5636 = vunpack.c.l.b16 %v4841
    %v5637 = vunpack.c.h.b16 %v4841
    %v5638 = vunpack.c.l.b16 %v4842
    %v5639 = vunpack.c.h.b16 %v4842
    %v5640 = vunpack.c.l.b16 %v4843
    %v5641 = vunpack.c.h.b16 %v4843
    %v5642 = vunpack.c.l.b16 %v4844
    %v5643 = vunpack.c.h.b16 %v4844
    %v5644 = vunpack.c.l.b16 %v4845
    %v5645 = vunpack.c.h.b16 %v4845
    %v5646 = vunpack.c.l.b16 %v4846
    %v5647 = vunpack.c.h.b16 %v4846
    %v5648 = vunpack.c.l.b16 %v4847
    %v5649 = vunpack.c.h.b16 %v4847
    %v5650 = vunpack.c.l.b16 %v4848
    %v5651 = vunpack.c.h.b16 %v4848
    %v5652 = vunpack.c.l.b16 %v4849
    %v5653 = vunpack.c.h.b16 %v4849
    %v5654 = vunpack.c.l.b16 %v4850
    %v5655 = vunpack.c.h.b16 %v4850
    %v5656 = vunpack.c.l.b16 %v4851
    %v5657 = vunpack.c.h.b16 %v4851
    %v5658 = vunpack.c.l.b16 %v4852
    %v5659 = vunpack.c.h.b16 %v4852
    %v5660 = vunpack.c.l.b16 %v4853
    %v5661 = vunpack.c.h.b16 %v4853
    %v5662 = vunpack.c.l.b16 %v4854
    %v5663 = vunpack.c.h.b16 %v4854
    %v5664 = vunpack.c.l.b16 %v4855
    %v5665 = vunpack.c.h.b16 %v4855
    %v5666 = vunpack.c.l.b16 %v4856
    %v5667 = vunpack.c.h.b16 %v4856
    %v5668 = vunpack.c.l.b16 %v4857
    %v5669 = vunpack.c.h.b16 %v4857
    %v5670 = vunpack.c.l.b16 %v4858
    %v5671 = vunpack.c.h.b16 %v4858
    %v5672 = vunpack.c.l.b16 %v4859
    %v5673 = vunpack.c.h.b16 %v4859
    %v5674 = vunpack.c.l.b16 %v4860
    %v5675 = vunpack.c.h.b16 %v4860
    %v5676 = vunpack.c.l.b16 %v4861
    %v5677 = vunpack.c.h.b16 %v4861
    %v5678 = vunpack.c.l.b16 %v4862
    %v5679 = vunpack.c.h.b16 %v4862
    %v5680 = vunpack.c.l.b16 %v4863
    %v5681 = vunpack.c.h.b16 %v4863
    %v5682 = vunpack.c.l.b16 %v4864
    %v5683 = vunpack.c.h.b16 %v4864
    %v5684 = vunpack.c.l.b16 %v4865
    %v5685 = vunpack.c.h.b16 %v4865
    %v5686 = vunpack.c.l.b16 %v4866
    %v5687 = vunpack.c.h.b16 %v4866
    %v5688 = vunpack.c.l.b16 %v4867
    %v5689 = vunpack.c.h.b16 %v4867
    %v5690 = vunpack.c.l.b16 %v4868
    %v5691 = vunpack.c.h.b16 %v4868
    %v5692 = vunpack.c.l.b16 %v4869
    %v5693 = vunpack.c.h.b16 %v4869
    %v5694 = vunpack.c.l.b16 %v4870
    %v5695 = vunpack.c.h.b16 %v4870
    %v5696 = vunpack.c.l.b16 %v4871
    %v5697 = vunpack.c.h.b16 %v4871
    %v5698 = vunpack.c.l.b16 %v4872
    %v5699 = vunpack.c.h.b16 %v4872
    %v5700 = vunpack.c.l.b16 %v4873
    %v5701 = vunpack.c.h.b16 %v4873
    %v5702 = vunpack.c.l.b16 %v4874
    %v5703 = vunpack.c.h.b16 %v4874
    %v5704 = vunpack.c.l.b16 %v4875
    %v5705 = vunpack.c.h.b16 %v4875
    %v5706 = vunpack.c.l.b16 %v4876
    %v5707 = vunpack.c.h.b16 %v4876
    %v5708 = vunpack.c.l.b16 %v4877
    %v5709 = vunpack.c.h.b16 %v4877
    %v5710 = vunpack.c.l.b16 %v4878
    %v5711 = vunpack.c.h.b16 %v4878
    %v5712 = vunpack.c.l.b16 %v4879
    %v5713 = vunpack.c.h.b16 %v4879
    %v5714 = vunpack.c.l.b16 %v4880
    %v5715 = vunpack.c.h.b16 %v4880
    %v5716 = vunpack.c.l.b16 %v4881
    %v5717 = vunpack.c.h.b16 %v4881
    %v5718 = vunpack.c.l.b16 %v4882
    %v5719 = vunpack.c.h.b16 %v4882
    %v5720 = vunpack.c.l.b16 %v4883
    %v5721 = vunpack.c.h.b16 %v4883
    %v5722 = vunpack.c.l.b16 %v4884
    %v5723 = vunpack.c.h.b16 %v4884
    %v5724 = vunpack.c.l.b16 %v4885
    %v5725 = vunpack.c.h.b16 %v4885
    %v5726 = vunpack.c.l.b16 %v4886
    %v5727 = vunpack.c.h.b16 %v4886
    %v5728 = vunpack.c.l.b16 %v4887
    %v5729 = vunpack.c.h.b16 %v4887
    %v5730 = vunpack.c.l.b16 %v4888
    %v5731 = vunpack.c.h.b16 %v4888
    %v5732 = vunpack.c.l.b16 %v4889
    %v5733 = vunpack.c.h.b16 %v4889
    %v5734 = vunpack.c.l.b16 %v4890
    %v5735 = vunpack.c.h.b16 %v4890
    %v5736 = vunpack.c.l.b16 %v4891
    %v5737 = vunpack.c.h.b16 %v4891
    %v5738 = vunpack.c.l.b16 %v4892
    %v5739 = vunpack.c.h.b16 %v4892
    %v5740 = vunpack.c.l.b16 %v4893
    %v5741 = vunpack.c.h.b16 %v4893
    %v5742 = vunpack.c.l.b16 %v4894
    %v5743 = vunpack.c.h.b16 %v4894
    %v5744 = vunpack.c.l.b16 %v4895
    %v5745 = vunpack.c.h.b16 %v4895
    %v5746 = vunpack.c.l.b16 %v4896
    %v5747 = vunpack.c.h.b16 %v4896
    %v5748 = vunpack.c.l.b16 %v4897
    %v5749 = vunpack.c.h.b16 %v4897
    %v5750 = vunpack.c.l.b16 %v4898
    %v5751 = vunpack.c.h.b16 %v4898
    %v5752 = vunpack.c.l.b16 %v4899
    %v5753 = vunpack.c.h.b16 %v4899
    %v5754 = vunpack.c.l.b16 %v4900
    %v5755 = vunpack.c.h.b16 %v4900
    %v5756 = vunpack.c.l.b16 %v4901
    %v5757 = vunpack.c.h.b16 %v4901
    %v5758 = vunpack.c.l.b16 %v4902
    %v5759 = vunpack.c.h.b16 %v4902
    %v5760 = vunpack.c.l.b16 %v4903
    %v5761 = vunpack.c.h.b16 %v4903
    %v5762 = vunpack.c.l.b16 %v4904
    %v5763 = vunpack.c.h.b16 %v4904
    %v5764 = vunpack.c.l.b16 %v4905
    %v5765 = vunpack.c.h.b16 %v4905
    %v5766 = vunpack.c.l.b16 %v4906
    %v5767 = vunpack.c.h.b16 %v4906
    %v5768 = vunpack.c.l.b16 %v4907
    %v5769 = vunpack.c.h.b16 %v4907
    %v5770 = vunpack.c.l.b16 %v4908
    %v5771 = vunpack.c.h.b16 %v4908
    %v5772 = vunpack.c.l.b16 %v4909
    %v5773 = vunpack.c.h.b16 %v4909
    %v5774 = vunpack.c.l.b16 %v4910
    %v5775 = vunpack.c.h.b16 %v4910
    %v5776 = vunpack.c.l.b16 %v4911
    %v5777 = vunpack.c.h.b16 %v4911
    %v5778 = vunpack.c.l.b16 %v4912
    %v5779 = vunpack.c.h.b16 %v4912
    %v5780 = vunpack.c.l.b16 %v4913
    %v5781 = vunpack.c.h.b16 %v4913
    %v5782 = vunpack.c.l.b16 %v4914
    %v5783 = vunpack.c.h.b16 %v4914
    %v5784 = vunpack.c.l.b16 %v4915
    %v5785 = vunpack.c.h.b16 %v4915
    %v5786 = vunpack.c.l.b16 %v4916
    %v5787 = vunpack.c.h.b16 %v4916
    %v5788 = vunpack.c.l.b16 %v4917
    %v5789 = vunpack.c.h.b16 %v4917
    %v5790 = vunpack.c.l.b16 %v4918
    %v5791 = vunpack.c.h.b16 %v4918
    %v5792 = vunpack.c.l.b16 %v4919
    %v5793 = vunpack.c.h.b16 %v4919
    %v5794 = vunpack.c.l.b16 %v4920
    %v5795 = vunpack.c.h.b16 %v4920
    %v5796 = vunpack.c.l.b16 %v4921
    %v5797 = vunpack.c.h.b16 %v4921
    %v5798 = vunpack.c.l.b16 %v4922
    %v5799 = vunpack.c.h.b16 %v4922
    %v5800 = vunpack.c.l.b16 %v4923
    %v5801 = vunpack.c.h.b16 %v4923
    %v5802 = vunpack.c.l.b16 %v4924
    %v5803 = vunpack.c.h.b16 %v4924
    %v5804 = vunpack.c.l.b16 %v4925
    %v5805 = vunpack.c.h.b16 %v4925
    %v5806 = vunpack.c.l.b16 %v4926
    %v5807 = vunpack.c.h.b16 %v4926
    %v5808 = vunpack.c.l.b16 %v4927
    %v5809 = vunpack.c.h.b16 %v4927
    %v5810 = vunpack.c.l.b16 %v4928
    %v5811 = vunpack.c.h.b16 %v4928
    %v5812 = vunpack.c.l.b16 %v4929
    %v5813 = vunpack.c.h.b16 %v4929
    %v5814 = vunpack.c.l.b16 %v4930
    %v5815 = vunpack.c.h.b16 %v4930
    %v5816 = vunpack.c.l.b16 %v4931
    %v5817 = vunpack.c.h.b16 %v4931
    %v5818 = vunpack.c.l.b16 %v4932
    %v5819 = vunpack.c.h.b16 %v4932
    %v5820 = vunpack.c.l.b16 %v4933
    %v5821 = vunpack.c.h.b16 %v4933
    %v5822 = vunpack.c.l.b16 %v4934
    %v5823 = vunpack.c.h.b16 %v4934
    %v5824 = vunpack.c.l.b16 %v4935
    %v5825 = vunpack.c.h.b16 %v4935
    %v5826 = vunpack.c.l.b16 %v4936
    %v5827 = vunpack.c.h.b16 %v4936
    %v5828 = vunpack.c.l.b16 %v4937
    %v5829 = vunpack.c.h.b16 %v4937
    %v5830 = vunpack.c.l.b16 %v4938
    %v5831 = vunpack.c.h.b16 %v4938
    %v5832 = vunpack.c.l.b16 %v4939
    %v5833 = vunpack.c.h.b16 %v4939
    %v5834 = vunpack.c.l.b16 %v4940
    %v5835 = vunpack.c.h.b16 %v4940
    %v5836 = vunpack.c.l.b16 %v4941
    %v5837 = vunpack.c.h.b16 %v4941
    %v5838 = vunpack.c.l.b16 %v4942
    %v5839 = vunpack.c.h.b16 %v4942
    %v5840 = vunpack.c.l.b16 %v4943
    %v5841 = vunpack.c.h.b16 %v4943
    %v5842 = vunpack.c.l.b16 %v4944
    %v5843 = vunpack.c.h.b16 %v4944
    %v5844 = vunpack.c.l.b16 %v4945
    %v5845 = vunpack.c.h.b16 %v4945
    %v5846 = vunpack.c.l.b16 %v4946
    %v5847 = vunpack.c.h.b16 %v4946
    %v5848 = vunpack.c.l.b16 %v4947
    %v5849 = vunpack.c.h.b16 %v4947
    %v5850 = vunpack.c.l.b16 %v4948
    %v5851 = vunpack.c.h.b16 %v4948
    %v5852 = vunpack.c.l.b16 %v4949
    %v5853 = vunpack.c.h.b16 %v4949
    %v5854 = vunpack.c.l.b16 %v4950
    %v5855 = vunpack.c.h.b16 %v4950
    %v5856 = vunpack.c.l.b16 %v4951
    %v5857 = vunpack.c.h.b16 %v4951
    %v5858 = vunpack.c.l.b16 %v4952
    %v5859 = vunpack.c.h.b16 %v4952
    %v5860 = vunpack.c.l.b16 %v4953
    %v5861 = vunpack.c.h.b16 %v4953
    %v5862 = vunpack.c.l.b16 %v4954
    %v5863 = vunpack.c.h.b16 %v4954
    %v5864 = vunpack.c.l.b16 %v4955
    %v5865 = vunpack.c.h.b16 %v4955
    %v5866 = vunpack.c.l.b16 %v4956
    %v5867 = vunpack.c.h.b16 %v4956
    %v5868 = vunpack.c.l.b16 %v4957
    %v5869 = vunpack.c.h.b16 %v4957
    %v5870 = vunpack.c.l.b16 %v4958
    %v5871 = vunpack.c.h.b16 %v4958
    %v5872 = vunpack.c.l.b16 %v4959
    %v5873 = vunpack.c.h.b16 %v4959
    %v5874 = vunpack.c.l.b16 %v4960
    %v5875 = vunpack.c.h.b16 %v4960
    %v5876 = vunpack.c.l.b16 %v4961
    %v5877 = vunpack.c.h.b16 %v4961
    %v5878 = vunpack.c.l.b16 %v4962
    %v5879 = vunpack.c.h.b16 %v4962
    %v5880 = vunpack.c.l.b16 %v4963
    %v5881 = vunpack.c.h.b16 %v4963
    %v5882 = vunpack.c.l.b16 %v4964
    %v5883 = vunpack.c.h.b16 %v4964
    %v5884 = vunpack.c.l.b16 %v4965
    %v5885 = vunpack.c.h.b16 %v4965
    %v5886 = vunpack.c.l.b16 %v4966
    %v5887 = vunpack.c.h.b16 %v4966
    %v5888 = vunpack.c.l.b16 %v4967
    %v5889 = vunpack.c.h.b16 %v4967
    %v5890 = vunpack.c.l.b16 %v4968
    %v5891 = vunpack.c.h.b16 %v4968
    %v5892 = vunpack.c.l.b16 %v4969
    %v5893 = vunpack.c.h.b16 %v4969
    %v5894 = vunpack.c.l.b16 %v4970
    %v5895 = vunpack.c.h.b16 %v4970
    %v5896 = vunpack.c.l.b16 %v4971
    %v5897 = vunpack.c.h.b16 %v4971
    %v5898 = vunpack.c.l.b16 %v4972
    %v5899 = vunpack.c.h.b16 %v4972
    %v5900 = vunpack.c.l.b16 %v4973
    %v5901 = vunpack.c.h.b16 %v4973
    %v5902 = vunpack.c.l.b16 %v4974
    %v5903 = vunpack.c.h.b16 %v4974
    %v5904 = vunpack.c.l.b16 %v4975
    %v5905 = vunpack.c.h.b16 %v4975
    %v5906 = vunpack.c.l.b16 %v4976
    %v5907 = vunpack.c.h.b16 %v4976
    %v5908 = vunpack.c.l.b16 %v4977
    %v5909 = vunpack.c.h.b16 %v4977
    %v5910 = vunpack.c.l.b16 %v4978
    %v5911 = vunpack.c.h.b16 %v4978
    %v5912 = vunpack.c.l.b16 %v4979
    %v5913 = vunpack.c.h.b16 %v4979
    %v5914 = vunpack.c.l.b16 %v4980
    %v5915 = vunpack.c.h.b16 %v4980
    %v5916 = vunpack.c.l.b16 %v4981
    %v5917 = vunpack.c.h.b16 %v4981
    %v5918 = vunpack.c.l.b16 %v4982
    %v5919 = vunpack.c.h.b16 %v4982
    %v5920 = vunpack.c.l.b16 %v4983
    %v5921 = vunpack.c.h.b16 %v4983
    %v5922 = vunpack.c.l.b16 %v4984
    %v5923 = vunpack.c.h.b16 %v4984
    %v5924 = vunpack.c.l.b16 %v4985
    %v5925 = vunpack.c.h.b16 %v4985
    %v5926 = vunpack.c.l.b16 %v4986
    %v5927 = vunpack.c.h.b16 %v4986
    %v5928 = vunpack.c.l.b16 %v4987
    %v5929 = vunpack.c.h.b16 %v4987
    %v5930 = vunpack.c.l.b16 %v4988
    %v5931 = vunpack.c.h.b16 %v4988
    %v5932 = vunpack.c.l.b16 %v4989
    %v5933 = vunpack.c.h.b16 %v4989
    %v5934 = vunpack.c.l.b16 %v4990
    %v5935 = vunpack.c.h.b16 %v4990
    %v5936 = vunpack.c.l.b16 %v4991
    %v5937 = vunpack.c.h.b16 %v4991
    %v5938 = vunpack.c.l.b16 %v4992
    %v5939 = vunpack.c.h.b16 %v4992
    %v5940 = vunpack.c.l.b16 %v4993
    %v5941 = vunpack.c.h.b16 %v4993
    %v5942 = vunpack.c.l.b16 %v4994
    %v5943 = vunpack.c.h.b16 %v4994
    %v5944 = vunpack.c.l.b16 %v4995
    %v5945 = vunpack.c.h.b16 %v4995
    %v5946 = vunpack.c.l.b16 %v4996
    %v5947 = vunpack.c.h.b16 %v4996
    %v5948 = vunpack.c.l.b16 %v4997
    %v5949 = vunpack.c.h.b16 %v4997
    %v5950 = vunpack.c.l.b16 %v4998
    %v5951 = vunpack.c.h.b16 %v4998
    %v5952 = vunpack.c.l.b16 %v4999
    %v5953 = vunpack.c.h.b16 %v4999
    %v5954 = vunpack.c.l.b16 %v5000
    %v5955 = vunpack.c.h.b16 %v5000
    %v5956 = vunpack.c.l.b16 %v5001
    %v5957 = vunpack.c.h.b16 %v5001
    %v5958 = vunpack.c.l.b16 %v5002
    %v5959 = vunpack.c.h.b16 %v5002
    %v5960 = vunpack.c.l.b16 %v5003
    %v5961 = vunpack.c.h.b16 %v5003
    %v5962 = vunpack.c.l.b16 %v5004
    %v5963 = vunpack.c.h.b16 %v5004
    %v5964 = vunpack.c.l.b16 %v5005
    %v5965 = vunpack.c.h.b16 %v5005
    %v5966 = vunpack.c.l.b16 %v5006
    %v5967 = vunpack.c.h.b16 %v5006
    %v5968 = vunpack.c.l.b16 %v5007
    %v5969 = vunpack.c.h.b16 %v5007
    %v5970 = vunpack.c.l.b16 %v5008
    %v5971 = vunpack.c.h.b16 %v5008
    %v5972 = vunpack.c.l.b16 %v5009
    %v5973 = vunpack.c.h.b16 %v5009
    %v5974 = vunpack.c.l.b16 %v5010
    %v5975 = vunpack.c.h.b16 %v5010
    %v5976 = vunpack.c.l.b16 %v5011
    %v5977 = vunpack.c.h.b16 %v5011
    %v5978 = vunpack.c.l.b16 %v5012
    %v5979 = vunpack.c.h.b16 %v5012
    %v5980 = vunpack.c.l.b16 %v5013
    %v5981 = vunpack.c.h.b16 %v5013
    %v5982 = vunpack.c.l.b16 %v5014
    %v5983 = vunpack.c.h.b16 %v5014
    %v5984 = vunpack.c.l.b16 %v5015
    %v5985 = vunpack.c.h.b16 %v5015
    %v5986 = vunpack.c.l.b16 %v5016
    %v5987 = vunpack.c.h.b16 %v5016
    %v5988 = vunpack.c.l.b16 %v5017
    %v5989 = vunpack.c.h.b16 %v5017
    %v5990 = vunpack.c.l.b16 %v5018
    %v5991 = vunpack.c.h.b16 %v5018
    %v5992 = vunpack.c.l.b16 %v5019
    %v5993 = vunpack.c.h.b16 %v5019
    %v5994 = vunpack.c.l.b16 %v5020
    %v5995 = vunpack.c.h.b16 %v5020
    %v5996 = vunpack.c.l.b16 %v5021
    %v5997 = vunpack.c.h.b16 %v5021
    %v5998 = vunpack.c.l.b16 %v5022
    %v5999 = vunpack.c.h.b16 %v5022
    %v6000 = vunpack.c.l.b16 %v5023
    %v6001 = vunpack.c.h.b16 %v5023
    %v6002 = vunpack.c.l.b16 %v5024
    %v6003 = vunpack.c.h.b16 %v5024
    %v6004 = vunpack.c.l.b16 %v5025
    %v6005 = vunpack.c.h.b16 %v5025
    %v6006 = vunpack.c.l.b16 %v5026
    %v6007 = vunpack.c.h.b16 %v5026
    %v6008 = vunpack.c.l.b16 %v5027
    %v6009 = vunpack.c.h.b16 %v5027
    %v6010 = vunpack.c.l.b16 %v5028
    %v6011 = vunpack.c.h.b16 %v5028
    %v6012 = vunpack.c.l.b16 %v5029
    %v6013 = vunpack.c.h.b16 %v5029
    %v6014 = vunpack.c.l.b16 %v5030
    %v6015 = vunpack.c.h.b16 %v5030
    %v6016 = vunpack.c.l.b16 %v5031
    %v6017 = vunpack.c.h.b16 %v5031
    %v6018 = vunpack.c.l.b16 %v5032
    %v6019 = vunpack.c.h.b16 %v5032
    %v6020 = vunpack.c.l.b16 %v5033
    %v6021 = vunpack.c.h.b16 %v5033
    %v6022 = vunpack.c.l.b16 %v5034
    %v6023 = vunpack.c.h.b16 %v5034
    %v6024 = vunpack.c.l.b16 %v5035
    %v6025 = vunpack.c.h.b16 %v5035
    %v6026 = vunpack.c.l.b16 %v5036
    %v6027 = vunpack.c.h.b16 %v5036
    %v6028 = vunpack.c.l.b16 %v5037
    %v6029 = vunpack.c.h.b16 %v5037
    %v6030 = vunpack.c.l.b16 %v5038
    %v6031 = vunpack.c.h.b16 %v5038
    %v6032 = vunpack.c.l.b16 %v5039
    %v6033 = vunpack.c.h.b16 %v5039
    %v6034 = vunpack.c.l.b16 %v5040
    %v6035 = vunpack.c.h.b16 %v5040
    %v6036 = vunpack.c.l.b16 %v5041
    %v6037 = vunpack.c.h.b16 %v5041
    %v6038 = vunpack.c.l.b16 %v5042
    %v6039 = vunpack.c.h.b16 %v5042
    %v6040 = vunpack.c.l.b16 %v5043
    %v6041 = vunpack.c.h.b16 %v5043
    %v6042 = vunpack.c.l.b16 %v5044
    %v6043 = vunpack.c.h.b16 %v5044
    %v6044 = vunpack.c.l.b16 %v5045
    %v6045 = vunpack.c.h.b16 %v5045
    %v6046 = vunpack.c.l.b16 %v5046
    %v6047 = vunpack.c.h.b16 %v5046
    %v6048 = vunpack.c.l.b16 %v5047
    %v6049 = vunpack.c.h.b16 %v5047
    %v6050 = vunpack.c.l.b16 %v5048
    %v6051 = vunpack.c.h.b16 %v5048
    %v6052 = vunpack.c.l.b16 %v5049
    %v6053 = vunpack.c.h.b16 %v5049
    %v6054 = vunpack.c.l.b16 %v5050
    %v6055 = vunpack.c.h.b16 %v5050
    %v6056 = vunpack.c.l.b16 %v5051
    %v6057 = vunpack.c.h.b16 %v5051
    %v6058 = vunpack.c.l.b16 %v5052
    %v6059 = vunpack.c.h.b16 %v5052
    %v6060 = vunpack.c.l.b16 %v5053
    %v6061 = vunpack.c.h.b16 %v5053
    %v6062 = vunpack.c.l.b16 %v5054
    %v6063 = vunpack.c.h.b16 %v5054
    %v6064 = vunpack.c.l.b16 %v5055
    %v6065 = vunpack.c.h.b16 %v5055
    %v6066 = vunpack.c.l.b16 %v5056
    %v6067 = vunpack.c.h.b16 %v5056
    %v6068 = vunpack.c.l.b16 %v5057
    %v6069 = vunpack.c.h.b16 %v5057
    %v6070 = vunpack.c.l.b16 %v5058
    %v6071 = vunpack.c.h.b16 %v5058
    %v6072 = vunpack.c.l.b16 %v5059
    %v6073 = vunpack.c.h.b16 %v5059
    %v6074 = vunpack.c.l.b16 %v5060
    %v6075 = vunpack.c.h.b16 %v5060
    %v6076 = vunpack.c.l.b16 %v5061
    %v6077 = vunpack.c.h.b16 %v5061
    %v6078 = vunpack.c.l.b16 %v5062
    %v6079 = vunpack.c.h.b16 %v5062
    %v6080 = vunpack.c.l.b16 %v5063
    %v6081 = vunpack.c.h.b16 %v5063
    %v6082 = vunpack.c.l.b16 %v5064
    %v6083 = vunpack.c.h.b16 %v5064
    %v6084 = vunpack.c.l.b16 %v5065
    %v6085 = vunpack.c.h.b16 %v5065
    %v6086 = vunpack.c.l.b16 %v5066
    %v6087 = vunpack.c.h.b16 %v5066
    %v6088 = vunpack.c.l.b16 %v5067
    %v6089 = vunpack.c.h.b16 %v5067
    %v6090 = vunpack.c.l.b16 %v5068
    %v6091 = vunpack.c.h.b16 %v5068
    %v6092 = vunpack.c.l.b16 %v5069
    %v6093 = vunpack.c.h.b16 %v5069
    %v6094 = vunpack.c.l.b16 %v5070
    %v6095 = vunpack.c.h.b16 %v5070
    %v6096 = vunpack.c.l.b16 %v5071
    %v6097 = vunpack.c.h.b16 %v5071
    %v6098 = vunpack.c.l.b16 %v5072
    %v6099 = vunpack.c.h.b16 %v5072
    %v6100 = vunpack.c.l.b16 %v5073
    %v6101 = vunpack.c.h.b16 %v5073
    %v6102 = vunpack.c.l.b16 %v5074
    %v6103 = vunpack.c.h.b16 %v5074
    %v6104 = vunpack.c.l.b16 %v5075
    %v6105 = vunpack.c.h.b16 %v5075
    %v6106 = vunpack.c.l.b16 %v5076
    %v6107 = vunpack.c.h.b16 %v5076
    %v6108 = vunpack.c.l.b16 %v5077
    %v6109 = vunpack.c.h.b16 %v5077
    %v6110 = vunpack.c.l.b16 %v5078
    %v6111 = vunpack.c.h.b16 %v5078
    %v6112 = vunpack.c.l.b16 %v5079
    %v6113 = vunpack.c.h.b16 %v5079
    %v6114 = vunpack.c.l.b16 %v5080
    %v6115 = vunpack.c.h.b16 %v5080
    %v6116 = vunpack.c.l.b16 %v5081
    %v6117 = vunpack.c.h.b16 %v5081
    %v6118 = vunpack.c.l.b16 %v5082
    %v6119 = vunpack.c.h.b16 %v5082
    %v6120 = vunpack.c.l.b16 %v5083
    %v6121 = vunpack.c.h.b16 %v5083
    %v6122 = vunpack.c.l.b16 %v5084
    %v6123 = vunpack.c.h.b16 %v5084
    %v6124 = vunpack.c.l.b16 %v5085
    %v6125 = vunpack.c.h.b16 %v5085
    %v6126 = vunpack.c.l.b16 %v5086
    %v6127 = vunpack.c.h.b16 %v5086
    %v6128 = vunpack.c.l.b16 %v5087
    %v6129 = vunpack.c.h.b16 %v5087
    %v6130 = vunpack.c.l.b16 %v5088
    %v6131 = vunpack.c.h.b16 %v5088
    %v6132 = vunpack.c.l.b16 %v5089
    %v6133 = vunpack.c.h.b16 %v5089
    %v6134 = vunpack.c.l.b16 %v5090
    %v6135 = vunpack.c.h.b16 %v5090
    %v6136 = vunpack.c.l.b16 %v5091
    %v6137 = vunpack.c.h.b16 %v5091
    %v6138 = vunpack.c.l.b16 %v5092
    %v6139 = vunpack.c.h.b16 %v5092
    %v6140 = vunpack.c.l.b16 %v5093
    %v6141 = vunpack.c.h.b16 %v5093
    %v6142 = vunpack.c.l.b16 %v5094
    %v6143 = vunpack.c.h.b16 %v5094
    %v6144 = vunpack.c.l.b16 %v5095
    %v6145 = vunpack.c.h.b16 %v5095
    %v6146 = vunpack.c.l.b16 %v5096
    %v6147 = vunpack.c.h.b16 %v5096
    %v6148 = vunpack.c.l.b16 %v5097
    %v6149 = vunpack.c.h.b16 %v5097
    %v6150 = vunpack.c.l.b16 %v5098
    %v6151 = vunpack.c.h.b16 %v5098
    %v6152 = vunpack.c.l.b16 %v5099
    %v6153 = vunpack.c.h.b16 %v5099
    %v6154 = vunpack.c.l.b16 %v5100
    %v6155 = vunpack.c.h.b16 %v5100
    %v6156 = vunpack.c.l.b16 %v5101
    %v6157 = vunpack.c.h.b16 %v5101
    %v6158 = vunpack.c.l.b16 %v5102
    %v6159 = vunpack.c.h.b16 %v5102
    %v6160 = vunpack.c.l.b16 %v5103
    %v6161 = vunpack.c.h.b16 %v5103
    %v6162 = vunpack.c.l.b16 %v5104
    %v6163 = vunpack.c.h.b16 %v5104
    %v6164 = vunpack.c.l.b16 %v5105
    %v6165 = vunpack.c.h.b16 %v5105
    %v6166 = vunpack.c.l.b16 %v5106
    %v6167 = vunpack.c.h.b16 %v5106
    %v6168 = vunpack.c.l.b16 %v5107
    %v6169 = vunpack.c.h.b16 %v5107
    %v6170 = vunpack.c.l.b16 %v5108
    %v6171 = vunpack.c.h.b16 %v5108
    %v6172 = vunpack.c.l.b16 %v5109
    %v6173 = vunpack.c.h.b16 %v5109
    %v6174 = vunpack.c.l.b16 %v5110
    %v6175 = vunpack.c.h.b16 %v5110
    %v6176 = vunpack.c.l.b16 %v5111
    %v6177 = vunpack.c.h.b16 %v5111
    %v6178 = vunpack.c.l.b16 %v5112
    %v6179 = vunpack.c.h.b16 %v5112
    %v6180 = vunpack.c.l.b16 %v5113
    %v6181 = vunpack.c.h.b16 %v5113
    %v6182 = vunpack.c.l.b16 %v5114
    %v6183 = vunpack.c.h.b16 %v5114
    %v6184 = vunpack.c.l.b16 %v5115
    %v6185 = vunpack.c.h.b16 %v5115
    %v6186 = vunpack.c.l.b16 %v5116
    %v6187 = vunpack.c.h.b16 %v5116
    %v6188 = vunpack.c.l.b16 %v5117
    %v6189 = vunpack.c.h.b16 %v5117
    %v6190 = vunpack.c.l.b16 %v5118
    %v6191 = vunpack.c.h.b16 %v5118
    %v6192 = vunpack.c.l.b16 %v5119
    %v6193 = vunpack.c.h.b16 %v5119
    %v6194 = vunpack.c.l.b16 %v5120
    %v6195 = vunpack.c.h.b16 %v5120
    %v6196 = vunpack.c.l.b16 %v5121
    %v6197 = vunpack.c.h.b16 %v5121
    %v6198 = vunpack.c.l.b16 %v5122
    %v6199 = vunpack.c.h.b16 %v5122
    %v6200 = vunpack.c.l.b16 %v5123
    %v6201 = vunpack.c.h.b16 %v5123
    %v6202 = vunpack.c.l.b16 %v5124
    %v6203 = vunpack.c.h.b16 %v5124
    %v6204 = vunpack.c.l.b16 %v5125
    %v6205 = vunpack.c.h.b16 %v5125
    %v6206 = vunpack.c.l.b16 %v5126
    %v6207 = vunpack.c.h.b16 %v5126
    %v6208 = vunpack.c.l.b16 %v5127
    %v6209 = vunpack.c.h.b16 %v5127
    %v6210 = vunpack.c.l.b16 %v5128
    %v6211 = vunpack.c.h.b16 %v5128
    %v6212 = vunpack.c.l.b16 %v5129
    %v6213 = vunpack.c.h.b16 %v5129
    %v6214 = vunpack.c.l.b16 %v5130
    %v6215 = vunpack.c.h.b16 %v5130
    %v6216 = vunpack.c.l.b16 %v5131
    %v6217 = vunpack.c.h.b16 %v5131
    %v6218 = vunpack.c.l.b16 %v5132
    %v6219 = vunpack.c.h.b16 %v5132
    %v6220 = vunpack.c.l.b16 %v5133
    %v6221 = vunpack.c.h.b16 %v5133
    %v6222 = vunpack.c.l.b16 %v5134
    %v6223 = vunpack.c.h.b16 %v5134
    %v6224 = vunpack.c.l.b16 %v5135
    %v6225 = vunpack.c.h.b16 %v5135
    %v6226 = vunpack.c.l.b16 %v5136
    %v6227 = vunpack.c.h.b16 %v5136
    %v6228 = vunpack.c.l.b16 %v5137
    %v6229 = vunpack.c.h.b16 %v5137
    %v6230 = vunpack.c.l.b16 %v5138
    %v6231 = vunpack.c.h.b16 %v5138
    %v6232 = vunpack.c.l.b16 %v5139
    %v6233 = vunpack.c.h.b16 %v5139
    %v6234 = vunpack.c.l.b16 %v5140
    %v6235 = vunpack.c.h.b16 %v5140
    %v6236 = vunpack.c.l.b16 %v5141
    %v6237 = vunpack.c.h.b16 %v5141
    %v6238 = vunpack.c.l.b16 %v5142
    %v6239 = vunpack.c.h.b16 %v5142
    %v6240 = vunpack.c.l.b16 %v5143
    %v6241 = vunpack.c.h.b16 %v5143
    %v6242 = vunpack.c.l.b16 %v5144
    %v6243 = vunpack.c.h.b16 %v5144
    %v6244 = vunpack.c.l.b16 %v5145
    %v6245 = vunpack.c.h.b16 %v5145
    %v6246 = vunpack.c.l.b16 %v5146
    %v6247 = vunpack.c.h.b16 %v5146
    %v6248 = vunpack.c.l.b16 %v5147
    %v6249 = vunpack.c.h.b16 %v5147
    %v6250 = vunpack.c.l.b16 %v5148
    %v6251 = vunpack.c.h.b16 %v5148
    %v6252 = vunpack.c.l.b16 %v5149
    %v6253 = vunpack.c.h.b16 %v5149
    %v6254 = vunpack.c.l.b16 %v5150
    %v6255 = vunpack.c.h.b16 %v5150
    %v6256 = vunpack.c.l.b16 %v5151
    %v6257 = vunpack.c.h.b16 %v5151
    %v6258 = vunpack.c.l.b16 %v5152
    %v6259 = vunpack.c.h.b16 %v5152
    %v6260 = vunpack.c.l.b16 %v5153
    %v6261 = vunpack.c.h.b16 %v5153
    %v6262 = vunpack.c.l.b16 %v5154
    %v6263 = vunpack.c.h.b16 %v5154
    %v6264 = vunpack.c.l.b16 %v5155
    %v6265 = vunpack.c.h.b16 %v5155
    %v6266 = vunpack.c.l.b16 %v5156
    %v6267 = vunpack.c.h.b16 %v5156
    %v6268 = vunpack.c.l.b16 %v5157
    %v6269 = vunpack.c.h.b16 %v5157
    %v6270 = vunpack.c.l.b16 %v5158
    %v6271 = vunpack.c.h.b16 %v5158
    %v6272 = vunpack.c.l.b16 %v5159
    %v6273 = vunpack.c.h.b16 %v5159
    %v6274 = vunpack.c.l.b16 %v5160
    %v6275 = vunpack.c.h.b16 %v5160
    %v6276 = vunpack.c.l.b16 %v5161
    %v6277 = vunpack.c.h.b16 %v5161
    %v6278 = vunpack.c.l.b16 %v5162
    %v6279 = vunpack.c.h.b16 %v5162
    %v6280 = vunpack.c.l.b16 %v5163
    %v6281 = vunpack.c.h.b16 %v5163
    %v6282 = vunpack.c.l.b16 %v5164
    %v6283 = vunpack.c.h.b16 %v5164
    %v6284 = vunpack.c.l.b16 %v5165
    %v6285 = vunpack.c.h.b16 %v5165
    %v6286 = vunpack.c.l.b16 %v5166
    %v6287 = vunpack.c.h.b16 %v5166
    %v6288 = vunpack.c.l.b16 %v5167
    %v6289 = vunpack.c.h.b16 %v5167
    %v6290 = vunpack.c.l.b16 %v5168
    %v6291 = vunpack.c.h.b16 %v5168
    %v6292 = vunpack.c.l.b16 %v5169
    %v6293 = vunpack.c.h.b16 %v5169
    %v6294 = vunpack.c.l.b16 %v5170
    %v6295 = vunpack.c.h.b16 %v5170
    %v6296 = vunpack.c.l.b16 %v5171
    %v6297 = vunpack.c.h.b16 %v5171
    %v6298 = vunpack.c.l.b16 %v5172
    %v6299 = vunpack.c.h.b16 %v5172
    %v6300 = vunpack.c.l.b16 %v5173
    %v6301 = vunpack.c.h.b16 %v5173
    %v6302 = vunpack.c.l.b16 %v5174
    %v6303 = vunpack.c.h.b16 %v5174
    %v6304 = vunpack.c.l.b16 %v5175
    %v6305 = vunpack.c.h.b16 %v5175
    %v6306 = vunpack.c.l.b16 %v5176
    %v6307 = vunpack.c.h.b16 %v5176
    %v6308 = vunpack.c.l.b16 %v5177
    %v6309 = vunpack.c.h.b16 %v5177
    %v6310 = vunpack.c.l.b16 %v5178
    %v6311 = vunpack.c.h.b16 %v5178
    %v6312 = vunpack.c.l.b16 %v5179
    %v6313 = vunpack.c.h.b16 %v5179
    %v6314 = vunpack.c.l.b16 %v5180
    %v6315 = vunpack.c.h.b16 %v5180
    %v6316 = vunpack.c.l.b16 %v5181
    %v6317 = vunpack.c.h.b16 %v5181
    %v6318 = vunpack.c.l.b16 %v5182
    %v6319 = vunpack.c.h.b16 %v5182
    %v6320 = vunpack.c.l.b16 %v5183
    %v6321 = vunpack.c.h.b16 %v5183
    %v6322 = vunpack.c.l.b16 %v5184
    %v6323 = vunpack.c.h.b16 %v5184
    %v6324 = vunpack.c.l.b16 %v5185
    %v6325 = vunpack.c.h.b16 %v5185
    %v6326 = vunpack.c.l.b16 %v5186
    %v6327 = vunpack.c.h.b16 %v5186
    %v6328 = vunpack.c.l.b16 %v5187
    %v6329 = vunpack.c.h.b16 %v5187
    %v6330 = vunpack.c.l.b16 %v5188
    %v6331 = vunpack.c.h.b16 %v5188
    %v6332 = vunpack.c.l.b16 %v5189
    %v6333 = vunpack.c.h.b16 %v5189
    %v6334 = vunpack.c.l.b16 %v5190
    %v6335 = vunpack.c.h.b16 %v5190
    %v6336 = vunpack.c.l.b16 %v5191
    %v6337 = vunpack.c.h.b16 %v5191
    %v6338 = vunpack.c.l.b16 %v5192
    %v6339 = vunpack.c.h.b16 %v5192
    %v6340 = vunpack.c.l.b16 %v5193
    %v6341 = vunpack.c.h.b16 %v5193
    %v6342 = vunpack.c.l.b16 %v5194
    %v6343 = vunpack.c.h.b16 %v5194
    %v6344 = vunpack.c.l.b16 %v5195
    %v6345 = vunpack.c.h.b16 %v5195
    %v6346 = vunpack.c.l.b16 %v5196
    %v6347 = vunpack.c.h.b16 %v5196
    %v6348 = vunpack.c.l.b16 %v5197
    %v6349 = vunpack.c.h.b16 %v5197
    %v6350 = vunpack.c.l.b16 %v5198
    %v6351 = vunpack.c.h.b16 %v5198
    %v6352 = vunpack.c.l.b16 %v5199
    %v6353 = vunpack.c.h.b16 %v5199
    %v6354 = vunpack.c.l.b16 %v5200
    %v6355 = vunpack.c.h.b16 %v5200
    %v6356 = vunpack.c.l.b16 %v5201
    %v6357 = vunpack.c.h.b16 %v5201
    %v6358 = vunpack.c.l.b16 %v5202
    %v6359 = vunpack.c.h.b16 %v5202
    %v6360 = vunpack.c.l.b16 %v5203
    %v6361 = vunpack.c.h.b16 %v5203
    %v6362 = vunpack.c.l.b16 %v5204
    %v6363 = vunpack.c.h.b16 %v5204
    %v6364 = vunpack.c.l.b16 %v5205
    %v6365 = vunpack.c.h.b16 %v5205
    %v6366 = vunpack.c.l.b16 %v5206
    %v6367 = vunpack.c.h.b16 %v5206
    %v6368 = vunpack.c.l.b16 %v5207
    %v6369 = vunpack.c.h.b16 %v5207
    %v6370 = vunpack.c.l.b16 %v5208
    %v6371 = vunpack.c.h.b16 %v5208
    %v6372 = vunpack.c.l.b16 %v5209
    %v6373 = vunpack.c.h.b16 %v5209
    %v6374 = vunpack.c.l.b16 %v5210
    %v6375 = vunpack.c.h.b16 %v5210
    %v6376 = vunpack.c.l.b16 %v5211
    %v6377 = vunpack.c.h.b16 %v5211
    %v6378 = vunpack.c.l.b16 %v5212
    %v6379 = vunpack.c.h.b16 %v5212
    %v6380 = vunpack.c.l.b16 %v5213
    %v6381 = vunpack.c.h.b16 %v5213
    %v6382 = vunpack.c.l.b16 %v5214
    %v6383 = vunpack.c.h.b16 %v5214
    %v6384 = vunpack.c.l.b16 %v5215
    %v6385 = vunpack.c.h.b16 %v5215
    %v6386 = vunpack.c.l.b16 %v5216
    %v6387 = vunpack.c.h.b16 %v5216
    %v6388 = vunpack.c.l.b16 %v5217
    %v6389 = vunpack.c.h.b16 %v5217
    %v6390 = vunpack.c.l.b16 %v5218
    %v6391 = vunpack.c.h.b16 %v5218
    %v6392 = vunpack.c.l.b16 %v5219
    %v6393 = vunpack.c.h.b16 %v5219
    %v6394 = vpack.c.b16 %v5630, %v5626
    %v6395 = vpack.c.b16 %v5631, %v5627
    %v6396 = vpack.c.b16 %v5632, %v5628
    %v6397 = vpack.c.b16 %v5633, %v5629
    %v6398 = vpack.c.b16 %v5638, %v5634
    %v6399 = vpack.c.b16 %v5639, %v5635
    %v6400 = vpack.c.b16 %v5640, %v5636
    %v6401 = vpack.c.b16 %v5641, %v5637
    %v6402 = vpack.c.b16 %v5646, %v5642
    %v6403 = vpack.c.b16 %v5647, %v5643
    %v6404 = vpack.c.b16 %v5648, %v5644
    %v6405 = vpack.c.b16 %v5649, %v5645
    %v6406 = vpack.c.b16 %v5654, %v5650
    %v6407 = vpack.c.b16 %v5655, %v5651
    %v6408 = vpack.c.b16 %v5656, %v5652
    %v6409 = vpack.c.b16 %v5657, %v5653
    %v6410 = vpack.c.b16 %v5662, %v5658
    %v6411 = vpack.c.b16 %v5663, %v5659
    %v6412 = vpack.c.b16 %v5664, %v5660
    %v6413 = vpack.c.b16 %v5665, %v5661
    %v6414 = vpack.c.b16 %v5670, %v5666
    %v6415 = vpack.c.b16 %v5671, %v5667
    %v6416 = vpack.c.b16 %v5672, %v5668
    %v6417 = vpack.c.b16 %v5673, %v5669
    %v6418 = vpack.c.b16 %v5678, %v5674
    %v6419 = vpack.c.b16 %v5679, %v5675
    %v6420 = vpack.c.b16 %v5680, %v5676
    %v6421 = vpack.c.b16 %v5681, %v5677
    %v6422 = vpack.c.b16 %v5686, %v5682
    %v6423 = vpack.c.b16 %v5687, %v5683
    %v6424 = vpack.c.b16 %v5688, %v5684
    %v6425 = vpack.c.b16 %v5689, %v5685
    %v6426 = vpack.c.b16 %v5694, %v5690
    %v6427 = vpack.c.b16 %v5695, %v5691
    %v6428 = vpack.c.b16 %v5696, %v5692
    %v6429 = vpack.c.b16 %v5697, %v5693
    %v6430 = vpack.c.b16 %v5702, %v5698
    %v6431 = vpack.c.b16 %v5703, %v5699
    %v6432 = vpack.c.b16 %v5704, %v5700
    %v6433 = vpack.c.b16 %v5705, %v5701
    %v6434 = vpack.c.b16 %v5710, %v5706
    %v6435 = vpack.c.b16 %v5711, %v5707
    %v6436 = vpack.c.b16 %v5712, %v5708
    %v6437 = vpack.c.b16 %v5713, %v5709
    %v6438 = vpack.c.b16 %v5718, %v5714
    %v6439 = vpack.c.b16 %v5719, %v5715
    %v6440 = vpack.c.b16 %v5720, %v5716
    %v6441 = vpack.c.b16 %v5721, %v5717
    %v6442 = vpack.c.b16 %v5726, %v5722
    %v6443 = vpack.c.b16 %v5727, %v5723
    %v6444 = vpack.c.b16 %v5728, %v5724
    %v6445 = vpack.c.b16 %v5729, %v5725
    %v6446 = vpack.c.b16 %v5734, %v5730
    %v6447 = vpack.c.b16 %v5735, %v5731
    %v6448 = vpack.c.b16 %v5736, %v5732
    %v6449 = vpack.c.b16 %v5737, %v5733
    %v6450 = vpack.c.b16 %v5742, %v5738
    %v6451 = vpack.c.b16 %v5743, %v5739
    %v6452 = vpack.c.b16 %v5744, %v5740
    %v6453 = vpack.c.b16 %v5745, %v5741
    %v6454 = vpack.c.b16 %v5750, %v5746
    %v6455 = vpack.c.b16 %v5751, %v5747
    %v6456 = vpack.c.b16 %v5752, %v5748
    %v6457 = vpack.c.b16 %v5753, %v5749
    %v6458 = vpack.c.b16 %v5758, %v5754
    %v6459 = vpack.c.b16 %v5759, %v5755
    %v6460 = vpack.c.b16 %v5760, %v5756
    %v6461 = vpack.c.b16 %v5761, %v5757
    %v6462 = vpack.c.b16 %v5766, %v5762
    %v6463 = vpack.c.b16 %v5767, %v5763
    %v6464 = vpack.c.b16 %v5768, %v5764
    %v6465 = vpack.c.b16 %v5769, %v5765
    %v6466 = vpack.c.b16 %v5774, %v5770
    %v6467 = vpack.c.b16 %v5775, %v5771
    %v6468 = vpack.c.b16 %v5776, %v5772
    %v6469 = vpack.c.b16 %v5777, %v5773
    %v6470 = vpack.c.b16 %v5782, %v5778
    %v6471 = vpack.c.b16 %v5783, %v5779
    %v6472 = vpack.c.b16 %v5784, %v5780
    %v6473 = vpack.c.b16 %v5785, %v5781
    %v6474 = vpack.c.b16 %v5790, %v5786
    %v6475 = vpack.c.b16 %v5791, %v5787
    %v6476 = vpack.c.b16 %v5792, %v5788
    %v6477 = vpack.c.b16 %v5793, %v5789
    %v6478 = vpack.c.b16 %v5798, %v5794
    %v6479 = vpack.c.b16 %v5799, %v5795
    %v6480 = vpack.c.b16 %v5800, %v5796
    %v6481 = vpack.c.b16 %v5801, %v5797
    %v6482 = vpack.c.b16 %v5806, %v5802
    %v6483 = vpack.c.b16 %v5807, %v5803
    %v6484 = vpack.c.b16 %v5808, %v5804
    %v6485 = vpack.c.b16 %v5809, %v5805
    %v6486 = vpack.c.b16 %v5814, %v5810
    %v6487 = vpack.c.b16 %v5815, %v5811
    %v6488 = vpack.c.b16 %v5816, %v5812
    %v6489 = vpack.c.b16 %v5817, %v5813
    %v6490 = vpack.c.b16 %v5822, %v5818
    %v6491 = vpack.c.b16 %v5823, %v5819
    %v6492 = vpack.c.b16 %v5824, %v5820
    %v6493 = vpack.c.b16 %v5825, %v5821
    %v6494 = vpack.c.b16 %v5830, %v5826
    %v6495 = vpack.c.b16 %v5831, %v5827
    %v6496 = vpack.c.b16 %v5832, %v5828
    %v6497 = vpack.c.b16 %v5833, %v5829
    %v6498 = vpack.c.b16 %v5838, %v5834
    %v6499 = vpack.c.b16 %v5839, %v5835
    %v6500 = vpack.c.b16 %v5840, %v5836
    %v6501 = vpack.c.b16 %v5841, %v5837
    %v6502 = vpack.c.b16 %v5846, %v5842
    %v6503 = vpack.c.b16 %v5847, %v5843
    %v6504 = vpack.c.b16 %v5848, %v5844
    %v6505 = vpack.c.b16 %v5849, %v5845
    %v6506 = vpack.c.b16 %v5854, %v5850
    %v6507 = vpack.c.b16 %v5855, %v5851
    %v6508 = vpack.c.b16 %v5856, %v5852
    %v6509 = vpack.c.b16 %v5857, %v5853
    %v6510 = vpack.c.b16 %v5862, %v5858
    %v6511 = vpack.c.b16 %v5863, %v5859
    %v6512 = vpack.c.b16 %v5864, %v5860
    %v6513 = vpack.c.b16 %v5865, %v5861
    %v6514 = vpack.c.b16 %v5870, %v5866
    %v6515 = vpack.c.b16 %v5871, %v5867
    %v6516 = vpack.c.b16 %v5872, %v5868
    %v6517 = vpack.c.b16 %v5873, %v5869
    %v6518 = vpack.c.b16 %v5878, %v5874
    %v6519 = vpack.c.b16 %v5879, %v5875
    %v6520 = vpack.c.b16 %v5880, %v5876
    %v6521 = vpack.c.b16 %v5881, %v5877
    %v6522 = vpack.c.b16 %v5886, %v5882
    %v6523 = vpack.c.b16 %v5887, %v5883
    %v6524 = vpack.c.b16 %v5888, %v5884
    %v6525 = vpack.c.b16 %v5889, %v5885
    %v6526 = vpack.c.b16 %v5894, %v5890
    %v6527 = vpack.c.b16 %v5895, %v5891
    %v6528 = vpack.c.b16 %v5896, %v5892
    %v6529 = vpack.c.b16 %v5897, %v5893
    %v6530 = vpack.c.b16 %v5902, %v5898
    %v6531 = vpack.c.b16 %v5903, %v5899
    %v6532 = vpack.c.b16 %v5904, %v5900
    %v6533 = vpack.c.b16 %v5905, %v5901
    %v6534 = vpack.c.b16 %v5910, %v5906
    %v6535 = vpack.c.b16 %v5911, %v5907
    %v6536 = vpack.c.b16 %v5912, %v5908
    %v6537 = vpack.c.b16 %v5913, %v5909
    %v6538 = vpack.c.b16 %v5918, %v5914
    %v6539 = vpack.c.b16 %v5919, %v5915
    %v6540 = vpack.c.b16 %v5920, %v5916
    %v6541 = vpack.c.b16 %v5921, %v5917
    %v6542 = vpack.c.b16 %v5926, %v5922
    %v6543 = vpack.c.b16 %v5927, %v5923
    %v6544 = vpack.c.b16 %v5928, %v5924
    %v6545 = vpack.c.b16 %v5929, %v5925
    %v6546 = vpack.c.b16 %v5934, %v5930
    %v6547 = vpack.c.b16 %v5935, %v5931
    %v6548 = vpack.c.b16 %v5936, %v5932
    %v6549 = vpack.c.b16 %v5937, %v5933
    %v6550 = vpack.c.b16 %v5942, %v5938
    %v6551 = vpack.c.b16 %v5943, %v5939
    %v6552 = vpack.c.b16 %v5944, %v5940
    %v6553 = vpack.c.b16 %v5945, %v5941
    %v6554 = vpack.c.b16 %v5950, %v5946
    %v6555 = vpack.c.b16 %v5951, %v5947
    %v6556 = vpack.c.b16 %v5952, %v5948
    %v6557 = vpack.c.b16 %v5953, %v5949
    %v6558 = vpack.c.b16 %v5958, %v5954
    %v6559 = vpack.c.b16 %v5959, %v5955
    %v6560 = vpack.c.b16 %v5960, %v5956
    %v6561 = vpack.c.b16 %v5961, %v5957
    %v6562 = vpack.c.b16 %v5966, %v5962
    %v6563 = vpack.c.b16 %v5967, %v5963
    %v6564 = vpack.c.b16 %v5968, %v5964
    %v6565 = vpack.c.b16 %v5969, %v5965
    %v6566 = vpack.c.b16 %v5974, %v5970
    %v6567 = vpack.c.b16 %v5975, %v5971
    %v6568 = vpack.c.b16 %v5976, %v5972
    %v6569 = vpack.c.b16 %v5977, %v5973
    %v6570 = vpack.c.b16 %v5982, %v5978
    %v6571 = vpack.c.b16 %v5983, %v5979
    %v6572 = vpack.c.b16 %v5984, %v5980
    %v6573 = vpack.c.b16 %v5985, %v5981
    %v6574 = vpack.c.b16 %v5990, %v5986
    %v6575 = vpack.c.b16 %v5991, %v5987
    %v6576 = vpack.c.b16 %v5992, %v5988
    %v6577 = vpack.c.b16 %v5993, %v5989
    %v6578 = vpack.c.b16 %v5998, %v5994
    %v6579 = vpack.c.b16 %v5999, %v5995
    %v6580 = vpack.c.b16 %v6000, %v5996
    %v6581 = vpack.c.b16 %v6001, %v5997
    %v6582 = vpack.c.b16 %v6006, %v6002
    %v6583 = vpack.c.b16 %v6007, %v6003
    %v6584 = vpack.c.b16 %v6008, %v6004
    %v6585 = vpack.c.b16 %v6009, %v6005
    %v6586 = vpack.c.b16 %v6014, %v6010
    %v6587 = vpack.c.b16 %v6015, %v6011
    %v6588 = vpack.c.b16 %v6016, %v6012
    %v6589 = vpack.c.b16 %v6017, %v6013
    %v6590 = vpack.c.b16 %v6022, %v6018
    %v6591 = vpack.c.b16 %v6023, %v6019
    %v6592 = vpack.c.b16 %v6024, %v6020
    %v6593 = vpack.c.b16 %v6025, %v6021
    %v6594 = vpack.c.b16 %v6030, %v6026
    %v6595 = vpack.c.b16 %v6031, %v6027
    %v6596 = vpack.c.b16 %v6032, %v6028
    %v6597 = vpack.c.b16 %v6033, %v6029
    %v6598 = vpack.c.b16 %v6038, %v6034
    %v6599 = vpack.c.b16 %v6039, %v6035
    %v6600 = vpack.c.b16 %v6040, %v6036
    %v6601 = vpack.c.b16 %v6041, %v6037
    %v6602 = vpack.c.b16 %v6046, %v6042
    %v6603 = vpack.c.b16 %v6047, %v6043
    %v6604 = vpack.c.b16 %v6048, %v6044
    %v6605 = vpack.c.b16 %v6049, %v6045
    %v6606 = vpack.c.b16 %v6054, %v6050
    %v6607 = vpack.c.b16 %v6055, %v6051
    %v6608 = vpack.c.b16 %v6056, %v6052
    %v6609 = vpack.c.b16 %v6057, %v6053
    %v6610 = vpack.c.b16 %v6062, %v6058
    %v6611 = vpack.c.b16 %v6063, %v6059
    %v6612 = vpack.c.b16 %v6064, %v6060
    %v6613 = vpack.c.b16 %v6065, %v6061
    %v6614 = vpack.c.b16 %v6070, %v6066
    %v6615 = vpack.c.b16 %v6071, %v6067
    %v6616 = vpack.c.b16 %v6072, %v6068
    %v6617 = vpack.c.b16 %v6073, %v6069
    %v6618 = vpack.c.b16 %v6078, %v6074
    %v6619 = vpack.c.b16 %v6079, %v6075
    %v6620 = vpack.c.b16 %v6080, %v6076
    %v6621 = vpack.c.b16 %v6081, %v6077
    %v6622 = vpack.c.b16 %v6086, %v6082
    %v6623 = vpack.c.b16 %v6087, %v6083
    %v6624 = vpack.c.b16 %v6088, %v6084
    %v6625 = vpack.c.b16 %v6089, %v6085
    %v6626 = vpack.c.b16 %v6094, %v6090
    %v6627 = vpack.c.b16 %v6095, %v6091
    %v6628 = vpack.c.b16 %v6096, %v6092
    %v6629 = vpack.c.b16 %v6097, %v6093
    %v6630 = vpack.c.b16 %v6102, %v6098
    %v6631 = vpack.c.b16 %v6103, %v6099
    %v6632 = vpack.c.b16 %v6104, %v6100
    %v6633 = vpack.c.b16 %v6105, %v6101
    %v6634 = vpack.c.b16 %v6110, %v6106
    %v6635 = vpack.c.b16 %v6111, %v6107
    %v6636 = vpack.c.b16 %v6112, %v6108
    %v6637 = vpack.c.b16 %v6113, %v6109
    %v6638 = vpack.c.b16 %v6118, %v6114
    %v6639 = vpack.c.b16 %v6119, %v6115
    %v6640 = vpack.c.b16 %v6120, %v6116
    %v6641 = vpack.c.b16 %v6121, %v6117
    %v6642 = vpack.c.b16 %v6126, %v6122
    %v6643 = vpack.c.b16 %v6127, %v6123
    %v6644 = vpack.c.b16 %v6128, %v6124
    %v6645 = vpack.c.b16 %v6129, %v6125
    %v6646 = vpack.c.b16 %v6134, %v6130
    %v6647 = vpack.c.b16 %v6135, %v6131
    %v6648 = vpack.c.b16 %v6136, %v6132
    %v6649 = vpack.c.b16 %v6137, %v6133
    %v6650 = vpack.c.b16 %v6142, %v6138
    %v6651 = vpack.c.b16 %v6143, %v6139
    %v6652 = vpack.c.b16 %v6144, %v6140
    %v6653 = vpack.c.b16 %v6145, %v6141
    %v6654 = vpack.c.b16 %v6150, %v6146
    %v6655 = vpack.c.b16 %v6151, %v6147
    %v6656 = vpack.c.b16 %v6152, %v6148
    %v6657 = vpack.c.b16 %v6153, %v6149
    %v6658 = vpack.c.b16 %v6158, %v6154
    %v6659 = vpack.c.b16 %v6159, %v6155
    %v6660 = vpack.c.b16 %v6160, %v6156
    %v6661 = vpack.c.b16 %v6161, %v6157
    %v6662 = vpack.c.b16 %v6166, %v6162
    %v6663 = vpack.c.b16 %v6167, %v6163
    %v6664 = vpack.c.b16 %v6168, %v6164
    %v6665 = vpack.c.b16 %v6169, %v6165
    %v6666 = vpack.c.b16 %v6174, %v6170
    %v6667 = vpack.c.b16 %v6175, %v6171
    %v6668 = vpack.c.b16 %v6176, %v6172
    %v6669 = vpack.c.b16 %v6177, %v6173
    %v6670 = vpack.c.b16 %v6182, %v6178
    %v6671 = vpack.c.b16 %v6183, %v6179
    %v6672 = vpack.c.b16 %v6184, %v6180
    %v6673 = vpack.c.b16 %v6185, %v6181
    %v6674 = vpack.c.b16 %v6190, %v6186
    %v6675 = vpack.c.b16 %v6191, %v6187
    %v6676 = vpack.c.b16 %v6192, %v6188
    %v6677 = vpack.c.b16 %v6193, %v6189
    %v6678 = vpack.c.b16 %v6198, %v6194
    %v6679 = vpack.c.b16 %v6199, %v6195
    %v6680 = vpack.c.b16 %v6200, %v6196
    %v6681 = vpack.c.b16 %v6201, %v6197
    %v6682 = vpack.c.b16 %v6206, %v6202
    %v6683 = vpack.c.b16 %v6207, %v6203
    %v6684 = vpack.c.b16 %v6208, %v6204
    %v6685 = vpack.c.b16 %v6209, %v6205
    %v6686 = vpack.c.b16 %v6214, %v6210
    %v6687 = vpack.c.b16 %v6215, %v6211
    %v6688 = vpack.c.b16 %v6216, %v6212
    %v6689 = vpack.c.b16 %v6217, %v6213
    %v6690 = vpack.c.b16 %v6222, %v6218
    %v6691 = vpack.c.b16 %v6223, %v6219
    %v6692 = vpack.c.b16 %v6224, %v6220
    %v6693 = vpack.c.b16 %v6225, %v6221
    %v6694 = vpack.c.b16 %v6230, %v6226
    %v6695 = vpack.c.b16 %v6231, %v6227
    %v6696 = vpack.c.b16 %v6232, %v6228
    %v6697 = vpack.c.b16 %v6233, %v6229
    %v6698 = vpack.c.b16 %v6238, %v6234
    %v6699 = vpack.c.b16 %v6239, %v6235
    %v6700 = vpack.c.b16 %v6240, %v6236
    %v6701 = vpack.c.b16 %v6241, %v6237
    %v6702 = vpack.c.b16 %v6246, %v6242
    %v6703 = vpack.c.b16 %v6247, %v6243
    %v6704 = vpack.c.b16 %v6248, %v6244
    %v6705 = vpack.c.b16 %v6249, %v6245
    %v6706 = vpack.c.b16 %v6254, %v6250
    %v6707 = vpack.c.b16 %v6255, %v6251
    %v6708 = vpack.c.b16 %v6256, %v6252
    %v6709 = vpack.c.b16 %v6257, %v6253
    %v6710 = vpack.c.b16 %v6262, %v6258
    %v6711 = vpack.c.b16 %v6263, %v6259
    %v6712 = vpack.c.b16 %v6264, %v6260
    %v6713 = vpack.c.b16 %v6265, %v6261
    %v6714 = vpack.c.b16 %v6270, %v6266
    %v6715 = vpack.c.b16 %v6271, %v6267
    %v6716 = vpack.c.b16 %v6272, %v6268
    %v6717 = vpack.c.b16 %v6273, %v6269
    %v6718 = vpack.c.b16 %v6278, %v6274
    %v6719 = vpack.c.b16 %v6279, %v6275
    %v6720 = vpack.c.b16 %v6280, %v6276
    %v6721 = vpack.c.b16 %v6281, %v6277
    %v6722 = vpack.c.b16 %v6286, %v6282
    %v6723 = vpack.c.b16 %v6287, %v6283
    %v6724 = vpack.c.b16 %v6288, %v6284
    %v6725 = vpack.c.b16 %v6289, %v6285
    %v6726 = vpack.c.b16 %v6294, %v6290
    %v6727 = vpack.c.b16 %v6295, %v6291
    %v6728 = vpack.c.b16 %v6296, %v6292
    %v6729 = vpack.c.b16 %v6297, %v6293
    %v6730 = vpack.c.b16 %v6302, %v6298
    %v6731 = vpack.c.b16 %v6303, %v6299
    %v6732 = vpack.c.b16 %v6304, %v6300
    %v6733 = vpack.c.b16 %v6305, %v6301
    %v6734 = vpack.c.b16 %v6310, %v6306
    %v6735 = vpack.c.b16 %v6311, %v6307
    %v6736 = vpack.c.b16 %v6312, %v6308
    %v6737 = vpack.c.b16 %v6313, %v6309
    %v6738 = vpack.c.b16 %v6318, %v6314
    %v6739 = vpack.c.b16 %v6319, %v6315
    %v6740 = vpack.c.b16 %v6320, %v6316
    %v6741 = vpack.c.b16 %v6321, %v6317
    %v6742 = vpack.c.b16 %v6326, %v6322
    %v6743 = vpack.c.b16 %v6327, %v6323
    %v6744 = vpack.c.b16 %v6328, %v6324
    %v6745 = vpack.c.b16 %v6329, %v6325
    %v6746 = vpack.c.b16 %v6334, %v6330
    %v6747 = vpack.c.b16 %v6335, %v6331
    %v6748 = vpack.c.b16 %v6336, %v6332
    %v6749 = vpack.c.b16 %v6337, %v6333
    %v6750 = vpack.c.b16 %v6342, %v6338
    %v6751 = vpack.c.b16 %v6343, %v6339
    %v6752 = vpack.c.b16 %v6344, %v6340
    %v6753 = vpack.c.b16 %v6345, %v6341
    %v6754 = vpack.c.b16 %v6350, %v6346
    %v6755 = vpack.c.b16 %v6351, %v6347
    %v6756 = vpack.c.b16 %v6352, %v6348
    %v6757 = vpack.c.b16 %v6353, %v6349
    %v6758 = vpack.c.b16 %v6358, %v6354
    %v6759 = vpack.c.b16 %v6359, %v6355
    %v6760 = vpack.c.b16 %v6360, %v6356
    %v6761 = vpack.c.b16 %v6361, %v6357
    %v6762 = vpack.c.b16 %v6366, %v6362
    %v6763 = vpack.c.b16 %v6367, %v6363
    %v6764 = vpack.c.b16 %v6368, %v6364
    %v6765 = vpack.c.b16 %v6369, %v6365
    %v6766 = vpack.c.b16 %v6374, %v6370
    %v6767 = vpack.c.b16 %v6375, %v6371
    %v6768 = vpack.c.b16 %v6376, %v6372
    %v6769 = vpack.c.b16 %v6377, %v6373
    %v6770 = vpack.c.b16 %v6382, %v6378
    %v6771 = vpack.c.b16 %v6383, %v6379
    %v6772 = vpack.c.b16 %v6384, %v6380
    %v6773 = vpack.c.b16 %v6385, %v6381
    %v6774 = vpack.c.b16 %v6390, %v6386
    %v6775 = vpack.c.b16 %v6391, %v6387
    %v6776 = vpack.c.b16 %v6392, %v6388
    %v6777 = vpack.c.b16 %v6393, %v6389
    %7162 = vmatprep.subr.bf16.mxu0 %v6395
    %7163 = vmatpush1.bf16.msra.mxu0 %v6394
    %7164 = vmatprep.subr.bf16.mxu0 %v6399
    %7165 = vmatpush1.bf16.msra.mxu0 %v6398
    %7166 = vmatprep.subr.bf16.mxu0 %v6403
    %7167 = vmatpush1.bf16.msra.mxu0 %v6402
    %7168 = vmatprep.subr.bf16.mxu0 %v6407
    %7169 = vmatpush1.bf16.msra.mxu0 %v6406
    %7170 = vmatprep.subr.bf16.mxu0 %v6411
    %7171 = vmatpush1.bf16.msra.mxu0 %v6410
    %7172 = vmatprep.subr.bf16.mxu0 %v6415
    %7173 = vmatpush1.bf16.msra.mxu0 %v6414
    %7174 = vmatprep.subr.bf16.mxu0 %v6419
    %7175 = vmatpush1.bf16.msra.mxu0 %v6418
    %7176 = vmatprep.subr.bf16.mxu0 %v6423
    %7177 = vmatpush1.bf16.msra.mxu0 %v6422
    %7178 = vmatprep.subr.bf16.mxu0 %v6427
    %7179 = vmatpush1.bf16.msra.mxu0 %v6426
    %7180 = vmatprep.subr.bf16.mxu0 %v6431
    %7181 = vmatpush1.bf16.msra.mxu0 %v6430
    %7182 = vmatprep.subr.bf16.mxu0 %v6435
    %7183 = vmatpush1.bf16.msra.mxu0 %v6434
    %7184 = vmatprep.subr.bf16.mxu0 %v6439
    %7185 = vmatpush1.bf16.msra.mxu0 %v6438
    %7186 = vmatprep.subr.bf16.mxu0 %v6443
    %7187 = vmatpush1.bf16.msra.mxu0 %v6442
    %7188 = vmatprep.subr.bf16.mxu0 %v6447
    %7189 = vmatpush1.bf16.msra.mxu0 %v6446
    %7190 = vmatprep.subr.bf16.mxu0 %v6451
    %7191 = vmatpush1.bf16.msra.mxu0 %v6450
    %7192 = vmatprep.subr.bf16.mxu0 %v6455
    %7193 = vmatpush1.bf16.msra.mxu0 %v6454
    %7194 = vmatprep.mubr.bf16.mxu0 %v4825
    %7195 = vmatmul.mubr.bf16.gmra.mrb[0].mxu0 %v4824
    %v7196 = vpop.f32.mrb[0].mxu0
    %v7197 = vadd.f32 %v5225, %v7196
    %v7198 = vpop.f32.mrb[0].mxu0
    %v7199 = vadd.f32 %v5229, %v7198
    %v7200 = vpop.f32.mrb[0].mxu0
    %v7201 = vpop.f32.mrb[0].mxu0
    %7202 = vdwg.mxu0
    %7203 = vmatprep.subr.bf16.mxu0 %v6459
    %7204 = vmatpush1.bf16.msra.mxu0 %v6458
    %7205 = vmatprep.subr.bf16.mxu0 %v6463
    %7206 = vmatpush1.bf16.msra.mxu0 %v6462
    %7207 = vmatprep.subr.bf16.mxu0 %v6467
    %7208 = vmatpush1.bf16.msra.mxu0 %v6466
    %7209 = vmatprep.subr.bf16.mxu0 %v6471
    %7210 = vmatpush1.bf16.msra.mxu0 %v6470
    %7211 = vmatprep.subr.bf16.mxu0 %v6475
    %7212 = vmatpush1.bf16.msra.mxu0 %v6474
    %7213 = vmatprep.subr.bf16.mxu0 %v6479
    %7214 = vmatpush1.bf16.msra.mxu0 %v6478
    %7215 = vmatprep.subr.bf16.mxu0 %v6483
    %7216 = vmatpush1.bf16.msra.mxu0 %v6482
    %7217 = vmatprep.subr.bf16.mxu0 %v6487
    %7218 = vmatpush1.bf16.msra.mxu0 %v6486
    %7219 = vmatprep.subr.bf16.mxu0 %v6491
    %7220 = vmatpush1.bf16.msra.mxu0 %v6490
    %7221 = vmatprep.subr.bf16.mxu0 %v6495
    %7222 = vmatpush1.bf16.msra.mxu0 %v6494
    %7223 = vmatprep.subr.bf16.mxu0 %v6499
    %7224 = vmatpush1.bf16.msra.mxu0 %v6498
    %7225 = vmatprep.subr.bf16.mxu0 %v6503
    %7226 = vmatpush1.bf16.msra.mxu0 %v6502
    %7227 = vmatprep.subr.bf16.mxu0 %v6507
    %7228 = vmatpush1.bf16.msra.mxu0 %v6506
    %7229 = vmatprep.subr.bf16.mxu0 %v6511
    %7230 = vmatpush1.bf16.msra.mxu0 %v6510
    %7231 = vmatprep.subr.bf16.mxu0 %v6515
    %7232 = vmatpush1.bf16.msra.mxu0 %v6514
    %7233 = vmatprep.subr.bf16.mxu0 %v6519
    %7234 = vmatpush1.bf16.msra.mxu0 %v6518
    %7235 = vmatprep.mubr.bf16.mxu0 %v4827
    %7236 = vmatmul.mubr.bf16.gmra.mrb[0].mxu0 %v4826
    %v7237 = vpop.f32.mrb[0].mxu0
    %v7238 = vadd.f32 %v7197, %v7237
    %v7239 = vpop.f32.mrb[0].mxu0
    %v7240 = vadd.f32 %v7199, %v7239
    %v7241 = vpop.f32.mrb[0].mxu0
    %v7242 = vpop.f32.mrb[0].mxu0
    %7243 = vdwg.mxu0
    %7244 = vmatprep.subr.bf16.mxu0 %v6523
    %7245 = vmatpush1.bf16.msra.mxu0 %v6522
    %7246 = vmatprep.subr.bf16.mxu0 %v6527
    %7247 = vmatpush1.bf16.msra.mxu0 %v6526
    %7248 = vmatprep.subr.bf16.mxu0 %v6531
    %7249 = vmatpush1.bf16.msra.mxu0 %v6530
    %7250 = vmatprep.subr.bf16.mxu0 %v6535
    %7251 = vmatpush1.bf16.msra.mxu0 %v6534
    %7252 = vmatprep.subr.bf16.mxu0 %v6539
    %7253 = vmatpush1.bf16.msra.mxu0 %v6538
    %7254 = vmatprep.subr.bf16.mxu0 %v6543
    %7255 = vmatpush1.bf16.msra.mxu0 %v6542
    %7256 = vmatprep.subr.bf16.mxu0 %v6547
    %7257 = vmatpush1.bf16.msra.mxu0 %v6546
    %7258 = vmatprep.subr.bf16.mxu0 %v6551
    %7259 = vmatpush1.bf16.msra.mxu0 %v6550
    %7260 = vmatprep.subr.bf16.mxu0 %v6555
    %7261 = vmatpush1.bf16.msra.mxu0 %v6554
    %7262 = vmatprep.subr.bf16.mxu0 %v6559
    %7263 = vmatpush1.bf16.msra.mxu0 %v6558
    %7264 = vmatprep.subr.bf16.mxu0 %v6563
    %7265 = vmatpush1.bf16.msra.mxu0 %v6562
    %7266 = vmatprep.subr.bf16.mxu0 %v6567
    %7267 = vmatpush1.bf16.msra.mxu0 %v6566
    %7268 = vmatprep.subr.bf16.mxu0 %v6571
    %7269 = vmatpush1.bf16.msra.mxu0 %v6570
    %7270 = vmatprep.subr.bf16.mxu0 %v6575
    %7271 = vmatpush1.bf16.msra.mxu0 %v6574
    %7272 = vmatprep.subr.bf16.mxu0 %v6579
    %7273 = vmatpush1.bf16.msra.mxu0 %v6578
    %7274 = vmatprep.subr.bf16.mxu0 %v6583
    %7275 = vmatpush1.bf16.msra.mxu0 %v6582
    %7276 = vmatprep.mubr.bf16.mxu0 %v4829
    %7277 = vmatmul.mubr.bf16.gmra.mrb[0].mxu0 %v4828
    %v7278 = vpop.f32.mrb[0].mxu0
    %v7279 = vadd.f32 %v7238, %v7278
    %v7280 = vpop.f32.mrb[0].mxu0
    %v7281 = vadd.f32 %v7240, %v7280
    %v7282 = vpop.f32.mrb[0].mxu0
    %v7283 = vpop.f32.mrb[0].mxu0
    %7284 = vdwg.mxu0
    %7285 = vmatprep.subr.bf16.mxu0 %v6587
    %7286 = vmatpush1.bf16.msra.mxu0 %v6586
    %7287 = vmatprep.subr.bf16.mxu0 %v6591
    %7288 = vmatpush1.bf16.msra.mxu0 %v6590
    %7289 = vmatprep.subr.bf16.mxu0 %v6595
    %7290 = vmatpush1.bf16.msra.mxu0 %v6594
    %7291 = vmatprep.subr.bf16.mxu0 %v6599
    %7292 = vmatpush1.bf16.msra.mxu0 %v6598
    %7293 = vmatprep.subr.bf16.mxu0 %v6603
    %7294 = vmatpush1.bf16.msra.mxu0 %v6602
    %7295 = vmatprep.subr.bf16.mxu0 %v6607
    %7296 = vmatpush1.bf16.msra.mxu0 %v6606
    %7297 = vmatprep.subr.bf16.mxu0 %v6611
    %7298 = vmatpush1.bf16.msra.mxu0 %v6610
    %7299 = vmatprep.subr.bf16.mxu0 %v6615
    %7300 = vmatpush1.bf16.msra.mxu0 %v6614
    %7301 = vmatprep.subr.bf16.mxu0 %v6619
    %7302 = vmatpush1.bf16.msra.mxu0 %v6618
    %7303 = vmatprep.subr.bf16.mxu0 %v6623
    %7304 = vmatpush1.bf16.msra.mxu0 %v6622
    %7305 = vmatprep.subr.bf16.mxu0 %v6627
    %7306 = vmatpush1.bf16.msra.mxu0 %v6626
    %7307 = vmatprep.subr.bf16.mxu0 %v6631
    %7308 = vmatpush1.bf16.msra.mxu0 %v6630
    %7309 = vmatprep.subr.bf16.mxu0 %v6635
    %7310 = vmatpush1.bf16.msra.mxu0 %v6634
    %7311 = vmatprep.subr.bf16.mxu0 %v6639
    %7312 = vmatpush1.bf16.msra.mxu0 %v6638
    %7313 = vmatprep.subr.bf16.mxu0 %v6643
    %7314 = vmatpush1.bf16.msra.mxu0 %v6642
    %7315 = vmatprep.subr.bf16.mxu0 %v6647
    %7316 = vmatpush1.bf16.msra.mxu0 %v6646
    %7317 = vmatprep.mubr.bf16.mxu0 %v4831
    %7318 = vmatmul.mubr.bf16.gmra.mrb[0].mxu0 %v4830
    %v7319 = vpop.f32.mrb[0].mxu0
    %v7320 = vadd.f32 %v7279, %v7319
    %v7321 = vpop.f32.mrb[0].mxu0
    %v7322 = vadd.f32 %v7281, %v7321
    %v7323 = vpop.f32.mrb[0].mxu0
    %v7324 = vpop.f32.mrb[0].mxu0
    %7325 = vdwg.mxu0
    %7326 = vmatprep.subr.bf16.mxu0 %v6651
    %7327 = vmatpush1.bf16.msra.mxu0 %v6650
    %7328 = vmatprep.subr.bf16.mxu0 %v6655
    %7329 = vmatpush1.bf16.msra.mxu0 %v6654
    %7330 = vmatprep.subr.bf16.mxu0 %v6659
    %7331 = vmatpush1.bf16.msra.mxu0 %v6658
    %7332 = vmatprep.subr.bf16.mxu0 %v6663
    %7333 = vmatpush1.bf16.msra.mxu0 %v6662
    %7334 = vmatprep.subr.bf16.mxu0 %v6667
    %7335 = vmatpush1.bf16.msra.mxu0 %v6666
    %7336 = vmatprep.subr.bf16.mxu0 %v6671
    %7337 = vmatpush1.bf16.msra.mxu0 %v6670
    %7338 = vmatprep.subr.bf16.mxu0 %v6675
    %7339 = vmatpush1.bf16.msra.mxu0 %v6674
    %7340 = vmatprep.subr.bf16.mxu0 %v6679
    %7341 = vmatpush1.bf16.msra.mxu0 %v6678
    %7342 = vmatprep.subr.bf16.mxu0 %v6683
    %7343 = vmatpush1.bf16.msra.mxu0 %v6682
    %7344 = vmatprep.subr.bf16.mxu0 %v6687
    %7345 = vmatpush1.bf16.msra.mxu0 %v6686
    %7346 = vmatprep.subr.bf16.mxu0 %v6691
    %7347 = vmatpush1.bf16.msra.mxu0 %v6690
    %7348 = vmatprep.subr.bf16.mxu0 %v6695
    %7349 = vmatpush1.bf16.msra.mxu0 %v6694
    %7350 = vmatprep.subr.bf16.mxu0 %v6699
    %7351 = vmatpush1.bf16.msra.mxu0 %v6698
    %7352 = vmatprep.subr.bf16.mxu0 %v6703
    %7353 = vmatpush1.bf16.msra.mxu0 %v6702
    %7354 = vmatprep.subr.bf16.mxu0 %v6707
    %7355 = vmatpush1.bf16.msra.mxu0 %v6706
    %7356 = vmatprep.subr.bf16.mxu0 %v6711
    %7357 = vmatpush1.bf16.msra.mxu0 %v6710
    %7358 = vmatprep.mubr.bf16.mxu0 %v4833
    %7359 = vmatmul.mubr.bf16.gmra.mrb[0].mxu0 %v4832
    %v7360 = vpop.f32.mrb[0].mxu0
    %v7361 = vadd.f32 %v7320, %v7360
    %v7362 = vpop.f32.mrb[0].mxu0
    %v7363 = vadd.f32 %v7322, %v7362
    %v7364 = vpop.f32.mrb[0].mxu0
    %v7365 = vpop.f32.mrb[0].mxu0
    %7366 = vdwg.mxu0
    %7367 = vmatprep.subr.bf16.mxu0 %v6715
    %7368 = vmatpush1.bf16.msra.mxu0 %v6714
    %7369 = vmatprep.subr.bf16.mxu0 %v6719
    %7370 = vmatpush1.bf16.msra.mxu0 %v6718
    %7371 = vmatprep.subr.bf16.mxu0 %v6723
    %7372 = vmatpush1.bf16.msra.mxu0 %v6722
    %7373 = vmatprep.subr.bf16.mxu0 %v6727
    %7374 = vmatpush1.bf16.msra.mxu0 %v6726
    %7375 = vmatprep.subr.bf16.mxu0 %v6731
    %7376 = vmatpush1.bf16.msra.mxu0 %v6730
    %7377 = vmatprep.subr.bf16.mxu0 %v6735
    %7378 = vmatpush1.bf16.msra.mxu0 %v6734
    %7379 = vmatprep.subr.bf16.mxu0 %v6739
    %7380 = vmatpush1.bf16.msra.mxu0 %v6738
    %7381 = vmatprep.subr.bf16.mxu0 %v6743
    %7382 = vmatpush1.bf16.msra.mxu0 %v6742
    %7383 = vmatprep.subr.bf16.mxu0 %v6747
    %7384 = vmatpush1.bf16.msra.mxu0 %v6746
    %7385 = vmatprep.subr.bf16.mxu0 %v6751
    %7386 = vmatpush1.bf16.msra.mxu0 %v6750
    %7387 = vmatprep.subr.bf16.mxu0 %v6755
    %7388 = vmatpush1.bf16.msra.mxu0 %v6754
    %7389 = vmatprep.subr.bf16.mxu0 %v6759
    %7390 = vmatpush1.bf16.msra.mxu0 %v6758
    %7391 = vmatprep.subr.bf16.mxu0 %v6763
    %7392 = vmatpush1.bf16.msra.mxu0 %v6762
    %7393 = vmatprep.subr.bf16.mxu0 %v6767
    %7394 = vmatpush1.bf16.msra.mxu0 %v6766
    %7395 = vmatprep.subr.bf16.mxu0 %v6771
    %7396 = vmatpush1.bf16.msra.mxu0 %v6770
    %7397 = vmatprep.subr.bf16.mxu0 %v6775
    %7398 = vmatpush1.bf16.msra.mxu0 %v6774
    %7399 = vmatprep.mubr.bf16.mxu0 %v4835
    %7400 = vmatmul.mubr.bf16.gmra.mrb[0].mxu0 %v4834
    %v7401 = vpop.f32.mrb[0].mxu0
    %v7402 = vadd.f32 %v7361, %v7401
    %v7403 = vpop.f32.mrb[0].mxu0
    %v7404 = vadd.f32 %v7363, %v7403
    %v7405 = vpop.f32.mrb[0].mxu0
    %v7406 = vpop.f32.mrb[0].mxu0
    %7407 = vdwg.mxu0
    %7408 = vmatprep.subr.bf16.mxu0 %v6397
    %7409 = vmatpush1.bf16.msra.mxu0 %v6396
    %7410 = vmatprep.subr.bf16.mxu0 %v6401
    %7411 = vmatpush1.bf16.msra.mxu0 %v6400
    %7412 = vmatprep.subr.bf16.mxu0 %v6405
    %7413 = vmatpush1.bf16.msra.mxu0 %v6404
    %7414 = vmatprep.subr.bf16.mxu0 %v6409
    %7415 = vmatpush1.bf16.msra.mxu0 %v6408
    %7416 = vmatprep.subr.bf16.mxu0 %v6413
    %7417 = vmatpush1.bf16.msra.mxu0 %v6412
    %7418 = vmatprep.subr.bf16.mxu0 %v6417
    %7419 = vmatpush1.bf16.msra.mxu0 %v6416
    %7420 = vmatprep.subr.bf16.mxu0 %v6421
    %7421 = vmatpush1.bf16.msra.mxu0 %v6420
    %7422 = vmatprep.subr.bf16.mxu0 %v6425
    %7423 = vmatpush1.bf16.msra.mxu0 %v6424
    %7424 = vmatprep.subr.bf16.mxu0 %v6429
    %7425 = vmatpush1.bf16.msra.mxu0 %v6428
    %7426 = vmatprep.subr.bf16.mxu0 %v6433
    %7427 = vmatpush1.bf16.msra.mxu0 %v6432
    %7428 = vmatprep.subr.bf16.mxu0 %v6437
    %7429 = vmatpush1.bf16.msra.mxu0 %v6436
    %7430 = vmatprep.subr.bf16.mxu0 %v6441
    %7431 = vmatpush1.bf16.msra.mxu0 %v6440
    %7432 = vmatprep.subr.bf16.mxu0 %v6445
    %7433 = vmatpush1.bf16.msra.mxu0 %v6444
    %7434 = vmatprep.subr.bf16.mxu0 %v6449
    %7435 = vmatpush1.bf16.msra.mxu0 %v6448
    %7436 = vmatprep.subr.bf16.mxu0 %v6453
    %7437 = vmatpush1.bf16.msra.mxu0 %v6452
    %7438 = vmatprep.subr.bf16.mxu0 %v6457
    %7439 = vmatpush1.bf16.msra.mxu0 %v6456
    %7440 = vmatprep.mubr.bf16.mxu0 %v4825
    %7441 = vmatmul.mubr.bf16.gmra.mrb[0].mxu0 %v4824
    %v7442 = vpop.f32.mrb[0].mxu0
    %v7443 = vadd.f32 %v5233, %v7442
    %v7444 = vpop.f32.mrb[0].mxu0
    %v7445 = vadd.f32 %v5237, %v7444
    %v7446 = vpop.f32.mrb[0].mxu0
    %v7447 = vpop.f32.mrb[0].mxu0
    %7448 = vdwg.mxu0
    %7449 = vmatprep.subr.bf16.mxu0 %v6461
    %7450 = vmatpush1.bf16.msra.mxu0 %v6460
    %7451 = vmatprep.subr.bf16.mxu0 %v6465
    %7452 = vmatpush1.bf16.msra.mxu0 %v6464
    %7453 = vmatprep.subr.bf16.mxu0 %v6469
    %7454 = vmatpush1.bf16.msra.mxu0 %v6468
    %7455 = vmatprep.subr.bf16.mxu0 %v6473
    %7456 = vmatpush1.bf16.msra.mxu0 %v6472
    %7457 = vmatprep.subr.bf16.mxu0 %v6477
    %7458 = vmatpush1.bf16.msra.mxu0 %v6476
    %7459 = vmatprep.subr.bf16.mxu0 %v6481
    %7460 = vmatpush1.bf16.msra.mxu0 %v6480
    %7461 = vmatprep.subr.bf16.mxu0 %v6485
    %7462 = vmatpush1.bf16.msra.mxu0 %v6484
    %7463 = vmatprep.subr.bf16.mxu0 %v6489
    %7464 = vmatpush1.bf16.msra.mxu0 %v6488
    %7465 = vmatprep.subr.bf16.mxu0 %v6493
    %7466 = vmatpush1.bf16.msra.mxu0 %v6492
    %7467 = vmatprep.subr.bf16.mxu0 %v6497
    %7468 = vmatpush1.bf16.msra.mxu0 %v6496
    %7469 = vmatprep.subr.bf16.mxu0 %v6501
    %7470 = vmatpush1.bf16.msra.mxu0 %v6500
    %7471 = vmatprep.subr.bf16.mxu0 %v6505
    %7472 = vmatpush1.bf16.msra.mxu0 %v6504
    %7473 = vmatprep.subr.bf16.mxu0 %v6509
    %7474 = vmatpush1.bf16.msra.mxu0 %v6508
    %7475 = vmatprep.subr.bf16.mxu0 %v6513
    %7476 = vmatpush1.bf16.msra.mxu0 %v6512
    %7477 = vmatprep.subr.bf16.mxu0 %v6517
    %7478 = vmatpush1.bf16.msra.mxu0 %v6516
    %7479 = vmatprep.subr.bf16.mxu0 %v6521
    %7480 = vmatpush1.bf16.msra.mxu0 %v6520
    %7481 = vmatprep.mubr.bf16.mxu0 %v4827
    %7482 = vmatmul.mubr.bf16.gmra.mrb[0].mxu0 %v4826
    %v7483 = vpop.f32.mrb[0].mxu0
    %v7484 = vadd.f32 %v7443, %v7483
    %v7485 = vpop.f32.mrb[0].mxu0
    %v7486 = vadd.f32 %v7445, %v7485
    %v7487 = vpop.f32.mrb[0].mxu0
    %v7488 = vpop.f32.mrb[0].mxu0
    %7489 = vdwg.mxu0
    %7490 = vmatprep.subr.bf16.mxu0 %v6525
    %7491 = vmatpush1.bf16.msra.mxu0 %v6524
    %7492 = vmatprep.subr.bf16.mxu0 %v6529
    %7493 = vmatpush1.bf16.msra.mxu0 %v6528
    %7494 = vmatprep.subr.bf16.mxu0 %v6533
    %7495 = vmatpush1.bf16.msra.mxu0 %v6532
    %7496 = vmatprep.subr.bf16.mxu0 %v6537
    %7497 = vmatpush1.bf16.msra.mxu0 %v6536
    %7498 = vmatprep.subr.bf16.mxu0 %v6541
    %7499 = vmatpush1.bf16.msra.mxu0 %v6540
    %7500 = vmatprep.subr.bf16.mxu0 %v6545
    %7501 = vmatpush1.bf16.msra.mxu0 %v6544
    %7502 = vmatprep.subr.bf16.mxu0 %v6549
    %7503 = vmatpush1.bf16.msra.mxu0 %v6548
    %7504 = vmatprep.subr.bf16.mxu0 %v6553
    %7505 = vmatpush1.bf16.msra.mxu0 %v6552
    %7506 = vmatprep.subr.bf16.mxu0 %v6557
    %7507 = vmatpush1.bf16.msra.mxu0 %v6556
    %7508 = vmatprep.subr.bf16.mxu0 %v6561
    %7509 = vmatpush1.bf16.msra.mxu0 %v6560
    %7510 = vmatprep.subr.bf16.mxu0 %v6565
    %7511 = vmatpush1.bf16.msra.mxu0 %v6564
    %7512 = vmatprep.subr.bf16.mxu0 %v6569
    %7513 = vmatpush1.bf16.msra.mxu0 %v6568
    %7514 = vmatprep.subr.bf16.mxu0 %v6573
    %7515 = vmatpush1.bf16.msra.mxu0 %v6572
    %7516 = vmatprep.subr.bf16.mxu0 %v6577
    %7517 = vmatpush1.bf16.msra.mxu0 %v6576
    %7518 = vmatprep.subr.bf16.mxu0 %v6581
    %7519 = vmatpush1.bf16.msra.mxu0 %v6580
    %7520 = vmatprep.subr.bf16.mxu0 %v6585
    %7521 = vmatpush1.bf16.msra.mxu0 %v6584
    %7522 = vmatprep.mubr.bf16.mxu0 %v4829
    %7523 = vmatmul.mubr.bf16.gmra.mrb[0].mxu0 %v4828
    %v7524 = vpop.f32.mrb[0].mxu0
    %v7525 = vadd.f32 %v7484, %v7524
    %v7526 = vpop.f32.mrb[0].mxu0
    %v7527 = vadd.f32 %v7486, %v7526
    %v7528 = vpop.f32.mrb[0].mxu0
    %v7529 = vpop.f32.mrb[0].mxu0
    %7530 = vdwg.mxu0
    %7531 = vmatprep.subr.bf16.mxu0 %v6589
    %7532 = vmatpush1.bf16.msra.mxu0 %v6588
    %7533 = vmatprep.subr.bf16.mxu0 %v6593
    %7534 = vmatpush1.bf16.msra.mxu0 %v6592
    %7535 = vmatprep.subr.bf16.mxu0 %v6597
    %7536 = vmatpush1.bf16.msra.mxu0 %v6596
    %7537 = vmatprep.subr.bf16.mxu0 %v6601
    %7538 = vmatpush1.bf16.msra.mxu0 %v6600
    %7539 = vmatprep.subr.bf16.mxu0 %v6605
    %7540 = vmatpush1.bf16.msra.mxu0 %v6604
    %7541 = vmatprep.subr.bf16.mxu0 %v6609
    %7542 = vmatpush1.bf16.msra.mxu0 %v6608
    %7543 = vmatprep.subr.bf16.mxu0 %v6613
    %7544 = vmatpush1.bf16.msra.mxu0 %v6612
    %7545 = vmatprep.subr.bf16.mxu0 %v6617
    %7546 = vmatpush1.bf16.msra.mxu0 %v6616
    %7547 = vmatprep.subr.bf16.mxu0 %v6621
    %7548 = vmatpush1.bf16.msra.mxu0 %v6620
    %7549 = vmatprep.subr.bf16.mxu0 %v6625
    %7550 = vmatpush1.bf16.msra.mxu0 %v6624
    %7551 = vmatprep.subr.bf16.mxu0 %v6629
    %7552 = vmatpush1.bf16.msra.mxu0 %v6628
    %7553 = vmatprep.subr.bf16.mxu0 %v6633
    %7554 = vmatpush1.bf16.msra.mxu0 %v6632
    %7555 = vmatprep.subr.bf16.mxu0 %v6637
    %7556 = vmatpush1.bf16.msra.mxu0 %v6636
    %7557 = vmatprep.subr.bf16.mxu0 %v6641
    %7558 = vmatpush1.bf16.msra.mxu0 %v6640
    %7559 = vmatprep.subr.bf16.mxu0 %v6645
    %7560 = vmatpush1.bf16.msra.mxu0 %v6644
    %7561 = vmatprep.subr.bf16.mxu0 %v6649
    %7562 = vmatpush1.bf16.msra.mxu0 %v6648
    %7563 = vmatprep.mubr.bf16.mxu0 %v4831
    %7564 = vmatmul.mubr.bf16.gmra.mrb[0].mxu0 %v4830
    %v7565 = vpop.f32.mrb[0].mxu0
    %v7566 = vadd.f32 %v7525, %v7565
    %v7567 = vpop.f32.mrb[0].mxu0
    %v7568 = vadd.f32 %v7527, %v7567
    %v7569 = vpop.f32.mrb[0].mxu0
    %v7570 = vpop.f32.mrb[0].mxu0
    %7571 = vdwg.mxu0
    %7572 = vmatprep.subr.bf16.mxu0 %v6653
    %7573 = vmatpush1.bf16.msra.mxu0 %v6652
    %7574 = vmatprep.subr.bf16.mxu0 %v6657
    %7575 = vmatpush1.bf16.msra.mxu0 %v6656
    %7576 = vmatprep.subr.bf16.mxu0 %v6661
    %7577 = vmatpush1.bf16.msra.mxu0 %v6660
    %7578 = vmatprep.subr.bf16.mxu0 %v6665
    %7579 = vmatpush1.bf16.msra.mxu0 %v6664
    %7580 = vmatprep.subr.bf16.mxu0 %v6669
    %7581 = vmatpush1.bf16.msra.mxu0 %v6668
    %7582 = vmatprep.subr.bf16.mxu0 %v6673
    %7583 = vmatpush1.bf16.msra.mxu0 %v6672
    %7584 = vmatprep.subr.bf16.mxu0 %v6677
    %7585 = vmatpush1.bf16.msra.mxu0 %v6676
    %7586 = vmatprep.subr.bf16.mxu0 %v6681
    %7587 = vmatpush1.bf16.msra.mxu0 %v6680
    %7588 = vmatprep.subr.bf16.mxu0 %v6685
    %7589 = vmatpush1.bf16.msra.mxu0 %v6684
    %7590 = vmatprep.subr.bf16.mxu0 %v6689
    %7591 = vmatpush1.bf16.msra.mxu0 %v6688
    %7592 = vmatprep.subr.bf16.mxu0 %v6693
    %7593 = vmatpush1.bf16.msra.mxu0 %v6692
    %7594 = vmatprep.subr.bf16.mxu0 %v6697
    %7595 = vmatpush1.bf16.msra.mxu0 %v6696
    %7596 = vmatprep.subr.bf16.mxu0 %v6701
    %7597 = vmatpush1.bf16.msra.mxu0 %v6700
    %7598 = vmatprep.subr.bf16.mxu0 %v6705
    %7599 = vmatpush1.bf16.msra.mxu0 %v6704
    %7600 = vmatprep.subr.bf16.mxu0 %v6709
    %7601 = vmatpush1.bf16.msra.mxu0 %v6708
    %7602 = vmatprep.subr.bf16.mxu0 %v6713
    %7603 = vmatpush1.bf16.msra.mxu0 %v6712
    %7604 = vmatprep.mubr.bf16.mxu0 %v4833
    %7605 = vmatmul.mubr.bf16.gmra.mrb[0].mxu0 %v4832
    %v7606 = vpop.f32.mrb[0].mxu0
    %v7607 = vadd.f32 %v7566, %v7606
    %v7608 = vpop.f32.mrb[0].mxu0
    %v7609 = vadd.f32 %v7568, %v7608
    %v7610 = vpop.f32.mrb[0].mxu0
    %v7611 = vpop.f32.mrb[0].mxu0
    %7612 = vdwg.mxu0
    %7613 = vmatprep.subr.bf16.mxu0 %v6717
    %7614 = vmatpush1.bf16.msra.mxu0 %v6716
    %7615 = vmatprep.subr.bf16.mxu0 %v6721
    %7616 = vmatpush1.bf16.msra.mxu0 %v6720
    %7617 = vmatprep.subr.bf16.mxu0 %v6725
    %7618 = vmatpush1.bf16.msra.mxu0 %v6724
    %7619 = vmatprep.subr.bf16.mxu0 %v6729
    %7620 = vmatpush1.bf16.msra.mxu0 %v6728
    %7621 = vmatprep.subr.bf16.mxu0 %v6733
    %7622 = vmatpush1.bf16.msra.mxu0 %v6732
    %7623 = vmatprep.subr.bf16.mxu0 %v6737
    %7624 = vmatpush1.bf16.msra.mxu0 %v6736
    %7625 = vmatprep.subr.bf16.mxu0 %v6741
    %7626 = vmatpush1.bf16.msra.mxu0 %v6740
    %7627 = vmatprep.subr.bf16.mxu0 %v6745
    %7628 = vmatpush1.bf16.msra.mxu0 %v6744
    %7629 = vmatprep.subr.bf16.mxu0 %v6749
    %7630 = vmatpush1.bf16.msra.mxu0 %v6748
    %7631 = vmatprep.subr.bf16.mxu0 %v6753
    %7632 = vmatpush1.bf16.msra.mxu0 %v6752
    %7633 = vmatprep.subr.bf16.mxu0 %v6757
    %7634 = vmatpush1.bf16.msra.mxu0 %v6756
    %7635 = vmatprep.subr.bf16.mxu0 %v6761
    %7636 = vmatpush1.bf16.msra.mxu0 %v6760
    %7637 = vmatprep.subr.bf16.mxu0 %v6765
    %7638 = vmatpush1.bf16.msra.mxu0 %v6764
    %7639 = vmatprep.subr.bf16.mxu0 %v6769
    %7640 = vmatpush1.bf16.msra.mxu0 %v6768
    %7641 = vmatprep.subr.bf16.mxu0 %v6773
    %7642 = vmatpush1.bf16.msra.mxu0 %v6772
    %7643 = vmatprep.subr.bf16.mxu0 %v6777
    %7644 = vmatpush1.bf16.msra.mxu0 %v6776
    %7645 = vmatprep.mubr.bf16.mxu0 %v4835
    %7646 = vmatmul.mubr.bf16.gmra.mrb[0].mxu0 %v4834
    %v7647 = vpop.f32.mrb[0].mxu0
    %v7648 = vadd.f32 %v7607, %v7647
    %v7649 = vpop.f32.mrb[0].mxu0
    %v7650 = vadd.f32 %v7609, %v7649
    %v7651 = vpop.f32.mrb[0].mxu0
    %v7652 = vpop.f32.mrb[0].mxu0
    %7653 = vdwg.mxu0
    %v7654 = vmax.f32 %v7402, 0.0
    %v7655 = vmax.f32 %v7404, 0.0
    %v7656 = vmax.f32 %v7648, 0.0
    %v7657 = vmax.f32 %v7650, 0.0
    %v7658 = vpack.c.bf16 %v7654, %v7654
    %v7659 = vpack.c.bf16 %v7655, %v7655
    %v7660 = vpack.c.bf16 %v7656, %v7656
    %v7661 = vpack.c.bf16 %v7657, %v7657
    %v7666 = vunpack.c.l.b16 %v7658
    %v7667 = vunpack.c.l.b16 %v7659
    %v7668 = vunpack.c.l.b16 %v7660
    %v7669 = vunpack.c.l.b16 %v7661
    %v7670 = vpack.c.b16 %v7667, %v7666
    %v7671 = vpack.c.b16 %v7669, %v7668
    %7674 = vst [vmem:[#allocation5] sm:$0xff] %v7670
    %7675 = vst [vmem:[#allocation5 + $0x8] sm:$0xff] %v7671
    %7676 = vst [vmem:[#allocation2] sm:$0x1] 0
    %7677 = vst [vmem:[#allocation2 + $0x8] sm:$0x1] 0
    %7678 = vst [vmem:[#allocation2 + $0x10] sm:$0x1] 0
    %7679 = vst [vmem:[#allocation2 + $0x18] sm:$0x1] 0
    %v7680 = vld [vmem:[#allocation5] sm:$0x22]
    %v7681 = vld [vmem:[#allocation5 + $0x8] sm:$0x22]
    %v7684 = vunpack.c.l.b16 %v7680
    %v7685 = vunpack.c.h.b16 %v7680
    %v7686 = vunpack.c.l.b16 %v7681
    %v7687 = vunpack.c.h.b16 %v7681
    %v7688 = vpack.c.b16 %v7684, %v7684
    %v7689 = vpack.c.b16 %v7685, %v7685
    %v7690 = vpack.c.b16 %v7686, %v7686
    %v7691 = vpack.c.b16 %v7687, %v7687
    %7696 = vst [vmem:[#allocation2] sm:$0x2] %v7688
    %7697 = vst [vmem:[#allocation2 + $0x8] sm:$0x2] %v7689
    %7698 = vst [vmem:[#allocation2 + $0x10] sm:$0x2] %v7690
    %7699 = vst [vmem:[#allocation2 + $0x18] sm:$0x2] %v7691
    %v7700 = vld [vmem:[#allocation5] sm:$0x11]
    %v7701 = vld [vmem:[#allocation5 + $0x8] sm:$0x11]
    %v7704 = vunpack.c.l.b16 %v7700
    %v7705 = vunpack.c.h.b16 %v7700
    %v7706 = vunpack.c.l.b16 %v7701
    %v7707 = vunpack.c.h.b16 %v7701
    %v7708 = vpack.c.b16 %v7704, %v7704
    %v7709 = vpack.c.b16 %v7705, %v7705
    %v7710 = vpack.c.b16 %v7706, %v7706
    %v7711 = vpack.c.b16 %v7707, %v7707
    %7716 = vst [vmem:[#allocation2 + $0x20] sm:$0x1] %v7708
    %7717 = vst [vmem:[#allocation2 + $0x28] sm:$0x1] %v7709
    %7718 = vst [vmem:[#allocation2 + $0x30] sm:$0x1] %v7710
    %7719 = vst [vmem:[#allocation2 + $0x38] sm:$0x1] %v7711
    %v7720 = vld [vmem:[#allocation5] sm:$0x44]
    %v7721 = vld [vmem:[#allocation5 + $0x8] sm:$0x44]
    %v7724 = vunpack.c.l.b16 %v7720
    %v7725 = vunpack.c.h.b16 %v7720
    %v7726 = vunpack.c.l.b16 %v7721
    %v7727 = vunpack.c.h.b16 %v7721
    %v7728 = vpack.c.b16 %v7724, %v7724
    %v7729 = vpack.c.b16 %v7725, %v7725
    %v7730 = vpack.c.b16 %v7726, %v7726
    %v7731 = vpack.c.b16 %v7727, %v7727
    %v7732 = vrot.slane %v7728, 1
    %v7733 = vrot.slane %v7729, 1
    %v7734 = vrot.slane %v7730, 1
    %v7735 = vrot.slane %v7731, 1
    %7740 = vst [vmem:[#allocation2 + $0x20] sm:$0x2] %v7732
    %7741 = vst [vmem:[#allocation2 + $0x28] sm:$0x2] %v7733
    %7742 = vst [vmem:[#allocation2 + $0x30] sm:$0x2] %v7734
    %7743 = vst [vmem:[#allocation2 + $0x38] sm:$0x2] %v7735
    %v7744 = vld [vmem:[#allocation5] sm:$0x22]
    %v7745 = vld [vmem:[#allocation5 + $0x8] sm:$0x22]
    %v7748 = vunpack.c.l.b16 %v7744
    %v7749 = vunpack.c.h.b16 %v7744
    %v7750 = vunpack.c.l.b16 %v7745
    %v7751 = vunpack.c.h.b16 %v7745
    %v7752 = vpack.c.b16 %v7748, %v7748
    %v7753 = vpack.c.b16 %v7749, %v7749
    %v7754 = vpack.c.b16 %v7750, %v7750
    %v7755 = vpack.c.b16 %v7751, %v7751
    %v7756 = vrot.slane %v7752, 1
    %v7757 = vrot.slane %v7753, 1
    %v7758 = vrot.slane %v7754, 1
    %v7759 = vrot.slane %v7755, 1
    %7764 = vst [vmem:[#allocation2 + $0x40] sm:$0x1] %v7756
    %7765 = vst [vmem:[#allocation2 + $0x48] sm:$0x1] %v7757
    %7766 = vst [vmem:[#allocation2 + $0x50] sm:$0x1] %v7758
    %7767 = vst [vmem:[#allocation2 + $0x58] sm:$0x1] %v7759
    %v7768 = vld [vmem:[#allocation5] sm:$0x88]
    %v7769 = vld [vmem:[#allocation5 + $0x8] sm:$0x88]
    %v7772 = vunpack.c.l.b16 %v7768
    %v7773 = vunpack.c.h.b16 %v7768
    %v7774 = vunpack.c.l.b16 %v7769
    %v7775 = vunpack.c.h.b16 %v7769
    %v7776 = vpack.c.b16 %v7772, %v7772
    %v7777 = vpack.c.b16 %v7773, %v7773
    %v7778 = vpack.c.b16 %v7774, %v7774
    %v7779 = vpack.c.b16 %v7775, %v7775
    %v7780 = vrot.slane %v7776, 2
    %v7781 = vrot.slane %v7777, 2
    %v7782 = vrot.slane %v7778, 2
    %v7783 = vrot.slane %v7779, 2
    %7788 = vst [vmem:[#allocation2 + $0x40] sm:$0x2] %v7780
    %7789 = vst [vmem:[#allocation2 + $0x48] sm:$0x2] %v7781
    %7790 = vst [vmem:[#allocation2 + $0x50] sm:$0x2] %v7782
    %7791 = vst [vmem:[#allocation2 + $0x58] sm:$0x2] %v7783
    %v7792 = vld [vmem:[#allocation2] sm:$0x3]
    %v7793 = vld [vmem:[#allocation2 + $0x8] sm:$0x3]
    %v7794 = vld [vmem:[#allocation2 + $0x10] sm:$0x3]
    %v7795 = vld [vmem:[#allocation2 + $0x18] sm:$0x3]
    %v7796 = vld [vmem:[#allocation2 + $0x20] sm:$0x3]
    %v7797 = vld [vmem:[#allocation2 + $0x28] sm:$0x3]
    %v7798 = vld [vmem:[#allocation2 + $0x30] sm:$0x3]
    %v7799 = vld [vmem:[#allocation2 + $0x38] sm:$0x3]
    %v7800 = vld [vmem:[#allocation2 + $0x40] sm:$0x3]
    %v7801 = vld [vmem:[#allocation2 + $0x48] sm:$0x3]
    %v7802 = vld [vmem:[#allocation2 + $0x50] sm:$0x3]
    %v7803 = vld [vmem:[#allocation2 + $0x58] sm:$0x3]
    %v7804 = vld [vmem:[%s4] sm:$0xff]
    %v7805 = vld [vmem:[%s4 + $0x8] sm:$0xff]
    %v7806 = vld [vmem:[%s4 + $0x10] sm:$0xff]
    %v7807 = vld [vmem:[%s4 + $0x18] sm:$0xff]
    %v7808 = vld [vmem:[%s4 + $0x20] sm:$0xff]
    %v7809 = vld [vmem:[%s4 + $0x28] sm:$0xff]
    %v7810 = vld [vmem:[%s4 + $0x30] sm:$0xff]
    %v7811 = vld [vmem:[%s4 + $0x38] sm:$0xff]
    %v7812 = vld [vmem:[%s4 + $0x40] sm:$0xff]
    %v7813 = vld [vmem:[%s4 + $0x48] sm:$0xff]
    %v7814 = vld [vmem:[%s4 + $0x50] sm:$0xff]
    %v7815 = vld [vmem:[%s4 + $0x58] sm:$0xff]
    %v7816 = vld [vmem:[%s4 + $0x60] sm:$0xff]
    %v7817 = vld [vmem:[%s4 + $0x68] sm:$0xff]
    %v7818 = vld [vmem:[%s4 + $0x70] sm:$0xff]
    %v7819 = vld [vmem:[%s4 + $0x78] sm:$0xff]
    %v7820 = vld [vmem:[%s4 + $0x80] sm:$0xff]
    %v7821 = vld [vmem:[%s4 + $0x88] sm:$0xff]
    %v7822 = vld [vmem:[%s4 + $0x90] sm:$0xff]
    %v7823 = vld [vmem:[%s4 + $0x98] sm:$0xff]
    %v7824 = vld [vmem:[%s4 + $0xa0] sm:$0xff]
    %v7825 = vld [vmem:[%s4 + $0xa8] sm:$0xff]
    %v7826 = vld [vmem:[%s4 + $0xb0] sm:$0xff]
    %v7827 = vld [vmem:[%s4 + $0xb8] sm:$0xff]
    %v7828 = vld [vmem:[%s4 + $0xc0] sm:$0xff]
    %v7829 = vld [vmem:[%s4 + $0xc8] sm:$0xff]
    %v7830 = vld [vmem:[%s4 + $0xd0] sm:$0xff]
    %v7831 = vld [vmem:[%s4 + $0xd8] sm:$0xff]
    %v7832 = vld [vmem:[%s4 + $0xe0] sm:$0xff]
    %v7833 = vld [vmem:[%s4 + $0xe8] sm:$0xff]
    %v7834 = vld [vmem:[%s4 + $0xf0] sm:$0xff]
    %v7835 = vld [vmem:[%s4 + $0xf8] sm:$0xff]
    %v7836 = vld [vmem:[%s4 + $0x100] sm:$0xff]
    %v7837 = vld [vmem:[%s4 + $0x108] sm:$0xff]
    %v7838 = vld [vmem:[%s4 + $0x110] sm:$0xff]
    %v7839 = vld [vmem:[%s4 + $0x118] sm:$0xff]
    %v7840 = vld [vmem:[%s4 + $0x120] sm:$0xff]
    %v7841 = vld [vmem:[%s4 + $0x128] sm:$0xff]
    %v7842 = vld [vmem:[%s4 + $0x130] sm:$0xff]
    %v7843 = vld [vmem:[%s4 + $0x138] sm:$0xff]
    %v7844 = vld [vmem:[%s4 + $0x140] sm:$0xff]
    %v7845 = vld [vmem:[%s4 + $0x148] sm:$0xff]
    %v7846 = vld [vmem:[%s4 + $0x150] sm:$0xff]
    %v7847 = vld [vmem:[%s4 + $0x158] sm:$0xff]
    %v7848 = vld [vmem:[%s4 + $0x160] sm:$0xff]
    %v7849 = vld [vmem:[%s4 + $0x168] sm:$0xff]
    %v7850 = vld [vmem:[%s4 + $0x170] sm:$0xff]
    %v7851 = vld [vmem:[%s4 + $0x178] sm:$0xff]
    %v7852 = vld [vmem:[%s4 + $0x180] sm:$0xff]
    %v7853 = vld [vmem:[%s4 + $0x188] sm:$0xff]
    %v7854 = vld [vmem:[%s4 + $0x190] sm:$0xff]
    %v7855 = vld [vmem:[%s4 + $0x198] sm:$0xff]
    %v7856 = vld [vmem:[%s4 + $0x1a0] sm:$0xff]
    %v7857 = vld [vmem:[%s4 + $0x1a8] sm:$0xff]
    %v7858 = vld [vmem:[%s4 + $0x1b0] sm:$0xff]
    %v7859 = vld [vmem:[%s4 + $0x1b8] sm:$0xff]
    %v7860 = vld [vmem:[%s4 + $0x1c0] sm:$0xff]
    %v7861 = vld [vmem:[%s4 + $0x1c8] sm:$0xff]
    %v7862 = vld [vmem:[%s4 + $0x1d0] sm:$0xff]
    %v7863 = vld [vmem:[%s4 + $0x1d8] sm:$0xff]
    %v7864 = vld [vmem:[%s4 + $0x1e0] sm:$0xff]
    %v7865 = vld [vmem:[%s4 + $0x1e8] sm:$0xff]
    %v7866 = vld [vmem:[%s4 + $0x1f0] sm:$0xff]
    %v7867 = vld [vmem:[%s4 + $0x1f8] sm:$0xff]
    %v7868 = vld [vmem:[%s4 + $0x200] sm:$0xff]
    %v7869 = vld [vmem:[%s4 + $0x208] sm:$0xff]
    %v7870 = vld [vmem:[%s4 + $0x210] sm:$0xff]
    %v7871 = vld [vmem:[%s4 + $0x218] sm:$0xff]
    %v7872 = vld [vmem:[%s4 + $0x220] sm:$0xff]
    %v7873 = vld [vmem:[%s4 + $0x228] sm:$0xff]
    %v7874 = vld [vmem:[%s4 + $0x230] sm:$0xff]
    %v7875 = vld [vmem:[%s4 + $0x238] sm:$0xff]
    %v7876 = vld [vmem:[%s4 + $0x240] sm:$0xff]
    %v7877 = vld [vmem:[%s4 + $0x248] sm:$0xff]
    %v7878 = vld [vmem:[%s4 + $0x250] sm:$0xff]
    %v7879 = vld [vmem:[%s4 + $0x258] sm:$0xff]
    %v7880 = vld [vmem:[%s4 + $0x260] sm:$0xff]
    %v7881 = vld [vmem:[%s4 + $0x268] sm:$0xff]
    %v7882 = vld [vmem:[%s4 + $0x270] sm:$0xff]
    %v7883 = vld [vmem:[%s4 + $0x278] sm:$0xff]
    %v7884 = vld [vmem:[%s4 + $0x280] sm:$0xff]
    %v7885 = vld [vmem:[%s4 + $0x288] sm:$0xff]
    %v7886 = vld [vmem:[%s4 + $0x290] sm:$0xff]
    %v7887 = vld [vmem:[%s4 + $0x298] sm:$0xff]
    %v7888 = vld [vmem:[%s4 + $0x2a0] sm:$0xff]
    %v7889 = vld [vmem:[%s4 + $0x2a8] sm:$0xff]
    %v7890 = vld [vmem:[%s4 + $0x2b0] sm:$0xff]
    %v7891 = vld [vmem:[%s4 + $0x2b8] sm:$0xff]
    %v7892 = vld [vmem:[%s4 + $0x2c0] sm:$0xff]
    %v7893 = vld [vmem:[%s4 + $0x2c8] sm:$0xff]
    %v7894 = vld [vmem:[%s4 + $0x2d0] sm:$0xff]
    %v7895 = vld [vmem:[%s4 + $0x2d8] sm:$0xff]
    %v7896 = vld [vmem:[%s4 + $0x2e0] sm:$0xff]
    %v7897 = vld [vmem:[%s4 + $0x2e8] sm:$0xff]
    %v7898 = vld [vmem:[%s4 + $0x2f0] sm:$0xff]
    %v7899 = vld [vmem:[%s4 + $0x2f8] sm:$0xff]
    %v7900 = vld [vmem:[%s4 + $0x300] sm:$0xff]
    %v7901 = vld [vmem:[%s4 + $0x308] sm:$0xff]
    %v7902 = vld [vmem:[%s4 + $0x310] sm:$0xff]
    %v7903 = vld [vmem:[%s4 + $0x318] sm:$0xff]
    %v7904 = vld [vmem:[%s4 + $0x320] sm:$0xff]
    %v7905 = vld [vmem:[%s4 + $0x328] sm:$0xff]
    %v7906 = vld [vmem:[%s4 + $0x330] sm:$0xff]
    %v7907 = vld [vmem:[%s4 + $0x338] sm:$0xff]
    %v7908 = vld [vmem:[%s4 + $0x340] sm:$0xff]
    %v7909 = vld [vmem:[%s4 + $0x348] sm:$0xff]
    %v7910 = vld [vmem:[%s4 + $0x350] sm:$0xff]
    %v7911 = vld [vmem:[%s4 + $0x358] sm:$0xff]
    %v7912 = vld [vmem:[%s4 + $0x360] sm:$0xff]
    %v7913 = vld [vmem:[%s4 + $0x368] sm:$0xff]
    %v7914 = vld [vmem:[%s4 + $0x370] sm:$0xff]
    %v7915 = vld [vmem:[%s4 + $0x378] sm:$0xff]
    %v7916 = vld [vmem:[%s4 + $0x380] sm:$0xff]
    %v7917 = vld [vmem:[%s4 + $0x388] sm:$0xff]
    %v7918 = vld [vmem:[%s4 + $0x390] sm:$0xff]
    %v7919 = vld [vmem:[%s4 + $0x398] sm:$0xff]
    %v7920 = vld [vmem:[%s4 + $0x3a0] sm:$0xff]
    %v7921 = vld [vmem:[%s4 + $0x3a8] sm:$0xff]
    %v7922 = vld [vmem:[%s4 + $0x3b0] sm:$0xff]
    %v7923 = vld [vmem:[%s4 + $0x3b8] sm:$0xff]
    %v7924 = vld [vmem:[%s4 + $0x3c0] sm:$0xff]
    %v7925 = vld [vmem:[%s4 + $0x3c8] sm:$0xff]
    %v7926 = vld [vmem:[%s4 + $0x3d0] sm:$0xff]
    %v7927 = vld [vmem:[%s4 + $0x3d8] sm:$0xff]
    %v7928 = vld [vmem:[%s4 + $0x3e0] sm:$0xff]
    %v7929 = vld [vmem:[%s4 + $0x3e8] sm:$0xff]
    %v7930 = vld [vmem:[%s4 + $0x3f0] sm:$0xff]
    %v7931 = vld [vmem:[%s4 + $0x3f8] sm:$0xff]
    %v7932 = vld [vmem:[%s4 + $0x400] sm:$0xff]
    %v7933 = vld [vmem:[%s4 + $0x408] sm:$0xff]
    %v7934 = vld [vmem:[%s4 + $0x410] sm:$0xff]
    %v7935 = vld [vmem:[%s4 + $0x418] sm:$0xff]
    %v7936 = vld [vmem:[%s4 + $0x420] sm:$0xff]
    %v7937 = vld [vmem:[%s4 + $0x428] sm:$0xff]
    %v7938 = vld [vmem:[%s4 + $0x430] sm:$0xff]
    %v7939 = vld [vmem:[%s4 + $0x438] sm:$0xff]
    %v7940 = vld [vmem:[%s4 + $0x440] sm:$0xff]
    %v7941 = vld [vmem:[%s4 + $0x448] sm:$0xff]
    %v7942 = vld [vmem:[%s4 + $0x450] sm:$0xff]
    %v7943 = vld [vmem:[%s4 + $0x458] sm:$0xff]
    %v7944 = vld [vmem:[%s4 + $0x460] sm:$0xff]
    %v7945 = vld [vmem:[%s4 + $0x468] sm:$0xff]
    %v7946 = vld [vmem:[%s4 + $0x470] sm:$0xff]
    %v7947 = vld [vmem:[%s4 + $0x478] sm:$0xff]
    %v7948 = vld [vmem:[%s4 + $0x480] sm:$0xff]
    %v7949 = vld [vmem:[%s4 + $0x488] sm:$0xff]
    %v7950 = vld [vmem:[%s4 + $0x490] sm:$0xff]
    %v7951 = vld [vmem:[%s4 + $0x498] sm:$0xff]
    %v7952 = vld [vmem:[%s4 + $0x4a0] sm:$0xff]
    %v7953 = vld [vmem:[%s4 + $0x4a8] sm:$0xff]
    %v7954 = vld [vmem:[%s4 + $0x4b0] sm:$0xff]
    %v7955 = vld [vmem:[%s4 + $0x4b8] sm:$0xff]
    %v7956 = vld [vmem:[%s4 + $0x4c0] sm:$0xff]
    %v7957 = vld [vmem:[%s4 + $0x4c8] sm:$0xff]
    %v7958 = vld [vmem:[%s4 + $0x4d0] sm:$0xff]
    %v7959 = vld [vmem:[%s4 + $0x4d8] sm:$0xff]
    %v7960 = vld [vmem:[%s4 + $0x4e0] sm:$0xff]
    %v7961 = vld [vmem:[%s4 + $0x4e8] sm:$0xff]
    %v7962 = vld [vmem:[%s4 + $0x4f0] sm:$0xff]
    %v7963 = vld [vmem:[%s4 + $0x4f8] sm:$0xff]
    %v7964 = vld [vmem:[%s4 + $0x500] sm:$0xff]
    %v7965 = vld [vmem:[%s4 + $0x508] sm:$0xff]
    %v7966 = vld [vmem:[%s4 + $0x510] sm:$0xff]
    %v7967 = vld [vmem:[%s4 + $0x518] sm:$0xff]
    %v7968 = vld [vmem:[%s4 + $0x520] sm:$0xff]
    %v7969 = vld [vmem:[%s4 + $0x528] sm:$0xff]
    %v7970 = vld [vmem:[%s4 + $0x530] sm:$0xff]
    %v7971 = vld [vmem:[%s4 + $0x538] sm:$0xff]
    %v7972 = vld [vmem:[%s4 + $0x540] sm:$0xff]
    %v7973 = vld [vmem:[%s4 + $0x548] sm:$0xff]
    %v7974 = vld [vmem:[%s4 + $0x550] sm:$0xff]
    %v7975 = vld [vmem:[%s4 + $0x558] sm:$0xff]
    %v7976 = vld [vmem:[%s4 + $0x560] sm:$0xff]
    %v7977 = vld [vmem:[%s4 + $0x568] sm:$0xff]
    %v7978 = vld [vmem:[%s4 + $0x570] sm:$0xff]
    %v7979 = vld [vmem:[%s4 + $0x578] sm:$0xff]
    %v7980 = vld [vmem:[%s4 + $0x580] sm:$0xff]
    %v7981 = vld [vmem:[%s4 + $0x588] sm:$0xff]
    %v7982 = vld [vmem:[%s4 + $0x590] sm:$0xff]
    %v7983 = vld [vmem:[%s4 + $0x598] sm:$0xff]
    %v7984 = vld [vmem:[%s4 + $0x5a0] sm:$0xff]
    %v7985 = vld [vmem:[%s4 + $0x5a8] sm:$0xff]
    %v7986 = vld [vmem:[%s4 + $0x5b0] sm:$0xff]
    %v7987 = vld [vmem:[%s4 + $0x5b8] sm:$0xff]
    %v7988 = vld [vmem:[%s4 + $0x5c0] sm:$0xff]
    %v7989 = vld [vmem:[%s4 + $0x5c8] sm:$0xff]
    %v7990 = vld [vmem:[%s4 + $0x5d0] sm:$0xff]
    %v7991 = vld [vmem:[%s4 + $0x5d8] sm:$0xff]
    %v7992 = vld [vmem:[%s4 + $0x5e0] sm:$0xff]
    %v7993 = vld [vmem:[%s4 + $0x5e8] sm:$0xff]
    %v7994 = vld [vmem:[%s4 + $0x5f0] sm:$0xff]
    %v7995 = vld [vmem:[%s4 + $0x5f8] sm:$0xff]
    %v7996 = vld [vmem:[#allocation19] sm:$0x3]
    %v7998 = vlaneseq
    %v7999 = vshrl.u32 %v7998, 7
    %v8000 = vsub.s32 0, %v7999
    %v8001 = vrot.slane %v7996, %v8000
    %v8002 = vlaneseq
    %v8003 = vshrl.u32 %v8002, 7
    %v8004 = vsub.s32 1, %v8003
    %v8005 = vrot.slane %v7996, %v8004
    %v8200 = vunpack.c.l.b16 %v7804
    %v8201 = vunpack.c.h.b16 %v7804
    %v8202 = vunpack.c.l.b16 %v7805
    %v8203 = vunpack.c.h.b16 %v7805
    %v8204 = vunpack.c.l.b16 %v7806
    %v8205 = vunpack.c.h.b16 %v7806
    %v8206 = vunpack.c.l.b16 %v7807
    %v8207 = vunpack.c.h.b16 %v7807
    %v8208 = vunpack.c.l.b16 %v7808
    %v8209 = vunpack.c.h.b16 %v7808
    %v8210 = vunpack.c.l.b16 %v7809
    %v8211 = vunpack.c.h.b16 %v7809
    %v8212 = vunpack.c.l.b16 %v7810
    %v8213 = vunpack.c.h.b16 %v7810
    %v8214 = vunpack.c.l.b16 %v7811
    %v8215 = vunpack.c.h.b16 %v7811
    %v8216 = vunpack.c.l.b16 %v7812
    %v8217 = vunpack.c.h.b16 %v7812
    %v8218 = vunpack.c.l.b16 %v7813
    %v8219 = vunpack.c.h.b16 %v7813
    %v8220 = vunpack.c.l.b16 %v7814
    %v8221 = vunpack.c.h.b16 %v7814
    %v8222 = vunpack.c.l.b16 %v7815
    %v8223 = vunpack.c.h.b16 %v7815
    %v8224 = vunpack.c.l.b16 %v7816
    %v8225 = vunpack.c.h.b16 %v7816
    %v8226 = vunpack.c.l.b16 %v7817
    %v8227 = vunpack.c.h.b16 %v7817
    %v8228 = vunpack.c.l.b16 %v7818
    %v8229 = vunpack.c.h.b16 %v7818
    %v8230 = vunpack.c.l.b16 %v7819
    %v8231 = vunpack.c.h.b16 %v7819
    %v8232 = vunpack.c.l.b16 %v7820
    %v8233 = vunpack.c.h.b16 %v7820
    %v8234 = vunpack.c.l.b16 %v7821
    %v8235 = vunpack.c.h.b16 %v7821
    %v8236 = vunpack.c.l.b16 %v7822
    %v8237 = vunpack.c.h.b16 %v7822
    %v8238 = vunpack.c.l.b16 %v7823
    %v8239 = vunpack.c.h.b16 %v7823
    %v8240 = vunpack.c.l.b16 %v7824
    %v8241 = vunpack.c.h.b16 %v7824
    %v8242 = vunpack.c.l.b16 %v7825
    %v8243 = vunpack.c.h.b16 %v7825
    %v8244 = vunpack.c.l.b16 %v7826
    %v8245 = vunpack.c.h.b16 %v7826
    %v8246 = vunpack.c.l.b16 %v7827
    %v8247 = vunpack.c.h.b16 %v7827
    %v8248 = vunpack.c.l.b16 %v7828
    %v8249 = vunpack.c.h.b16 %v7828
    %v8250 = vunpack.c.l.b16 %v7829
    %v8251 = vunpack.c.h.b16 %v7829
    %v8252 = vunpack.c.l.b16 %v7830
    %v8253 = vunpack.c.h.b16 %v7830
    %v8254 = vunpack.c.l.b16 %v7831
    %v8255 = vunpack.c.h.b16 %v7831
    %v8256 = vunpack.c.l.b16 %v7832
    %v8257 = vunpack.c.h.b16 %v7832
    %v8258 = vunpack.c.l.b16 %v7833
    %v8259 = vunpack.c.h.b16 %v7833
    %v8260 = vunpack.c.l.b16 %v7834
    %v8261 = vunpack.c.h.b16 %v7834
    %v8262 = vunpack.c.l.b16 %v7835
    %v8263 = vunpack.c.h.b16 %v7835
    %v8264 = vunpack.c.l.b16 %v7836
    %v8265 = vunpack.c.h.b16 %v7836
    %v8266 = vunpack.c.l.b16 %v7837
    %v8267 = vunpack.c.h.b16 %v7837
    %v8268 = vunpack.c.l.b16 %v7838
    %v8269 = vunpack.c.h.b16 %v7838
    %v8270 = vunpack.c.l.b16 %v7839
    %v8271 = vunpack.c.h.b16 %v7839
    %v8272 = vunpack.c.l.b16 %v7840
    %v8273 = vunpack.c.h.b16 %v7840
    %v8274 = vunpack.c.l.b16 %v7841
    %v8275 = vunpack.c.h.b16 %v7841
    %v8276 = vunpack.c.l.b16 %v7842
    %v8277 = vunpack.c.h.b16 %v7842
    %v8278 = vunpack.c.l.b16 %v7843
    %v8279 = vunpack.c.h.b16 %v7843
    %v8280 = vunpack.c.l.b16 %v7844
    %v8281 = vunpack.c.h.b16 %v7844
    %v8282 = vunpack.c.l.b16 %v7845
    %v8283 = vunpack.c.h.b16 %v7845
    %v8284 = vunpack.c.l.b16 %v7846
    %v8285 = vunpack.c.h.b16 %v7846
    %v8286 = vunpack.c.l.b16 %v7847
    %v8287 = vunpack.c.h.b16 %v7847
    %v8288 = vunpack.c.l.b16 %v7848
    %v8289 = vunpack.c.h.b16 %v7848
    %v8290 = vunpack.c.l.b16 %v7849
    %v8291 = vunpack.c.h.b16 %v7849
    %v8292 = vunpack.c.l.b16 %v7850
    %v8293 = vunpack.c.h.b16 %v7850
    %v8294 = vunpack.c.l.b16 %v7851
    %v8295 = vunpack.c.h.b16 %v7851
    %v8296 = vunpack.c.l.b16 %v7852
    %v8297 = vunpack.c.h.b16 %v7852
    %v8298 = vunpack.c.l.b16 %v7853
    %v8299 = vunpack.c.h.b16 %v7853
    %v8300 = vunpack.c.l.b16 %v7854
    %v8301 = vunpack.c.h.b16 %v7854
    %v8302 = vunpack.c.l.b16 %v7855
    %v8303 = vunpack.c.h.b16 %v7855
    %v8304 = vunpack.c.l.b16 %v7856
    %v8305 = vunpack.c.h.b16 %v7856
    %v8306 = vunpack.c.l.b16 %v7857
    %v8307 = vunpack.c.h.b16 %v7857
    %v8308 = vunpack.c.l.b16 %v7858
    %v8309 = vunpack.c.h.b16 %v7858
    %v8310 = vunpack.c.l.b16 %v7859
    %v8311 = vunpack.c.h.b16 %v7859
    %v8312 = vunpack.c.l.b16 %v7860
    %v8313 = vunpack.c.h.b16 %v7860
    %v8314 = vunpack.c.l.b16 %v7861
    %v8315 = vunpack.c.h.b16 %v7861
    %v8316 = vunpack.c.l.b16 %v7862
    %v8317 = vunpack.c.h.b16 %v7862
    %v8318 = vunpack.c.l.b16 %v7863
    %v8319 = vunpack.c.h.b16 %v7863
    %v8320 = vunpack.c.l.b16 %v7864
    %v8321 = vunpack.c.h.b16 %v7864
    %v8322 = vunpack.c.l.b16 %v7865
    %v8323 = vunpack.c.h.b16 %v7865
    %v8324 = vunpack.c.l.b16 %v7866
    %v8325 = vunpack.c.h.b16 %v7866
    %v8326 = vunpack.c.l.b16 %v7867
    %v8327 = vunpack.c.h.b16 %v7867
    %v8328 = vunpack.c.l.b16 %v7868
    %v8329 = vunpack.c.h.b16 %v7868
    %v8330 = vunpack.c.l.b16 %v7869
    %v8331 = vunpack.c.h.b16 %v7869
    %v8332 = vunpack.c.l.b16 %v7870
    %v8333 = vunpack.c.h.b16 %v7870
    %v8334 = vunpack.c.l.b16 %v7871
    %v8335 = vunpack.c.h.b16 %v7871
    %v8336 = vunpack.c.l.b16 %v7872
    %v8337 = vunpack.c.h.b16 %v7872
    %v8338 = vunpack.c.l.b16 %v7873
    %v8339 = vunpack.c.h.b16 %v7873
    %v8340 = vunpack.c.l.b16 %v7874
    %v8341 = vunpack.c.h.b16 %v7874
    %v8342 = vunpack.c.l.b16 %v7875
    %v8343 = vunpack.c.h.b16 %v7875
    %v8344 = vunpack.c.l.b16 %v7876
    %v8345 = vunpack.c.h.b16 %v7876
    %v8346 = vunpack.c.l.b16 %v7877
    %v8347 = vunpack.c.h.b16 %v7877
    %v8348 = vunpack.c.l.b16 %v7878
    %v8349 = vunpack.c.h.b16 %v7878
    %v8350 = vunpack.c.l.b16 %v7879
    %v8351 = vunpack.c.h.b16 %v7879
    %v8352 = vunpack.c.l.b16 %v7880
    %v8353 = vunpack.c.h.b16 %v7880
    %v8354 = vunpack.c.l.b16 %v7881
    %v8355 = vunpack.c.h.b16 %v7881
    %v8356 = vunpack.c.l.b16 %v7882
    %v8357 = vunpack.c.h.b16 %v7882
    %v8358 = vunpack.c.l.b16 %v7883
    %v8359 = vunpack.c.h.b16 %v7883
    %v8360 = vunpack.c.l.b16 %v7884
    %v8361 = vunpack.c.h.b16 %v7884
    %v8362 = vunpack.c.l.b16 %v7885
    %v8363 = vunpack.c.h.b16 %v7885
    %v8364 = vunpack.c.l.b16 %v7886
    %v8365 = vunpack.c.h.b16 %v7886
    %v8366 = vunpack.c.l.b16 %v7887
    %v8367 = vunpack.c.h.b16 %v7887
    %v8368 = vunpack.c.l.b16 %v7888
    %v8369 = vunpack.c.h.b16 %v7888
    %v8370 = vunpack.c.l.b16 %v7889
    %v8371 = vunpack.c.h.b16 %v7889
    %v8372 = vunpack.c.l.b16 %v7890
    %v8373 = vunpack.c.h.b16 %v7890
    %v8374 = vunpack.c.l.b16 %v7891
    %v8375 = vunpack.c.h.b16 %v7891
    %v8376 = vunpack.c.l.b16 %v7892
    %v8377 = vunpack.c.h.b16 %v7892
    %v8378 = vunpack.c.l.b16 %v7893
    %v8379 = vunpack.c.h.b16 %v7893
    %v8380 = vunpack.c.l.b16 %v7894
    %v8381 = vunpack.c.h.b16 %v7894
    %v8382 = vunpack.c.l.b16 %v7895
    %v8383 = vunpack.c.h.b16 %v7895
    %v8384 = vunpack.c.l.b16 %v7896
    %v8385 = vunpack.c.h.b16 %v7896
    %v8386 = vunpack.c.l.b16 %v7897
    %v8387 = vunpack.c.h.b16 %v7897
    %v8388 = vunpack.c.l.b16 %v7898
    %v8389 = vunpack.c.h.b16 %v7898
    %v8390 = vunpack.c.l.b16 %v7899
    %v8391 = vunpack.c.h.b16 %v7899
    %v8392 = vunpack.c.l.b16 %v7900
    %v8393 = vunpack.c.h.b16 %v7900
    %v8394 = vunpack.c.l.b16 %v7901
    %v8395 = vunpack.c.h.b16 %v7901
    %v8396 = vunpack.c.l.b16 %v7902
    %v8397 = vunpack.c.h.b16 %v7902
    %v8398 = vunpack.c.l.b16 %v7903
    %v8399 = vunpack.c.h.b16 %v7903
    %v8400 = vunpack.c.l.b16 %v7904
    %v8401 = vunpack.c.h.b16 %v7904
    %v8402 = vunpack.c.l.b16 %v7905
    %v8403 = vunpack.c.h.b16 %v7905
    %v8404 = vunpack.c.l.b16 %v7906
    %v8405 = vunpack.c.h.b16 %v7906
    %v8406 = vunpack.c.l.b16 %v7907
    %v8407 = vunpack.c.h.b16 %v7907
    %v8408 = vunpack.c.l.b16 %v7908
    %v8409 = vunpack.c.h.b16 %v7908
    %v8410 = vunpack.c.l.b16 %v7909
    %v8411 = vunpack.c.h.b16 %v7909
    %v8412 = vunpack.c.l.b16 %v7910
    %v8413 = vunpack.c.h.b16 %v7910
    %v8414 = vunpack.c.l.b16 %v7911
    %v8415 = vunpack.c.h.b16 %v7911
    %v8416 = vunpack.c.l.b16 %v7912
    %v8417 = vunpack.c.h.b16 %v7912
    %v8418 = vunpack.c.l.b16 %v7913
    %v8419 = vunpack.c.h.b16 %v7913
    %v8420 = vunpack.c.l.b16 %v7914
    %v8421 = vunpack.c.h.b16 %v7914
    %v8422 = vunpack.c.l.b16 %v7915
    %v8423 = vunpack.c.h.b16 %v7915
    %v8424 = vunpack.c.l.b16 %v7916
    %v8425 = vunpack.c.h.b16 %v7916
    %v8426 = vunpack.c.l.b16 %v7917
    %v8427 = vunpack.c.h.b16 %v7917
    %v8428 = vunpack.c.l.b16 %v7918
    %v8429 = vunpack.c.h.b16 %v7918
    %v8430 = vunpack.c.l.b16 %v7919
    %v8431 = vunpack.c.h.b16 %v7919
    %v8432 = vunpack.c.l.b16 %v7920
    %v8433 = vunpack.c.h.b16 %v7920
    %v8434 = vunpack.c.l.b16 %v7921
    %v8435 = vunpack.c.h.b16 %v7921
    %v8436 = vunpack.c.l.b16 %v7922
    %v8437 = vunpack.c.h.b16 %v7922
    %v8438 = vunpack.c.l.b16 %v7923
    %v8439 = vunpack.c.h.b16 %v7923
    %v8440 = vunpack.c.l.b16 %v7924
    %v8441 = vunpack.c.h.b16 %v7924
    %v8442 = vunpack.c.l.b16 %v7925
    %v8443 = vunpack.c.h.b16 %v7925
    %v8444 = vunpack.c.l.b16 %v7926
    %v8445 = vunpack.c.h.b16 %v7926
    %v8446 = vunpack.c.l.b16 %v7927
    %v8447 = vunpack.c.h.b16 %v7927
    %v8448 = vunpack.c.l.b16 %v7928
    %v8449 = vunpack.c.h.b16 %v7928
    %v8450 = vunpack.c.l.b16 %v7929
    %v8451 = vunpack.c.h.b16 %v7929
    %v8452 = vunpack.c.l.b16 %v7930
    %v8453 = vunpack.c.h.b16 %v7930
    %v8454 = vunpack.c.l.b16 %v7931
    %v8455 = vunpack.c.h.b16 %v7931
    %v8456 = vunpack.c.l.b16 %v7932
    %v8457 = vunpack.c.h.b16 %v7932
    %v8458 = vunpack.c.l.b16 %v7933
    %v8459 = vunpack.c.h.b16 %v7933
    %v8460 = vunpack.c.l.b16 %v7934
    %v8461 = vunpack.c.h.b16 %v7934
    %v8462 = vunpack.c.l.b16 %v7935
    %v8463 = vunpack.c.h.b16 %v7935
    %v8464 = vunpack.c.l.b16 %v7936
    %v8465 = vunpack.c.h.b16 %v7936
    %v8466 = vunpack.c.l.b16 %v7937
    %v8467 = vunpack.c.h.b16 %v7937
    %v8468 = vunpack.c.l.b16 %v7938
    %v8469 = vunpack.c.h.b16 %v7938
    %v8470 = vunpack.c.l.b16 %v7939
    %v8471 = vunpack.c.h.b16 %v7939
    %v8472 = vunpack.c.l.b16 %v7940
    %v8473 = vunpack.c.h.b16 %v7940
    %v8474 = vunpack.c.l.b16 %v7941
    %v8475 = vunpack.c.h.b16 %v7941
    %v8476 = vunpack.c.l.b16 %v7942
    %v8477 = vunpack.c.h.b16 %v7942
    %v8478 = vunpack.c.l.b16 %v7943
    %v8479 = vunpack.c.h.b16 %v7943
    %v8480 = vunpack.c.l.b16 %v7944
    %v8481 = vunpack.c.h.b16 %v7944
    %v8482 = vunpack.c.l.b16 %v7945
    %v8483 = vunpack.c.h.b16 %v7945
    %v8484 = vunpack.c.l.b16 %v7946
    %v8485 = vunpack.c.h.b16 %v7946
    %v8486 = vunpack.c.l.b16 %v7947
    %v8487 = vunpack.c.h.b16 %v7947
    %v8488 = vunpack.c.l.b16 %v7948
    %v8489 = vunpack.c.h.b16 %v7948
    %v8490 = vunpack.c.l.b16 %v7949
    %v8491 = vunpack.c.h.b16 %v7949
    %v8492 = vunpack.c.l.b16 %v7950
    %v8493 = vunpack.c.h.b16 %v7950
    %v8494 = vunpack.c.l.b16 %v7951
    %v8495 = vunpack.c.h.b16 %v7951
    %v8496 = vunpack.c.l.b16 %v7952
    %v8497 = vunpack.c.h.b16 %v7952
    %v8498 = vunpack.c.l.b16 %v7953
    %v8499 = vunpack.c.h.b16 %v7953
    %v8500 = vunpack.c.l.b16 %v7954
    %v8501 = vunpack.c.h.b16 %v7954
    %v8502 = vunpack.c.l.b16 %v7955
    %v8503 = vunpack.c.h.b16 %v7955
    %v8504 = vunpack.c.l.b16 %v7956
    %v8505 = vunpack.c.h.b16 %v7956
    %v8506 = vunpack.c.l.b16 %v7957
    %v8507 = vunpack.c.h.b16 %v7957
    %v8508 = vunpack.c.l.b16 %v7958
    %v8509 = vunpack.c.h.b16 %v7958
    %v8510 = vunpack.c.l.b16 %v7959
    %v8511 = vunpack.c.h.b16 %v7959
    %v8512 = vunpack.c.l.b16 %v7960
    %v8513 = vunpack.c.h.b16 %v7960
    %v8514 = vunpack.c.l.b16 %v7961
    %v8515 = vunpack.c.h.b16 %v7961
    %v8516 = vunpack.c.l.b16 %v7962
    %v8517 = vunpack.c.h.b16 %v7962
    %v8518 = vunpack.c.l.b16 %v7963
    %v8519 = vunpack.c.h.b16 %v7963
    %v8520 = vunpack.c.l.b16 %v7964
    %v8521 = vunpack.c.h.b16 %v7964
    %v8522 = vunpack.c.l.b16 %v7965
    %v8523 = vunpack.c.h.b16 %v7965
    %v8524 = vunpack.c.l.b16 %v7966
    %v8525 = vunpack.c.h.b16 %v7966
    %v8526 = vunpack.c.l.b16 %v7967
    %v8527 = vunpack.c.h.b16 %v7967
    %v8528 = vunpack.c.l.b16 %v7968
    %v8529 = vunpack.c.h.b16 %v7968
    %v8530 = vunpack.c.l.b16 %v7969
    %v8531 = vunpack.c.h.b16 %v7969
    %v8532 = vunpack.c.l.b16 %v7970
    %v8533 = vunpack.c.h.b16 %v7970
    %v8534 = vunpack.c.l.b16 %v7971
    %v8535 = vunpack.c.h.b16 %v7971
    %v8536 = vunpack.c.l.b16 %v7972
    %v8537 = vunpack.c.h.b16 %v7972
    %v8538 = vunpack.c.l.b16 %v7973
    %v8539 = vunpack.c.h.b16 %v7973
    %v8540 = vunpack.c.l.b16 %v7974
    %v8541 = vunpack.c.h.b16 %v7974
    %v8542 = vunpack.c.l.b16 %v7975
    %v8543 = vunpack.c.h.b16 %v7975
    %v8544 = vunpack.c.l.b16 %v7976
    %v8545 = vunpack.c.h.b16 %v7976
    %v8546 = vunpack.c.l.b16 %v7977
    %v8547 = vunpack.c.h.b16 %v7977
    %v8548 = vunpack.c.l.b16 %v7978
    %v8549 = vunpack.c.h.b16 %v7978
    %v8550 = vunpack.c.l.b16 %v7979
    %v8551 = vunpack.c.h.b16 %v7979
    %v8552 = vunpack.c.l.b16 %v7980
    %v8553 = vunpack.c.h.b16 %v7980
    %v8554 = vunpack.c.l.b16 %v7981
    %v8555 = vunpack.c.h.b16 %v7981
    %v8556 = vunpack.c.l.b16 %v7982
    %v8557 = vunpack.c.h.b16 %v7982
    %v8558 = vunpack.c.l.b16 %v7983
    %v8559 = vunpack.c.h.b16 %v7983
    %v8560 = vunpack.c.l.b16 %v7984
    %v8561 = vunpack.c.h.b16 %v7984
    %v8562 = vunpack.c.l.b16 %v7985
    %v8563 = vunpack.c.h.b16 %v7985
    %v8564 = vunpack.c.l.b16 %v7986
    %v8565 = vunpack.c.h.b16 %v7986
    %v8566 = vunpack.c.l.b16 %v7987
    %v8567 = vunpack.c.h.b16 %v7987
    %v8568 = vunpack.c.l.b16 %v7988
    %v8569 = vunpack.c.h.b16 %v7988
    %v8570 = vunpack.c.l.b16 %v7989
    %v8571 = vunpack.c.h.b16 %v7989
    %v8572 = vunpack.c.l.b16 %v7990
    %v8573 = vunpack.c.h.b16 %v7990
    %v8574 = vunpack.c.l.b16 %v7991
    %v8575 = vunpack.c.h.b16 %v7991
    %v8576 = vunpack.c.l.b16 %v7992
    %v8577 = vunpack.c.h.b16 %v7992
    %v8578 = vunpack.c.l.b16 %v7993
    %v8579 = vunpack.c.h.b16 %v7993
    %v8580 = vunpack.c.l.b16 %v7994
    %v8581 = vunpack.c.h.b16 %v7994
    %v8582 = vunpack.c.l.b16 %v7995
    %v8583 = vunpack.c.h.b16 %v7995
    %v8584 = vpack.c.b16 %v8202, %v8200
    %v8585 = vpack.c.b16 %v8203, %v8201
    %v8586 = vpack.c.b16 %v8206, %v8204
    %v8587 = vpack.c.b16 %v8207, %v8205
    %v8588 = vpack.c.b16 %v8210, %v8208
    %v8589 = vpack.c.b16 %v8211, %v8209
    %v8590 = vpack.c.b16 %v8214, %v8212
    %v8591 = vpack.c.b16 %v8215, %v8213
    %v8592 = vpack.c.b16 %v8218, %v8216
    %v8593 = vpack.c.b16 %v8219, %v8217
    %v8594 = vpack.c.b16 %v8222, %v8220
    %v8595 = vpack.c.b16 %v8223, %v8221
    %v8596 = vpack.c.b16 %v8226, %v8224
    %v8597 = vpack.c.b16 %v8227, %v8225
    %v8598 = vpack.c.b16 %v8230, %v8228
    %v8599 = vpack.c.b16 %v8231, %v8229
    %v8600 = vpack.c.b16 %v8234, %v8232
    %v8601 = vpack.c.b16 %v8235, %v8233
    %v8602 = vpack.c.b16 %v8238, %v8236
    %v8603 = vpack.c.b16 %v8239, %v8237
    %v8604 = vpack.c.b16 %v8242, %v8240
    %v8605 = vpack.c.b16 %v8243, %v8241
    %v8606 = vpack.c.b16 %v8246, %v8244
    %v8607 = vpack.c.b16 %v8247, %v8245
    %v8608 = vpack.c.b16 %v8250, %v8248
    %v8609 = vpack.c.b16 %v8251, %v8249
    %v8610 = vpack.c.b16 %v8254, %v8252
    %v8611 = vpack.c.b16 %v8255, %v8253
    %v8612 = vpack.c.b16 %v8258, %v8256
    %v8613 = vpack.c.b16 %v8259, %v8257
    %v8614 = vpack.c.b16 %v8262, %v8260
    %v8615 = vpack.c.b16 %v8263, %v8261
    %v8616 = vpack.c.b16 %v8266, %v8264
    %v8617 = vpack.c.b16 %v8267, %v8265
    %v8618 = vpack.c.b16 %v8270, %v8268
    %v8619 = vpack.c.b16 %v8271, %v8269
    %v8620 = vpack.c.b16 %v8274, %v8272
    %v8621 = vpack.c.b16 %v8275, %v8273
    %v8622 = vpack.c.b16 %v8278, %v8276
    %v8623 = vpack.c.b16 %v8279, %v8277
    %v8624 = vpack.c.b16 %v8282, %v8280
    %v8625 = vpack.c.b16 %v8283, %v8281
    %v8626 = vpack.c.b16 %v8286, %v8284
    %v8627 = vpack.c.b16 %v8287, %v8285
    %v8628 = vpack.c.b16 %v8290, %v8288
    %v8629 = vpack.c.b16 %v8291, %v8289
    %v8630 = vpack.c.b16 %v8294, %v8292
    %v8631 = vpack.c.b16 %v8295, %v8293
    %v8632 = vpack.c.b16 %v8298, %v8296
    %v8633 = vpack.c.b16 %v8299, %v8297
    %v8634 = vpack.c.b16 %v8302, %v8300
    %v8635 = vpack.c.b16 %v8303, %v8301
    %v8636 = vpack.c.b16 %v8306, %v8304
    %v8637 = vpack.c.b16 %v8307, %v8305
    %v8638 = vpack.c.b16 %v8310, %v8308
    %v8639 = vpack.c.b16 %v8311, %v8309
    %v8640 = vpack.c.b16 %v8314, %v8312
    %v8641 = vpack.c.b16 %v8315, %v8313
    %v8642 = vpack.c.b16 %v8318, %v8316
    %v8643 = vpack.c.b16 %v8319, %v8317
    %v8644 = vpack.c.b16 %v8322, %v8320
    %v8645 = vpack.c.b16 %v8323, %v8321
    %v8646 = vpack.c.b16 %v8326, %v8324
    %v8647 = vpack.c.b16 %v8327, %v8325
    %v8648 = vpack.c.b16 %v8330, %v8328
    %v8649 = vpack.c.b16 %v8331, %v8329
    %v8650 = vpack.c.b16 %v8334, %v8332
    %v8651 = vpack.c.b16 %v8335, %v8333
    %v8652 = vpack.c.b16 %v8338, %v8336
    %v8653 = vpack.c.b16 %v8339, %v8337
    %v8654 = vpack.c.b16 %v8342, %v8340
    %v8655 = vpack.c.b16 %v8343, %v8341
    %v8656 = vpack.c.b16 %v8346, %v8344
    %v8657 = vpack.c.b16 %v8347, %v8345
    %v8658 = vpack.c.b16 %v8350, %v8348
    %v8659 = vpack.c.b16 %v8351, %v8349
    %v8660 = vpack.c.b16 %v8354, %v8352
    %v8661 = vpack.c.b16 %v8355, %v8353
    %v8662 = vpack.c.b16 %v8358, %v8356
    %v8663 = vpack.c.b16 %v8359, %v8357
    %v8664 = vpack.c.b16 %v8362, %v8360
    %v8665 = vpack.c.b16 %v8363, %v8361
    %v8666 = vpack.c.b16 %v8366, %v8364
    %v8667 = vpack.c.b16 %v8367, %v8365
    %v8668 = vpack.c.b16 %v8370, %v8368
    %v8669 = vpack.c.b16 %v8371, %v8369
    %v8670 = vpack.c.b16 %v8374, %v8372
    %v8671 = vpack.c.b16 %v8375, %v8373
    %v8672 = vpack.c.b16 %v8378, %v8376
    %v8673 = vpack.c.b16 %v8379, %v8377
    %v8674 = vpack.c.b16 %v8382, %v8380
    %v8675 = vpack.c.b16 %v8383, %v8381
    %v8676 = vpack.c.b16 %v8386, %v8384
    %v8677 = vpack.c.b16 %v8387, %v8385
    %v8678 = vpack.c.b16 %v8390, %v8388
    %v8679 = vpack.c.b16 %v8391, %v8389
    %v8680 = vpack.c.b16 %v8394, %v8392
    %v8681 = vpack.c.b16 %v8395, %v8393
    %v8682 = vpack.c.b16 %v8398, %v8396
    %v8683 = vpack.c.b16 %v8399, %v8397
    %v8684 = vpack.c.b16 %v8402, %v8400
    %v8685 = vpack.c.b16 %v8403, %v8401
    %v8686 = vpack.c.b16 %v8406, %v8404
    %v8687 = vpack.c.b16 %v8407, %v8405
    %v8688 = vpack.c.b16 %v8410, %v8408
    %v8689 = vpack.c.b16 %v8411, %v8409
    %v8690 = vpack.c.b16 %v8414, %v8412
    %v8691 = vpack.c.b16 %v8415, %v8413
    %v8692 = vpack.c.b16 %v8418, %v8416
    %v8693 = vpack.c.b16 %v8419, %v8417
    %v8694 = vpack.c.b16 %v8422, %v8420
    %v8695 = vpack.c.b16 %v8423, %v8421
    %v8696 = vpack.c.b16 %v8426, %v8424
    %v8697 = vpack.c.b16 %v8427, %v8425
    %v8698 = vpack.c.b16 %v8430, %v8428
    %v8699 = vpack.c.b16 %v8431, %v8429
    %v8700 = vpack.c.b16 %v8434, %v8432
    %v8701 = vpack.c.b16 %v8435, %v8433
    %v8702 = vpack.c.b16 %v8438, %v8436
    %v8703 = vpack.c.b16 %v8439, %v8437
    %v8704 = vpack.c.b16 %v8442, %v8440
    %v8705 = vpack.c.b16 %v8443, %v8441
    %v8706 = vpack.c.b16 %v8446, %v8444
    %v8707 = vpack.c.b16 %v8447, %v8445
    %v8708 = vpack.c.b16 %v8450, %v8448
    %v8709 = vpack.c.b16 %v8451, %v8449
    %v8710 = vpack.c.b16 %v8454, %v8452
    %v8711 = vpack.c.b16 %v8455, %v8453
    %v8712 = vpack.c.b16 %v8458, %v8456
    %v8713 = vpack.c.b16 %v8459, %v8457
    %v8714 = vpack.c.b16 %v8462, %v8460
    %v8715 = vpack.c.b16 %v8463, %v8461
    %v8716 = vpack.c.b16 %v8466, %v8464
    %v8717 = vpack.c.b16 %v8467, %v8465
    %v8718 = vpack.c.b16 %v8470, %v8468
    %v8719 = vpack.c.b16 %v8471, %v8469
    %v8720 = vpack.c.b16 %v8474, %v8472
    %v8721 = vpack.c.b16 %v8475, %v8473
    %v8722 = vpack.c.b16 %v8478, %v8476
    %v8723 = vpack.c.b16 %v8479, %v8477
    %v8724 = vpack.c.b16 %v8482, %v8480
    %v8725 = vpack.c.b16 %v8483, %v8481
    %v8726 = vpack.c.b16 %v8486, %v8484
    %v8727 = vpack.c.b16 %v8487, %v8485
    %v8728 = vpack.c.b16 %v8490, %v8488
    %v8729 = vpack.c.b16 %v8491, %v8489
    %v8730 = vpack.c.b16 %v8494, %v8492
    %v8731 = vpack.c.b16 %v8495, %v8493
    %v8732 = vpack.c.b16 %v8498, %v8496
    %v8733 = vpack.c.b16 %v8499, %v8497
    %v8734 = vpack.c.b16 %v8502, %v8500
    %v8735 = vpack.c.b16 %v8503, %v8501
    %v8736 = vpack.c.b16 %v8506, %v8504
    %v8737 = vpack.c.b16 %v8507, %v8505
    %v8738 = vpack.c.b16 %v8510, %v8508
    %v8739 = vpack.c.b16 %v8511, %v8509
    %v8740 = vpack.c.b16 %v8514, %v8512
    %v8741 = vpack.c.b16 %v8515, %v8513
    %v8742 = vpack.c.b16 %v8518, %v8516
    %v8743 = vpack.c.b16 %v8519, %v8517
    %v8744 = vpack.c.b16 %v8522, %v8520
    %v8745 = vpack.c.b16 %v8523, %v8521
    %v8746 = vpack.c.b16 %v8526, %v8524
    %v8747 = vpack.c.b16 %v8527, %v8525
    %v8748 = vpack.c.b16 %v8530, %v8528
    %v8749 = vpack.c.b16 %v8531, %v8529
    %v8750 = vpack.c.b16 %v8534, %v8532
    %v8751 = vpack.c.b16 %v8535, %v8533
    %v8752 = vpack.c.b16 %v8538, %v8536
    %v8753 = vpack.c.b16 %v8539, %v8537
    %v8754 = vpack.c.b16 %v8542, %v8540
    %v8755 = vpack.c.b16 %v8543, %v8541
    %v8756 = vpack.c.b16 %v8546, %v8544
    %v8757 = vpack.c.b16 %v8547, %v8545
    %v8758 = vpack.c.b16 %v8550, %v8548
    %v8759 = vpack.c.b16 %v8551, %v8549
    %v8760 = vpack.c.b16 %v8554, %v8552
    %v8761 = vpack.c.b16 %v8555, %v8553
    %v8762 = vpack.c.b16 %v8558, %v8556
    %v8763 = vpack.c.b16 %v8559, %v8557
    %v8764 = vpack.c.b16 %v8562, %v8560
    %v8765 = vpack.c.b16 %v8563, %v8561
    %v8766 = vpack.c.b16 %v8566, %v8564
    %v8767 = vpack.c.b16 %v8567, %v8565
    %v8768 = vpack.c.b16 %v8570, %v8568
    %v8769 = vpack.c.b16 %v8571, %v8569
    %v8770 = vpack.c.b16 %v8574, %v8572
    %v8771 = vpack.c.b16 %v8575, %v8573
    %v8772 = vpack.c.b16 %v8578, %v8576
    %v8773 = vpack.c.b16 %v8579, %v8577
    %v8774 = vpack.c.b16 %v8582, %v8580
    %v8775 = vpack.c.b16 %v8583, %v8581
    %8968 = vmatprep.subr.bf16.mxu0 %v8585
    %8969 = vmatpush1.bf16.msra.mxu0 %v8584
    %8970 = vmatprep.subr.bf16.mxu0 %v8587
    %8971 = vmatpush1.bf16.msra.mxu0 %v8586
    %8972 = vmatprep.subr.bf16.mxu0 %v8589
    %8973 = vmatpush1.bf16.msra.mxu0 %v8588
    %8974 = vmatprep.subr.bf16.mxu0 %v8591
    %8975 = vmatpush1.bf16.msra.mxu0 %v8590
    %8976 = vmatprep.subr.bf16.mxu0 %v8593
    %8977 = vmatpush1.bf16.msra.mxu0 %v8592
    %8978 = vmatprep.subr.bf16.mxu0 %v8595
    %8979 = vmatpush1.bf16.msra.mxu0 %v8594
    %8980 = vmatprep.subr.bf16.mxu0 %v8597
    %8981 = vmatpush1.bf16.msra.mxu0 %v8596
    %8982 = vmatprep.subr.bf16.mxu0 %v8599
    %8983 = vmatpush1.bf16.msra.mxu0 %v8598
    %8984 = vmatprep.subr.bf16.mxu0 %v8601
    %8985 = vmatpush1.bf16.msra.mxu0 %v8600
    %8986 = vmatprep.subr.bf16.mxu0 %v8603
    %8987 = vmatpush1.bf16.msra.mxu0 %v8602
    %8988 = vmatprep.subr.bf16.mxu0 %v8605
    %8989 = vmatpush1.bf16.msra.mxu0 %v8604
    %8990 = vmatprep.subr.bf16.mxu0 %v8607
    %8991 = vmatpush1.bf16.msra.mxu0 %v8606
    %8992 = vmatprep.subr.bf16.mxu0 %v8609
    %8993 = vmatpush1.bf16.msra.mxu0 %v8608
    %8994 = vmatprep.subr.bf16.mxu0 %v8611
    %8995 = vmatpush1.bf16.msra.mxu0 %v8610
    %8996 = vmatprep.subr.bf16.mxu0 %v8613
    %8997 = vmatpush1.bf16.msra.mxu0 %v8612
    %8998 = vmatprep.subr.bf16.mxu0 %v8615
    %8999 = vmatpush1.bf16.msra.mxu0 %v8614
    %9000 = vmatprep.mubr.bf16.mxu0 %v7793
    %9001 = vmatmul.mubr.bf16.gmra.mrb[0].mxu0 %v7792
    %v9002 = vpop.f32.mrb[0].mxu0
    %v9003 = vadd.f32 %v8001, %v9002
    %v9004 = vpop.f32.mrb[0].mxu0
    %v9005 = vadd.f32 %v8005, %v9004
    %v9006 = vpop.f32.mrb[0].mxu0
    %v9007 = vpop.f32.mrb[0].mxu0
    %9008 = vdwg.mxu0
    %9009 = vmatprep.subr.bf16.mxu0 %v8617
    %9010 = vmatpush1.bf16.msra.mxu0 %v8616
    %9011 = vmatprep.subr.bf16.mxu0 %v8619
    %9012 = vmatpush1.bf16.msra.mxu0 %v8618
    %9013 = vmatprep.subr.bf16.mxu0 %v8621
    %9014 = vmatpush1.bf16.msra.mxu0 %v8620
    %9015 = vmatprep.subr.bf16.mxu0 %v8623
    %9016 = vmatpush1.bf16.msra.mxu0 %v8622
    %9017 = vmatprep.subr.bf16.mxu0 %v8625
    %9018 = vmatpush1.bf16.msra.mxu0 %v8624
    %9019 = vmatprep.subr.bf16.mxu0 %v8627
    %9020 = vmatpush1.bf16.msra.mxu0 %v8626
    %9021 = vmatprep.subr.bf16.mxu0 %v8629
    %9022 = vmatpush1.bf16.msra.mxu0 %v8628
    %9023 = vmatprep.subr.bf16.mxu0 %v8631
    %9024 = vmatpush1.bf16.msra.mxu0 %v8630
    %9025 = vmatprep.subr.bf16.mxu0 %v8633
    %9026 = vmatpush1.bf16.msra.mxu0 %v8632
    %9027 = vmatprep.subr.bf16.mxu0 %v8635
    %9028 = vmatpush1.bf16.msra.mxu0 %v8634
    %9029 = vmatprep.subr.bf16.mxu0 %v8637
    %9030 = vmatpush1.bf16.msra.mxu0 %v8636
    %9031 = vmatprep.subr.bf16.mxu0 %v8639
    %9032 = vmatpush1.bf16.msra.mxu0 %v8638
    %9033 = vmatprep.subr.bf16.mxu0 %v8641
    %9034 = vmatpush1.bf16.msra.mxu0 %v8640
    %9035 = vmatprep.subr.bf16.mxu0 %v8643
    %9036 = vmatpush1.bf16.msra.mxu0 %v8642
    %9037 = vmatprep.subr.bf16.mxu0 %v8645
    %9038 = vmatpush1.bf16.msra.mxu0 %v8644
    %9039 = vmatprep.subr.bf16.mxu0 %v8647
    %9040 = vmatpush1.bf16.msra.mxu0 %v8646
    %9041 = vmatprep.mubr.bf16.mxu0 %v7795
    %9042 = vmatmul.mubr.bf16.gmra.mrb[0].mxu0 %v7794
    %v9043 = vpop.f32.mrb[0].mxu0
    %v9044 = vadd.f32 %v9003, %v9043
    %v9045 = vpop.f32.mrb[0].mxu0
    %v9046 = vadd.f32 %v9005, %v9045
    %v9047 = vpop.f32.mrb[0].mxu0
    %v9048 = vpop.f32.mrb[0].mxu0
    %9049 = vdwg.mxu0
    %9050 = vmatprep.subr.bf16.mxu0 %v8649
    %9051 = vmatpush1.bf16.msra.mxu0 %v8648
    %9052 = vmatprep.subr.bf16.mxu0 %v8651
    %9053 = vmatpush1.bf16.msra.mxu0 %v8650
    %9054 = vmatprep.subr.bf16.mxu0 %v8653
    %9055 = vmatpush1.bf16.msra.mxu0 %v8652
    %9056 = vmatprep.subr.bf16.mxu0 %v8655
    %9057 = vmatpush1.bf16.msra.mxu0 %v8654
    %9058 = vmatprep.subr.bf16.mxu0 %v8657
    %9059 = vmatpush1.bf16.msra.mxu0 %v8656
    %9060 = vmatprep.subr.bf16.mxu0 %v8659
    %9061 = vmatpush1.bf16.msra.mxu0 %v8658
    %9062 = vmatprep.subr.bf16.mxu0 %v8661
    %9063 = vmatpush1.bf16.msra.mxu0 %v8660
    %9064 = vmatprep.subr.bf16.mxu0 %v8663
    %9065 = vmatpush1.bf16.msra.mxu0 %v8662
    %9066 = vmatprep.subr.bf16.mxu0 %v8665
    %9067 = vmatpush1.bf16.msra.mxu0 %v8664
    %9068 = vmatprep.subr.bf16.mxu0 %v8667
    %9069 = vmatpush1.bf16.msra.mxu0 %v8666
    %9070 = vmatprep.subr.bf16.mxu0 %v8669
    %9071 = vmatpush1.bf16.msra.mxu0 %v8668
    %9072 = vmatprep.subr.bf16.mxu0 %v8671
    %9073 = vmatpush1.bf16.msra.mxu0 %v8670
    %9074 = vmatprep.subr.bf16.mxu0 %v8673
    %9075 = vmatpush1.bf16.msra.mxu0 %v8672
    %9076 = vmatprep.subr.bf16.mxu0 %v8675
    %9077 = vmatpush1.bf16.msra.mxu0 %v8674
    %9078 = vmatprep.subr.bf16.mxu0 %v8677
    %9079 = vmatpush1.bf16.msra.mxu0 %v8676
    %9080 = vmatprep.subr.bf16.mxu0 %v8679
    %9081 = vmatpush1.bf16.msra.mxu0 %v8678
    %9082 = vmatprep.mubr.bf16.mxu0 %v7797
    %9083 = vmatmul.mubr.bf16.gmra.mrb[0].mxu0 %v7796
    %v9084 = vpop.f32.mrb[0].mxu0
    %v9085 = vadd.f32 %v9044, %v9084
    %v9086 = vpop.f32.mrb[0].mxu0
    %v9087 = vadd.f32 %v9046, %v9086
    %v9088 = vpop.f32.mrb[0].mxu0
    %v9089 = vpop.f32.mrb[0].mxu0
    %9090 = vdwg.mxu0
    %9091 = vmatprep.subr.bf16.mxu0 %v8681
    %9092 = vmatpush1.bf16.msra.mxu0 %v8680
    %9093 = vmatprep.subr.bf16.mxu0 %v8683
    %9094 = vmatpush1.bf16.msra.mxu0 %v8682
    %9095 = vmatprep.subr.bf16.mxu0 %v8685
    %9096 = vmatpush1.bf16.msra.mxu0 %v8684
    %9097 = vmatprep.subr.bf16.mxu0 %v8687
    %9098 = vmatpush1.bf16.msra.mxu0 %v8686
    %9099 = vmatprep.subr.bf16.mxu0 %v8689
    %9100 = vmatpush1.bf16.msra.mxu0 %v8688
    %9101 = vmatprep.subr.bf16.mxu0 %v8691
    %9102 = vmatpush1.bf16.msra.mxu0 %v8690
    %9103 = vmatprep.subr.bf16.mxu0 %v8693
    %9104 = vmatpush1.bf16.msra.mxu0 %v8692
    %9105 = vmatprep.subr.bf16.mxu0 %v8695
    %9106 = vmatpush1.bf16.msra.mxu0 %v8694
    %9107 = vmatprep.subr.bf16.mxu0 %v8697
    %9108 = vmatpush1.bf16.msra.mxu0 %v8696
    %9109 = vmatprep.subr.bf16.mxu0 %v8699
    %9110 = vmatpush1.bf16.msra.mxu0 %v8698
    %9111 = vmatprep.subr.bf16.mxu0 %v8701
    %9112 = vmatpush1.bf16.msra.mxu0 %v8700
    %9113 = vmatprep.subr.bf16.mxu0 %v8703
    %9114 = vmatpush1.bf16.msra.mxu0 %v8702
    %9115 = vmatprep.subr.bf16.mxu0 %v8705
    %9116 = vmatpush1.bf16.msra.mxu0 %v8704
    %9117 = vmatprep.subr.bf16.mxu0 %v8707
    %9118 = vmatpush1.bf16.msra.mxu0 %v8706
    %9119 = vmatprep.subr.bf16.mxu0 %v8709
    %9120 = vmatpush1.bf16.msra.mxu0 %v8708
    %9121 = vmatprep.subr.bf16.mxu0 %v8711
    %9122 = vmatpush1.bf16.msra.mxu0 %v8710
    %9123 = vmatprep.mubr.bf16.mxu0 %v7799
    %9124 = vmatmul.mubr.bf16.gmra.mrb[0].mxu0 %v7798
    %v9125 = vpop.f32.mrb[0].mxu0
    %v9126 = vadd.f32 %v9085, %v9125
    %v9127 = vpop.f32.mrb[0].mxu0
    %v9128 = vadd.f32 %v9087, %v9127
    %v9129 = vpop.f32.mrb[0].mxu0
    %v9130 = vpop.f32.mrb[0].mxu0
    %9131 = vdwg.mxu0
    %9132 = vmatprep.subr.bf16.mxu0 %v8713
    %9133 = vmatpush1.bf16.msra.mxu0 %v8712
    %9134 = vmatprep.subr.bf16.mxu0 %v8715
    %9135 = vmatpush1.bf16.msra.mxu0 %v8714
    %9136 = vmatprep.subr.bf16.mxu0 %v8717
    %9137 = vmatpush1.bf16.msra.mxu0 %v8716
    %9138 = vmatprep.subr.bf16.mxu0 %v8719
    %9139 = vmatpush1.bf16.msra.mxu0 %v8718
    %9140 = vmatprep.subr.bf16.mxu0 %v8721
    %9141 = vmatpush1.bf16.msra.mxu0 %v8720
    %9142 = vmatprep.subr.bf16.mxu0 %v8723
    %9143 = vmatpush1.bf16.msra.mxu0 %v8722
    %9144 = vmatprep.subr.bf16.mxu0 %v8725
    %9145 = vmatpush1.bf16.msra.mxu0 %v8724
    %9146 = vmatprep.subr.bf16.mxu0 %v8727
    %9147 = vmatpush1.bf16.msra.mxu0 %v8726
    %9148 = vmatprep.subr.bf16.mxu0 %v8729
    %9149 = vmatpush1.bf16.msra.mxu0 %v8728
    %9150 = vmatprep.subr.bf16.mxu0 %v8731
    %9151 = vmatpush1.bf16.msra.mxu0 %v8730
    %9152 = vmatprep.subr.bf16.mxu0 %v8733
    %9153 = vmatpush1.bf16.msra.mxu0 %v8732
    %9154 = vmatprep.subr.bf16.mxu0 %v8735
    %9155 = vmatpush1.bf16.msra.mxu0 %v8734
    %9156 = vmatprep.subr.bf16.mxu0 %v8737
    %9157 = vmatpush1.bf16.msra.mxu0 %v8736
    %9158 = vmatprep.subr.bf16.mxu0 %v8739
    %9159 = vmatpush1.bf16.msra.mxu0 %v8738
    %9160 = vmatprep.subr.bf16.mxu0 %v8741
    %9161 = vmatpush1.bf16.msra.mxu0 %v8740
    %9162 = vmatprep.subr.bf16.mxu0 %v8743
    %9163 = vmatpush1.bf16.msra.mxu0 %v8742
    %9164 = vmatprep.mubr.bf16.mxu0 %v7801
    %9165 = vmatmul.mubr.bf16.gmra.mrb[0].mxu0 %v7800
    %v9166 = vpop.f32.mrb[0].mxu0
    %v9167 = vadd.f32 %v9126, %v9166
    %v9168 = vpop.f32.mrb[0].mxu0
    %v9169 = vadd.f32 %v9128, %v9168
    %v9170 = vpop.f32.mrb[0].mxu0
    %v9171 = vpop.f32.mrb[0].mxu0
    %9172 = vdwg.mxu0
    %9173 = vmatprep.subr.bf16.mxu0 %v8745
    %9174 = vmatpush1.bf16.msra.mxu0 %v8744
    %9175 = vmatprep.subr.bf16.mxu0 %v8747
    %9176 = vmatpush1.bf16.msra.mxu0 %v8746
    %9177 = vmatprep.subr.bf16.mxu0 %v8749
    %9178 = vmatpush1.bf16.msra.mxu0 %v8748
    %9179 = vmatprep.subr.bf16.mxu0 %v8751
    %9180 = vmatpush1.bf16.msra.mxu0 %v8750
    %9181 = vmatprep.subr.bf16.mxu0 %v8753
    %9182 = vmatpush1.bf16.msra.mxu0 %v8752
    %9183 = vmatprep.subr.bf16.mxu0 %v8755
    %9184 = vmatpush1.bf16.msra.mxu0 %v8754
    %9185 = vmatprep.subr.bf16.mxu0 %v8757
    %9186 = vmatpush1.bf16.msra.mxu0 %v8756
    %9187 = vmatprep.subr.bf16.mxu0 %v8759
    %9188 = vmatpush1.bf16.msra.mxu0 %v8758
    %9189 = vmatprep.subr.bf16.mxu0 %v8761
    %9190 = vmatpush1.bf16.msra.mxu0 %v8760
    %9191 = vmatprep.subr.bf16.mxu0 %v8763
    %9192 = vmatpush1.bf16.msra.mxu0 %v8762
    %9193 = vmatprep.subr.bf16.mxu0 %v8765
    %9194 = vmatpush1.bf16.msra.mxu0 %v8764
    %9195 = vmatprep.subr.bf16.mxu0 %v8767
    %9196 = vmatpush1.bf16.msra.mxu0 %v8766
    %9197 = vmatprep.subr.bf16.mxu0 %v8769
    %9198 = vmatpush1.bf16.msra.mxu0 %v8768
    %9199 = vmatprep.subr.bf16.mxu0 %v8771
    %9200 = vmatpush1.bf16.msra.mxu0 %v8770
    %9201 = vmatprep.subr.bf16.mxu0 %v8773
    %9202 = vmatpush1.bf16.msra.mxu0 %v8772
    %9203 = vmatprep.subr.bf16.mxu0 %v8775
    %9204 = vmatpush1.bf16.msra.mxu0 %v8774
    %9205 = vmatprep.mubr.bf16.mxu0 %v7803
    %9206 = vmatmul.mubr.bf16.gmra.mrb[0].mxu0 %v7802
    %v9207 = vpop.f32.mrb[0].mxu0
    %v9208 = vadd.f32 %v9167, %v9207
    %v9209 = vpop.f32.mrb[0].mxu0
    %v9210 = vadd.f32 %v9169, %v9209
    %v9211 = vpop.f32.mrb[0].mxu0
    %v9212 = vpop.f32.mrb[0].mxu0
    %9213 = vdwg.mxu0
    %v9214 = vmax.f32 %v9208, 0.0
    %v9215 = vmax.f32 %v9210, 0.0
    %v9216 = vpack.c.bf16 %v9214, %v9214
    %v9217 = vpack.c.bf16 %v9215, %v9215
    %v9220 = vcombine.low %v9216, %v9217
    %v9222 = vunpack.c.l.s4 1983009808
    %v9223 = vunpack.c.0.s8 %v9222
    %v9224 = vlaneseq
    %v9225 = vshrl.u32 %v9224, 7
    %v9226 = vsub.s32 %v9223, %v9225
    %v9227 = vrot.slane %v9220, %v9226
    %9229 = vst [vmem:[#allocation6] sm:$0xf] %v9227
    %9230 = vst [vmem:[#allocation2] sm:$0x1] 0
    %9231 = vst [vmem:[#allocation2 + $0x8] sm:$0x1] 0
    %v9232 = vld [vmem:[#allocation6] sm:$0x5]
    %v9235 = vunpack.c.l.s4 1983009808
    %v9236 = vunpack.c.0.s8 %v9235
    %v9237 = vlaneseq
    %v9238 = vshrl.u32 %v9237, 7
    %v9239 = vsub.s32 %v9236, %v9238
    %v9240 = vrot.slane %v9232, %v9239
    %v9241 = vcombine.high %v9240, %v9240
    %9244 = vst [vmem:[#allocation2 + $0x10] sm:$0x1] %v9240
    %9245 = vst [vmem:[#allocation2 + $0x18] sm:$0x1] %v9241
    %v9246 = vld [vmem:[#allocation6] sm:$0xa]
    %v9249 = vunpack.c.l.s4 1983009808
    %v9250 = vunpack.c.0.s8 %v9249
    %v9251 = vlaneseq
    %v9252 = vshrl.u32 %v9251, 7
    %v9253 = vsub.s32 %v9250, %v9252
    %v9254 = vrot.slane %v9246, %v9253
    %v9255 = vcombine.high %v9254, %v9254
    %v9256 = vrot.slane %v9254, 1
    %v9257 = vrot.slane %v9255, 1
    %9260 = vst [vmem:[#allocation2 + $0x20] sm:$0x1] %v9256
    %9261 = vst [vmem:[#allocation2 + $0x28] sm:$0x1] %v9257
    %v9262 = vld [vmem:[#allocation2] sm:$0x1]
    %v9263 = vld [vmem:[#allocation2 + $0x8] sm:$0x1]
    %v9264 = vld [vmem:[#allocation2 + $0x10] sm:$0x1]
    %v9265 = vld [vmem:[#allocation2 + $0x18] sm:$0x1]
    %v9266 = vld [vmem:[#allocation2 + $0x20] sm:$0x1]
    %v9267 = vld [vmem:[#allocation2 + $0x28] sm:$0x1]
    %v9268 = vld [vmem:[#allocation13] sm:$0xf]
    %v9269 = vld [vmem:[#allocation13 + $0x4] sm:$0xf]
    %v9270 = vld [vmem:[#allocation13 + $0x8] sm:$0xf]
    %v9271 = vld [vmem:[#allocation13 + $0xc] sm:$0xf]
    %v9272 = vld [vmem:[#allocation13 + $0x10] sm:$0xf]
    %v9273 = vld [vmem:[#allocation13 + $0x14] sm:$0xf]
    %v9274 = vld [vmem:[#allocation13 + $0x18] sm:$0xf]
    %v9275 = vld [vmem:[#allocation13 + $0x1c] sm:$0xf]
    %v9276 = vld [vmem:[#allocation13 + $0x20] sm:$0xf]
    %v9277 = vld [vmem:[#allocation13 + $0x24] sm:$0xf]
    %v9278 = vld [vmem:[#allocation13 + $0x28] sm:$0xf]
    %v9279 = vld [vmem:[#allocation13 + $0x2c] sm:$0xf]
    %v9280 = vld [vmem:[#allocation13 + $0x30] sm:$0xf]
    %v9281 = vld [vmem:[#allocation13 + $0x34] sm:$0xf]
    %v9282 = vld [vmem:[#allocation13 + $0x38] sm:$0xf]
    %v9283 = vld [vmem:[#allocation13 + $0x3c] sm:$0xf]
    %v9284 = vld [vmem:[#allocation13 + $0x40] sm:$0xf]
    %v9285 = vld [vmem:[#allocation13 + $0x44] sm:$0xf]
    %v9286 = vld [vmem:[#allocation13 + $0x48] sm:$0xf]
    %v9287 = vld [vmem:[#allocation13 + $0x4c] sm:$0xf]
    %v9288 = vld [vmem:[#allocation13 + $0x50] sm:$0xf]
    %v9289 = vld [vmem:[#allocation13 + $0x54] sm:$0xf]
    %v9290 = vld [vmem:[#allocation13 + $0x58] sm:$0xf]
    %v9291 = vld [vmem:[#allocation13 + $0x5c] sm:$0xf]
    %v9292 = vld [vmem:[#allocation13 + $0x60] sm:$0xf]
    %v9293 = vld [vmem:[#allocation13 + $0x64] sm:$0xf]
    %v9294 = vld [vmem:[#allocation13 + $0x68] sm:$0xf]
    %v9295 = vld [vmem:[#allocation13 + $0x6c] sm:$0xf]
    %v9296 = vld [vmem:[#allocation13 + $0x70] sm:$0xf]
    %v9297 = vld [vmem:[#allocation13 + $0x74] sm:$0xf]
    %v9298 = vld [vmem:[#allocation13 + $0x78] sm:$0xf]
    %v9299 = vld [vmem:[#allocation13 + $0x7c] sm:$0xf]
    %v9300 = vld [vmem:[#allocation13 + $0x80] sm:$0xf]
    %v9301 = vld [vmem:[#allocation13 + $0x84] sm:$0xf]
    %v9302 = vld [vmem:[#allocation13 + $0x88] sm:$0xf]
    %v9303 = vld [vmem:[#allocation13 + $0x8c] sm:$0xf]
    %v9304 = vld [vmem:[#allocation13 + $0x90] sm:$0xf]
    %v9305 = vld [vmem:[#allocation13 + $0x94] sm:$0xf]
    %v9306 = vld [vmem:[#allocation13 + $0x98] sm:$0xf]
    %v9307 = vld [vmem:[#allocation13 + $0x9c] sm:$0xf]
    %v9308 = vld [vmem:[#allocation13 + $0xa0] sm:$0xf]
    %v9309 = vld [vmem:[#allocation13 + $0xa4] sm:$0xf]
    %v9310 = vld [vmem:[#allocation13 + $0xa8] sm:$0xf]
    %v9311 = vld [vmem:[#allocation13 + $0xac] sm:$0xf]
    %v9312 = vld [vmem:[#allocation13 + $0xb0] sm:$0xf]
    %v9313 = vld [vmem:[#allocation13 + $0xb4] sm:$0xf]
    %v9314 = vld [vmem:[#allocation13 + $0xb8] sm:$0xf]
    %v9315 = vld [vmem:[#allocation13 + $0xbc] sm:$0xf]
    %v9316 = vld [vmem:[#allocation13 + $0xc0] sm:$0xf]
    %v9317 = vld [vmem:[#allocation13 + $0xc4] sm:$0xf]
    %v9318 = vld [vmem:[#allocation13 + $0xc8] sm:$0xf]
    %v9319 = vld [vmem:[#allocation13 + $0xcc] sm:$0xf]
    %v9320 = vld [vmem:[#allocation13 + $0xd0] sm:$0xf]
    %v9321 = vld [vmem:[#allocation13 + $0xd4] sm:$0xf]
    %v9322 = vld [vmem:[#allocation13 + $0xd8] sm:$0xf]
    %v9323 = vld [vmem:[#allocation13 + $0xdc] sm:$0xf]
    %v9324 = vld [vmem:[#allocation13 + $0xe0] sm:$0xf]
    %v9325 = vld [vmem:[#allocation13 + $0xe4] sm:$0xf]
    %v9326 = vld [vmem:[#allocation13 + $0xe8] sm:$0xf]
    %v9327 = vld [vmem:[#allocation13 + $0xec] sm:$0xf]
    %v9328 = vld [vmem:[#allocation13 + $0xf0] sm:$0xf]
    %v9329 = vld [vmem:[#allocation13 + $0xf4] sm:$0xf]
    %v9330 = vld [vmem:[#allocation13 + $0xf8] sm:$0xf]
    %v9331 = vld [vmem:[#allocation13 + $0xfc] sm:$0xf]
    %v9332 = vld [vmem:[#allocation13 + $0x100] sm:$0xf]
    %v9333 = vld [vmem:[#allocation13 + $0x104] sm:$0xf]
    %v9334 = vld [vmem:[#allocation13 + $0x108] sm:$0xf]
    %v9335 = vld [vmem:[#allocation13 + $0x10c] sm:$0xf]
    %v9336 = vld [vmem:[#allocation13 + $0x110] sm:$0xf]
    %v9337 = vld [vmem:[#allocation13 + $0x114] sm:$0xf]
    %v9338 = vld [vmem:[#allocation13 + $0x118] sm:$0xf]
    %v9339 = vld [vmem:[#allocation13 + $0x11c] sm:$0xf]
    %v9340 = vld [vmem:[#allocation13 + $0x120] sm:$0xf]
    %v9341 = vld [vmem:[#allocation13 + $0x124] sm:$0xf]
    %v9342 = vld [vmem:[#allocation13 + $0x128] sm:$0xf]
    %v9343 = vld [vmem:[#allocation13 + $0x12c] sm:$0xf]
    %v9344 = vld [vmem:[#allocation13 + $0x130] sm:$0xf]
    %v9345 = vld [vmem:[#allocation13 + $0x134] sm:$0xf]
    %v9346 = vld [vmem:[#allocation13 + $0x138] sm:$0xf]
    %v9347 = vld [vmem:[#allocation13 + $0x13c] sm:$0xf]
    %v9348 = vld [vmem:[#allocation13 + $0x140] sm:$0xf]
    %v9349 = vld [vmem:[#allocation13 + $0x144] sm:$0xf]
    %v9350 = vld [vmem:[#allocation13 + $0x148] sm:$0xf]
    %v9351 = vld [vmem:[#allocation13 + $0x14c] sm:$0xf]
    %v9352 = vld [vmem:[#allocation13 + $0x150] sm:$0xf]
    %v9353 = vld [vmem:[#allocation13 + $0x154] sm:$0xf]
    %v9354 = vld [vmem:[#allocation13 + $0x158] sm:$0xf]
    %v9355 = vld [vmem:[#allocation13 + $0x15c] sm:$0xf]
    %v9356 = vld [vmem:[#allocation13 + $0x160] sm:$0xf]
    %v9357 = vld [vmem:[#allocation13 + $0x164] sm:$0xf]
    %v9358 = vld [vmem:[#allocation13 + $0x168] sm:$0xf]
    %v9359 = vld [vmem:[#allocation13 + $0x16c] sm:$0xf]
    %v9360 = vld [vmem:[#allocation13 + $0x170] sm:$0xf]
    %v9361 = vld [vmem:[#allocation13 + $0x174] sm:$0xf]
    %v9362 = vld [vmem:[#allocation13 + $0x178] sm:$0xf]
    %v9363 = vld [vmem:[#allocation13 + $0x17c] sm:$0xf]
    %v9364 = vld [vmem:[#allocation21] sm:$0x1]
    %v9366 = vlaneseq
    %v9367 = vshrl.u32 %v9366, 7
    %v9368 = vsub.s32 0, %v9367
    %v9369 = vrot.slane %v9364, %v9368
    %v9467 = vunpack.c.l.b16 %v9268
    %v9468 = vunpack.c.l.b16 %v9269
    %v9469 = vunpack.c.l.b16 %v9270
    %v9470 = vunpack.c.l.b16 %v9271
    %v9471 = vunpack.c.l.b16 %v9272
    %v9472 = vunpack.c.l.b16 %v9273
    %v9473 = vunpack.c.l.b16 %v9274
    %v9474 = vunpack.c.l.b16 %v9275
    %v9475 = vunpack.c.l.b16 %v9276
    %v9476 = vunpack.c.l.b16 %v9277
    %v9477 = vunpack.c.l.b16 %v9278
    %v9478 = vunpack.c.l.b16 %v9279
    %v9479 = vunpack.c.l.b16 %v9280
    %v9480 = vunpack.c.l.b16 %v9281
    %v9481 = vunpack.c.l.b16 %v9282
    %v9482 = vunpack.c.l.b16 %v9283
    %v9483 = vunpack.c.l.b16 %v9284
    %v9484 = vunpack.c.l.b16 %v9285
    %v9485 = vunpack.c.l.b16 %v9286
    %v9486 = vunpack.c.l.b16 %v9287
    %v9487 = vunpack.c.l.b16 %v9288
    %v9488 = vunpack.c.l.b16 %v9289
    %v9489 = vunpack.c.l.b16 %v9290
    %v9490 = vunpack.c.l.b16 %v9291
    %v9491 = vunpack.c.l.b16 %v9292
    %v9492 = vunpack.c.l.b16 %v9293
    %v9493 = vunpack.c.l.b16 %v9294
    %v9494 = vunpack.c.l.b16 %v9295
    %v9495 = vunpack.c.l.b16 %v9296
    %v9496 = vunpack.c.l.b16 %v9297
    %v9497 = vunpack.c.l.b16 %v9298
    %v9498 = vunpack.c.l.b16 %v9299
    %v9499 = vunpack.c.l.b16 %v9300
    %v9500 = vunpack.c.l.b16 %v9301
    %v9501 = vunpack.c.l.b16 %v9302
    %v9502 = vunpack.c.l.b16 %v9303
    %v9503 = vunpack.c.l.b16 %v9304
    %v9504 = vunpack.c.l.b16 %v9305
    %v9505 = vunpack.c.l.b16 %v9306
    %v9506 = vunpack.c.l.b16 %v9307
    %v9507 = vunpack.c.l.b16 %v9308
    %v9508 = vunpack.c.l.b16 %v9309
    %v9509 = vunpack.c.l.b16 %v9310
    %v9510 = vunpack.c.l.b16 %v9311
    %v9511 = vunpack.c.l.b16 %v9312
    %v9512 = vunpack.c.l.b16 %v9313
    %v9513 = vunpack.c.l.b16 %v9314
    %v9514 = vunpack.c.l.b16 %v9315
    %v9515 = vunpack.c.l.b16 %v9316
    %v9516 = vunpack.c.l.b16 %v9317
    %v9517 = vunpack.c.l.b16 %v9318
    %v9518 = vunpack.c.l.b16 %v9319
    %v9519 = vunpack.c.l.b16 %v9320
    %v9520 = vunpack.c.l.b16 %v9321
    %v9521 = vunpack.c.l.b16 %v9322
    %v9522 = vunpack.c.l.b16 %v9323
    %v9523 = vunpack.c.l.b16 %v9324
    %v9524 = vunpack.c.l.b16 %v9325
    %v9525 = vunpack.c.l.b16 %v9326
    %v9526 = vunpack.c.l.b16 %v9327
    %v9527 = vunpack.c.l.b16 %v9328
    %v9528 = vunpack.c.l.b16 %v9329
    %v9529 = vunpack.c.l.b16 %v9330
    %v9530 = vunpack.c.l.b16 %v9331
    %v9531 = vunpack.c.l.b16 %v9332
    %v9532 = vunpack.c.l.b16 %v9333
    %v9533 = vunpack.c.l.b16 %v9334
    %v9534 = vunpack.c.l.b16 %v9335
    %v9535 = vunpack.c.l.b16 %v9336
    %v9536 = vunpack.c.l.b16 %v9337
    %v9537 = vunpack.c.l.b16 %v9338
    %v9538 = vunpack.c.l.b16 %v9339
    %v9539 = vunpack.c.l.b16 %v9340
    %v9540 = vunpack.c.l.b16 %v9341
    %v9541 = vunpack.c.l.b16 %v9342
    %v9542 = vunpack.c.l.b16 %v9343
    %v9543 = vunpack.c.l.b16 %v9344
    %v9544 = vunpack.c.l.b16 %v9345
    %v9545 = vunpack.c.l.b16 %v9346
    %v9546 = vunpack.c.l.b16 %v9347
    %v9547 = vunpack.c.l.b16 %v9348
    %v9548 = vunpack.c.l.b16 %v9349
    %v9549 = vunpack.c.l.b16 %v9350
    %v9550 = vunpack.c.l.b16 %v9351
    %v9551 = vunpack.c.l.b16 %v9352
    %v9552 = vunpack.c.l.b16 %v9353
    %v9553 = vunpack.c.l.b16 %v9354
    %v9554 = vunpack.c.l.b16 %v9355
    %v9555 = vunpack.c.l.b16 %v9356
    %v9556 = vunpack.c.l.b16 %v9357
    %v9557 = vunpack.c.l.b16 %v9358
    %v9558 = vunpack.c.l.b16 %v9359
    %v9559 = vunpack.c.l.b16 %v9360
    %v9560 = vunpack.c.l.b16 %v9361
    %v9561 = vunpack.c.l.b16 %v9362
    %v9562 = vunpack.c.l.b16 %v9363
    %v9563 = vpack.c.b16 %v9468, %v9467
    %v9564 = vpack.c.b16 %v9470, %v9469
    %v9565 = vpack.c.b16 %v9472, %v9471
    %v9566 = vpack.c.b16 %v9474, %v9473
    %v9567 = vpack.c.b16 %v9476, %v9475
    %v9568 = vpack.c.b16 %v9478, %v9477
    %v9569 = vpack.c.b16 %v9480, %v9479
    %v9570 = vpack.c.b16 %v9482, %v9481
    %v9571 = vpack.c.b16 %v9484, %v9483
    %v9572 = vpack.c.b16 %v9486, %v9485
    %v9573 = vpack.c.b16 %v9488, %v9487
    %v9574 = vpack.c.b16 %v9490, %v9489
    %v9575 = vpack.c.b16 %v9492, %v9491
    %v9576 = vpack.c.b16 %v9494, %v9493
    %v9577 = vpack.c.b16 %v9496, %v9495
    %v9578 = vpack.c.b16 %v9498, %v9497
    %v9579 = vpack.c.b16 %v9500, %v9499
    %v9580 = vpack.c.b16 %v9502, %v9501
    %v9581 = vpack.c.b16 %v9504, %v9503
    %v9582 = vpack.c.b16 %v9506, %v9505
    %v9583 = vpack.c.b16 %v9508, %v9507
    %v9584 = vpack.c.b16 %v9510, %v9509
    %v9585 = vpack.c.b16 %v9512, %v9511
    %v9586 = vpack.c.b16 %v9514, %v9513
    %v9587 = vpack.c.b16 %v9516, %v9515
    %v9588 = vpack.c.b16 %v9518, %v9517
    %v9589 = vpack.c.b16 %v9520, %v9519
    %v9590 = vpack.c.b16 %v9522, %v9521
    %v9591 = vpack.c.b16 %v9524, %v9523
    %v9592 = vpack.c.b16 %v9526, %v9525
    %v9593 = vpack.c.b16 %v9528, %v9527
    %v9594 = vpack.c.b16 %v9530, %v9529
    %v9595 = vpack.c.b16 %v9532, %v9531
    %v9596 = vpack.c.b16 %v9534, %v9533
    %v9597 = vpack.c.b16 %v9536, %v9535
    %v9598 = vpack.c.b16 %v9538, %v9537
    %v9599 = vpack.c.b16 %v9540, %v9539
    %v9600 = vpack.c.b16 %v9542, %v9541
    %v9601 = vpack.c.b16 %v9544, %v9543
    %v9602 = vpack.c.b16 %v9546, %v9545
    %v9603 = vpack.c.b16 %v9548, %v9547
    %v9604 = vpack.c.b16 %v9550, %v9549
    %v9605 = vpack.c.b16 %v9552, %v9551
    %v9606 = vpack.c.b16 %v9554, %v9553
    %v9607 = vpack.c.b16 %v9556, %v9555
    %v9608 = vpack.c.b16 %v9558, %v9557
    %v9609 = vpack.c.b16 %v9560, %v9559
    %v9610 = vpack.c.b16 %v9562, %v9561
    %9659 = vmatprep.subr.bf16.mxu0 0
    %9660 = vmatpush1.bf16.msra.mxu0 %v9563
    %9661 = vmatprep.subr.bf16.mxu0 0
    %9662 = vmatpush1.bf16.msra.mxu0 %v9564
    %9663 = vmatprep.subr.bf16.mxu0 0
    %9664 = vmatpush1.bf16.msra.mxu0 %v9565
    %9665 = vmatprep.subr.bf16.mxu0 0
    %9666 = vmatpush1.bf16.msra.mxu0 %v9566
    %9667 = vmatprep.subr.bf16.mxu0 0
    %9668 = vmatpush1.bf16.msra.mxu0 %v9567
    %9669 = vmatprep.subr.bf16.mxu0 0
    %9670 = vmatpush1.bf16.msra.mxu0 %v9568
    %9671 = vmatprep.subr.bf16.mxu0 0
    %9672 = vmatpush1.bf16.msra.mxu0 %v9569
    %9673 = vmatprep.subr.bf16.mxu0 0
    %9674 = vmatpush1.bf16.msra.mxu0 %v9570
    %9675 = vmatprep.subr.bf16.mxu0 0
    %9676 = vmatpush1.bf16.msra.mxu0 %v9571
    %9677 = vmatprep.subr.bf16.mxu0 0
    %9678 = vmatpush1.bf16.msra.mxu0 %v9572
    %9679 = vmatprep.subr.bf16.mxu0 0
    %9680 = vmatpush1.bf16.msra.mxu0 %v9573
    %9681 = vmatprep.subr.bf16.mxu0 0
    %9682 = vmatpush1.bf16.msra.mxu0 %v9574
    %9683 = vmatprep.subr.bf16.mxu0 0
    %9684 = vmatpush1.bf16.msra.mxu0 %v9575
    %9685 = vmatprep.subr.bf16.mxu0 0
    %9686 = vmatpush1.bf16.msra.mxu0 %v9576
    %9687 = vmatprep.subr.bf16.mxu0 0
    %9688 = vmatpush1.bf16.msra.mxu0 %v9577
    %9689 = vmatprep.subr.bf16.mxu0 0
    %9690 = vmatpush1.bf16.msra.mxu0 %v9578
    %9691 = vmatprep.mubr.bf16.mxu0 %v9263
    %9692 = vmatmul.mubr.bf16.gmra.mrb[0].mxu0 %v9262
    %v9693 = vpop.f32.mrb[0].mxu0
    %v9694 = vadd.f32 %v9369, %v9693
    %v9695 = vpop.f32.mrb[0].mxu0
    %v9696 = vpop.f32.mrb[0].mxu0
    %v9697 = vpop.f32.mrb[0].mxu0
    %9698 = vdwg.mxu0
    %9699 = vmatprep.subr.bf16.mxu0 0
    %9700 = vmatpush1.bf16.msra.mxu0 %v9579
    %9701 = vmatprep.subr.bf16.mxu0 0
    %9702 = vmatpush1.bf16.msra.mxu0 %v9580
    %9703 = vmatprep.subr.bf16.mxu0 0
    %9704 = vmatpush1.bf16.msra.mxu0 %v9581
    %9705 = vmatprep.subr.bf16.mxu0 0
    %9706 = vmatpush1.bf16.msra.mxu0 %v9582
    %9707 = vmatprep.subr.bf16.mxu0 0
    %9708 = vmatpush1.bf16.msra.mxu0 %v9583
    %9709 = vmatprep.subr.bf16.mxu0 0
    %9710 = vmatpush1.bf16.msra.mxu0 %v9584
    %9711 = vmatprep.subr.bf16.mxu0 0
    %9712 = vmatpush1.bf16.msra.mxu0 %v9585
    %9713 = vmatprep.subr.bf16.mxu0 0
    %9714 = vmatpush1.bf16.msra.mxu0 %v9586
    %9715 = vmatprep.subr.bf16.mxu0 0
    %9716 = vmatpush1.bf16.msra.mxu0 %v9587
    %9717 = vmatprep.subr.bf16.mxu0 0
    %9718 = vmatpush1.bf16.msra.mxu0 %v9588
    %9719 = vmatprep.subr.bf16.mxu0 0
    %9720 = vmatpush1.bf16.msra.mxu0 %v9589
    %9721 = vmatprep.subr.bf16.mxu0 0
    %9722 = vmatpush1.bf16.msra.mxu0 %v9590
    %9723 = vmatprep.subr.bf16.mxu0 0
    %9724 = vmatpush1.bf16.msra.mxu0 %v9591
    %9725 = vmatprep.subr.bf16.mxu0 0
    %9726 = vmatpush1.bf16.msra.mxu0 %v9592
    %9727 = vmatprep.subr.bf16.mxu0 0
    %9728 = vmatpush1.bf16.msra.mxu0 %v9593
    %9729 = vmatprep.subr.bf16.mxu0 0
    %9730 = vmatpush1.bf16.msra.mxu0 %v9594
    %9731 = vmatprep.mubr.bf16.mxu0 %v9265
    %9732 = vmatmul.mubr.bf16.gmra.mrb[0].mxu0 %v9264
    %v9733 = vpop.f32.mrb[0].mxu0
    %v9734 = vadd.f32 %v9694, %v9733
    %v9735 = vpop.f32.mrb[0].mxu0
    %v9736 = vpop.f32.mrb[0].mxu0
    %v9737 = vpop.f32.mrb[0].mxu0
    %9738 = vdwg.mxu0
    %9739 = vmatprep.subr.bf16.mxu0 0
    %9740 = vmatpush1.bf16.msra.mxu0 %v9595
    %9741 = vmatprep.subr.bf16.mxu0 0
    %9742 = vmatpush1.bf16.msra.mxu0 %v9596
    %9743 = vmatprep.subr.bf16.mxu0 0
    %9744 = vmatpush1.bf16.msra.mxu0 %v9597
    %9745 = vmatprep.subr.bf16.mxu0 0
    %9746 = vmatpush1.bf16.msra.mxu0 %v9598
    %9747 = vmatprep.subr.bf16.mxu0 0
    %9748 = vmatpush1.bf16.msra.mxu0 %v9599
    %9749 = vmatprep.subr.bf16.mxu0 0
    %9750 = vmatpush1.bf16.msra.mxu0 %v9600
    %9751 = vmatprep.subr.bf16.mxu0 0
    %9752 = vmatpush1.bf16.msra.mxu0 %v9601
    %9753 = vmatprep.subr.bf16.mxu0 0
    %9754 = vmatpush1.bf16.msra.mxu0 %v9602
    %9755 = vmatprep.subr.bf16.mxu0 0
    %9756 = vmatpush1.bf16.msra.mxu0 %v9603
    %9757 = vmatprep.subr.bf16.mxu0 0
    %9758 = vmatpush1.bf16.msra.mxu0 %v9604
    %9759 = vmatprep.subr.bf16.mxu0 0
    %9760 = vmatpush1.bf16.msra.mxu0 %v9605
    %9761 = vmatprep.subr.bf16.mxu0 0
    %9762 = vmatpush1.bf16.msra.mxu0 %v9606
    %9763 = vmatprep.subr.bf16.mxu0 0
    %9764 = vmatpush1.bf16.msra.mxu0 %v9607
    %9765 = vmatprep.subr.bf16.mxu0 0
    %9766 = vmatpush1.bf16.msra.mxu0 %v9608
    %9767 = vmatprep.subr.bf16.mxu0 0
    %9768 = vmatpush1.bf16.msra.mxu0 %v9609
    %9769 = vmatprep.subr.bf16.mxu0 0
    %9770 = vmatpush1.bf16.msra.mxu0 %v9610
    %9771 = vmatprep.mubr.bf16.mxu0 %v9267
    %9772 = vmatmul.mubr.bf16.gmra.mrb[0].mxu0 %v9266
    %v9773 = vpop.f32.mrb[0].mxu0
    %v9774 = vadd.f32 %v9734, %v9773
    %v9775 = vpop.f32.mrb[0].mxu0
    %v9776 = vpop.f32.mrb[0].mxu0
    %v9777 = vpop.f32.mrb[0].mxu0
    %9778 = vdwg.mxu0
    %v9779 = vmax.f32 %v9774, 0.0
    %v9780 = vpack.c.bf16 %v9779, %v9779
    %9781 = vst [vmem:[#allocation7] sm:$0x1] %v9780
    %v9782 = vld [vmem:[#allocation7] sm:$0x1]
    %9783 = vst [vmem:[#allocation2] sm:$0x1] %v9782
    %v9784 = vld [vmem:[#allocation2] sm:$0x1]
    %v9785 = vld [vmem:[%s6] sm:$0xf]
    %v9786 = vld [vmem:[%s6 + $0x4] sm:$0xf]
    %v9787 = vld [vmem:[%s6 + $0x8] sm:$0xf]
    %v9788 = vld [vmem:[%s6 + $0xc] sm:$0xf]
    %v9789 = vld [vmem:[%s6 + $0x10] sm:$0xf]
    %v9790 = vld [vmem:[%s6 + $0x14] sm:$0xf]
    %v9791 = vld [vmem:[%s6 + $0x18] sm:$0xf]
    %v9792 = vld [vmem:[%s6 + $0x1c] sm:$0xf]
    %v9793 = vld [vmem:[%s6 + $0x20] sm:$0xf]
    %v9794 = vld [vmem:[%s6 + $0x24] sm:$0xf]
    %v9795 = vld [vmem:[%s6 + $0x28] sm:$0xf]
    %v9796 = vld [vmem:[%s6 + $0x2c] sm:$0xf]
    %v9797 = vld [vmem:[%s6 + $0x30] sm:$0xf]
    %v9798 = vld [vmem:[%s6 + $0x34] sm:$0xf]
    %v9799 = vld [vmem:[%s6 + $0x38] sm:$0xf]
    %v9800 = vld [vmem:[%s6 + $0x3c] sm:$0xf]
    %v9801 = vld [vmem:[#allocation22] sm:$0x1]
    %v9803 = vlaneseq
    %v9804 = vshrl.u32 %v9803, 7
    %v9805 = vsub.s32 0, %v9804
    %v9806 = vrot.slane %v9801, %v9805
    %v9824 = vunpack.c.l.b16 %v9785
    %v9825 = vunpack.c.l.b16 %v9786
    %v9826 = vunpack.c.l.b16 %v9787
    %v9827 = vunpack.c.l.b16 %v9788
    %v9828 = vunpack.c.l.b16 %v9789
    %v9829 = vunpack.c.l.b16 %v9790
    %v9830 = vunpack.c.l.b16 %v9791
    %v9831 = vunpack.c.l.b16 %v9792
    %v9832 = vunpack.c.l.b16 %v9793
    %v9833 = vunpack.c.l.b16 %v9794
    %v9834 = vunpack.c.l.b16 %v9795
    %v9835 = vunpack.c.l.b16 %v9796
    %v9836 = vunpack.c.l.b16 %v9797
    %v9837 = vunpack.c.l.b16 %v9798
    %v9838 = vunpack.c.l.b16 %v9799
    %v9839 = vunpack.c.l.b16 %v9800
    %v9840 = vpack.c.b16 %v9825, %v9824
    %v9841 = vpack.c.b16 %v9827, %v9826
    %v9842 = vpack.c.b16 %v9829, %v9828
    %v9843 = vpack.c.b16 %v9831, %v9830
    %v9844 = vpack.c.b16 %v9833, %v9832
    %v9845 = vpack.c.b16 %v9835, %v9834
    %v9846 = vpack.c.b16 %v9837, %v9836
    %v9847 = vpack.c.b16 %v9839, %v9838
    %9856 = vmatprep.subr.bf16.mxu0 0
    %9857 = vmatpush1.bf16.msra.mxu0 %v9840
    %9858 = vmatprep.subr.bf16.mxu0 0
    %9859 = vmatpush1.bf16.msra.mxu0 %v9841
    %9860 = vmatprep.subr.bf16.mxu0 0
    %9861 = vmatpush1.bf16.msra.mxu0 %v9842
    %9862 = vmatprep.subr.bf16.mxu0 0
    %9863 = vmatpush1.bf16.msra.mxu0 %v9843
    %9864 = vmatprep.subr.bf16.mxu0 0
    %9865 = vmatpush1.bf16.msra.mxu0 %v9844
    %9866 = vmatprep.subr.bf16.mxu0 0
    %9867 = vmatpush1.bf16.msra.mxu0 %v9845
    %9868 = vmatprep.subr.bf16.mxu0 0
    %9869 = vmatpush1.bf16.msra.mxu0 %v9846
    %9870 = vmatprep.subr.bf16.mxu0 0
    %9871 = vmatpush1.bf16.msra.mxu0 %v9847
    %9872 = vmatprep.subr.bf16.mxu0 0
    %9873 = vmatpush1.bf16.msra.mxu0 0
    %9874 = vmatprep.subr.bf16.mxu0 0
    %9875 = vmatpush1.bf16.msra.mxu0 0
    %9876 = vmatprep.subr.bf16.mxu0 0
    %9877 = vmatpush1.bf16.msra.mxu0 0
    %9878 = vmatprep.subr.bf16.mxu0 0
    %9879 = vmatpush1.bf16.msra.mxu0 0
    %9880 = vmatprep.subr.bf16.mxu0 0
    %9881 = vmatpush1.bf16.msra.mxu0 0
    %9882 = vmatprep.subr.bf16.mxu0 0
    %9883 = vmatpush1.bf16.msra.mxu0 0
    %9884 = vmatprep.subr.bf16.mxu0 0
    %9885 = vmatpush1.bf16.msra.mxu0 0
    %9886 = vmatprep.subr.bf16.mxu0 0
    %9887 = vmatpush1.bf16.msra.mxu0 0
    %9888 = vmatprep.mubr.bf16.mxu0 0
    %9889 = vmatmul.mubr.bf16.gmra.mrb[0].mxu0 %v9784
    %v9890 = vpop.f32.mrb[0].mxu0
    %v9891 = vadd.f32 %v9806, %v9890
    %v9892 = vpop.f32.mrb[0].mxu0
    %v9893 = vpop.f32.mrb[0].mxu0
    %v9894 = vpop.f32.mrb[0].mxu0
    %9895 = vdwg.mxu0
    %vm9896 = vcmask 254976
    %9897 = vst.msk [vmem:[%s13] sm:$0x3] %vm9896, %v9891
    // Predicated region
    $region94: #{fwd.1} parent=1 // pred_check
      _
    $region95: #{fwd.1} parent=1 // pred_check_branch
      %9899 = sbr.rel (0) target = $region97
    $region96: #{fwd.1} parent=1 // pred_region
      _
    $region97: #{fwd.1} parent=1 // pred_fallthru
      _
    // Predicated region
    $region98: #{fwd.1} parent=1 // pred_check
      _
    $region99: #{fwd.1} parent=1 // pred_check_branch
      %9901 = sbr.rel (0) target = $region101
    $region100: #{fwd.1} parent=1 // pred_region
      _
    $region101: #{fwd.1} parent=1 // pred_fallthru
      _
    %9902 = vsyncpa [#allocation9], 1
    %9903 = vsyncpa [#allocation11], 1
    %9904 = vsyncpa [#allocation14], 1
    %9905 = vsyncpa [#allocation17], 1
    %9906 = vsyncpa [#allocation20], 1
    %9907 = vsyncpa [#allocation23], 1

</llo_original>
